<compile_context>
chip_gen: v7x
topology: tpu7x:2x2x1
jax: 0.10.0
libtpu: 0.0.40
codegen_flags: <defaults>
</compile_context>

<pallas_src>
import functools
import math

import numpy as np

import jax
import jax.numpy as jnp
from jax import lax
from jax.experimental import pallas as pl
from jax.experimental.pallas import tpu as pltpu

ACT_LINEAR, ACT_RELU, ACT_LRELU, ACT_SIGMOID = 0, 1, 2, 3
COMPUTE_DTYPE = jnp.bfloat16            # MXU-native operand dtype (f32 accumulation)
DILATIONS = ((4, 2), (8, 4), (12, 6))   # nets_new BaseNet default
_BAND_LIMIT_BYTES = 4 * 1024 * 1024     # per-step input-band budget before row-banding
_BAND_TH = 16                           # output rows per grid step in banded mode


def _round_up(v, m):
    return (v + m - 1) // m * m


def _vmem_limit(step_bytes):
    """Only raise the scoped-VMEM limit when the kernel needs it; stay < v7x 64 MiB."""
    need = int(step_bytes) * 2 + (4 << 20)       # double buffering + headroom
    if need <= (32 << 20):
        return None
    return int(min(need, 60 << 20))


def _apply_act(y, act):
    if act == ACT_RELU:
        return jnp.maximum(y, 0.0)
    if act == ACT_LRELU:
        return jnp.where(y >= 0.0, y, 0.01 * y)
    if act == ACT_SIGMOID:
        return jax.nn.sigmoid(y)
    return y


# ----------------------------------------------------------------------------
# Pallas kernel 1: matmul + bias + fused activation (M tiled, full K / full N)
# ----------------------------------------------------------------------------
def _mm_kernel(a_ref, b_ref, bias_ref, o_ref, *, act):
    y = jnp.dot(a_ref[...], b_ref[...], preferred_element_type=jnp.float32)
    y = _apply_act(y + bias_ref[...], act)
    o_ref[...] = y.astype(o_ref.dtype)


def matmul_bias_act(a, b, bias, act=ACT_LINEAR, out_dtype=None):
    """bf16 (M,K)@(K,N)+bias[N], fused activation, f32 accumulation."""
    out_dtype = out_dtype or COMPUTE_DTYPE
    M, K = a.shape
    Nc = b.shape[1]
    a = a.astype(COMPUTE_DTYPE)
    b = b.astype(COMPUTE_DTYPE)
    bias2 = bias.astype(jnp.float32).reshape(1, Nc)

    # <=256-row M tiles so big matmuls expose >=2 "parallel" grid steps (v7x megacore).
    nsteps = pl.cdiv(M, 256)
    TM = _round_up(pl.cdiv(M, nsteps), 8)
    Mp = nsteps * TM
    if Mp != M:
        a = jnp.pad(a, ((0, Mp - M), (0, 0)))

    out_bytes = jnp.dtype(out_dtype).itemsize
    step_bytes = TM * K * 2 + K * Nc * 2 + Nc * 4 + TM * Nc * out_bytes
    cost = pl.CostEstimate(
        flops=2 * Mp * K * Nc,
        transcendentals=Mp * Nc if act == ACT_SIGMOID else 0,
        bytes_accessed=Mp * K * 2 + K * Nc * 2 + Mp * Nc * out_bytes)

    out = pl.pallas_call(
        functools.partial(_mm_kernel, act=act),
        out_shape=jax.ShapeDtypeStruct((Mp, Nc), out_dtype),
        grid_spec=pltpu.PrefetchScalarGridSpec(
            num_scalar_prefetch=0,
            grid=(nsteps,),
            in_specs=[
                pl.BlockSpec((TM, K), lambda i: (i, 0)),
                pl.BlockSpec((K, Nc), lambda i: (0, 0)),
                pl.BlockSpec((1, Nc), lambda i: (0, 0)),
            ],
            out_specs=pl.BlockSpec((TM, Nc), lambda i: (i, 0)),
        ),
        compiler_params=pltpu.CompilerParams(
            dimension_semantics=("parallel",),
            vmem_limit_bytes=_vmem_limit(step_bytes)),
        cost_estimate=cost,
    )(a, b, bias2)
    return out[:M] if Mp != M else out


# ----------------------------------------------------------------------------
# Pallas kernel 2: multi-row / multi-input NHWC conv with K-fused taps
# ----------------------------------------------------------------------------
def _conv_kernel(*refs, n_inputs, nb, kh, kw, sh, dh, dw, TH, Wo, act):
    nx = n_inputs * nb
    x_refs = refs[:nx]
    w_ref, b_ref, o_ref = refs[nx], refs[nx + 1], refs[nx + 2]
    Cout = o_ref.shape[-1]

    # Assemble each input's row band (nb operands are vertically adjacent blocks).
    bands = []
    for a in range(n_inputs):
        parts = [x_refs[a * nb + r][0] for r in range(nb)]
        bands.append(parts[0] if nb == 1 else jnp.concatenate(parts, axis=0))

    # Implicit im2col in VMEM: lane-concat the kh*kw shifted windows of every input,
    # then ONE MXU matmul with K = kh*kw*sum(Cin)  (K-fused taps; fused channel concat).
    cols = []
    for i in range(kh):
        row_sets = []
        for band in bands:
            rows = band[i * dh: i * dh + TH * sh]
            if sh > 1:                                    # H-stride via leading-dim reshape
                rows = rows.reshape(TH, sh, rows.shape[1], rows.shape[2])[:, 0]
            row_sets.append(rows)
        for j in range(kw):
            for rows in row_sets:
                seg = rows[:, j * dw: j * dw + Wo, :]
                cols.append(seg.reshape(TH * Wo, seg.shape[-1]))
    patches = cols[0] if len(cols) == 1 else jnp.concatenate(cols, axis=-1)

    y = jnp.dot(patches, w_ref[...], preferred_element_type=jnp.float32)
    y = _apply_act(y + b_ref[...], act)
    # TODO(synk): repack small-Cout outputs into a lane-dense (TH, Wo*Cout) slab.
    o_ref[0] = y.reshape(TH, Wo, Cout).astype(o_ref.dtype)


def conv2d_nhwc(inputs, wmat, bias2, *, kh, kw, stride=(1, 1), pad=(1, 1),
                dil=(1, 1), act=ACT_RELU, out_dtype=None, band_rows=None):
    """NHWC conv + folded BN + fused activation.  `inputs` is a list of NHWC tensors
    that are implicitly channel-concatenated (fused concat, no HBM temporary).
    Stride-2-in-W convs fold W pairs into channels with a FREE reshape so the kernel
    never performs strided lane/sublane reads."""
    out_dtype = out_dtype or COMPUTE_DTYPE
    sh, sw = stride
    ph, pw = pad
    dh, dw = dil
    N, H, W, _ = inputs[0].shape
    Cout = wmat.shape[1]
    Ho = (H + 2 * ph - dh * (kh - 1) - 1) // sh + 1
    Wo = (W + 2 * pw - dw * (kw - 1) - 1) // sw + 1

    folded = sw > 1
    if folded:
        assert sw == 2 and dw == 1 and len(inputs) == 1, (
            "W-stride fold supports stride-2 / dilation-1 / single-input convs")
        kw_e, dw_e = (kw + 1) // 2, 1
    else:
        assert sw == 1
        kw_e, dw_e = kw, dw

    # ---- row tiling: full-H per grid step when small, else TH-row banded grid ----
    halo = (kh - 1) * dh
    cin_total = sum(x.shape[-1] for x in inputs)
    band_bytes = (halo + Ho * sh) * (W + 2 * pw) * cin_total * 2
    if band_rows is not None:
        TH = min(int(band_rows), Ho)
        use_band = TH < Ho
    else:
        use_band = band_bytes > _BAND_LIMIT_BYTES and Ho > _BAND_TH
        TH = _BAND_TH if use_band else Ho
    BH = TH * sh
    nb = 1 + pl.cdiv(halo, BH) if use_band else 1
    Hob = pl.cdiv(Ho, TH)
    Ho_p = Hob * TH

    if use_band:
        blk_h = BH
        Hp = _round_up(max((Hob + nb - 1) * BH, H + 2 * ph), BH)
    else:
        blk_h = max(halo + TH * sh, H + 2 * ph)
        Hp = blk_h

    Wp = max(W + 2 * pw, (kw - 1) * dw + (Wo - 1) * sw + 1)
    if folded:
        Wp = max(Wp + (Wp % 2), 2 * (kw_e - 1 + Wo))
    Wp_eff = Wp // 2 if folded else Wp

    # TODO(synk): halo handled via per-conv zero padding; a clamped index_map would
    # avoid one activation round trip per layer.
    xs, in_specs = [], []
    for x_a in inputs:
        ca = x_a.shape[-1]
        xp = jnp.pad(x_a.astype(COMPUTE_DTYPE),
                     ((0, 0), (ph, Hp - H - ph), (pw, Wp - W - pw), (0, 0)))
        if folded:
            xp = xp.reshape(N, Hp, Wp_eff, 2 * ca)
        for r in range(nb):
            xs.append(xp)
            in_specs.append(pl.BlockSpec(
                (1, blk_h, Wp_eff, xp.shape[-1]),
                lambda n, hb, r=r: (n, hb + r, 0, 0)))
    in_specs += [
        pl.BlockSpec(wmat.shape, lambda n, hb: (0, 0)),
        pl.BlockSpec((1, Cout), lambda n, hb: (0, 0)),
    ]

    K_eff = wmat.shape[0]
    out_bytes = jnp.dtype(out_dtype).itemsize
    uniq = xs[::nb]
    in_bytes = sum(N * Hob * nb * blk_h * Wp_eff * u.shape[-1] * 2 for u in uniq)
    step_bytes = (sum(nb * blk_h * Wp_eff * u.shape[-1] * 2 for u in uniq)
                  + K_eff * Cout * 2 + TH * Wo * (Cout * out_bytes + 3 * K_eff))
    cost = pl.CostEstimate(
        flops=2 * N * Ho_p * Wo * K_eff * Cout,
        transcendentals=N * Ho_p * Wo * Cout if act == ACT_SIGMOID else 0,
        bytes_accessed=int(in_bytes + K_eff * Cout * 2 + N * Ho_p * Wo * Cout * out_bytes))

    out = pl.pallas_call(
        functools.partial(_conv_kernel, n_inputs=len(inputs), nb=nb, kh=kh, kw=kw_e,
                          sh=sh, dh=dh, dw=dw_e, TH=TH, Wo=Wo, act=act),
        out_shape=jax.ShapeDtypeStruct((N, Ho_p, Wo, Cout), out_dtype),
        grid_spec=pltpu.PrefetchScalarGridSpec(
            num_scalar_prefetch=0,
            grid=(N, Hob),
            in_specs=in_specs,
            out_specs=pl.BlockSpec((1, TH, Wo, Cout), lambda n, hb: (n, hb, 0, 0)),
        ),
        compiler_params=pltpu.CompilerParams(
            dimension_semantics=("parallel", "parallel"),
            vmem_limit_bytes=_vmem_limit(step_bytes)),
        cost_estimate=cost,
    )(*xs, wmat, bias2)
    return out[:, :Ho] if Ho_p != Ho else out


def conv_bn_act(prep, inputs, *, ksize=(3, 3), stride=(1, 1), pad=(1, 1),
                dil=(1, 1), act=ACT_RELU, out_dtype=None):
    if not isinstance(inputs, (list, tuple)):
        inputs = [inputs]
    return conv2d_nhwc(list(inputs), prep["wmat"], prep["bias"],
                       kh=ksize[0], kw=ksize[1], stride=stride, pad=pad, dil=dil,
                       act=act, out_dtype=out_dtype)


# ----------------------------------------------------------------------------
# Pallas kernel 3: bidirectional LSTM recurrence (both directions in ONE loop)
# ----------------------------------------------------------------------------
def _bilstm_kernel(xpf_ref, xpb_ref, wh_ref, of_ref, ob_ref, *, T, H):
    Nb = of_ref.shape[1]
    wh = wh_ref[...]                       # (2H, 8H) block-diag [[Whh_f.T,0],[0,Whh_b.T]]

    def cell(g, c):
        i = jax.nn.sigmoid(g[:, 0 * H:1 * H])
        f = jax.nn.sigmoid(g[:, 1 * H:2 * H])
        gg = jnp.tanh(g[:, 2 * H:3 * H])
        o = jax.nn.sigmoid(g[:, 3 * H:4 * H])
        c = f * c + i * gg
        return o * jnp.tanh(c), c

    def step(t, carry):
        hf, cf, hb, cb = carry
        # one bf16 MXU dot drives BOTH directions -> halved serial critical path
        hcat = jnp.concatenate([hf, hb], axis=-1).astype(COMPUTE_DTYPE)
        g = jnp.dot(hcat, wh, preferred_element_type=jnp.float32)       # (Nb, 8H)
        hf, cf = cell(xpf_ref[t] + g[:, :4 * H], cf)
        hb, cb = cell(xpb_ref[T - 1 - t] + g[:, 4 * H:], cb)
        of_ref[t] = hf.astype(of_ref.dtype)
        ob_ref[T - 1 - t] = hb.astype(ob_ref.dtype)
        return (hf, cf, hb, cb)

    z = jnp.zeros((Nb, H), jnp.float32)
    lax.fori_loop(0, T, step, (z, z, z, z))


def lstm_bidir_recurrence(xp_f, xp_b, whh):
    """xp_*: (T, N, 4H) pre-projected gates (f32); whh: (2H, 8H) block-diag bf16."""
    T, Nb, H4 = xp_f.shape
    H = H4 // 4
    need = 2 * T * Nb * H4 * 4 + 2 * T * Nb * H * 2 + int(whh.size) * 2
    of, ob = pl.pallas_call(
        functools.partial(_bilstm_kernel, T=T, H=H),
        out_shape=(jax.ShapeDtypeStruct((T, Nb, H), COMPUTE_DTYPE),
                   jax.ShapeDtypeStruct((T, Nb, H), COMPUTE_DTYPE)),
        compiler_params=pltpu.CompilerParams(vmem_limit_bytes=_vmem_limit(need)),
    )(xp_f.astype(jnp.float32), xp_b.astype(jnp.float32), whh)
    return of, ob


# ----------------------------------------------------------------------------
# Plain-JAX glue: bilinear 2x resize (align_corners=True, matmul form), crop.
# TODO(synk): fuse the 2x upsample + skip concat directly into the decoder conv
#             kernel via the index_map (only the channel-concat is fused today).
# ----------------------------------------------------------------------------
@functools.lru_cache(maxsize=None)
def _interp_matrix_np(in_size, out_size):
    if in_size == 1:
        return np.ones((out_size, 1), np.float32)
    pos = np.arange(out_size, dtype=np.float64) * (in_size - 1) / (out_size - 1)
    lo = np.floor(pos).astype(np.int64)
    hi = np.minimum(lo + 1, in_size - 1)
    frac = pos - lo
    m = np.zeros((out_size, in_size), np.float64)
    m[np.arange(out_size), lo] += 1.0 - frac
    m[np.arange(out_size), hi] += frac
    return m.astype(np.float32)


def resize_bilinear_ac(x, out_h, out_w):
    N, H, W, C = x.shape
    if out_h != H:
        mh = jnp.asarray(_interp_matrix_np(H, out_h), x.dtype)
        x = jnp.einsum('oh,nhwc->nowc', mh, x,
                       preferred_element_type=jnp.float32).astype(x.dtype)
    if out_w != W:
        mw = jnp.asarray(_interp_matrix_np(W, out_w), x.dtype)
        x = jnp.einsum('ow,nhwc->nhoc', mw, x,
                       preferred_element_type=jnp.float32).astype(x.dtype)
    return x


def crop_center(skip, x):
    st, xt = skip.shape[2], x.shape[2]     # time axis in NHWC
    if st == xt:
        return skip
    if st < xt:
        raise ValueError("skip time dim must be >= upsampled time dim")
    s = (st - xt) // 2
    return skip[:, :, s:s + xt, :]


# ----------------------------------------------------------------------------
# Network blocks (layers_new / nets_new semantics, eval mode) — NHWC
# ----------------------------------------------------------------------------
def encoder_fwd(p, x):
    h = conv_bn_act(p["conv1"], x, stride=(2, 2), act=ACT_LRELU)
    return conv_bn_act(p["conv2"], h, act=ACT_LRELU)


def decoder_fwd(p, xs, skip=None):
    # 2x align_corners bilinear upsample of every x, then conv over the fused channel
    # concat [up(x0), up(x1), ..., cropped skip] (no HBM concat temporary).
    ups = [resize_bilinear_ac(t, 2 * t.shape[1], 2 * t.shape[2]) for t in xs]
    inputs = ups + ([crop_center(skip, ups[0])] if skip is not None else [])
    return conv_bn_act(p, inputs, act=ACT_RELU)        # Dropout2d: identity (eval)


def aspp_fwd(p, x):
    N, H, W, C = x.shape
    pooled = jnp.mean(x.astype(jnp.float32), axis=1, keepdims=True).astype(x.dtype)
    feat1 = conv_bn_act(p["conv1"], pooled, ksize=(1, 1), pad=(0, 0), act=ACT_RELU)
    feat1 = resize_bilinear_ac(feat1, H, W)
    feat2 = conv_bn_act(p["conv2"], x, ksize=(1, 1), pad=(0, 0), act=ACT_RELU)
    feat3 = conv_bn_act(p["conv3"], x, pad=DILATIONS[0], dil=DILATIONS[0], act=ACT_RELU)
    feat4 = conv_bn_act(p["conv4"], x, pad=DILATIONS[1], dil=DILATIONS[1], act=ACT_RELU)
    feat5 = conv_bn_act(p["conv5"], x, pad=DILATIONS[2], dil=DILATIONS[2], act=ACT_RELU)
    # bottleneck 1x1 over the fused 5-way channel concat (no HBM concat temporary)
    return conv_bn_act(p["bottleneck"], [feat1, feat2, feat3, feat4, feat5],
                       ksize=(1, 1), pad=(0, 0), act=ACT_RELU)   # Dropout2d: identity


def lstm_module_fwd(p, x):
    # x: (N, nbins, nframes, C) NHWC
    Nb, nbins, nframes, _ = x.shape
    h = conv_bn_act(p["conv"], x, ksize=(1, 1), pad=(0, 0), act=ACT_RELU)   # (N, nbins, T, 1)
    h = h[..., 0].transpose(2, 0, 1)                                        # (T, N, nbins)
    T = nframes
    H = p["whh"].shape[0] // 2

    # fused fw+bw input projection (one matmul; b_ih + b_hh folded into the epilogue)
    xproj = matmul_bias_act(h.reshape(T * Nb, nbins), p["wih"], p["bg"],
                            act=ACT_LINEAR, out_dtype=jnp.float32)
    xproj = xproj.reshape(T, Nb, 8 * H)

    hs_f, hs_b = lstm_bidir_recurrence(xproj[..., :4 * H], xproj[..., 4 * H:], p["whh"])
    hcat = jnp.concatenate([hs_f, hs_b], axis=-1).reshape(T * Nb, 2 * H)

    # Linear + BatchNorm1d + ReLU fused into one matmul epilogue
    out = matmul_bias_act(hcat, p["dense_wT"], p["dense_b"], act=ACT_RELU)
    return out.reshape(T, Nb, nbins).transpose(1, 2, 0)[..., None]          # (N, nbins, T, 1)


def basenet_fwd(p, xs):
    e1 = conv_bn_act(p["enc1"], xs, act=ACT_RELU)
    e2 = encoder_fwd(p["enc2"], e1)
    e3 = encoder_fwd(p["enc3"], e2)
    e4 = encoder_fwd(p["enc4"], e3)
    e5 = encoder_fwd(p["enc5"], e4)
    h = aspp_fwd(p["aspp"], e5)
    h = decoder_fwd(p["dec4"], [h], e4)
    h = decoder_fwd(p["dec3"], [h], e3)
    h = decoder_fwd(p["dec2"], [h], e2)
    lstm_out = lstm_module_fwd(p["lstm_dec2"], h)
    h = decoder_fwd(p["dec1"], [h, lstm_out], e1)       # fused [h, lstm, skip] concat
    return h


def cascadednet_fwd(prep, x, *, n_fft):
    max_bin = n_fft // 2
    output_bin = n_fft // 2 + 1
    offset = 64

    # NCHW (N, 2, F, T) -> NHWC (N, F, T, 2)
    xc = x[:, :, :max_bin].transpose(0, 2, 3, 1).astype(COMPUTE_DTYPE)
    bandw = xc.shape[1] // 2
    l1_in = xc[:, :bandw]
    h1_in = xc[:, bandw:]

    l1 = basenet_fwd(prep["stg1_low"]["base"], [l1_in])
    l1 = conv_bn_act(prep["stg1_low"]["post"], l1, ksize=(1, 1), pad=(0, 0), act=ACT_RELU)
    h1 = basenet_fwd(prep["stg1_high"], [h1_in])

    aux1 = jnp.concatenate([l1, h1], axis=1)                   # freq axis

    l2 = basenet_fwd(prep["stg2_low"]["base"], [l1_in, l1])    # fused channel concat
    l2 = conv_bn_act(prep["stg2_low"]["post"], l2, ksize=(1, 1), pad=(0, 0), act=ACT_RELU)
    h2 = basenet_fwd(prep["stg2_high"], [h1_in, h1])

    aux2 = jnp.concatenate([l2, h2], axis=1)
    f3 = basenet_fwd(prep["stg3"], [xc, aux1, aux2])           # fused channel concat

    # out conv (bias=False) with sigmoid fused into the Pallas epilogue
    mask = conv_bn_act(prep["out"], f3, ksize=(1, 1), pad=(0, 0),
                       act=ACT_SIGMOID, out_dtype=jnp.float32)  # (N, F, T, 2)
    pad_amt = output_bin - mask.shape[1]
    mask = jnp.pad(mask, ((0, 0), (0, pad_amt), (0, 0), (0, 0)), mode="edge")
    mask = mask.transpose(0, 3, 1, 2)                           # back to NCHW

    pred_mag = x * mask
    pred_mag = pred_mag[:, :, :, offset:-offset]
    return pred_mag


# ----------------------------------------------------------------------------
# Deterministic synthetic parameter construction (mirrors module __init__ shapes)
# ----------------------------------------------------------------------------
class ParamGen:
    def __init__(self, key):
        self._key = key

    def _nk(self):
        self._key, sub = jax.random.split(self._key)
        return sub

    def conv_bn(self, cin, cout, kh, kw):
        fan_in = cin * kh * kw
        w = jax.random.normal(self._nk(), (cout, cin, kh, kw),
                              jnp.float32) * (1.0 / math.sqrt(fan_in))
        eps = 1e-5   # fresh BatchNorm2d, eval: gamma=1, beta=0, mean=0, var=1
        scale = jnp.ones((cout,), jnp.float32) / jnp.sqrt(1.0 + eps)
        bias = jnp.zeros((cout,), jnp.float32)
        return {"w": w, "scale": scale, "bias": bias}

    def conv_plain(self, cin, cout, kh, kw):
        fan_in = cin * kh * kw
        w = jax.random.normal(self._nk(), (cout, cin, kh, kw),
                              jnp.float32) * (1.0 / math.sqrt(fan_in))
        return {"w": w,
                "scale": jnp.ones((cout,), jnp.float32),
                "bias": jnp.zeros((cout,), jnp.float32)}

    def linear_bn(self, nin, nout):
        k = 1.0 / math.sqrt(nin)
        w = jax.random.uniform(self._nk(), (nout, nin), jnp.float32, -k, k)
        b = jax.random.uniform(self._nk(), (nout,), jnp.float32, -k, k)
        eps = 1e-5   # fresh BatchNorm1d, eval mode — folded into the matmul epilogue
        s = jnp.ones((nout,), jnp.float32) / jnp.sqrt(1.0 + eps)
        return {"wT": (w * s[:, None]).T, "b": b * s}

    def lstm_dir(self, input_size, hidden):
        k = 1.0 / math.sqrt(hidden)
        u = lambda shape: jax.random.uniform(self._nk(), shape, jnp.float32, -k, k)
        return {"w_ih": u((4 * hidden, input_size)),
                "w_hh": u((4 * hidden, hidden)),
                "b_ih": u((4 * hidden,)),
                "b_hh": u((4 * hidden,))}

    def lstm(self, input_size, hidden):
        return {"fw": self.lstm_dir(input_size, hidden),
                "bw": self.lstm_dir(input_size, hidden)}


def make_lstm_module(pg, nin_conv, nin_lstm, nout_lstm):
    return {"conv": pg.conv_bn(nin_conv, 1, 1, 1),
            "lstm": pg.lstm(nin_lstm, nout_lstm // 2),
            "dense": pg.linear_bn(nout_lstm, nin_lstm)}


def make_basenet(pg, nin, nout, nin_lstm, nout_lstm):
    return {
        "enc1": pg.conv_bn(nin, nout, 3, 3),
        "enc2": {"conv1": pg.conv_bn(nout, nout * 2, 3, 3),
                 "conv2": pg.conv_bn(nout * 2, nout * 2, 3, 3)},
        "enc3": {"conv1": pg.conv_bn(nout * 2, nout * 4, 3, 3),
                 "conv2": pg.conv_bn(nout * 4, nout * 4, 3, 3)},
        "enc4": {"conv1": pg.conv_bn(nout * 4, nout * 6, 3, 3),
                 "conv2": pg.conv_bn(nout * 6, nout * 6, 3, 3)},
        "enc5": {"conv1": pg.conv_bn(nout * 6, nout * 8, 3, 3),
                 "conv2": pg.conv_bn(nout * 8, nout * 8, 3, 3)},
        "aspp": {"conv1": pg.conv_bn(nout * 8, nout * 8, 1, 1),
                 "conv2": pg.conv_bn(nout * 8, nout * 8, 1, 1),
                 "conv3": pg.conv_bn(nout * 8, nout * 8, 3, 3),
                 "conv4": pg.conv_bn(nout * 8, nout * 8, 3, 3),
                 "conv5": pg.conv_bn(nout * 8, nout * 8, 3, 3),
                 "bottleneck": pg.conv_bn(nout * 8 * 5, nout * 8, 1, 1)},
        "dec4": {"conv1": pg.conv_bn(nout * (6 + 8), nout * 6, 3, 3)},
        "dec3": {"conv1": pg.conv_bn(nout * (4 + 6), nout * 4, 3, 3)},
        "dec2": {"conv1": pg.conv_bn(nout * (2 + 4), nout * 2, 3, 3)},
        "lstm_dec2": make_lstm_module(pg, nout * 2, nin_lstm, nout_lstm),
        "dec1": {"conv1": pg.conv_bn(nout * (1 + 2) + 1, nout, 3, 3)},
    }


def make_cascadednet(pg, n_fft, nout, nout_lstm):
    max_bin = n_fft // 2
    nin_lstm = max_bin // 2
    return {
        "stg1_low": {"base": make_basenet(pg, 2, nout // 2, nin_lstm // 2, nout_lstm),
                     "post": pg.conv_bn(nout // 2, nout // 4, 1, 1)},
        "stg1_high": make_basenet(pg, 2, nout // 4, nin_lstm // 2, nout_lstm // 2),
        "stg2_low": {"base": make_basenet(pg, nout // 4 + 2, nout, nin_lstm // 2, nout_lstm),
                     "post": pg.conv_bn(nout, nout // 2, 1, 1)},
        "stg2_high": make_basenet(pg, nout // 4 + 2, nout // 2, nin_lstm // 2, nout_lstm // 2),
        "stg3": make_basenet(pg, 3 * nout // 4 + 2, nout, nin_lstm, nout_lstm),
        "out": pg.conv_plain(nout, 2, 1, 1),
        "aux_out": pg.conv_plain(3 * nout // 4, 2, 1, 1),   # unused in eval forward
    }


# ----------------------------------------------------------------------------
# One-time (outside-jit) weight preparation: BN fold, matmul layout, LSTM fusion
# ----------------------------------------------------------------------------
def prep_conv(p, stride=(1, 1)):
    """Fold BN scale into the conv weight and lay it out as a (K, Cout) matmul operand
    matching the kernel's (kh, kw, concat-channel) patch order.  Stride-2-in-W convs
    are pre-folded into a stride-1 conv over W-pair channels (with zero-padded taps)."""
    cout, cin, kh, kw = p["w"].shape
    w = p["w"].astype(jnp.float32) * p["scale"].astype(jnp.float32)[:, None, None, None]
    w = w.transpose(2, 3, 1, 0)                               # (kh, kw, cin, cout)
    if stride[1] == 2:
        kw_e = (kw + 1) // 2
        w = jnp.pad(w, ((0, 0), (0, 2 * kw_e - kw), (0, 0), (0, 0)))
        w = w.reshape(kh, kw_e, 2 * cin, cout)
    return {"wmat": w.reshape(-1, cout).astype(COMPUTE_DTYPE),
            "bias": p["bias"].astype(jnp.float32).reshape(1, cout)}


def prep_encoder(e):
    return {"conv1": prep_conv(e["conv1"], stride=(2, 2)),
            "conv2": prep_conv(e["conv2"])}


def prep_lstm_module(p):
    fw, bw = p["lstm"]["fw"], p["lstm"]["bw"]
    wih = jnp.concatenate([fw["w_ih"], bw["w_ih"]], axis=0).T.astype(COMPUTE_DTYPE)
    bg = jnp.concatenate([fw["b_ih"] + fw["b_hh"], bw["b_ih"] + bw["b_hh"]]).astype(jnp.float32)
    whf_t, whb_t = fw["w_hh"].T, bw["w_hh"].T                  # (H, 4H)
    z = jnp.zeros_like(whf_t)
    whh = jnp.concatenate([jnp.concatenate([whf_t, z], axis=1),
                           jnp.concatenate([z, whb_t], axis=1)], axis=0).astype(COMPUTE_DTYPE)
    return {"conv": prep_conv(p["conv"]),
            "wih": wih, "bg": bg, "whh": whh,
            "dense_wT": p["dense"]["wT"].astype(COMPUTE_DTYPE),
            "dense_b": p["dense"]["b"].astype(jnp.float32)}


def prep_basenet(p):
    return {
        "enc1": prep_conv(p["enc1"]),
        "enc2": prep_encoder(p["enc2"]),
        "enc3": prep_encoder(p["enc3"]),
        "enc4": prep_encoder(p["enc4"]),
        "enc5": prep_encoder(p["enc5"]),
        "aspp": {k: prep_conv(p["aspp"][k]) for k in
                 ("conv1", "conv2", "conv3", "conv4", "conv5", "bottleneck")},
        "dec4": prep_conv(p["dec4"]["conv1"]),
        "dec3": prep_conv(p["dec3"]["conv1"]),
        "dec2": prep_conv(p["dec2"]["conv1"]),
        "lstm_dec2": prep_lstm_module(p["lstm_dec2"]),
        "dec1": prep_conv(p["dec1"]["conv1"]),
    }


def prep_cascadednet(params):
    return {
        "stg1_low": {"base": prep_basenet(params["stg1_low"]["base"]),
                     "post": prep_conv(params["stg1_low"]["post"])},
        "stg1_high": prep_basenet(params["stg1_high"]),
        "stg2_low": {"base": prep_basenet(params["stg2_low"]["base"]),
                     "post": prep_conv(params["stg2_low"]["post"])},
        "stg2_high": prep_basenet(params["stg2_high"]),
        "stg3": prep_basenet(params["stg3"]),
        "out": prep_conv(params["out"]),
    }


# ----------------------------------------------------------------------------
# Small numeric self-checks of the conv kernel against lax.conv (bf16 operands)
# ----------------------------------------------------------------------------
def _self_test():
    # (1) stride-2 conv (exercises the W-pair channel fold), odd H/W
    x = jax.random.uniform(jax.random.PRNGKey(1), (1, 23, 37, 6), jnp.float32)
    w = jax.random.normal(jax.random.PRNGKey(2), (10, 6, 3, 3), jnp.float32) * 0.2
    raw = {"w": w, "scale": jnp.ones((10,), jnp.float32), "bias": jnp.zeros((10,), jnp.float32)}
    pc = prep_conv(raw, stride=(2, 2))
    ours = conv2d_nhwc([x], pc["wmat"], pc["bias"], kh=3, kw=3, stride=(2, 2),
                       pad=(1, 1), dil=(1, 1), act=ACT_LINEAR, out_dtype=jnp.float32)
    xb = x.astype(COMPUTE_DTYPE).astype(jnp.float32)
    wb = w.astype(COMPUTE_DTYPE).astype(jnp.float32)
    ref = lax.conv_general_dilated(xb, wb, (2, 2), ((1, 1), (1, 1)),
                                   dimension_numbers=("NHWC", "OIHW", "NHWC"))
    assert bool(jnp.allclose(ours, ref, atol=3e-2, rtol=3e-2)), "stride-2 conv self-test failed"

    # (2) dilated conv, forced row-banded grid + fused 2-input channel concat
    x2 = jax.random.uniform(jax.random.PRNGKey(3), (1, 37, 33, 6), jnp.float32)
    w2 = jax.random.normal(jax.random.PRNGKey(4), (10, 6, 3, 3), jnp.float32) * 0.2
    raw2 = {"w": w2, "scale": jnp.ones((10,), jnp.float32), "bias": jnp.zeros((10,), jnp.float32)}
    pc2 = prep_conv(raw2)
    ours2 = conv2d_nhwc([x2[..., :2], x2[..., 2:]], pc2["wmat"], pc2["bias"],
                        kh=3, kw=3, stride=(1, 1), pad=(3, 2), dil=(3, 2),
                        act=ACT_LINEAR, out_dtype=jnp.float32, band_rows=8)
    x2b = x2.astype(COMPUTE_DTYPE).astype(jnp.float32)
    w2b = w2.astype(COMPUTE_DTYPE).astype(jnp.float32)
    ref2 = lax.conv_general_dilated(x2b, w2b, (1, 1), ((3, 3), (2, 2)),
                                    rhs_dilation=(3, 2),
                                    dimension_numbers=("NHWC", "OIHW", "NHWC"))
    assert bool(jnp.allclose(ours2, ref2, atol=3e-2, rtol=3e-2)), "banded dilated conv self-test failed"


# ----------------------------------------------------------------------------
if __name__ == "__main__":
    # Small, forward-consistent config:
    #   n_fft=64 -> max_bin=32 (freq bands divisible by 16 for the 4x down/up-sampling),
    #   frames=144 (divisible by 16 and > 2*offset=128), nout=8, nout_lstm=16.
    N_FFT, NOUT, NOUT_LSTM = 64, 8, 16
    BATCH, FRAMES = 2, 144
    FREQ = N_FFT // 2 + 1        # 33, as produced by an STFT with n_fft bins

    _self_test()

    key = jax.random.PRNGKey(0)
    pkey, xkey = jax.random.split(key)
    params = make_cascadednet(ParamGen(pkey), N_FFT, NOUT, NOUT_LSTM)
    prep = prep_cascadednet(params)          # fold / transpose / fuse weights ONCE, outside jit
    x = jax.random.uniform(xkey, (BATCH, 2, FREQ, FRAMES), jnp.float32)

    fwd = jax.jit(functools.partial(cascadednet_fwd, n_fft=N_FFT))
    y = fwd(prep, x)
    jax.block_until_ready(y)
    assert y.shape == (BATCH, 2, FREQ, FRAMES - 2 * 64), y.shape
    assert y.dtype == jnp.float32
    assert bool(jnp.isfinite(y).all())
    print("KERNEL_OK")
</pallas_src>

<mosaic_0001>
module attributes {stable_mosaic.version = 11 : i64} {
  func.func @_conv_kernel(%arg0: i32, %arg1: i32, %arg2: memref<1x26x20x12xbf16, #tpu.memory_space<vmem>>, %arg3: memref<72x10xbf16, #tpu.memory_space<vmem>>, %arg4: memref<1x10xf32, #tpu.memory_space<vmem>>, %arg5: memref<1x12x19x10xf32, #tpu.memory_space<vmem>>) attributes {dimension_semantics = [#tpu.dimension_semantics<parallel>, #tpu.dimension_semantics<parallel>], iteration_bounds = array<i64: 1, 1>, scalar_prefetch = 0 : i64, scratch_operands = 0 : i64, tpu.core_type = #tpu.core_type<tc>, window_params = [{transform_indices = @transform_0, window_bounds = array<i64: 1, 26, 20, 12>}, {pipeline_mode = #tpu.pipeline_mode<synchronous>, transform_indices = @transform_1, window_bounds = array<i64: 72, 10>}, {pipeline_mode = #tpu.pipeline_mode<synchronous>, transform_indices = @transform_2, window_bounds = array<i64: 1, 10>}, {transform_indices = @transform_3, window_bounds = array<i64: 1, 12, 19, 10>}]} {
    %c0 = arith.constant 0 : index
    %c0_0 = arith.constant 0 : index
    %c0_1 = arith.constant 0 : index
    %c0_2 = arith.constant 0 : index
    %0 = vector.load %arg2[%c0, %c0_0, %c0_1, %c0_2] : memref<1x26x20x12xbf16, #tpu.memory_space<vmem>>, vector<1x26x20x12xbf16>
    %1 = vector.shape_cast %0 : vector<1x26x20x12xbf16> to vector<26x20x12xbf16>
    %2 = vector.extract_strided_slice %1 {offsets = [0, 0, 0], sizes = [24, 20, 12], strides = [1, 1, 1]} : vector<26x20x12xbf16> to vector<24x20x12xbf16>
    %3 = vector.shape_cast %2 : vector<24x20x12xbf16> to vector<12x2x20x12xbf16>
    %4 = vector.extract_strided_slice %3 {offsets = [0, 0, 0, 0], sizes = [12, 1, 20, 12], strides = [1, 1, 1, 1]} : vector<12x2x20x12xbf16> to vector<12x1x20x12xbf16>
    %5 = vector.shape_cast %4 : vector<12x1x20x12xbf16> to vector<12x20x12xbf16>
    %6 = vector.extract_strided_slice %5 {offsets = [0, 0, 0], sizes = [12, 19, 12], strides = [1, 1, 1]} : vector<12x20x12xbf16> to vector<12x19x12xbf16>
    %7 = vector.shape_cast %6 : vector<12x19x12xbf16> to vector<228x12xbf16>
    %8 = vector.extract_strided_slice %5 {offsets = [0, 1, 0], sizes = [12, 19, 12], strides = [1, 1, 1]} : vector<12x20x12xbf16> to vector<12x19x12xbf16>
    %9 = vector.shape_cast %8 : vector<12x19x12xbf16> to vector<228x12xbf16>
    %10 = vector.extract_strided_slice %1 {offsets = [1, 0, 0], sizes = [24, 20, 12], strides = [1, 1, 1]} : vector<26x20x12xbf16> to vector<24x20x12xbf16>
    %11 = vector.shape_cast %10 : vector<24x20x12xbf16> to vector<12x2x20x12xbf16>
    %12 = vector.extract_strided_slice %11 {offsets = [0, 0, 0, 0], sizes = [12, 1, 20, 12], strides = [1, 1, 1, 1]} : vector<12x2x20x12xbf16> to vector<12x1x20x12xbf16>
    %13 = vector.shape_cast %12 : vector<12x1x20x12xbf16> to vector<12x20x12xbf16>
    %14 = vector.extract_strided_slice %13 {offsets = [0, 0, 0], sizes = [12, 19, 12], strides = [1, 1, 1]} : vector<12x20x12xbf16> to vector<12x19x12xbf16>
    %15 = vector.shape_cast %14 : vector<12x19x12xbf16> to vector<228x12xbf16>
    %16 = vector.extract_strided_slice %13 {offsets = [0, 1, 0], sizes = [12, 19, 12], strides = [1, 1, 1]} : vector<12x20x12xbf16> to vector<12x19x12xbf16>
    %17 = vector.shape_cast %16 : vector<12x19x12xbf16> to vector<228x12xbf16>
    %18 = vector.extract_strided_slice %1 {offsets = [2, 0, 0], sizes = [24, 20, 12], strides = [1, 1, 1]} : vector<26x20x12xbf16> to vector<24x20x12xbf16>
    %19 = vector.shape_cast %18 : vector<24x20x12xbf16> to vector<12x2x20x12xbf16>
    %20 = vector.extract_strided_slice %19 {offsets = [0, 0, 0, 0], sizes = [12, 1, 20, 12], strides = [1, 1, 1, 1]} : vector<12x2x20x12xbf16> to vector<12x1x20x12xbf16>
    %21 = vector.shape_cast %20 : vector<12x1x20x12xbf16> to vector<12x20x12xbf16>
    %22 = vector.extract_strided_slice %21 {offsets = [0, 0, 0], sizes = [12, 19, 12], strides = [1, 1, 1]} : vector<12x20x12xbf16> to vector<12x19x12xbf16>
    %23 = vector.shape_cast %22 : vector<12x19x12xbf16> to vector<228x12xbf16>
    %24 = vector.extract_strided_slice %21 {offsets = [0, 1, 0], sizes = [12, 19, 12], strides = [1, 1, 1]} : vector<12x20x12xbf16> to vector<12x19x12xbf16>
    %25 = vector.shape_cast %24 : vector<12x19x12xbf16> to vector<228x12xbf16>
    %26 = tpu.concatenate %7, %9, %15, %17, %23, %25 in 1 : vector<228x12xbf16>, vector<228x12xbf16>, vector<228x12xbf16>, vector<228x12xbf16>, vector<228x12xbf16>, vector<228x12xbf16> -> vector<228x72xbf16>
    %c0_3 = arith.constant 0 : index
    %c0_4 = arith.constant 0 : index
    %27 = vector.load %arg3[%c0_3, %c0_4] : memref<72x10xbf16, #tpu.memory_space<vmem>>, vector<72x10xbf16>
    %cst = arith.constant dense<0.000000e+00> : vector<228x10xf32>
    %28 = tpu.matmul %26, %27, %cst {dimension_numbers = #tpu.dot_dimension_numbers<[1], [0], [0], [1], [0, 0, 1, 1], [], []>} : vector<228x72xbf16>, vector<72x10xbf16>, vector<228x10xf32> -> vector<228x10xf32>
    %c0_5 = arith.constant 0 : index
    %c0_6 = arith.constant 0 : index
    %29 = vector.load %arg4[%c0_5, %c0_6] : memref<1x10xf32, #tpu.memory_space<vmem>>, vector<1x10xf32>
    %30 = vector.broadcast %29 : vector<1x10xf32> to vector<228x10xf32>
    %31 = arith.addf %28, %30 : vector<228x10xf32>
    %32 = vector.shape_cast %31 : vector<228x10xf32> to vector<12x19x10xf32>
    %c0_7 = arith.constant 0 : index
    %c0_8 = arith.constant 0 : index
    %c0_9 = arith.constant 0 : index
    %c0_10 = arith.constant 0 : index
    %33 = vector.load %arg5[%c0_7, %c0_8, %c0_9, %c0_10] : memref<1x12x19x10xf32, #tpu.memory_space<vmem>>, vector<1x12x19x10xf32>
    %34 = vector.shape_cast %33 : vector<1x12x19x10xf32> to vector<12x19x10xf32>
    %35 = vector.shape_cast %32 : vector<12x19x10xf32> to vector<1x12x19x10xf32>
    tpu.vector_store %arg5[%c0_7, %c0_8, %c0_9, %c0_10], %35 {strides = array<i32>} : memref<1x12x19x10xf32, #tpu.memory_space<vmem>>, vector<1x12x19x10xf32>,
    return
  }
  func.func @transform_0(%arg0: i32, %arg1: i32) -> (i32, i32, i32, i32) {
    %c0_i32 = arith.constant 0 : i32
    %0 = arith.addi %arg1, %c0_i32 : i32
    %c0_i32_0 = arith.constant 0 : i32
    %c0_i32_1 = arith.constant 0 : i32
    %c0_i32_2 = arith.constant 0 : i32
    return %arg0, %0, %c0_i32_0, %c0_i32_1 : i32, i32, i32, i32
  }
  func.func @transform_1(%arg0: i32, %arg1: i32) -> (i32, i32) {
    %c0_i32 = arith.constant 0 : i32
    %c0_i32_0 = arith.constant 0 : i32
    %c0_i32_1 = arith.constant 0 : i32
    return %c0_i32, %c0_i32_0 : i32, i32
  }
  func.func @transform_2(%arg0: i32, %arg1: i32) -> (i32, i32) {
    %c0_i32 = arith.constant 0 : i32
    %c0_i32_0 = arith.constant 0 : i32
    %c0_i32_1 = arith.constant 0 : i32
    return %c0_i32, %c0_i32_0 : i32, i32
  }
  func.func @transform_3(%arg0: i32, %arg1: i32) -> (i32, i32, i32, i32) {
    %c0_i32 = arith.constant 0 : i32
    %c0_i32_0 = arith.constant 0 : i32
    %c0_i32_1 = arith.constant 0 : i32
    return %arg0, %arg1, %c0_i32, %c0_i32_0 : i32, i32, i32, i32
  }
}

</mosaic_0001>

<llo_original>
// kernel: tpu_custom_call.1
$region0: #{tpu_custom_call.1}
  #allocation0 [shape = 'u32[]', space=smem, size = 0x4, offset = 0x4, fixed_abs, tag = 'smem constant byte address 0x4 - core index']
  #allocation1 [shape = 'u32[144,128]{1,0:T(1,128)}', space=vmem, size = 0x12000, scoped, tag = 'internal scratch']
  %s0 = inlined_call_operand.vmem [shape: bf16[1,26,20,12], index: 0, kind: input, shape index: {}]
  %s1 = inlined_call_operand.vmem [shape: bf16[72,10], index: 1, kind: input, shape index: {}]
  %s2 = inlined_call_operand.vmem [shape: f32[1,10], index: 2, kind: input, shape index: {}]
  %s3 = inlined_call_operand.vmem [shape: f32[1,12,19,10], index: 3, kind: output, shape index: {}]
  %s4 = sld [smem:[#allocation0]]
  $region22: #{tpu_custom_call.1} parent=0
    _
  %s6 = ssub.s32 1, %s4
  %s7 = scalar_select 0, %s6, %s4
  // Predicated region
  $region2: #{tpu_custom_call.1} parent=0 // pred_check
    _
  $region3: #{tpu_custom_call.1} parent=0 // pred_check_branch
    %9 = sbr.rel (0) target = $region5
  $region4: #{tpu_custom_call.1} parent=0 // pred_region
    _
  $region5: #{tpu_custom_call.1} parent=0 // pred_fallthru
    _
  // Predicated region
  $region6: #{tpu_custom_call.1} parent=0 // pred_check
    _
  $region7: #{tpu_custom_call.1} parent=0 // pred_check_branch
    %11 = sbr.rel (0) target = $region9
  $region8: #{tpu_custom_call.1} parent=0 // pred_region
    _
  $region9: #{tpu_custom_call.1} parent=0 // pred_fallthru
    _
  // Predicated region
  $region10: #{tpu_custom_call.1} parent=0 // pred_check
    _
  $region11: #{tpu_custom_call.1} parent=0 // pred_check_branch
    %13 = sbr.rel (0) target = $region13
  $region12: #{tpu_custom_call.1} parent=0 // pred_region
    _
  $region13: #{tpu_custom_call.1} parent=0 // pred_fallthru
    _
  %v15 = vld [vmem:[%s0] sm:$0xf]
  %v16 = vld [vmem:[%s0 + $0x4] sm:$0xf]
  %v17 = vld [vmem:[%s0 + $0x8] sm:$0x3]
  %v18 = vld [vmem:[%s0 + $0xc] sm:$0xf]
  %v19 = vld [vmem:[%s0 + $0x10] sm:$0xf]
  %v20 = vld [vmem:[%s0 + $0x14] sm:$0x3]
  %v21 = vld [vmem:[%s0 + $0x18] sm:$0xf]
  %v22 = vld [vmem:[%s0 + $0x1c] sm:$0xf]
  %v23 = vld [vmem:[%s0 + $0x20] sm:$0x3]
  %v24 = vld [vmem:[%s0 + $0x24] sm:$0xf]
  %v25 = vld [vmem:[%s0 + $0x28] sm:$0xf]
  %v26 = vld [vmem:[%s0 + $0x2c] sm:$0x3]
  %v27 = vld [vmem:[%s0 + $0x30] sm:$0xf]
  %v28 = vld [vmem:[%s0 + $0x34] sm:$0xf]
  %v29 = vld [vmem:[%s0 + $0x38] sm:$0x3]
  %v30 = vld [vmem:[%s0 + $0x3c] sm:$0xf]
  %v31 = vld [vmem:[%s0 + $0x40] sm:$0xf]
  %v32 = vld [vmem:[%s0 + $0x44] sm:$0x3]
  %v33 = vld [vmem:[%s0 + $0x48] sm:$0xf]
  %v34 = vld [vmem:[%s0 + $0x4c] sm:$0xf]
  %v35 = vld [vmem:[%s0 + $0x50] sm:$0x3]
  %v36 = vld [vmem:[%s0 + $0x54] sm:$0xf]
  %v37 = vld [vmem:[%s0 + $0x58] sm:$0xf]
  %v38 = vld [vmem:[%s0 + $0x5c] sm:$0x3]
  %v39 = vld [vmem:[%s0 + $0x60] sm:$0xf]
  %v40 = vld [vmem:[%s0 + $0x64] sm:$0xf]
  %v41 = vld [vmem:[%s0 + $0x68] sm:$0x3]
  %v42 = vld [vmem:[%s0 + $0x6c] sm:$0xf]
  %v43 = vld [vmem:[%s0 + $0x70] sm:$0xf]
  %v44 = vld [vmem:[%s0 + $0x74] sm:$0x3]
  %v45 = vld [vmem:[%s0 + $0x78] sm:$0xf]
  %v46 = vld [vmem:[%s0 + $0x7c] sm:$0xf]
  %v47 = vld [vmem:[%s0 + $0x80] sm:$0x3]
  %v48 = vld [vmem:[%s0 + $0x84] sm:$0xf]
  %v49 = vld [vmem:[%s0 + $0x88] sm:$0xf]
  %v50 = vld [vmem:[%s0 + $0x8c] sm:$0x3]
  %v51 = vld [vmem:[%s0 + $0x90] sm:$0xf]
  %v52 = vld [vmem:[%s0 + $0x94] sm:$0xf]
  %v53 = vld [vmem:[%s0 + $0x98] sm:$0x3]
  %v54 = vld [vmem:[%s0 + $0x9c] sm:$0xf]
  %v55 = vld [vmem:[%s0 + $0xa0] sm:$0xf]
  %v56 = vld [vmem:[%s0 + $0xa4] sm:$0x3]
  %v57 = vld [vmem:[%s0 + $0xa8] sm:$0xf]
  %v58 = vld [vmem:[%s0 + $0xac] sm:$0xf]
  %v59 = vld [vmem:[%s0 + $0xb0] sm:$0x3]
  %v60 = vld [vmem:[%s0 + $0xb4] sm:$0xf]
  %v61 = vld [vmem:[%s0 + $0xb8] sm:$0xf]
  %v62 = vld [vmem:[%s0 + $0xbc] sm:$0x3]
  %v63 = vld [vmem:[%s0 + $0xc0] sm:$0xf]
  %v64 = vld [vmem:[%s0 + $0xc4] sm:$0xf]
  %v65 = vld [vmem:[%s0 + $0xc8] sm:$0x3]
  %v66 = vld [vmem:[%s0 + $0xcc] sm:$0xf]
  %v67 = vld [vmem:[%s0 + $0xd0] sm:$0xf]
  %v68 = vld [vmem:[%s0 + $0xd4] sm:$0x3]
  %v69 = vld [vmem:[%s0 + $0xd8] sm:$0xf]
  %v70 = vld [vmem:[%s0 + $0xdc] sm:$0xf]
  %v71 = vld [vmem:[%s0 + $0xe0] sm:$0x3]
  %v72 = vld [vmem:[%s0 + $0xe4] sm:$0xf]
  %v73 = vld [vmem:[%s0 + $0xe8] sm:$0xf]
  %v74 = vld [vmem:[%s0 + $0xec] sm:$0x3]
  %v75 = vld [vmem:[%s0 + $0xf0] sm:$0xf]
  %v76 = vld [vmem:[%s0 + $0xf4] sm:$0xf]
  %v77 = vld [vmem:[%s0 + $0xf8] sm:$0x3]
  %v78 = vld [vmem:[%s0 + $0xfc] sm:$0xf]
  %v79 = vld [vmem:[%s0 + $0x100] sm:$0xf]
  %v80 = vld [vmem:[%s0 + $0x104] sm:$0x3]
  %v81 = vld [vmem:[%s0 + $0x108] sm:$0xf]
  %v82 = vld [vmem:[%s0 + $0x10c] sm:$0xf]
  %v83 = vld [vmem:[%s0 + $0x110] sm:$0x3]
  %v84 = vld [vmem:[%s0 + $0x114] sm:$0xf]
  %v85 = vld [vmem:[%s0 + $0x118] sm:$0xf]
  %v86 = vld [vmem:[%s0 + $0x11c] sm:$0x3]
  %v87 = vld [vmem:[%s0 + $0x120] sm:$0xf]
  %v88 = vld [vmem:[%s0 + $0x124] sm:$0xf]
  %v89 = vld [vmem:[%s0 + $0x128] sm:$0x3]
  %v127 = vunpack.c.l.s4 1966171168
  %v128 = vunpack.c.0.s8 %v127
  %v129 = vlaneseq
  %v130 = vshrl.u32 %v129, 7
  %v131 = vsub.s32 %v128, %v130
  %v132 = vrot.slane %v15, %v131
  %v133 = vcombine.high %v132, %v132
  %v135 = vunpack.c.l.s4 1966171168
  %v136 = vunpack.c.0.s8 %v135
  %v137 = vlaneseq
  %v138 = vshrl.u32 %v137, 7
  %v139 = vsub.s32 %v136, %v138
  %v140 = vrot.slane %v132, %v139
  %v142 = vunpack.c.l.s4 1966171168
  %v143 = vunpack.c.0.s8 %v142
  %v144 = vlaneseq
  %v145 = vshrl.u32 %v144, 7
  %v146 = vsub.s32 %v143, %v145
  %v147 = vrot.slane %v133, %v146
  %v148 = vcombine.high %v140, %v140
  %v149 = vcombine.high %v147, %v147
  %v151 = vunpack.c.l.s4 1966171168
  %v152 = vunpack.c.0.s8 %v151
  %v153 = vlaneseq
  %v154 = vshrl.u32 %v153, 7
  %v155 = vsub.s32 %v152, %v154
  %v156 = vrot.slane %v16, %v155
  %v157 = vcombine.high %v156, %v156
  %v159 = vunpack.c.l.s4 1966171168
  %v160 = vunpack.c.0.s8 %v159
  %v161 = vlaneseq
  %v162 = vshrl.u32 %v161, 7
  %v163 = vsub.s32 %v160, %v162
  %v164 = vrot.slane %v156, %v163
  %v166 = vunpack.c.l.s4 1966171168
  %v167 = vunpack.c.0.s8 %v166
  %v168 = vlaneseq
  %v169 = vshrl.u32 %v168, 7
  %v170 = vsub.s32 %v167, %v169
  %v171 = vrot.slane %v157, %v170
  %v172 = vcombine.high %v164, %v164
  %v173 = vcombine.high %v171, %v171
  %v175 = vunpack.c.l.s4 1966171168
  %v176 = vunpack.c.0.s8 %v175
  %v177 = vlaneseq
  %v178 = vshrl.u32 %v177, 7
  %v179 = vsub.s32 %v176, %v178
  %v180 = vrot.slane %v17, %v179
  %v181 = vcombine.high %v180, %v180
  %v183 = vunpack.c.l.s4 1966171168
  %v184 = vunpack.c.0.s8 %v183
  %v185 = vlaneseq
  %v186 = vshrl.u32 %v185, 7
  %v187 = vsub.s32 %v184, %v186
  %v188 = vrot.slane %v180, %v187
  %v190 = vunpack.c.l.s4 1966171168
  %v191 = vunpack.c.0.s8 %v190
  %v192 = vlaneseq
  %v193 = vshrl.u32 %v192, 7
  %v194 = vsub.s32 %v191, %v193
  %v195 = vrot.slane %v181, %v194
  %v197 = vunpack.c.l.s4 1966171168
  %v198 = vunpack.c.0.s8 %v197
  %v199 = vlaneseq
  %v200 = vshrl.u32 %v199, 7
  %v201 = vsub.s32 %v198, %v200
  %v202 = vrot.slane %v21, %v201
  %v203 = vcombine.high %v202, %v202
  %v205 = vunpack.c.l.s4 1966171168
  %v206 = vunpack.c.0.s8 %v205
  %v207 = vlaneseq
  %v208 = vshrl.u32 %v207, 7
  %v209 = vsub.s32 %v206, %v208
  %v210 = vrot.slane %v202, %v209
  %v212 = vunpack.c.l.s4 1966171168
  %v213 = vunpack.c.0.s8 %v212
  %v214 = vlaneseq
  %v215 = vshrl.u32 %v214, 7
  %v216 = vsub.s32 %v213, %v215
  %v217 = vrot.slane %v203, %v216
  %v218 = vcombine.high %v210, %v210
  %v219 = vcombine.high %v217, %v217
  %v221 = vunpack.c.l.s4 1966171168
  %v222 = vunpack.c.0.s8 %v221
  %v223 = vlaneseq
  %v224 = vshrl.u32 %v223, 7
  %v225 = vsub.s32 %v222, %v224
  %v226 = vrot.slane %v22, %v225
  %v227 = vcombine.high %v226, %v226
  %v229 = vunpack.c.l.s4 1966171168
  %v230 = vunpack.c.0.s8 %v229
  %v231 = vlaneseq
  %v232 = vshrl.u32 %v231, 7
  %v233 = vsub.s32 %v230, %v232
  %v234 = vrot.slane %v226, %v233
  %v236 = vunpack.c.l.s4 1966171168
  %v237 = vunpack.c.0.s8 %v236
  %v238 = vlaneseq
  %v239 = vshrl.u32 %v238, 7
  %v240 = vsub.s32 %v237, %v239
  %v241 = vrot.slane %v227, %v240
  %v242 = vcombine.high %v234, %v234
  %v243 = vcombine.high %v241, %v241
  %v245 = vunpack.c.l.s4 1966171168
  %v246 = vunpack.c.0.s8 %v245
  %v247 = vlaneseq
  %v248 = vshrl.u32 %v247, 7
  %v249 = vsub.s32 %v246, %v248
  %v250 = vrot.slane %v23, %v249
  %v251 = vcombine.high %v250, %v250
  %v253 = vunpack.c.l.s4 1966171168
  %v254 = vunpack.c.0.s8 %v253
  %v255 = vlaneseq
  %v256 = vshrl.u32 %v255, 7
  %v257 = vsub.s32 %v254, %v256
  %v258 = vrot.slane %v250, %v257
  %v260 = vunpack.c.l.s4 1966171168
  %v261 = vunpack.c.0.s8 %v260
  %v262 = vlaneseq
  %v263 = vshrl.u32 %v262, 7
  %v264 = vsub.s32 %v261, %v263
  %v265 = vrot.slane %v251, %v264
  %v267 = vunpack.c.l.s4 1966171168
  %v268 = vunpack.c.0.s8 %v267
  %v269 = vlaneseq
  %v270 = vshrl.u32 %v269, 7
  %v271 = vsub.s32 %v268, %v270
  %v272 = vrot.slane %v27, %v271
  %v273 = vcombine.high %v272, %v272
  %v275 = vunpack.c.l.s4 1966171168
  %v276 = vunpack.c.0.s8 %v275
  %v277 = vlaneseq
  %v278 = vshrl.u32 %v277, 7
  %v279 = vsub.s32 %v276, %v278
  %v280 = vrot.slane %v272, %v279
  %v282 = vunpack.c.l.s4 1966171168
  %v283 = vunpack.c.0.s8 %v282
  %v284 = vlaneseq
  %v285 = vshrl.u32 %v284, 7
  %v286 = vsub.s32 %v283, %v285
  %v287 = vrot.slane %v273, %v286
  %v288 = vcombine.high %v280, %v280
  %v289 = vcombine.high %v287, %v287
  %v291 = vunpack.c.l.s4 1966171168
  %v292 = vunpack.c.0.s8 %v291
  %v293 = vlaneseq
  %v294 = vshrl.u32 %v293, 7
  %v295 = vsub.s32 %v292, %v294
  %v296 = vrot.slane %v28, %v295
  %v297 = vcombine.high %v296, %v296
  %v299 = vunpack.c.l.s4 1966171168
  %v300 = vunpack.c.0.s8 %v299
  %v301 = vlaneseq
  %v302 = vshrl.u32 %v301, 7
  %v303 = vsub.s32 %v300, %v302
  %v304 = vrot.slane %v296, %v303
  %v306 = vunpack.c.l.s4 1966171168
  %v307 = vunpack.c.0.s8 %v306
  %v308 = vlaneseq
  %v309 = vshrl.u32 %v308, 7
  %v310 = vsub.s32 %v307, %v309
  %v311 = vrot.slane %v297, %v310
  %v312 = vcombine.high %v304, %v304
  %v313 = vcombine.high %v311, %v311
  %v315 = vunpack.c.l.s4 1966171168
  %v316 = vunpack.c.0.s8 %v315
  %v317 = vlaneseq
  %v318 = vshrl.u32 %v317, 7
  %v319 = vsub.s32 %v316, %v318
  %v320 = vrot.slane %v29, %v319
  %v321 = vcombine.high %v320, %v320
  %v323 = vunpack.c.l.s4 1966171168
  %v324 = vunpack.c.0.s8 %v323
  %v325 = vlaneseq
  %v326 = vshrl.u32 %v325, 7
  %v327 = vsub.s32 %v324, %v326
  %v328 = vrot.slane %v320, %v327
  %v330 = vunpack.c.l.s4 1966171168
  %v331 = vunpack.c.0.s8 %v330
  %v332 = vlaneseq
  %v333 = vshrl.u32 %v332, 7
  %v334 = vsub.s32 %v331, %v333
  %v335 = vrot.slane %v321, %v334
  %v337 = vunpack.c.l.s4 1966171168
  %v338 = vunpack.c.0.s8 %v337
  %v339 = vlaneseq
  %v340 = vshrl.u32 %v339, 7
  %v341 = vsub.s32 %v338, %v340
  %v342 = vrot.slane %v33, %v341
  %v343 = vcombine.high %v342, %v342
  %v345 = vunpack.c.l.s4 1966171168
  %v346 = vunpack.c.0.s8 %v345
  %v347 = vlaneseq
  %v348 = vshrl.u32 %v347, 7
  %v349 = vsub.s32 %v346, %v348
  %v350 = vrot.slane %v342, %v349
  %v352 = vunpack.c.l.s4 1966171168
  %v353 = vunpack.c.0.s8 %v352
  %v354 = vlaneseq
  %v355 = vshrl.u32 %v354, 7
  %v356 = vsub.s32 %v353, %v355
  %v357 = vrot.slane %v343, %v356
  %v358 = vcombine.high %v350, %v350
  %v359 = vcombine.high %v357, %v357
  %v361 = vunpack.c.l.s4 1966171168
  %v362 = vunpack.c.0.s8 %v361
  %v363 = vlaneseq
  %v364 = vshrl.u32 %v363, 7
  %v365 = vsub.s32 %v362, %v364
  %v366 = vrot.slane %v34, %v365
  %v367 = vcombine.high %v366, %v366
  %v369 = vunpack.c.l.s4 1966171168
  %v370 = vunpack.c.0.s8 %v369
  %v371 = vlaneseq
  %v372 = vshrl.u32 %v371, 7
  %v373 = vsub.s32 %v370, %v372
  %v374 = vrot.slane %v366, %v373
  %v376 = vunpack.c.l.s4 1966171168
  %v377 = vunpack.c.0.s8 %v376
  %v378 = vlaneseq
  %v379 = vshrl.u32 %v378, 7
  %v380 = vsub.s32 %v377, %v379
  %v381 = vrot.slane %v367, %v380
  %v382 = vcombine.high %v374, %v374
  %v383 = vcombine.high %v381, %v381
  %v385 = vunpack.c.l.s4 1966171168
  %v386 = vunpack.c.0.s8 %v385
  %v387 = vlaneseq
  %v388 = vshrl.u32 %v387, 7
  %v389 = vsub.s32 %v386, %v388
  %v390 = vrot.slane %v35, %v389
  %v391 = vcombine.high %v390, %v390
  %v393 = vunpack.c.l.s4 1966171168
  %v394 = vunpack.c.0.s8 %v393
  %v395 = vlaneseq
  %v396 = vshrl.u32 %v395, 7
  %v397 = vsub.s32 %v394, %v396
  %v398 = vrot.slane %v390, %v397
  %v400 = vunpack.c.l.s4 1966171168
  %v401 = vunpack.c.0.s8 %v400
  %v402 = vlaneseq
  %v403 = vshrl.u32 %v402, 7
  %v404 = vsub.s32 %v401, %v403
  %v405 = vrot.slane %v391, %v404
  %v407 = vunpack.c.l.s4 1966171168
  %v408 = vunpack.c.0.s8 %v407
  %v409 = vlaneseq
  %v410 = vshrl.u32 %v409, 7
  %v411 = vsub.s32 %v408, %v410
  %v412 = vrot.slane %v39, %v411
  %v413 = vcombine.high %v412, %v412
  %v415 = vunpack.c.l.s4 1966171168
  %v416 = vunpack.c.0.s8 %v415
  %v417 = vlaneseq
  %v418 = vshrl.u32 %v417, 7
  %v419 = vsub.s32 %v416, %v418
  %v420 = vrot.slane %v412, %v419
  %v422 = vunpack.c.l.s4 1966171168
  %v423 = vunpack.c.0.s8 %v422
  %v424 = vlaneseq
  %v425 = vshrl.u32 %v424, 7
  %v426 = vsub.s32 %v423, %v425
  %v427 = vrot.slane %v413, %v426
  %v428 = vcombine.high %v420, %v420
  %v429 = vcombine.high %v427, %v427
  %v431 = vunpack.c.l.s4 1966171168
  %v432 = vunpack.c.0.s8 %v431
  %v433 = vlaneseq
  %v434 = vshrl.u32 %v433, 7
  %v435 = vsub.s32 %v432, %v434
  %v436 = vrot.slane %v40, %v435
  %v437 = vcombine.high %v436, %v436
  %v439 = vunpack.c.l.s4 1966171168
  %v440 = vunpack.c.0.s8 %v439
  %v441 = vlaneseq
  %v442 = vshrl.u32 %v441, 7
  %v443 = vsub.s32 %v440, %v442
  %v444 = vrot.slane %v436, %v443
  %v446 = vunpack.c.l.s4 1966171168
  %v447 = vunpack.c.0.s8 %v446
  %v448 = vlaneseq
  %v449 = vshrl.u32 %v448, 7
  %v450 = vsub.s32 %v447, %v449
  %v451 = vrot.slane %v437, %v450
  %v452 = vcombine.high %v444, %v444
  %v453 = vcombine.high %v451, %v451
  %v455 = vunpack.c.l.s4 1966171168
  %v456 = vunpack.c.0.s8 %v455
  %v457 = vlaneseq
  %v458 = vshrl.u32 %v457, 7
  %v459 = vsub.s32 %v456, %v458
  %v460 = vrot.slane %v41, %v459
  %v461 = vcombine.high %v460, %v460
  %v463 = vunpack.c.l.s4 1966171168
  %v464 = vunpack.c.0.s8 %v463
  %v465 = vlaneseq
  %v466 = vshrl.u32 %v465, 7
  %v467 = vsub.s32 %v464, %v466
  %v468 = vrot.slane %v460, %v467
  %v470 = vunpack.c.l.s4 1966171168
  %v471 = vunpack.c.0.s8 %v470
  %v472 = vlaneseq
  %v473 = vshrl.u32 %v472, 7
  %v474 = vsub.s32 %v471, %v473
  %v475 = vrot.slane %v461, %v474
  %v477 = vunpack.c.l.s4 1966171168
  %v478 = vunpack.c.0.s8 %v477
  %v479 = vlaneseq
  %v480 = vshrl.u32 %v479, 7
  %v481 = vsub.s32 %v478, %v480
  %v482 = vrot.slane %v45, %v481
  %v483 = vcombine.high %v482, %v482
  %v485 = vunpack.c.l.s4 1966171168
  %v486 = vunpack.c.0.s8 %v485
  %v487 = vlaneseq
  %v488 = vshrl.u32 %v487, 7
  %v489 = vsub.s32 %v486, %v488
  %v490 = vrot.slane %v482, %v489
  %v492 = vunpack.c.l.s4 1966171168
  %v493 = vunpack.c.0.s8 %v492
  %v494 = vlaneseq
  %v495 = vshrl.u32 %v494, 7
  %v496 = vsub.s32 %v493, %v495
  %v497 = vrot.slane %v483, %v496
  %v498 = vcombine.high %v490, %v490
  %v499 = vcombine.high %v497, %v497
  %v501 = vunpack.c.l.s4 1966171168
  %v502 = vunpack.c.0.s8 %v501
  %v503 = vlaneseq
  %v504 = vshrl.u32 %v503, 7
  %v505 = vsub.s32 %v502, %v504
  %v506 = vrot.slane %v46, %v505
  %v507 = vcombine.high %v506, %v506
  %v509 = vunpack.c.l.s4 1966171168
  %v510 = vunpack.c.0.s8 %v509
  %v511 = vlaneseq
  %v512 = vshrl.u32 %v511, 7
  %v513 = vsub.s32 %v510, %v512
  %v514 = vrot.slane %v506, %v513
  %v516 = vunpack.c.l.s4 1966171168
  %v517 = vunpack.c.0.s8 %v516
  %v518 = vlaneseq
  %v519 = vshrl.u32 %v518, 7
  %v520 = vsub.s32 %v517, %v519
  %v521 = vrot.slane %v507, %v520
  %v522 = vcombine.high %v514, %v514
  %v523 = vcombine.high %v521, %v521
  %v525 = vunpack.c.l.s4 1966171168
  %v526 = vunpack.c.0.s8 %v525
  %v527 = vlaneseq
  %v528 = vshrl.u32 %v527, 7
  %v529 = vsub.s32 %v526, %v528
  %v530 = vrot.slane %v47, %v529
  %v531 = vcombine.high %v530, %v530
  %v533 = vunpack.c.l.s4 1966171168
  %v534 = vunpack.c.0.s8 %v533
  %v535 = vlaneseq
  %v536 = vshrl.u32 %v535, 7
  %v537 = vsub.s32 %v534, %v536
  %v538 = vrot.slane %v530, %v537
  %v540 = vunpack.c.l.s4 1966171168
  %v541 = vunpack.c.0.s8 %v540
  %v542 = vlaneseq
  %v543 = vshrl.u32 %v542, 7
  %v544 = vsub.s32 %v541, %v543
  %v545 = vrot.slane %v531, %v544
  %v547 = vunpack.c.l.s4 1966171168
  %v548 = vunpack.c.0.s8 %v547
  %v549 = vlaneseq
  %v550 = vshrl.u32 %v549, 7
  %v551 = vsub.s32 %v548, %v550
  %v552 = vrot.slane %v51, %v551
  %v553 = vcombine.high %v552, %v552
  %v555 = vunpack.c.l.s4 1966171168
  %v556 = vunpack.c.0.s8 %v555
  %v557 = vlaneseq
  %v558 = vshrl.u32 %v557, 7
  %v559 = vsub.s32 %v556, %v558
  %v560 = vrot.slane %v552, %v559
  %v562 = vunpack.c.l.s4 1966171168
  %v563 = vunpack.c.0.s8 %v562
  %v564 = vlaneseq
  %v565 = vshrl.u32 %v564, 7
  %v566 = vsub.s32 %v563, %v565
  %v567 = vrot.slane %v553, %v566
  %v568 = vcombine.high %v560, %v560
  %v569 = vcombine.high %v567, %v567
  %v571 = vunpack.c.l.s4 1966171168
  %v572 = vunpack.c.0.s8 %v571
  %v573 = vlaneseq
  %v574 = vshrl.u32 %v573, 7
  %v575 = vsub.s32 %v572, %v574
  %v576 = vrot.slane %v52, %v575
  %v577 = vcombine.high %v576, %v576
  %v579 = vunpack.c.l.s4 1966171168
  %v580 = vunpack.c.0.s8 %v579
  %v581 = vlaneseq
  %v582 = vshrl.u32 %v581, 7
  %v583 = vsub.s32 %v580, %v582
  %v584 = vrot.slane %v576, %v583
  %v586 = vunpack.c.l.s4 1966171168
  %v587 = vunpack.c.0.s8 %v586
  %v588 = vlaneseq
  %v589 = vshrl.u32 %v588, 7
  %v590 = vsub.s32 %v587, %v589
  %v591 = vrot.slane %v577, %v590
  %v592 = vcombine.high %v584, %v584
  %v593 = vcombine.high %v591, %v591
  %v595 = vunpack.c.l.s4 1966171168
  %v596 = vunpack.c.0.s8 %v595
  %v597 = vlaneseq
  %v598 = vshrl.u32 %v597, 7
  %v599 = vsub.s32 %v596, %v598
  %v600 = vrot.slane %v53, %v599
  %v601 = vcombine.high %v600, %v600
  %v603 = vunpack.c.l.s4 1966171168
  %v604 = vunpack.c.0.s8 %v603
  %v605 = vlaneseq
  %v606 = vshrl.u32 %v605, 7
  %v607 = vsub.s32 %v604, %v606
  %v608 = vrot.slane %v600, %v607
  %v610 = vunpack.c.l.s4 1966171168
  %v611 = vunpack.c.0.s8 %v610
  %v612 = vlaneseq
  %v613 = vshrl.u32 %v612, 7
  %v614 = vsub.s32 %v611, %v613
  %v615 = vrot.slane %v601, %v614
  %v617 = vunpack.c.l.s4 1966171168
  %v618 = vunpack.c.0.s8 %v617
  %v619 = vlaneseq
  %v620 = vshrl.u32 %v619, 7
  %v621 = vsub.s32 %v618, %v620
  %v622 = vrot.slane %v57, %v621
  %v623 = vcombine.high %v622, %v622
  %v625 = vunpack.c.l.s4 1966171168
  %v626 = vunpack.c.0.s8 %v625
  %v627 = vlaneseq
  %v628 = vshrl.u32 %v627, 7
  %v629 = vsub.s32 %v626, %v628
  %v630 = vrot.slane %v622, %v629
  %v632 = vunpack.c.l.s4 1966171168
  %v633 = vunpack.c.0.s8 %v632
  %v634 = vlaneseq
  %v635 = vshrl.u32 %v634, 7
  %v636 = vsub.s32 %v633, %v635
  %v637 = vrot.slane %v623, %v636
  %v638 = vcombine.high %v630, %v630
  %v639 = vcombine.high %v637, %v637
  %v641 = vunpack.c.l.s4 1966171168
  %v642 = vunpack.c.0.s8 %v641
  %v643 = vlaneseq
  %v644 = vshrl.u32 %v643, 7
  %v645 = vsub.s32 %v642, %v644
  %v646 = vrot.slane %v58, %v645
  %v647 = vcombine.high %v646, %v646
  %v649 = vunpack.c.l.s4 1966171168
  %v650 = vunpack.c.0.s8 %v649
  %v651 = vlaneseq
  %v652 = vshrl.u32 %v651, 7
  %v653 = vsub.s32 %v650, %v652
  %v654 = vrot.slane %v646, %v653
  %v656 = vunpack.c.l.s4 1966171168
  %v657 = vunpack.c.0.s8 %v656
  %v658 = vlaneseq
  %v659 = vshrl.u32 %v658, 7
  %v660 = vsub.s32 %v657, %v659
  %v661 = vrot.slane %v647, %v660
  %v662 = vcombine.high %v654, %v654
  %v663 = vcombine.high %v661, %v661
  %v665 = vunpack.c.l.s4 1966171168
  %v666 = vunpack.c.0.s8 %v665
  %v667 = vlaneseq
  %v668 = vshrl.u32 %v667, 7
  %v669 = vsub.s32 %v666, %v668
  %v670 = vrot.slane %v59, %v669
  %v671 = vcombine.high %v670, %v670
  %v673 = vunpack.c.l.s4 1966171168
  %v674 = vunpack.c.0.s8 %v673
  %v675 = vlaneseq
  %v676 = vshrl.u32 %v675, 7
  %v677 = vsub.s32 %v674, %v676
  %v678 = vrot.slane %v670, %v677
  %v680 = vunpack.c.l.s4 1966171168
  %v681 = vunpack.c.0.s8 %v680
  %v682 = vlaneseq
  %v683 = vshrl.u32 %v682, 7
  %v684 = vsub.s32 %v681, %v683
  %v685 = vrot.slane %v671, %v684
  %v687 = vunpack.c.l.s4 1966171168
  %v688 = vunpack.c.0.s8 %v687
  %v689 = vlaneseq
  %v690 = vshrl.u32 %v689, 7
  %v691 = vsub.s32 %v688, %v690
  %v692 = vrot.slane %v63, %v691
  %v693 = vcombine.high %v692, %v692
  %v695 = vunpack.c.l.s4 1966171168
  %v696 = vunpack.c.0.s8 %v695
  %v697 = vlaneseq
  %v698 = vshrl.u32 %v697, 7
  %v699 = vsub.s32 %v696, %v698
  %v700 = vrot.slane %v692, %v699
  %v702 = vunpack.c.l.s4 1966171168
  %v703 = vunpack.c.0.s8 %v702
  %v704 = vlaneseq
  %v705 = vshrl.u32 %v704, 7
  %v706 = vsub.s32 %v703, %v705
  %v707 = vrot.slane %v693, %v706
  %v708 = vcombine.high %v700, %v700
  %v709 = vcombine.high %v707, %v707
  %v711 = vunpack.c.l.s4 1966171168
  %v712 = vunpack.c.0.s8 %v711
  %v713 = vlaneseq
  %v714 = vshrl.u32 %v713, 7
  %v715 = vsub.s32 %v712, %v714
  %v716 = vrot.slane %v64, %v715
  %v717 = vcombine.high %v716, %v716
  %v719 = vunpack.c.l.s4 1966171168
  %v720 = vunpack.c.0.s8 %v719
  %v721 = vlaneseq
  %v722 = vshrl.u32 %v721, 7
  %v723 = vsub.s32 %v720, %v722
  %v724 = vrot.slane %v716, %v723
  %v726 = vunpack.c.l.s4 1966171168
  %v727 = vunpack.c.0.s8 %v726
  %v728 = vlaneseq
  %v729 = vshrl.u32 %v728, 7
  %v730 = vsub.s32 %v727, %v729
  %v731 = vrot.slane %v717, %v730
  %v732 = vcombine.high %v724, %v724
  %v733 = vcombine.high %v731, %v731
  %v735 = vunpack.c.l.s4 1966171168
  %v736 = vunpack.c.0.s8 %v735
  %v737 = vlaneseq
  %v738 = vshrl.u32 %v737, 7
  %v739 = vsub.s32 %v736, %v738
  %v740 = vrot.slane %v65, %v739
  %v741 = vcombine.high %v740, %v740
  %v743 = vunpack.c.l.s4 1966171168
  %v744 = vunpack.c.0.s8 %v743
  %v745 = vlaneseq
  %v746 = vshrl.u32 %v745, 7
  %v747 = vsub.s32 %v744, %v746
  %v748 = vrot.slane %v740, %v747
  %v750 = vunpack.c.l.s4 1966171168
  %v751 = vunpack.c.0.s8 %v750
  %v752 = vlaneseq
  %v753 = vshrl.u32 %v752, 7
  %v754 = vsub.s32 %v751, %v753
  %v755 = vrot.slane %v741, %v754
  %v757 = vunpack.c.l.s4 1966171168
  %v758 = vunpack.c.0.s8 %v757
  %v759 = vlaneseq
  %v760 = vshrl.u32 %v759, 7
  %v761 = vsub.s32 %v758, %v760
  %v762 = vrot.slane %v69, %v761
  %v763 = vcombine.high %v762, %v762
  %v765 = vunpack.c.l.s4 1966171168
  %v766 = vunpack.c.0.s8 %v765
  %v767 = vlaneseq
  %v768 = vshrl.u32 %v767, 7
  %v769 = vsub.s32 %v766, %v768
  %v770 = vrot.slane %v762, %v769
  %v772 = vunpack.c.l.s4 1966171168
  %v773 = vunpack.c.0.s8 %v772
  %v774 = vlaneseq
  %v775 = vshrl.u32 %v774, 7
  %v776 = vsub.s32 %v773, %v775
  %v777 = vrot.slane %v763, %v776
  %v778 = vcombine.high %v770, %v770
  %v779 = vcombine.high %v777, %v777
  %v781 = vunpack.c.l.s4 1966171168
  %v782 = vunpack.c.0.s8 %v781
  %v783 = vlaneseq
  %v784 = vshrl.u32 %v783, 7
  %v785 = vsub.s32 %v782, %v784
  %v786 = vrot.slane %v70, %v785
  %v787 = vcombine.high %v786, %v786
  %v789 = vunpack.c.l.s4 1966171168
  %v790 = vunpack.c.0.s8 %v789
  %v791 = vlaneseq
  %v792 = vshrl.u32 %v791, 7
  %v793 = vsub.s32 %v790, %v792
  %v794 = vrot.slane %v786, %v793
  %v796 = vunpack.c.l.s4 1966171168
  %v797 = vunpack.c.0.s8 %v796
  %v798 = vlaneseq
  %v799 = vshrl.u32 %v798, 7
  %v800 = vsub.s32 %v797, %v799
  %v801 = vrot.slane %v787, %v800
  %v802 = vcombine.high %v794, %v794
  %v803 = vcombine.high %v801, %v801
  %v805 = vunpack.c.l.s4 1966171168
  %v806 = vunpack.c.0.s8 %v805
  %v807 = vlaneseq
  %v808 = vshrl.u32 %v807, 7
  %v809 = vsub.s32 %v806, %v808
  %v810 = vrot.slane %v71, %v809
  %v811 = vcombine.high %v810, %v810
  %v813 = vunpack.c.l.s4 1966171168
  %v814 = vunpack.c.0.s8 %v813
  %v815 = vlaneseq
  %v816 = vshrl.u32 %v815, 7
  %v817 = vsub.s32 %v814, %v816
  %v818 = vrot.slane %v810, %v817
  %v820 = vunpack.c.l.s4 1966171168
  %v821 = vunpack.c.0.s8 %v820
  %v822 = vlaneseq
  %v823 = vshrl.u32 %v822, 7
  %v824 = vsub.s32 %v821, %v823
  %v825 = vrot.slane %v811, %v824
  %v827 = vunpack.c.l.s4 1966171168
  %v828 = vunpack.c.0.s8 %v827
  %v829 = vlaneseq
  %v830 = vshrl.u32 %v829, 7
  %v831 = vsub.s32 %v828, %v830
  %v832 = vrot.slane %v75, %v831
  %v833 = vcombine.high %v832, %v832
  %v835 = vunpack.c.l.s4 1966171168
  %v836 = vunpack.c.0.s8 %v835
  %v837 = vlaneseq
  %v838 = vshrl.u32 %v837, 7
  %v839 = vsub.s32 %v836, %v838
  %v840 = vrot.slane %v832, %v839
  %v842 = vunpack.c.l.s4 1966171168
  %v843 = vunpack.c.0.s8 %v842
  %v844 = vlaneseq
  %v845 = vshrl.u32 %v844, 7
  %v846 = vsub.s32 %v843, %v845
  %v847 = vrot.slane %v833, %v846
  %v848 = vcombine.high %v840, %v840
  %v849 = vcombine.high %v847, %v847
  %v851 = vunpack.c.l.s4 1966171168
  %v852 = vunpack.c.0.s8 %v851
  %v853 = vlaneseq
  %v854 = vshrl.u32 %v853, 7
  %v855 = vsub.s32 %v852, %v854
  %v856 = vrot.slane %v76, %v855
  %v857 = vcombine.high %v856, %v856
  %v859 = vunpack.c.l.s4 1966171168
  %v860 = vunpack.c.0.s8 %v859
  %v861 = vlaneseq
  %v862 = vshrl.u32 %v861, 7
  %v863 = vsub.s32 %v860, %v862
  %v864 = vrot.slane %v856, %v863
  %v866 = vunpack.c.l.s4 1966171168
  %v867 = vunpack.c.0.s8 %v866
  %v868 = vlaneseq
  %v869 = vshrl.u32 %v868, 7
  %v870 = vsub.s32 %v867, %v869
  %v871 = vrot.slane %v857, %v870
  %v872 = vcombine.high %v864, %v864
  %v873 = vcombine.high %v871, %v871
  %v875 = vunpack.c.l.s4 1966171168
  %v876 = vunpack.c.0.s8 %v875
  %v877 = vlaneseq
  %v878 = vshrl.u32 %v877, 7
  %v879 = vsub.s32 %v876, %v878
  %v880 = vrot.slane %v77, %v879
  %v881 = vcombine.high %v880, %v880
  %v883 = vunpack.c.l.s4 1966171168
  %v884 = vunpack.c.0.s8 %v883
  %v885 = vlaneseq
  %v886 = vshrl.u32 %v885, 7
  %v887 = vsub.s32 %v884, %v886
  %v888 = vrot.slane %v880, %v887
  %v890 = vunpack.c.l.s4 1966171168
  %v891 = vunpack.c.0.s8 %v890
  %v892 = vlaneseq
  %v893 = vshrl.u32 %v892, 7
  %v894 = vsub.s32 %v891, %v893
  %v895 = vrot.slane %v881, %v894
  %v897 = vunpack.c.l.s4 1966171168
  %v898 = vunpack.c.0.s8 %v897
  %v899 = vlaneseq
  %v900 = vshrl.u32 %v899, 7
  %v901 = vsub.s32 %v898, %v900
  %v902 = vrot.slane %v81, %v901
  %v903 = vcombine.high %v902, %v902
  %v905 = vunpack.c.l.s4 1966171168
  %v906 = vunpack.c.0.s8 %v905
  %v907 = vlaneseq
  %v908 = vshrl.u32 %v907, 7
  %v909 = vsub.s32 %v906, %v908
  %v910 = vrot.slane %v902, %v909
  %v912 = vunpack.c.l.s4 1966171168
  %v913 = vunpack.c.0.s8 %v912
  %v914 = vlaneseq
  %v915 = vshrl.u32 %v914, 7
  %v916 = vsub.s32 %v913, %v915
  %v917 = vrot.slane %v903, %v916
  %v918 = vcombine.high %v910, %v910
  %v919 = vcombine.high %v917, %v917
  %v921 = vunpack.c.l.s4 1966171168
  %v922 = vunpack.c.0.s8 %v921
  %v923 = vlaneseq
  %v924 = vshrl.u32 %v923, 7
  %v925 = vsub.s32 %v922, %v924
  %v926 = vrot.slane %v82, %v925
  %v927 = vcombine.high %v926, %v926
  %v929 = vunpack.c.l.s4 1966171168
  %v930 = vunpack.c.0.s8 %v929
  %v931 = vlaneseq
  %v932 = vshrl.u32 %v931, 7
  %v933 = vsub.s32 %v930, %v932
  %v934 = vrot.slane %v926, %v933
  %v936 = vunpack.c.l.s4 1966171168
  %v937 = vunpack.c.0.s8 %v936
  %v938 = vlaneseq
  %v939 = vshrl.u32 %v938, 7
  %v940 = vsub.s32 %v937, %v939
  %v941 = vrot.slane %v927, %v940
  %v942 = vcombine.high %v934, %v934
  %v943 = vcombine.high %v941, %v941
  %v945 = vunpack.c.l.s4 1966171168
  %v946 = vunpack.c.0.s8 %v945
  %v947 = vlaneseq
  %v948 = vshrl.u32 %v947, 7
  %v949 = vsub.s32 %v946, %v948
  %v950 = vrot.slane %v83, %v949
  %v951 = vcombine.high %v950, %v950
  %v953 = vunpack.c.l.s4 1966171168
  %v954 = vunpack.c.0.s8 %v953
  %v955 = vlaneseq
  %v956 = vshrl.u32 %v955, 7
  %v957 = vsub.s32 %v954, %v956
  %v958 = vrot.slane %v950, %v957
  %v960 = vunpack.c.l.s4 1966171168
  %v961 = vunpack.c.0.s8 %v960
  %v962 = vlaneseq
  %v963 = vshrl.u32 %v962, 7
  %v964 = vsub.s32 %v961, %v963
  %v965 = vrot.slane %v951, %v964
  %v966 = vunpack.i.l.s16 %v140
  %v967 = vunpack.i.h.s16 %v140
  %v968 = vunpack.i.l.s16 %v147
  %v969 = vunpack.i.h.s16 %v147
  %v970 = vunpack.i.l.s16 %v148
  %v971 = vunpack.i.h.s16 %v148
  %v972 = vunpack.i.l.s16 %v149
  %v973 = vunpack.i.h.s16 %v149
  %v974 = vunpack.i.l.s16 %v164
  %v975 = vunpack.i.h.s16 %v164
  %v976 = vunpack.i.l.s16 %v171
  %v977 = vunpack.i.h.s16 %v171
  %v978 = vunpack.i.l.s16 %v172
  %v979 = vunpack.i.h.s16 %v172
  %v980 = vunpack.i.l.s16 %v173
  %v981 = vunpack.i.h.s16 %v173
  %v982 = vunpack.i.l.s16 %v188
  %v983 = vunpack.i.h.s16 %v188
  %v984 = vunpack.i.l.s16 %v195
  %v985 = vunpack.i.l.s16 %v210
  %v986 = vunpack.i.h.s16 %v210
  %v987 = vunpack.i.l.s16 %v217
  %v988 = vunpack.i.h.s16 %v217
  %v989 = vunpack.i.l.s16 %v218
  %v990 = vunpack.i.h.s16 %v218
  %v991 = vunpack.i.l.s16 %v219
  %v992 = vunpack.i.h.s16 %v219
  %v993 = vunpack.i.l.s16 %v234
  %v994 = vunpack.i.h.s16 %v234
  %v995 = vunpack.i.l.s16 %v241
  %v996 = vunpack.i.h.s16 %v241
  %v997 = vunpack.i.l.s16 %v242
  %v998 = vunpack.i.h.s16 %v242
  %v999 = vunpack.i.l.s16 %v243
  %v1000 = vunpack.i.h.s16 %v243
  %v1001 = vunpack.i.l.s16 %v258
  %v1002 = vunpack.i.h.s16 %v258
  %v1003 = vunpack.i.l.s16 %v265
  %v1004 = vunpack.i.l.s16 %v280
  %v1005 = vunpack.i.h.s16 %v280
  %v1006 = vunpack.i.l.s16 %v287
  %v1007 = vunpack.i.h.s16 %v287
  %v1008 = vunpack.i.l.s16 %v288
  %v1009 = vunpack.i.h.s16 %v288
  %v1010 = vunpack.i.l.s16 %v289
  %v1011 = vunpack.i.h.s16 %v289
  %v1012 = vunpack.i.l.s16 %v304
  %v1013 = vunpack.i.h.s16 %v304
  %v1014 = vunpack.i.l.s16 %v311
  %v1015 = vunpack.i.h.s16 %v311
  %v1016 = vunpack.i.l.s16 %v312
  %v1017 = vunpack.i.h.s16 %v312
  %v1018 = vunpack.i.l.s16 %v313
  %v1019 = vunpack.i.h.s16 %v313
  %v1020 = vunpack.i.l.s16 %v328
  %v1021 = vunpack.i.h.s16 %v328
  %v1022 = vunpack.i.l.s16 %v335
  %v1023 = vunpack.i.l.s16 %v350
  %v1024 = vunpack.i.h.s16 %v350
  %v1025 = vunpack.i.l.s16 %v357
  %v1026 = vunpack.i.h.s16 %v357
  %v1027 = vunpack.i.l.s16 %v358
  %v1028 = vunpack.i.h.s16 %v358
  %v1029 = vunpack.i.l.s16 %v359
  %v1030 = vunpack.i.h.s16 %v359
  %v1031 = vunpack.i.l.s16 %v374
  %v1032 = vunpack.i.h.s16 %v374
  %v1033 = vunpack.i.l.s16 %v381
  %v1034 = vunpack.i.h.s16 %v381
  %v1035 = vunpack.i.l.s16 %v382
  %v1036 = vunpack.i.h.s16 %v382
  %v1037 = vunpack.i.l.s16 %v383
  %v1038 = vunpack.i.h.s16 %v383
  %v1039 = vunpack.i.l.s16 %v398
  %v1040 = vunpack.i.h.s16 %v398
  %v1041 = vunpack.i.l.s16 %v405
  %v1042 = vunpack.i.l.s16 %v420
  %v1043 = vunpack.i.h.s16 %v420
  %v1044 = vunpack.i.l.s16 %v427
  %v1045 = vunpack.i.h.s16 %v427
  %v1046 = vunpack.i.l.s16 %v428
  %v1047 = vunpack.i.h.s16 %v428
  %v1048 = vunpack.i.l.s16 %v429
  %v1049 = vunpack.i.h.s16 %v429
  %v1050 = vunpack.i.l.s16 %v444
  %v1051 = vunpack.i.h.s16 %v444
  %v1052 = vunpack.i.l.s16 %v451
  %v1053 = vunpack.i.h.s16 %v451
  %v1054 = vunpack.i.l.s16 %v452
  %v1055 = vunpack.i.h.s16 %v452
  %v1056 = vunpack.i.l.s16 %v453
  %v1057 = vunpack.i.h.s16 %v453
  %v1058 = vunpack.i.l.s16 %v468
  %v1059 = vunpack.i.h.s16 %v468
  %v1060 = vunpack.i.l.s16 %v475
  %v1061 = vunpack.i.l.s16 %v490
  %v1062 = vunpack.i.h.s16 %v490
  %v1063 = vunpack.i.l.s16 %v497
  %v1064 = vunpack.i.h.s16 %v497
  %v1065 = vunpack.i.l.s16 %v498
  %v1066 = vunpack.i.h.s16 %v498
  %v1067 = vunpack.i.l.s16 %v499
  %v1068 = vunpack.i.h.s16 %v499
  %v1069 = vunpack.i.l.s16 %v514
  %v1070 = vunpack.i.h.s16 %v514
  %v1071 = vunpack.i.l.s16 %v521
  %v1072 = vunpack.i.h.s16 %v521
  %v1073 = vunpack.i.l.s16 %v522
  %v1074 = vunpack.i.h.s16 %v522
  %v1075 = vunpack.i.l.s16 %v523
  %v1076 = vunpack.i.h.s16 %v523
  %v1077 = vunpack.i.l.s16 %v538
  %v1078 = vunpack.i.h.s16 %v538
  %v1079 = vunpack.i.l.s16 %v545
  %v1080 = vunpack.i.l.s16 %v560
  %v1081 = vunpack.i.h.s16 %v560
  %v1082 = vunpack.i.l.s16 %v567
  %v1083 = vunpack.i.h.s16 %v567
  %v1084 = vunpack.i.l.s16 %v568
  %v1085 = vunpack.i.h.s16 %v568
  %v1086 = vunpack.i.l.s16 %v569
  %v1087 = vunpack.i.h.s16 %v569
  %v1088 = vunpack.i.l.s16 %v584
  %v1089 = vunpack.i.h.s16 %v584
  %v1090 = vunpack.i.l.s16 %v591
  %v1091 = vunpack.i.h.s16 %v591
  %v1092 = vunpack.i.l.s16 %v592
  %v1093 = vunpack.i.h.s16 %v592
  %v1094 = vunpack.i.l.s16 %v593
  %v1095 = vunpack.i.h.s16 %v593
  %v1096 = vunpack.i.l.s16 %v608
  %v1097 = vunpack.i.h.s16 %v608
  %v1098 = vunpack.i.l.s16 %v615
  %v1099 = vunpack.i.l.s16 %v630
  %v1100 = vunpack.i.h.s16 %v630
  %v1101 = vunpack.i.l.s16 %v637
  %v1102 = vunpack.i.h.s16 %v637
  %v1103 = vunpack.i.l.s16 %v638
  %v1104 = vunpack.i.h.s16 %v638
  %v1105 = vunpack.i.l.s16 %v639
  %v1106 = vunpack.i.h.s16 %v639
  %v1107 = vunpack.i.l.s16 %v654
  %v1108 = vunpack.i.h.s16 %v654
  %v1109 = vunpack.i.l.s16 %v661
  %v1110 = vunpack.i.h.s16 %v661
  %v1111 = vunpack.i.l.s16 %v662
  %v1112 = vunpack.i.h.s16 %v662
  %v1113 = vunpack.i.l.s16 %v663
  %v1114 = vunpack.i.h.s16 %v663
  %v1115 = vunpack.i.l.s16 %v678
  %v1116 = vunpack.i.h.s16 %v678
  %v1117 = vunpack.i.l.s16 %v685
  %v1118 = vunpack.i.l.s16 %v700
  %v1119 = vunpack.i.h.s16 %v700
  %v1120 = vunpack.i.l.s16 %v707
  %v1121 = vunpack.i.h.s16 %v707
  %v1122 = vunpack.i.l.s16 %v708
  %v1123 = vunpack.i.h.s16 %v708
  %v1124 = vunpack.i.l.s16 %v709
  %v1125 = vunpack.i.h.s16 %v709
  %v1126 = vunpack.i.l.s16 %v724
  %v1127 = vunpack.i.h.s16 %v724
  %v1128 = vunpack.i.l.s16 %v731
  %v1129 = vunpack.i.h.s16 %v731
  %v1130 = vunpack.i.l.s16 %v732
  %v1131 = vunpack.i.h.s16 %v732
  %v1132 = vunpack.i.l.s16 %v733
  %v1133 = vunpack.i.h.s16 %v733
  %v1134 = vunpack.i.l.s16 %v748
  %v1135 = vunpack.i.h.s16 %v748
  %v1136 = vunpack.i.l.s16 %v755
  %v1137 = vunpack.i.l.s16 %v770
  %v1138 = vunpack.i.h.s16 %v770
  %v1139 = vunpack.i.l.s16 %v777
  %v1140 = vunpack.i.h.s16 %v777
  %v1141 = vunpack.i.l.s16 %v778
  %v1142 = vunpack.i.h.s16 %v778
  %v1143 = vunpack.i.l.s16 %v779
  %v1144 = vunpack.i.h.s16 %v779
  %v1145 = vunpack.i.l.s16 %v794
  %v1146 = vunpack.i.h.s16 %v794
  %v1147 = vunpack.i.l.s16 %v801
  %v1148 = vunpack.i.h.s16 %v801
  %v1149 = vunpack.i.l.s16 %v802
  %v1150 = vunpack.i.h.s16 %v802
  %v1151 = vunpack.i.l.s16 %v803
  %v1152 = vunpack.i.h.s16 %v803
  %v1153 = vunpack.i.l.s16 %v818
  %v1154 = vunpack.i.h.s16 %v818
  %v1155 = vunpack.i.l.s16 %v825
  %v1156 = vunpack.i.l.s16 %v840
  %v1157 = vunpack.i.h.s16 %v840
  %v1158 = vunpack.i.l.s16 %v847
  %v1159 = vunpack.i.h.s16 %v847
  %v1160 = vunpack.i.l.s16 %v848
  %v1161 = vunpack.i.h.s16 %v848
  %v1162 = vunpack.i.l.s16 %v849
  %v1163 = vunpack.i.h.s16 %v849
  %v1164 = vunpack.i.l.s16 %v864
  %v1165 = vunpack.i.h.s16 %v864
  %v1166 = vunpack.i.l.s16 %v871
  %v1167 = vunpack.i.h.s16 %v871
  %v1168 = vunpack.i.l.s16 %v872
  %v1169 = vunpack.i.h.s16 %v872
  %v1170 = vunpack.i.l.s16 %v873
  %v1171 = vunpack.i.h.s16 %v873
  %v1172 = vunpack.i.l.s16 %v888
  %v1173 = vunpack.i.h.s16 %v888
  %v1174 = vunpack.i.l.s16 %v895
  %v1175 = vunpack.i.l.s16 %v910
  %v1176 = vunpack.i.h.s16 %v910
  %v1177 = vunpack.i.l.s16 %v917
  %v1178 = vunpack.i.h.s16 %v917
  %v1179 = vunpack.i.l.s16 %v918
  %v1180 = vunpack.i.h.s16 %v918
  %v1181 = vunpack.i.l.s16 %v919
  %v1182 = vunpack.i.h.s16 %v919
  %v1183 = vunpack.i.l.s16 %v934
  %v1184 = vunpack.i.h.s16 %v934
  %v1185 = vunpack.i.l.s16 %v941
  %v1186 = vunpack.i.h.s16 %v941
  %v1187 = vunpack.i.l.s16 %v942
  %v1188 = vunpack.i.h.s16 %v942
  %v1189 = vunpack.i.l.s16 %v943
  %v1190 = vunpack.i.h.s16 %v943
  %v1191 = vunpack.i.l.s16 %v958
  %v1192 = vunpack.i.h.s16 %v958
  %v1193 = vunpack.i.l.s16 %v965
  %v1194 = vunpack.i.h.s16 %v195
  %v1195 = vunpack.i.h.s16 %v265
  %v1196 = vunpack.i.h.s16 %v335
  %v1197 = vunpack.i.h.s16 %v405
  %v1198 = vunpack.i.h.s16 %v475
  %v1199 = vunpack.i.h.s16 %v545
  %v1200 = vunpack.i.h.s16 %v615
  %v1201 = vunpack.i.h.s16 %v685
  %v1202 = vunpack.i.h.s16 %v755
  %v1203 = vunpack.i.h.s16 %v825
  %v1204 = vunpack.i.h.s16 %v895
  %v1205 = vunpack.i.h.s16 %v965
  %v1243 = vunpack.c.l.s4 1966171168
  %v1244 = vunpack.c.0.s8 %v1243
  %v1245 = vlaneseq
  %v1246 = vshrl.u32 %v1245, 7
  %v1247 = vsub.s32 %v1244, %v1246
  %v1248 = vrot.slane %v18, %v1247
  %v1249 = vcombine.high %v1248, %v1248
  %v1251 = vunpack.c.l.s4 1966171168
  %v1252 = vunpack.c.0.s8 %v1251
  %v1253 = vlaneseq
  %v1254 = vshrl.u32 %v1253, 7
  %v1255 = vsub.s32 %v1252, %v1254
  %v1256 = vrot.slane %v1248, %v1255
  %v1258 = vunpack.c.l.s4 1966171168
  %v1259 = vunpack.c.0.s8 %v1258
  %v1260 = vlaneseq
  %v1261 = vshrl.u32 %v1260, 7
  %v1262 = vsub.s32 %v1259, %v1261
  %v1263 = vrot.slane %v1249, %v1262
  %v1264 = vcombine.high %v1256, %v1256
  %v1265 = vcombine.high %v1263, %v1263
  %v1267 = vunpack.c.l.s4 1966171168
  %v1268 = vunpack.c.0.s8 %v1267
  %v1269 = vlaneseq
  %v1270 = vshrl.u32 %v1269, 7
  %v1271 = vsub.s32 %v1268, %v1270
  %v1272 = vrot.slane %v19, %v1271
  %v1273 = vcombine.high %v1272, %v1272
  %v1275 = vunpack.c.l.s4 1966171168
  %v1276 = vunpack.c.0.s8 %v1275
  %v1277 = vlaneseq
  %v1278 = vshrl.u32 %v1277, 7
  %v1279 = vsub.s32 %v1276, %v1278
  %v1280 = vrot.slane %v1272, %v1279
  %v1282 = vunpack.c.l.s4 1966171168
  %v1283 = vunpack.c.0.s8 %v1282
  %v1284 = vlaneseq
  %v1285 = vshrl.u32 %v1284, 7
  %v1286 = vsub.s32 %v1283, %v1285
  %v1287 = vrot.slane %v1273, %v1286
  %v1288 = vcombine.high %v1280, %v1280
  %v1289 = vcombine.high %v1287, %v1287
  %v1291 = vunpack.c.l.s4 1966171168
  %v1292 = vunpack.c.0.s8 %v1291
  %v1293 = vlaneseq
  %v1294 = vshrl.u32 %v1293, 7
  %v1295 = vsub.s32 %v1292, %v1294
  %v1296 = vrot.slane %v20, %v1295
  %v1297 = vcombine.high %v1296, %v1296
  %v1299 = vunpack.c.l.s4 1966171168
  %v1300 = vunpack.c.0.s8 %v1299
  %v1301 = vlaneseq
  %v1302 = vshrl.u32 %v1301, 7
  %v1303 = vsub.s32 %v1300, %v1302
  %v1304 = vrot.slane %v1296, %v1303
  %v1306 = vunpack.c.l.s4 1966171168
  %v1307 = vunpack.c.0.s8 %v1306
  %v1308 = vlaneseq
  %v1309 = vshrl.u32 %v1308, 7
  %v1310 = vsub.s32 %v1307, %v1309
  %v1311 = vrot.slane %v1297, %v1310
  %v1313 = vunpack.c.l.s4 1966171168
  %v1314 = vunpack.c.0.s8 %v1313
  %v1315 = vlaneseq
  %v1316 = vshrl.u32 %v1315, 7
  %v1317 = vsub.s32 %v1314, %v1316
  %v1318 = vrot.slane %v24, %v1317
  %v1319 = vcombine.high %v1318, %v1318
  %v1321 = vunpack.c.l.s4 1966171168
  %v1322 = vunpack.c.0.s8 %v1321
  %v1323 = vlaneseq
  %v1324 = vshrl.u32 %v1323, 7
  %v1325 = vsub.s32 %v1322, %v1324
  %v1326 = vrot.slane %v1318, %v1325
  %v1328 = vunpack.c.l.s4 1966171168
  %v1329 = vunpack.c.0.s8 %v1328
  %v1330 = vlaneseq
  %v1331 = vshrl.u32 %v1330, 7
  %v1332 = vsub.s32 %v1329, %v1331
  %v1333 = vrot.slane %v1319, %v1332
  %v1334 = vcombine.high %v1326, %v1326
  %v1335 = vcombine.high %v1333, %v1333
  %v1337 = vunpack.c.l.s4 1966171168
  %v1338 = vunpack.c.0.s8 %v1337
  %v1339 = vlaneseq
  %v1340 = vshrl.u32 %v1339, 7
  %v1341 = vsub.s32 %v1338, %v1340
  %v1342 = vrot.slane %v25, %v1341
  %v1343 = vcombine.high %v1342, %v1342
  %v1345 = vunpack.c.l.s4 1966171168
  %v1346 = vunpack.c.0.s8 %v1345
  %v1347 = vlaneseq
  %v1348 = vshrl.u32 %v1347, 7
  %v1349 = vsub.s32 %v1346, %v1348
  %v1350 = vrot.slane %v1342, %v1349
  %v1352 = vunpack.c.l.s4 1966171168
  %v1353 = vunpack.c.0.s8 %v1352
  %v1354 = vlaneseq
  %v1355 = vshrl.u32 %v1354, 7
  %v1356 = vsub.s32 %v1353, %v1355
  %v1357 = vrot.slane %v1343, %v1356
  %v1358 = vcombine.high %v1350, %v1350
  %v1359 = vcombine.high %v1357, %v1357
  %v1361 = vunpack.c.l.s4 1966171168
  %v1362 = vunpack.c.0.s8 %v1361
  %v1363 = vlaneseq
  %v1364 = vshrl.u32 %v1363, 7
  %v1365 = vsub.s32 %v1362, %v1364
  %v1366 = vrot.slane %v26, %v1365
  %v1367 = vcombine.high %v1366, %v1366
  %v1369 = vunpack.c.l.s4 1966171168
  %v1370 = vunpack.c.0.s8 %v1369
  %v1371 = vlaneseq
  %v1372 = vshrl.u32 %v1371, 7
  %v1373 = vsub.s32 %v1370, %v1372
  %v1374 = vrot.slane %v1366, %v1373
  %v1376 = vunpack.c.l.s4 1966171168
  %v1377 = vunpack.c.0.s8 %v1376
  %v1378 = vlaneseq
  %v1379 = vshrl.u32 %v1378, 7
  %v1380 = vsub.s32 %v1377, %v1379
  %v1381 = vrot.slane %v1367, %v1380
  %v1383 = vunpack.c.l.s4 1966171168
  %v1384 = vunpack.c.0.s8 %v1383
  %v1385 = vlaneseq
  %v1386 = vshrl.u32 %v1385, 7
  %v1387 = vsub.s32 %v1384, %v1386
  %v1388 = vrot.slane %v30, %v1387
  %v1389 = vcombine.high %v1388, %v1388
  %v1391 = vunpack.c.l.s4 1966171168
  %v1392 = vunpack.c.0.s8 %v1391
  %v1393 = vlaneseq
  %v1394 = vshrl.u32 %v1393, 7
  %v1395 = vsub.s32 %v1392, %v1394
  %v1396 = vrot.slane %v1388, %v1395
  %v1398 = vunpack.c.l.s4 1966171168
  %v1399 = vunpack.c.0.s8 %v1398
  %v1400 = vlaneseq
  %v1401 = vshrl.u32 %v1400, 7
  %v1402 = vsub.s32 %v1399, %v1401
  %v1403 = vrot.slane %v1389, %v1402
  %v1404 = vcombine.high %v1396, %v1396
  %v1405 = vcombine.high %v1403, %v1403
  %v1407 = vunpack.c.l.s4 1966171168
  %v1408 = vunpack.c.0.s8 %v1407
  %v1409 = vlaneseq
  %v1410 = vshrl.u32 %v1409, 7
  %v1411 = vsub.s32 %v1408, %v1410
  %v1412 = vrot.slane %v31, %v1411
  %v1413 = vcombine.high %v1412, %v1412
  %v1415 = vunpack.c.l.s4 1966171168
  %v1416 = vunpack.c.0.s8 %v1415
  %v1417 = vlaneseq
  %v1418 = vshrl.u32 %v1417, 7
  %v1419 = vsub.s32 %v1416, %v1418
  %v1420 = vrot.slane %v1412, %v1419
  %v1422 = vunpack.c.l.s4 1966171168
  %v1423 = vunpack.c.0.s8 %v1422
  %v1424 = vlaneseq
  %v1425 = vshrl.u32 %v1424, 7
  %v1426 = vsub.s32 %v1423, %v1425
  %v1427 = vrot.slane %v1413, %v1426
  %v1428 = vcombine.high %v1420, %v1420
  %v1429 = vcombine.high %v1427, %v1427
  %v1431 = vunpack.c.l.s4 1966171168
  %v1432 = vunpack.c.0.s8 %v1431
  %v1433 = vlaneseq
  %v1434 = vshrl.u32 %v1433, 7
  %v1435 = vsub.s32 %v1432, %v1434
  %v1436 = vrot.slane %v32, %v1435
  %v1437 = vcombine.high %v1436, %v1436
  %v1439 = vunpack.c.l.s4 1966171168
  %v1440 = vunpack.c.0.s8 %v1439
  %v1441 = vlaneseq
  %v1442 = vshrl.u32 %v1441, 7
  %v1443 = vsub.s32 %v1440, %v1442
  %v1444 = vrot.slane %v1436, %v1443
  %v1446 = vunpack.c.l.s4 1966171168
  %v1447 = vunpack.c.0.s8 %v1446
  %v1448 = vlaneseq
  %v1449 = vshrl.u32 %v1448, 7
  %v1450 = vsub.s32 %v1447, %v1449
  %v1451 = vrot.slane %v1437, %v1450
  %v1453 = vunpack.c.l.s4 1966171168
  %v1454 = vunpack.c.0.s8 %v1453
  %v1455 = vlaneseq
  %v1456 = vshrl.u32 %v1455, 7
  %v1457 = vsub.s32 %v1454, %v1456
  %v1458 = vrot.slane %v36, %v1457
  %v1459 = vcombine.high %v1458, %v1458
  %v1461 = vunpack.c.l.s4 1966171168
  %v1462 = vunpack.c.0.s8 %v1461
  %v1463 = vlaneseq
  %v1464 = vshrl.u32 %v1463, 7
  %v1465 = vsub.s32 %v1462, %v1464
  %v1466 = vrot.slane %v1458, %v1465
  %v1468 = vunpack.c.l.s4 1966171168
  %v1469 = vunpack.c.0.s8 %v1468
  %v1470 = vlaneseq
  %v1471 = vshrl.u32 %v1470, 7
  %v1472 = vsub.s32 %v1469, %v1471
  %v1473 = vrot.slane %v1459, %v1472
  %v1474 = vcombine.high %v1466, %v1466
  %v1475 = vcombine.high %v1473, %v1473
  %v1477 = vunpack.c.l.s4 1966171168
  %v1478 = vunpack.c.0.s8 %v1477
  %v1479 = vlaneseq
  %v1480 = vshrl.u32 %v1479, 7
  %v1481 = vsub.s32 %v1478, %v1480
  %v1482 = vrot.slane %v37, %v1481
  %v1483 = vcombine.high %v1482, %v1482
  %v1485 = vunpack.c.l.s4 1966171168
  %v1486 = vunpack.c.0.s8 %v1485
  %v1487 = vlaneseq
  %v1488 = vshrl.u32 %v1487, 7
  %v1489 = vsub.s32 %v1486, %v1488
  %v1490 = vrot.slane %v1482, %v1489
  %v1492 = vunpack.c.l.s4 1966171168
  %v1493 = vunpack.c.0.s8 %v1492
  %v1494 = vlaneseq
  %v1495 = vshrl.u32 %v1494, 7
  %v1496 = vsub.s32 %v1493, %v1495
  %v1497 = vrot.slane %v1483, %v1496
  %v1498 = vcombine.high %v1490, %v1490
  %v1499 = vcombine.high %v1497, %v1497
  %v1501 = vunpack.c.l.s4 1966171168
  %v1502 = vunpack.c.0.s8 %v1501
  %v1503 = vlaneseq
  %v1504 = vshrl.u32 %v1503, 7
  %v1505 = vsub.s32 %v1502, %v1504
  %v1506 = vrot.slane %v38, %v1505
  %v1507 = vcombine.high %v1506, %v1506
  %v1509 = vunpack.c.l.s4 1966171168
  %v1510 = vunpack.c.0.s8 %v1509
  %v1511 = vlaneseq
  %v1512 = vshrl.u32 %v1511, 7
  %v1513 = vsub.s32 %v1510, %v1512
  %v1514 = vrot.slane %v1506, %v1513
  %v1516 = vunpack.c.l.s4 1966171168
  %v1517 = vunpack.c.0.s8 %v1516
  %v1518 = vlaneseq
  %v1519 = vshrl.u32 %v1518, 7
  %v1520 = vsub.s32 %v1517, %v1519
  %v1521 = vrot.slane %v1507, %v1520
  %v1523 = vunpack.c.l.s4 1966171168
  %v1524 = vunpack.c.0.s8 %v1523
  %v1525 = vlaneseq
  %v1526 = vshrl.u32 %v1525, 7
  %v1527 = vsub.s32 %v1524, %v1526
  %v1528 = vrot.slane %v42, %v1527
  %v1529 = vcombine.high %v1528, %v1528
  %v1531 = vunpack.c.l.s4 1966171168
  %v1532 = vunpack.c.0.s8 %v1531
  %v1533 = vlaneseq
  %v1534 = vshrl.u32 %v1533, 7
  %v1535 = vsub.s32 %v1532, %v1534
  %v1536 = vrot.slane %v1528, %v1535
  %v1538 = vunpack.c.l.s4 1966171168
  %v1539 = vunpack.c.0.s8 %v1538
  %v1540 = vlaneseq
  %v1541 = vshrl.u32 %v1540, 7
  %v1542 = vsub.s32 %v1539, %v1541
  %v1543 = vrot.slane %v1529, %v1542
  %v1544 = vcombine.high %v1536, %v1536
  %v1545 = vcombine.high %v1543, %v1543
  %v1547 = vunpack.c.l.s4 1966171168
  %v1548 = vunpack.c.0.s8 %v1547
  %v1549 = vlaneseq
  %v1550 = vshrl.u32 %v1549, 7
  %v1551 = vsub.s32 %v1548, %v1550
  %v1552 = vrot.slane %v43, %v1551
  %v1553 = vcombine.high %v1552, %v1552
  %v1555 = vunpack.c.l.s4 1966171168
  %v1556 = vunpack.c.0.s8 %v1555
  %v1557 = vlaneseq
  %v1558 = vshrl.u32 %v1557, 7
  %v1559 = vsub.s32 %v1556, %v1558
  %v1560 = vrot.slane %v1552, %v1559
  %v1562 = vunpack.c.l.s4 1966171168
  %v1563 = vunpack.c.0.s8 %v1562
  %v1564 = vlaneseq
  %v1565 = vshrl.u32 %v1564, 7
  %v1566 = vsub.s32 %v1563, %v1565
  %v1567 = vrot.slane %v1553, %v1566
  %v1568 = vcombine.high %v1560, %v1560
  %v1569 = vcombine.high %v1567, %v1567
  %v1571 = vunpack.c.l.s4 1966171168
  %v1572 = vunpack.c.0.s8 %v1571
  %v1573 = vlaneseq
  %v1574 = vshrl.u32 %v1573, 7
  %v1575 = vsub.s32 %v1572, %v1574
  %v1576 = vrot.slane %v44, %v1575
  %v1577 = vcombine.high %v1576, %v1576
  %v1579 = vunpack.c.l.s4 1966171168
  %v1580 = vunpack.c.0.s8 %v1579
  %v1581 = vlaneseq
  %v1582 = vshrl.u32 %v1581, 7
  %v1583 = vsub.s32 %v1580, %v1582
  %v1584 = vrot.slane %v1576, %v1583
  %v1586 = vunpack.c.l.s4 1966171168
  %v1587 = vunpack.c.0.s8 %v1586
  %v1588 = vlaneseq
  %v1589 = vshrl.u32 %v1588, 7
  %v1590 = vsub.s32 %v1587, %v1589
  %v1591 = vrot.slane %v1577, %v1590
  %v1593 = vunpack.c.l.s4 1966171168
  %v1594 = vunpack.c.0.s8 %v1593
  %v1595 = vlaneseq
  %v1596 = vshrl.u32 %v1595, 7
  %v1597 = vsub.s32 %v1594, %v1596
  %v1598 = vrot.slane %v48, %v1597
  %v1599 = vcombine.high %v1598, %v1598
  %v1601 = vunpack.c.l.s4 1966171168
  %v1602 = vunpack.c.0.s8 %v1601
  %v1603 = vlaneseq
  %v1604 = vshrl.u32 %v1603, 7
  %v1605 = vsub.s32 %v1602, %v1604
  %v1606 = vrot.slane %v1598, %v1605
  %v1608 = vunpack.c.l.s4 1966171168
  %v1609 = vunpack.c.0.s8 %v1608
  %v1610 = vlaneseq
  %v1611 = vshrl.u32 %v1610, 7
  %v1612 = vsub.s32 %v1609, %v1611
  %v1613 = vrot.slane %v1599, %v1612
  %v1614 = vcombine.high %v1606, %v1606
  %v1615 = vcombine.high %v1613, %v1613
  %v1617 = vunpack.c.l.s4 1966171168
  %v1618 = vunpack.c.0.s8 %v1617
  %v1619 = vlaneseq
  %v1620 = vshrl.u32 %v1619, 7
  %v1621 = vsub.s32 %v1618, %v1620
  %v1622 = vrot.slane %v49, %v1621
  %v1623 = vcombine.high %v1622, %v1622
  %v1625 = vunpack.c.l.s4 1966171168
  %v1626 = vunpack.c.0.s8 %v1625
  %v1627 = vlaneseq
  %v1628 = vshrl.u32 %v1627, 7
  %v1629 = vsub.s32 %v1626, %v1628
  %v1630 = vrot.slane %v1622, %v1629
  %v1632 = vunpack.c.l.s4 1966171168
  %v1633 = vunpack.c.0.s8 %v1632
  %v1634 = vlaneseq
  %v1635 = vshrl.u32 %v1634, 7
  %v1636 = vsub.s32 %v1633, %v1635
  %v1637 = vrot.slane %v1623, %v1636
  %v1638 = vcombine.high %v1630, %v1630
  %v1639 = vcombine.high %v1637, %v1637
  %v1641 = vunpack.c.l.s4 1966171168
  %v1642 = vunpack.c.0.s8 %v1641
  %v1643 = vlaneseq
  %v1644 = vshrl.u32 %v1643, 7
  %v1645 = vsub.s32 %v1642, %v1644
  %v1646 = vrot.slane %v50, %v1645
  %v1647 = vcombine.high %v1646, %v1646
  %v1649 = vunpack.c.l.s4 1966171168
  %v1650 = vunpack.c.0.s8 %v1649
  %v1651 = vlaneseq
  %v1652 = vshrl.u32 %v1651, 7
  %v1653 = vsub.s32 %v1650, %v1652
  %v1654 = vrot.slane %v1646, %v1653
  %v1656 = vunpack.c.l.s4 1966171168
  %v1657 = vunpack.c.0.s8 %v1656
  %v1658 = vlaneseq
  %v1659 = vshrl.u32 %v1658, 7
  %v1660 = vsub.s32 %v1657, %v1659
  %v1661 = vrot.slane %v1647, %v1660
  %v1663 = vunpack.c.l.s4 1966171168
  %v1664 = vunpack.c.0.s8 %v1663
  %v1665 = vlaneseq
  %v1666 = vshrl.u32 %v1665, 7
  %v1667 = vsub.s32 %v1664, %v1666
  %v1668 = vrot.slane %v54, %v1667
  %v1669 = vcombine.high %v1668, %v1668
  %v1671 = vunpack.c.l.s4 1966171168
  %v1672 = vunpack.c.0.s8 %v1671
  %v1673 = vlaneseq
  %v1674 = vshrl.u32 %v1673, 7
  %v1675 = vsub.s32 %v1672, %v1674
  %v1676 = vrot.slane %v1668, %v1675
  %v1678 = vunpack.c.l.s4 1966171168
  %v1679 = vunpack.c.0.s8 %v1678
  %v1680 = vlaneseq
  %v1681 = vshrl.u32 %v1680, 7
  %v1682 = vsub.s32 %v1679, %v1681
  %v1683 = vrot.slane %v1669, %v1682
  %v1684 = vcombine.high %v1676, %v1676
  %v1685 = vcombine.high %v1683, %v1683
  %v1687 = vunpack.c.l.s4 1966171168
  %v1688 = vunpack.c.0.s8 %v1687
  %v1689 = vlaneseq
  %v1690 = vshrl.u32 %v1689, 7
  %v1691 = vsub.s32 %v1688, %v1690
  %v1692 = vrot.slane %v55, %v1691
  %v1693 = vcombine.high %v1692, %v1692
  %v1695 = vunpack.c.l.s4 1966171168
  %v1696 = vunpack.c.0.s8 %v1695
  %v1697 = vlaneseq
  %v1698 = vshrl.u32 %v1697, 7
  %v1699 = vsub.s32 %v1696, %v1698
  %v1700 = vrot.slane %v1692, %v1699
  %v1702 = vunpack.c.l.s4 1966171168
  %v1703 = vunpack.c.0.s8 %v1702
  %v1704 = vlaneseq
  %v1705 = vshrl.u32 %v1704, 7
  %v1706 = vsub.s32 %v1703, %v1705
  %v1707 = vrot.slane %v1693, %v1706
  %v1708 = vcombine.high %v1700, %v1700
  %v1709 = vcombine.high %v1707, %v1707
  %v1711 = vunpack.c.l.s4 1966171168
  %v1712 = vunpack.c.0.s8 %v1711
  %v1713 = vlaneseq
  %v1714 = vshrl.u32 %v1713, 7
  %v1715 = vsub.s32 %v1712, %v1714
  %v1716 = vrot.slane %v56, %v1715
  %v1717 = vcombine.high %v1716, %v1716
  %v1719 = vunpack.c.l.s4 1966171168
  %v1720 = vunpack.c.0.s8 %v1719
  %v1721 = vlaneseq
  %v1722 = vshrl.u32 %v1721, 7
  %v1723 = vsub.s32 %v1720, %v1722
  %v1724 = vrot.slane %v1716, %v1723
  %v1726 = vunpack.c.l.s4 1966171168
  %v1727 = vunpack.c.0.s8 %v1726
  %v1728 = vlaneseq
  %v1729 = vshrl.u32 %v1728, 7
  %v1730 = vsub.s32 %v1727, %v1729
  %v1731 = vrot.slane %v1717, %v1730
  %v1733 = vunpack.c.l.s4 1966171168
  %v1734 = vunpack.c.0.s8 %v1733
  %v1735 = vlaneseq
  %v1736 = vshrl.u32 %v1735, 7
  %v1737 = vsub.s32 %v1734, %v1736
  %v1738 = vrot.slane %v60, %v1737
  %v1739 = vcombine.high %v1738, %v1738
  %v1741 = vunpack.c.l.s4 1966171168
  %v1742 = vunpack.c.0.s8 %v1741
  %v1743 = vlaneseq
  %v1744 = vshrl.u32 %v1743, 7
  %v1745 = vsub.s32 %v1742, %v1744
  %v1746 = vrot.slane %v1738, %v1745
  %v1748 = vunpack.c.l.s4 1966171168
  %v1749 = vunpack.c.0.s8 %v1748
  %v1750 = vlaneseq
  %v1751 = vshrl.u32 %v1750, 7
  %v1752 = vsub.s32 %v1749, %v1751
  %v1753 = vrot.slane %v1739, %v1752
  %v1754 = vcombine.high %v1746, %v1746
  %v1755 = vcombine.high %v1753, %v1753
  %v1757 = vunpack.c.l.s4 1966171168
  %v1758 = vunpack.c.0.s8 %v1757
  %v1759 = vlaneseq
  %v1760 = vshrl.u32 %v1759, 7
  %v1761 = vsub.s32 %v1758, %v1760
  %v1762 = vrot.slane %v61, %v1761
  %v1763 = vcombine.high %v1762, %v1762
  %v1765 = vunpack.c.l.s4 1966171168
  %v1766 = vunpack.c.0.s8 %v1765
  %v1767 = vlaneseq
  %v1768 = vshrl.u32 %v1767, 7
  %v1769 = vsub.s32 %v1766, %v1768
  %v1770 = vrot.slane %v1762, %v1769
  %v1772 = vunpack.c.l.s4 1966171168
  %v1773 = vunpack.c.0.s8 %v1772
  %v1774 = vlaneseq
  %v1775 = vshrl.u32 %v1774, 7
  %v1776 = vsub.s32 %v1773, %v1775
  %v1777 = vrot.slane %v1763, %v1776
  %v1778 = vcombine.high %v1770, %v1770
  %v1779 = vcombine.high %v1777, %v1777
  %v1781 = vunpack.c.l.s4 1966171168
  %v1782 = vunpack.c.0.s8 %v1781
  %v1783 = vlaneseq
  %v1784 = vshrl.u32 %v1783, 7
  %v1785 = vsub.s32 %v1782, %v1784
  %v1786 = vrot.slane %v62, %v1785
  %v1787 = vcombine.high %v1786, %v1786
  %v1789 = vunpack.c.l.s4 1966171168
  %v1790 = vunpack.c.0.s8 %v1789
  %v1791 = vlaneseq
  %v1792 = vshrl.u32 %v1791, 7
  %v1793 = vsub.s32 %v1790, %v1792
  %v1794 = vrot.slane %v1786, %v1793
  %v1796 = vunpack.c.l.s4 1966171168
  %v1797 = vunpack.c.0.s8 %v1796
  %v1798 = vlaneseq
  %v1799 = vshrl.u32 %v1798, 7
  %v1800 = vsub.s32 %v1797, %v1799
  %v1801 = vrot.slane %v1787, %v1800
  %v1803 = vunpack.c.l.s4 1966171168
  %v1804 = vunpack.c.0.s8 %v1803
  %v1805 = vlaneseq
  %v1806 = vshrl.u32 %v1805, 7
  %v1807 = vsub.s32 %v1804, %v1806
  %v1808 = vrot.slane %v66, %v1807
  %v1809 = vcombine.high %v1808, %v1808
  %v1811 = vunpack.c.l.s4 1966171168
  %v1812 = vunpack.c.0.s8 %v1811
  %v1813 = vlaneseq
  %v1814 = vshrl.u32 %v1813, 7
  %v1815 = vsub.s32 %v1812, %v1814
  %v1816 = vrot.slane %v1808, %v1815
  %v1818 = vunpack.c.l.s4 1966171168
  %v1819 = vunpack.c.0.s8 %v1818
  %v1820 = vlaneseq
  %v1821 = vshrl.u32 %v1820, 7
  %v1822 = vsub.s32 %v1819, %v1821
  %v1823 = vrot.slane %v1809, %v1822
  %v1824 = vcombine.high %v1816, %v1816
  %v1825 = vcombine.high %v1823, %v1823
  %v1827 = vunpack.c.l.s4 1966171168
  %v1828 = vunpack.c.0.s8 %v1827
  %v1829 = vlaneseq
  %v1830 = vshrl.u32 %v1829, 7
  %v1831 = vsub.s32 %v1828, %v1830
  %v1832 = vrot.slane %v67, %v1831
  %v1833 = vcombine.high %v1832, %v1832
  %v1835 = vunpack.c.l.s4 1966171168
  %v1836 = vunpack.c.0.s8 %v1835
  %v1837 = vlaneseq
  %v1838 = vshrl.u32 %v1837, 7
  %v1839 = vsub.s32 %v1836, %v1838
  %v1840 = vrot.slane %v1832, %v1839
  %v1842 = vunpack.c.l.s4 1966171168
  %v1843 = vunpack.c.0.s8 %v1842
  %v1844 = vlaneseq
  %v1845 = vshrl.u32 %v1844, 7
  %v1846 = vsub.s32 %v1843, %v1845
  %v1847 = vrot.slane %v1833, %v1846
  %v1848 = vcombine.high %v1840, %v1840
  %v1849 = vcombine.high %v1847, %v1847
  %v1851 = vunpack.c.l.s4 1966171168
  %v1852 = vunpack.c.0.s8 %v1851
  %v1853 = vlaneseq
  %v1854 = vshrl.u32 %v1853, 7
  %v1855 = vsub.s32 %v1852, %v1854
  %v1856 = vrot.slane %v68, %v1855
  %v1857 = vcombine.high %v1856, %v1856
  %v1859 = vunpack.c.l.s4 1966171168
  %v1860 = vunpack.c.0.s8 %v1859
  %v1861 = vlaneseq
  %v1862 = vshrl.u32 %v1861, 7
  %v1863 = vsub.s32 %v1860, %v1862
  %v1864 = vrot.slane %v1856, %v1863
  %v1866 = vunpack.c.l.s4 1966171168
  %v1867 = vunpack.c.0.s8 %v1866
  %v1868 = vlaneseq
  %v1869 = vshrl.u32 %v1868, 7
  %v1870 = vsub.s32 %v1867, %v1869
  %v1871 = vrot.slane %v1857, %v1870
  %v1873 = vunpack.c.l.s4 1966171168
  %v1874 = vunpack.c.0.s8 %v1873
  %v1875 = vlaneseq
  %v1876 = vshrl.u32 %v1875, 7
  %v1877 = vsub.s32 %v1874, %v1876
  %v1878 = vrot.slane %v72, %v1877
  %v1879 = vcombine.high %v1878, %v1878
  %v1881 = vunpack.c.l.s4 1966171168
  %v1882 = vunpack.c.0.s8 %v1881
  %v1883 = vlaneseq
  %v1884 = vshrl.u32 %v1883, 7
  %v1885 = vsub.s32 %v1882, %v1884
  %v1886 = vrot.slane %v1878, %v1885
  %v1888 = vunpack.c.l.s4 1966171168
  %v1889 = vunpack.c.0.s8 %v1888
  %v1890 = vlaneseq
  %v1891 = vshrl.u32 %v1890, 7
  %v1892 = vsub.s32 %v1889, %v1891
  %v1893 = vrot.slane %v1879, %v1892
  %v1894 = vcombine.high %v1886, %v1886
  %v1895 = vcombine.high %v1893, %v1893
  %v1897 = vunpack.c.l.s4 1966171168
  %v1898 = vunpack.c.0.s8 %v1897
  %v1899 = vlaneseq
  %v1900 = vshrl.u32 %v1899, 7
  %v1901 = vsub.s32 %v1898, %v1900
  %v1902 = vrot.slane %v73, %v1901
  %v1903 = vcombine.high %v1902, %v1902
  %v1905 = vunpack.c.l.s4 1966171168
  %v1906 = vunpack.c.0.s8 %v1905
  %v1907 = vlaneseq
  %v1908 = vshrl.u32 %v1907, 7
  %v1909 = vsub.s32 %v1906, %v1908
  %v1910 = vrot.slane %v1902, %v1909
  %v1912 = vunpack.c.l.s4 1966171168
  %v1913 = vunpack.c.0.s8 %v1912
  %v1914 = vlaneseq
  %v1915 = vshrl.u32 %v1914, 7
  %v1916 = vsub.s32 %v1913, %v1915
  %v1917 = vrot.slane %v1903, %v1916
  %v1918 = vcombine.high %v1910, %v1910
  %v1919 = vcombine.high %v1917, %v1917
  %v1921 = vunpack.c.l.s4 1966171168
  %v1922 = vunpack.c.0.s8 %v1921
  %v1923 = vlaneseq
  %v1924 = vshrl.u32 %v1923, 7
  %v1925 = vsub.s32 %v1922, %v1924
  %v1926 = vrot.slane %v74, %v1925
  %v1927 = vcombine.high %v1926, %v1926
  %v1929 = vunpack.c.l.s4 1966171168
  %v1930 = vunpack.c.0.s8 %v1929
  %v1931 = vlaneseq
  %v1932 = vshrl.u32 %v1931, 7
  %v1933 = vsub.s32 %v1930, %v1932
  %v1934 = vrot.slane %v1926, %v1933
  %v1936 = vunpack.c.l.s4 1966171168
  %v1937 = vunpack.c.0.s8 %v1936
  %v1938 = vlaneseq
  %v1939 = vshrl.u32 %v1938, 7
  %v1940 = vsub.s32 %v1937, %v1939
  %v1941 = vrot.slane %v1927, %v1940
  %v1943 = vunpack.c.l.s4 1966171168
  %v1944 = vunpack.c.0.s8 %v1943
  %v1945 = vlaneseq
  %v1946 = vshrl.u32 %v1945, 7
  %v1947 = vsub.s32 %v1944, %v1946
  %v1948 = vrot.slane %v78, %v1947
  %v1949 = vcombine.high %v1948, %v1948
  %v1951 = vunpack.c.l.s4 1966171168
  %v1952 = vunpack.c.0.s8 %v1951
  %v1953 = vlaneseq
  %v1954 = vshrl.u32 %v1953, 7
  %v1955 = vsub.s32 %v1952, %v1954
  %v1956 = vrot.slane %v1948, %v1955
  %v1958 = vunpack.c.l.s4 1966171168
  %v1959 = vunpack.c.0.s8 %v1958
  %v1960 = vlaneseq
  %v1961 = vshrl.u32 %v1960, 7
  %v1962 = vsub.s32 %v1959, %v1961
  %v1963 = vrot.slane %v1949, %v1962
  %v1964 = vcombine.high %v1956, %v1956
  %v1965 = vcombine.high %v1963, %v1963
  %v1967 = vunpack.c.l.s4 1966171168
  %v1968 = vunpack.c.0.s8 %v1967
  %v1969 = vlaneseq
  %v1970 = vshrl.u32 %v1969, 7
  %v1971 = vsub.s32 %v1968, %v1970
  %v1972 = vrot.slane %v79, %v1971
  %v1973 = vcombine.high %v1972, %v1972
  %v1975 = vunpack.c.l.s4 1966171168
  %v1976 = vunpack.c.0.s8 %v1975
  %v1977 = vlaneseq
  %v1978 = vshrl.u32 %v1977, 7
  %v1979 = vsub.s32 %v1976, %v1978
  %v1980 = vrot.slane %v1972, %v1979
  %v1982 = vunpack.c.l.s4 1966171168
  %v1983 = vunpack.c.0.s8 %v1982
  %v1984 = vlaneseq
  %v1985 = vshrl.u32 %v1984, 7
  %v1986 = vsub.s32 %v1983, %v1985
  %v1987 = vrot.slane %v1973, %v1986
  %v1988 = vcombine.high %v1980, %v1980
  %v1989 = vcombine.high %v1987, %v1987
  %v1991 = vunpack.c.l.s4 1966171168
  %v1992 = vunpack.c.0.s8 %v1991
  %v1993 = vlaneseq
  %v1994 = vshrl.u32 %v1993, 7
  %v1995 = vsub.s32 %v1992, %v1994
  %v1996 = vrot.slane %v80, %v1995
  %v1997 = vcombine.high %v1996, %v1996
  %v1999 = vunpack.c.l.s4 1966171168
  %v2000 = vunpack.c.0.s8 %v1999
  %v2001 = vlaneseq
  %v2002 = vshrl.u32 %v2001, 7
  %v2003 = vsub.s32 %v2000, %v2002
  %v2004 = vrot.slane %v1996, %v2003
  %v2006 = vunpack.c.l.s4 1966171168
  %v2007 = vunpack.c.0.s8 %v2006
  %v2008 = vlaneseq
  %v2009 = vshrl.u32 %v2008, 7
  %v2010 = vsub.s32 %v2007, %v2009
  %v2011 = vrot.slane %v1997, %v2010
  %v2013 = vunpack.c.l.s4 1966171168
  %v2014 = vunpack.c.0.s8 %v2013
  %v2015 = vlaneseq
  %v2016 = vshrl.u32 %v2015, 7
  %v2017 = vsub.s32 %v2014, %v2016
  %v2018 = vrot.slane %v84, %v2017
  %v2019 = vcombine.high %v2018, %v2018
  %v2021 = vunpack.c.l.s4 1966171168
  %v2022 = vunpack.c.0.s8 %v2021
  %v2023 = vlaneseq
  %v2024 = vshrl.u32 %v2023, 7
  %v2025 = vsub.s32 %v2022, %v2024
  %v2026 = vrot.slane %v2018, %v2025
  %v2028 = vunpack.c.l.s4 1966171168
  %v2029 = vunpack.c.0.s8 %v2028
  %v2030 = vlaneseq
  %v2031 = vshrl.u32 %v2030, 7
  %v2032 = vsub.s32 %v2029, %v2031
  %v2033 = vrot.slane %v2019, %v2032
  %v2034 = vcombine.high %v2026, %v2026
  %v2035 = vcombine.high %v2033, %v2033
  %v2037 = vunpack.c.l.s4 1966171168
  %v2038 = vunpack.c.0.s8 %v2037
  %v2039 = vlaneseq
  %v2040 = vshrl.u32 %v2039, 7
  %v2041 = vsub.s32 %v2038, %v2040
  %v2042 = vrot.slane %v85, %v2041
  %v2043 = vcombine.high %v2042, %v2042
  %v2045 = vunpack.c.l.s4 1966171168
  %v2046 = vunpack.c.0.s8 %v2045
  %v2047 = vlaneseq
  %v2048 = vshrl.u32 %v2047, 7
  %v2049 = vsub.s32 %v2046, %v2048
  %v2050 = vrot.slane %v2042, %v2049
  %v2052 = vunpack.c.l.s4 1966171168
  %v2053 = vunpack.c.0.s8 %v2052
  %v2054 = vlaneseq
  %v2055 = vshrl.u32 %v2054, 7
  %v2056 = vsub.s32 %v2053, %v2055
  %v2057 = vrot.slane %v2043, %v2056
  %v2058 = vcombine.high %v2050, %v2050
  %v2059 = vcombine.high %v2057, %v2057
  %v2061 = vunpack.c.l.s4 1966171168
  %v2062 = vunpack.c.0.s8 %v2061
  %v2063 = vlaneseq
  %v2064 = vshrl.u32 %v2063, 7
  %v2065 = vsub.s32 %v2062, %v2064
  %v2066 = vrot.slane %v86, %v2065
  %v2067 = vcombine.high %v2066, %v2066
  %v2069 = vunpack.c.l.s4 1966171168
  %v2070 = vunpack.c.0.s8 %v2069
  %v2071 = vlaneseq
  %v2072 = vshrl.u32 %v2071, 7
  %v2073 = vsub.s32 %v2070, %v2072
  %v2074 = vrot.slane %v2066, %v2073
  %v2076 = vunpack.c.l.s4 1966171168
  %v2077 = vunpack.c.0.s8 %v2076
  %v2078 = vlaneseq
  %v2079 = vshrl.u32 %v2078, 7
  %v2080 = vsub.s32 %v2077, %v2079
  %v2081 = vrot.slane %v2067, %v2080
  %v2082 = vunpack.i.l.s16 %v1256
  %v2083 = vunpack.i.h.s16 %v1256
  %v2084 = vunpack.i.l.s16 %v1263
  %v2085 = vunpack.i.h.s16 %v1263
  %v2086 = vunpack.i.l.s16 %v1264
  %v2087 = vunpack.i.h.s16 %v1264
  %v2088 = vunpack.i.l.s16 %v1265
  %v2089 = vunpack.i.h.s16 %v1265
  %v2090 = vunpack.i.l.s16 %v1280
  %v2091 = vunpack.i.h.s16 %v1280
  %v2092 = vunpack.i.l.s16 %v1287
  %v2093 = vunpack.i.h.s16 %v1287
  %v2094 = vunpack.i.l.s16 %v1288
  %v2095 = vunpack.i.h.s16 %v1288
  %v2096 = vunpack.i.l.s16 %v1289
  %v2097 = vunpack.i.h.s16 %v1289
  %v2098 = vunpack.i.l.s16 %v1304
  %v2099 = vunpack.i.h.s16 %v1304
  %v2100 = vunpack.i.l.s16 %v1311
  %v2101 = vunpack.i.l.s16 %v1326
  %v2102 = vunpack.i.h.s16 %v1326
  %v2103 = vunpack.i.l.s16 %v1333
  %v2104 = vunpack.i.h.s16 %v1333
  %v2105 = vunpack.i.l.s16 %v1334
  %v2106 = vunpack.i.h.s16 %v1334
  %v2107 = vunpack.i.l.s16 %v1335
  %v2108 = vunpack.i.h.s16 %v1335
  %v2109 = vunpack.i.l.s16 %v1350
  %v2110 = vunpack.i.h.s16 %v1350
  %v2111 = vunpack.i.l.s16 %v1357
  %v2112 = vunpack.i.h.s16 %v1357
  %v2113 = vunpack.i.l.s16 %v1358
  %v2114 = vunpack.i.h.s16 %v1358
  %v2115 = vunpack.i.l.s16 %v1359
  %v2116 = vunpack.i.h.s16 %v1359
  %v2117 = vunpack.i.l.s16 %v1374
  %v2118 = vunpack.i.h.s16 %v1374
  %v2119 = vunpack.i.l.s16 %v1381
  %v2120 = vunpack.i.l.s16 %v1396
  %v2121 = vunpack.i.h.s16 %v1396
  %v2122 = vunpack.i.l.s16 %v1403
  %v2123 = vunpack.i.h.s16 %v1403
  %v2124 = vunpack.i.l.s16 %v1404
  %v2125 = vunpack.i.h.s16 %v1404
  %v2126 = vunpack.i.l.s16 %v1405
  %v2127 = vunpack.i.h.s16 %v1405
  %v2128 = vunpack.i.l.s16 %v1420
  %v2129 = vunpack.i.h.s16 %v1420
  %v2130 = vunpack.i.l.s16 %v1427
  %v2131 = vunpack.i.h.s16 %v1427
  %v2132 = vunpack.i.l.s16 %v1428
  %v2133 = vunpack.i.h.s16 %v1428
  %v2134 = vunpack.i.l.s16 %v1429
  %v2135 = vunpack.i.h.s16 %v1429
  %v2136 = vunpack.i.l.s16 %v1444
  %v2137 = vunpack.i.h.s16 %v1444
  %v2138 = vunpack.i.l.s16 %v1451
  %v2139 = vunpack.i.l.s16 %v1466
  %v2140 = vunpack.i.h.s16 %v1466
  %v2141 = vunpack.i.l.s16 %v1473
  %v2142 = vunpack.i.h.s16 %v1473
  %v2143 = vunpack.i.l.s16 %v1474
  %v2144 = vunpack.i.h.s16 %v1474
  %v2145 = vunpack.i.l.s16 %v1475
  %v2146 = vunpack.i.h.s16 %v1475
  %v2147 = vunpack.i.l.s16 %v1490
  %v2148 = vunpack.i.h.s16 %v1490
  %v2149 = vunpack.i.l.s16 %v1497
  %v2150 = vunpack.i.h.s16 %v1497
  %v2151 = vunpack.i.l.s16 %v1498
  %v2152 = vunpack.i.h.s16 %v1498
  %v2153 = vunpack.i.l.s16 %v1499
  %v2154 = vunpack.i.h.s16 %v1499
  %v2155 = vunpack.i.l.s16 %v1514
  %v2156 = vunpack.i.h.s16 %v1514
  %v2157 = vunpack.i.l.s16 %v1521
  %v2158 = vunpack.i.l.s16 %v1536
  %v2159 = vunpack.i.h.s16 %v1536
  %v2160 = vunpack.i.l.s16 %v1543
  %v2161 = vunpack.i.h.s16 %v1543
  %v2162 = vunpack.i.l.s16 %v1544
  %v2163 = vunpack.i.h.s16 %v1544
  %v2164 = vunpack.i.l.s16 %v1545
  %v2165 = vunpack.i.h.s16 %v1545
  %v2166 = vunpack.i.l.s16 %v1560
  %v2167 = vunpack.i.h.s16 %v1560
  %v2168 = vunpack.i.l.s16 %v1567
  %v2169 = vunpack.i.h.s16 %v1567
  %v2170 = vunpack.i.l.s16 %v1568
  %v2171 = vunpack.i.h.s16 %v1568
  %v2172 = vunpack.i.l.s16 %v1569
  %v2173 = vunpack.i.h.s16 %v1569
  %v2174 = vunpack.i.l.s16 %v1584
  %v2175 = vunpack.i.h.s16 %v1584
  %v2176 = vunpack.i.l.s16 %v1591
  %v2177 = vunpack.i.l.s16 %v1606
  %v2178 = vunpack.i.h.s16 %v1606
  %v2179 = vunpack.i.l.s16 %v1613
  %v2180 = vunpack.i.h.s16 %v1613
  %v2181 = vunpack.i.l.s16 %v1614
  %v2182 = vunpack.i.h.s16 %v1614
  %v2183 = vunpack.i.l.s16 %v1615
  %v2184 = vunpack.i.h.s16 %v1615
  %v2185 = vunpack.i.l.s16 %v1630
  %v2186 = vunpack.i.h.s16 %v1630
  %v2187 = vunpack.i.l.s16 %v1637
  %v2188 = vunpack.i.h.s16 %v1637
  %v2189 = vunpack.i.l.s16 %v1638
  %v2190 = vunpack.i.h.s16 %v1638
  %v2191 = vunpack.i.l.s16 %v1639
  %v2192 = vunpack.i.h.s16 %v1639
  %v2193 = vunpack.i.l.s16 %v1654
  %v2194 = vunpack.i.h.s16 %v1654
  %v2195 = vunpack.i.l.s16 %v1661
  %v2196 = vunpack.i.l.s16 %v1676
  %v2197 = vunpack.i.h.s16 %v1676
  %v2198 = vunpack.i.l.s16 %v1683
  %v2199 = vunpack.i.h.s16 %v1683
  %v2200 = vunpack.i.l.s16 %v1684
  %v2201 = vunpack.i.h.s16 %v1684
  %v2202 = vunpack.i.l.s16 %v1685
  %v2203 = vunpack.i.h.s16 %v1685
  %v2204 = vunpack.i.l.s16 %v1700
  %v2205 = vunpack.i.h.s16 %v1700
  %v2206 = vunpack.i.l.s16 %v1707
  %v2207 = vunpack.i.h.s16 %v1707
  %v2208 = vunpack.i.l.s16 %v1708
  %v2209 = vunpack.i.h.s16 %v1708
  %v2210 = vunpack.i.l.s16 %v1709
  %v2211 = vunpack.i.h.s16 %v1709
  %v2212 = vunpack.i.l.s16 %v1724
  %v2213 = vunpack.i.h.s16 %v1724
  %v2214 = vunpack.i.l.s16 %v1731
  %v2215 = vunpack.i.l.s16 %v1746
  %v2216 = vunpack.i.h.s16 %v1746
  %v2217 = vunpack.i.l.s16 %v1753
  %v2218 = vunpack.i.h.s16 %v1753
  %v2219 = vunpack.i.l.s16 %v1754
  %v2220 = vunpack.i.h.s16 %v1754
  %v2221 = vunpack.i.l.s16 %v1755
  %v2222 = vunpack.i.h.s16 %v1755
  %v2223 = vunpack.i.l.s16 %v1770
  %v2224 = vunpack.i.h.s16 %v1770
  %v2225 = vunpack.i.l.s16 %v1777
  %v2226 = vunpack.i.h.s16 %v1777
  %v2227 = vunpack.i.l.s16 %v1778
  %v2228 = vunpack.i.h.s16 %v1778
  %v2229 = vunpack.i.l.s16 %v1779
  %v2230 = vunpack.i.h.s16 %v1779
  %v2231 = vunpack.i.l.s16 %v1794
  %v2232 = vunpack.i.h.s16 %v1794
  %v2233 = vunpack.i.l.s16 %v1801
  %v2234 = vunpack.i.l.s16 %v1816
  %v2235 = vunpack.i.h.s16 %v1816
  %v2236 = vunpack.i.l.s16 %v1823
  %v2237 = vunpack.i.h.s16 %v1823
  %v2238 = vunpack.i.l.s16 %v1824
  %v2239 = vunpack.i.h.s16 %v1824
  %v2240 = vunpack.i.l.s16 %v1825
  %v2241 = vunpack.i.h.s16 %v1825
  %v2242 = vunpack.i.l.s16 %v1840
  %v2243 = vunpack.i.h.s16 %v1840
  %v2244 = vunpack.i.l.s16 %v1847
  %v2245 = vunpack.i.h.s16 %v1847
  %v2246 = vunpack.i.l.s16 %v1848
  %v2247 = vunpack.i.h.s16 %v1848
  %v2248 = vunpack.i.l.s16 %v1849
  %v2249 = vunpack.i.h.s16 %v1849
  %v2250 = vunpack.i.l.s16 %v1864
  %v2251 = vunpack.i.h.s16 %v1864
  %v2252 = vunpack.i.l.s16 %v1871
  %v2253 = vunpack.i.l.s16 %v1886
  %v2254 = vunpack.i.h.s16 %v1886
  %v2255 = vunpack.i.l.s16 %v1893
  %v2256 = vunpack.i.h.s16 %v1893
  %v2257 = vunpack.i.l.s16 %v1894
  %v2258 = vunpack.i.h.s16 %v1894
  %v2259 = vunpack.i.l.s16 %v1895
  %v2260 = vunpack.i.h.s16 %v1895
  %v2261 = vunpack.i.l.s16 %v1910
  %v2262 = vunpack.i.h.s16 %v1910
  %v2263 = vunpack.i.l.s16 %v1917
  %v2264 = vunpack.i.h.s16 %v1917
  %v2265 = vunpack.i.l.s16 %v1918
  %v2266 = vunpack.i.h.s16 %v1918
  %v2267 = vunpack.i.l.s16 %v1919
  %v2268 = vunpack.i.h.s16 %v1919
  %v2269 = vunpack.i.l.s16 %v1934
  %v2270 = vunpack.i.h.s16 %v1934
  %v2271 = vunpack.i.l.s16 %v1941
  %v2272 = vunpack.i.l.s16 %v1956
  %v2273 = vunpack.i.h.s16 %v1956
  %v2274 = vunpack.i.l.s16 %v1963
  %v2275 = vunpack.i.h.s16 %v1963
  %v2276 = vunpack.i.l.s16 %v1964
  %v2277 = vunpack.i.h.s16 %v1964
  %v2278 = vunpack.i.l.s16 %v1965
  %v2279 = vunpack.i.h.s16 %v1965
  %v2280 = vunpack.i.l.s16 %v1980
  %v2281 = vunpack.i.h.s16 %v1980
  %v2282 = vunpack.i.l.s16 %v1987
  %v2283 = vunpack.i.h.s16 %v1987
  %v2284 = vunpack.i.l.s16 %v1988
  %v2285 = vunpack.i.h.s16 %v1988
  %v2286 = vunpack.i.l.s16 %v1989
  %v2287 = vunpack.i.h.s16 %v1989
  %v2288 = vunpack.i.l.s16 %v2004
  %v2289 = vunpack.i.h.s16 %v2004
  %v2290 = vunpack.i.l.s16 %v2011
  %v2291 = vunpack.i.l.s16 %v2026
  %v2292 = vunpack.i.h.s16 %v2026
  %v2293 = vunpack.i.l.s16 %v2033
  %v2294 = vunpack.i.h.s16 %v2033
  %v2295 = vunpack.i.l.s16 %v2034
  %v2296 = vunpack.i.h.s16 %v2034
  %v2297 = vunpack.i.l.s16 %v2035
  %v2298 = vunpack.i.h.s16 %v2035
  %v2299 = vunpack.i.l.s16 %v2050
  %v2300 = vunpack.i.h.s16 %v2050
  %v2301 = vunpack.i.l.s16 %v2057
  %v2302 = vunpack.i.h.s16 %v2057
  %v2303 = vunpack.i.l.s16 %v2058
  %v2304 = vunpack.i.h.s16 %v2058
  %v2305 = vunpack.i.l.s16 %v2059
  %v2306 = vunpack.i.h.s16 %v2059
  %v2307 = vunpack.i.l.s16 %v2074
  %v2308 = vunpack.i.h.s16 %v2074
  %v2309 = vunpack.i.l.s16 %v2081
  %v2310 = vunpack.i.h.s16 %v1311
  %v2311 = vunpack.i.h.s16 %v1381
  %v2312 = vunpack.i.h.s16 %v1451
  %v2313 = vunpack.i.h.s16 %v1521
  %v2314 = vunpack.i.h.s16 %v1591
  %v2315 = vunpack.i.h.s16 %v1661
  %v2316 = vunpack.i.h.s16 %v1731
  %v2317 = vunpack.i.h.s16 %v1801
  %v2318 = vunpack.i.h.s16 %v1871
  %v2319 = vunpack.i.h.s16 %v1941
  %v2320 = vunpack.i.h.s16 %v2011
  %v2321 = vunpack.i.h.s16 %v2081
  %v2326 = vunpack.c.l.s4 1966171168
  %v2327 = vunpack.c.0.s8 %v2326
  %v2328 = vlaneseq
  %v2329 = vshrl.u32 %v2328, 7
  %v2330 = vsub.s32 %v2327, %v2329
  %v2331 = vrot.slane %v87, %v2330
  %v2332 = vcombine.high %v2331, %v2331
  %v2334 = vunpack.c.l.s4 1966171168
  %v2335 = vunpack.c.0.s8 %v2334
  %v2336 = vlaneseq
  %v2337 = vshrl.u32 %v2336, 7
  %v2338 = vsub.s32 %v2335, %v2337
  %v2339 = vrot.slane %v2331, %v2338
  %v2341 = vunpack.c.l.s4 1966171168
  %v2342 = vunpack.c.0.s8 %v2341
  %v2343 = vlaneseq
  %v2344 = vshrl.u32 %v2343, 7
  %v2345 = vsub.s32 %v2342, %v2344
  %v2346 = vrot.slane %v2332, %v2345
  %v2347 = vcombine.high %v2339, %v2339
  %v2348 = vcombine.high %v2346, %v2346
  %v2350 = vunpack.c.l.s4 1966171168
  %v2351 = vunpack.c.0.s8 %v2350
  %v2352 = vlaneseq
  %v2353 = vshrl.u32 %v2352, 7
  %v2354 = vsub.s32 %v2351, %v2353
  %v2355 = vrot.slane %v88, %v2354
  %v2356 = vcombine.high %v2355, %v2355
  %v2358 = vunpack.c.l.s4 1966171168
  %v2359 = vunpack.c.0.s8 %v2358
  %v2360 = vlaneseq
  %v2361 = vshrl.u32 %v2360, 7
  %v2362 = vsub.s32 %v2359, %v2361
  %v2363 = vrot.slane %v2355, %v2362
  %v2365 = vunpack.c.l.s4 1966171168
  %v2366 = vunpack.c.0.s8 %v2365
  %v2367 = vlaneseq
  %v2368 = vshrl.u32 %v2367, 7
  %v2369 = vsub.s32 %v2366, %v2368
  %v2370 = vrot.slane %v2356, %v2369
  %v2371 = vcombine.high %v2363, %v2363
  %v2372 = vcombine.high %v2370, %v2370
  %v2374 = vunpack.c.l.s4 1966171168
  %v2375 = vunpack.c.0.s8 %v2374
  %v2376 = vlaneseq
  %v2377 = vshrl.u32 %v2376, 7
  %v2378 = vsub.s32 %v2375, %v2377
  %v2379 = vrot.slane %v89, %v2378
  %v2380 = vcombine.high %v2379, %v2379
  %v2382 = vunpack.c.l.s4 1966171168
  %v2383 = vunpack.c.0.s8 %v2382
  %v2384 = vlaneseq
  %v2385 = vshrl.u32 %v2384, 7
  %v2386 = vsub.s32 %v2383, %v2385
  %v2387 = vrot.slane %v2379, %v2386
  %v2389 = vunpack.c.l.s4 1966171168
  %v2390 = vunpack.c.0.s8 %v2389
  %v2391 = vlaneseq
  %v2392 = vshrl.u32 %v2391, 7
  %v2393 = vsub.s32 %v2390, %v2392
  %v2394 = vrot.slane %v2380, %v2393
  %v2395 = vunpack.i.l.s16 %v2339
  %v2396 = vunpack.i.h.s16 %v2339
  %v2397 = vunpack.i.l.s16 %v2346
  %v2398 = vunpack.i.h.s16 %v2346
  %v2399 = vunpack.i.l.s16 %v2347
  %v2400 = vunpack.i.h.s16 %v2347
  %v2401 = vunpack.i.l.s16 %v2348
  %v2402 = vunpack.i.h.s16 %v2348
  %v2403 = vunpack.i.l.s16 %v2363
  %v2404 = vunpack.i.h.s16 %v2363
  %v2405 = vunpack.i.l.s16 %v2370
  %v2406 = vunpack.i.h.s16 %v2370
  %v2407 = vunpack.i.l.s16 %v2371
  %v2408 = vunpack.i.h.s16 %v2371
  %v2409 = vunpack.i.l.s16 %v2372
  %v2410 = vunpack.i.h.s16 %v2372
  %v2411 = vunpack.i.l.s16 %v2387
  %v2412 = vunpack.i.h.s16 %v2387
  %v2413 = vunpack.i.l.s16 %v2394
  %v2414 = vunpack.i.h.s16 %v2394
  %v2415 = vpack.i.b16 %v967, %v966
  %v2416 = vpack.i.b16 %v969, %v968
  %v2417 = vpack.i.b16 %v971, %v970
  %v2418 = vpack.i.b16 %v973, %v972
  %v2419 = vpack.i.b16 %v975, %v974
  %v2420 = vpack.i.b16 %v977, %v976
  %v2421 = vpack.i.b16 %v979, %v978
  %v2422 = vpack.i.b16 %v981, %v980
  %v2423 = vpack.i.b16 %v983, %v982
  %v2424 = vpack.i.b16 %v985, %v984
  %v2425 = vpack.i.b16 %v987, %v986
  %v2426 = vpack.i.b16 %v989, %v988
  %v2427 = vpack.i.b16 %v991, %v990
  %v2428 = vpack.i.b16 %v993, %v992
  %v2429 = vpack.i.b16 %v995, %v994
  %v2430 = vpack.i.b16 %v997, %v996
  %v2431 = vpack.i.b16 %v999, %v998
  %v2432 = vpack.i.b16 %v1001, %v1000
  %v2433 = vpack.i.b16 %v1003, %v1002
  %v2434 = vpack.i.b16 %v1005, %v1004
  %v2435 = vpack.i.b16 %v1007, %v1006
  %v2436 = vpack.i.b16 %v1009, %v1008
  %v2437 = vpack.i.b16 %v1011, %v1010
  %v2438 = vpack.i.b16 %v1013, %v1012
  %v2439 = vpack.i.b16 %v1015, %v1014
  %v2440 = vpack.i.b16 %v1017, %v1016
  %v2441 = vpack.i.b16 %v1019, %v1018
  %v2442 = vpack.i.b16 %v1021, %v1020
  %v2443 = vpack.i.b16 %v1023, %v1022
  %v2444 = vpack.i.b16 %v1025, %v1024
  %v2445 = vpack.i.b16 %v1027, %v1026
  %v2446 = vpack.i.b16 %v1029, %v1028
  %v2447 = vpack.i.b16 %v1031, %v1030
  %v2448 = vpack.i.b16 %v1033, %v1032
  %v2449 = vpack.i.b16 %v1035, %v1034
  %v2450 = vpack.i.b16 %v1037, %v1036
  %v2451 = vpack.i.b16 %v1039, %v1038
  %v2452 = vpack.i.b16 %v1041, %v1040
  %v2453 = vpack.i.b16 %v1043, %v1042
  %v2454 = vpack.i.b16 %v1045, %v1044
  %v2455 = vpack.i.b16 %v1047, %v1046
  %v2456 = vpack.i.b16 %v1049, %v1048
  %v2457 = vpack.i.b16 %v1051, %v1050
  %v2458 = vpack.i.b16 %v1053, %v1052
  %v2459 = vpack.i.b16 %v1055, %v1054
  %v2460 = vpack.i.b16 %v1057, %v1056
  %v2461 = vpack.i.b16 %v1059, %v1058
  %v2462 = vpack.i.b16 %v1061, %v1060
  %v2463 = vpack.i.b16 %v1063, %v1062
  %v2464 = vpack.i.b16 %v1065, %v1064
  %v2465 = vpack.i.b16 %v1067, %v1066
  %v2466 = vpack.i.b16 %v1069, %v1068
  %v2467 = vpack.i.b16 %v1071, %v1070
  %v2468 = vpack.i.b16 %v1073, %v1072
  %v2469 = vpack.i.b16 %v1075, %v1074
  %v2470 = vpack.i.b16 %v1077, %v1076
  %v2471 = vpack.i.b16 %v1079, %v1078
  %v2472 = vpack.i.b16 %v1081, %v1080
  %v2473 = vpack.i.b16 %v1083, %v1082
  %v2474 = vpack.i.b16 %v1085, %v1084
  %v2475 = vpack.i.b16 %v1087, %v1086
  %v2476 = vpack.i.b16 %v1089, %v1088
  %v2477 = vpack.i.b16 %v1091, %v1090
  %v2478 = vpack.i.b16 %v1093, %v1092
  %v2479 = vpack.i.b16 %v1095, %v1094
  %v2480 = vpack.i.b16 %v1097, %v1096
  %v2481 = vpack.i.b16 %v1099, %v1098
  %v2482 = vpack.i.b16 %v1101, %v1100
  %v2483 = vpack.i.b16 %v1103, %v1102
  %v2484 = vpack.i.b16 %v1105, %v1104
  %v2485 = vpack.i.b16 %v1107, %v1106
  %v2486 = vpack.i.b16 %v1109, %v1108
  %v2487 = vpack.i.b16 %v1111, %v1110
  %v2488 = vpack.i.b16 %v1113, %v1112
  %v2489 = vpack.i.b16 %v1115, %v1114
  %v2490 = vpack.i.b16 %v1117, %v1116
  %v2491 = vpack.i.b16 %v1119, %v1118
  %v2492 = vpack.i.b16 %v1121, %v1120
  %v2493 = vpack.i.b16 %v1123, %v1122
  %v2494 = vpack.i.b16 %v1125, %v1124
  %v2495 = vpack.i.b16 %v1127, %v1126
  %v2496 = vpack.i.b16 %v1129, %v1128
  %v2497 = vpack.i.b16 %v1131, %v1130
  %v2498 = vpack.i.b16 %v1133, %v1132
  %v2499 = vpack.i.b16 %v1135, %v1134
  %v2500 = vpack.i.b16 %v1137, %v1136
  %v2501 = vpack.i.b16 %v1139, %v1138
  %v2502 = vpack.i.b16 %v1141, %v1140
  %v2503 = vpack.i.b16 %v1143, %v1142
  %v2504 = vpack.i.b16 %v1145, %v1144
  %v2505 = vpack.i.b16 %v1147, %v1146
  %v2506 = vpack.i.b16 %v1149, %v1148
  %v2507 = vpack.i.b16 %v1151, %v1150
  %v2508 = vpack.i.b16 %v1153, %v1152
  %v2509 = vpack.i.b16 %v1155, %v1154
  %v2510 = vpack.i.b16 %v1157, %v1156
  %v2511 = vpack.i.b16 %v1159, %v1158
  %v2512 = vpack.i.b16 %v1161, %v1160
  %v2513 = vpack.i.b16 %v1163, %v1162
  %v2514 = vpack.i.b16 %v1165, %v1164
  %v2515 = vpack.i.b16 %v1167, %v1166
  %v2516 = vpack.i.b16 %v1169, %v1168
  %v2517 = vpack.i.b16 %v1171, %v1170
  %v2518 = vpack.i.b16 %v1173, %v1172
  %v2519 = vpack.i.b16 %v1175, %v1174
  %v2520 = vpack.i.b16 %v1177, %v1176
  %v2521 = vpack.i.b16 %v1179, %v1178
  %v2522 = vpack.i.b16 %v1181, %v1180
  %v2523 = vpack.i.b16 %v1183, %v1182
  %v2524 = vpack.i.b16 %v1185, %v1184
  %v2525 = vpack.i.b16 %v1187, %v1186
  %v2526 = vpack.i.b16 %v1189, %v1188
  %v2527 = vpack.i.b16 %v1191, %v1190
  %v2528 = vpack.i.b16 %v1193, %v1192
  %v2529 = vcombine.low %v2415, %v2416
  %v2530 = vcombine.low %v2417, %v2418
  %v2531 = vcombine.low %v2419, %v2420
  %v2532 = vcombine.low %v2421, %v2422
  %v2534 = vunpack.c.l.s4 1966171168
  %v2535 = vunpack.c.0.s8 %v2534
  %v2536 = vlaneseq
  %v2537 = vshrl.u32 %v2536, 7
  %v2538 = vsub.s32 %v2535, %v2537
  %v2539 = vrot.slane %v2529, %v2538
  %v2541 = vunpack.c.l.s4 1966171168
  %v2542 = vunpack.c.0.s8 %v2541
  %v2543 = vlaneseq
  %v2544 = vshrl.u32 %v2543, 7
  %v2545 = vsub.s32 %v2542, %v2544
  %v2546 = vrot.slane %v2530, %v2545
  %v2548 = vunpack.c.l.s4 1966171168
  %v2549 = vunpack.c.0.s8 %v2548
  %v2550 = vlaneseq
  %v2551 = vshrl.u32 %v2550, 7
  %v2552 = vsub.s32 %v2549, %v2551
  %v2553 = vrot.slane %v2531, %v2552
  %v2555 = vunpack.c.l.s4 1966171168
  %v2556 = vunpack.c.0.s8 %v2555
  %v2557 = vlaneseq
  %v2558 = vshrl.u32 %v2557, 7
  %v2559 = vsub.s32 %v2556, %v2558
  %v2560 = vrot.slane %v2532, %v2559
  %v2561 = vcombine.low %v2539, %v2546
  %v2562 = vcombine.low %v2553, %v2560
  %v2564 = vunpack.c.l.s4 1966171168
  %v2565 = vunpack.c.0.s8 %v2564
  %v2566 = vlaneseq
  %v2567 = vshrl.u32 %v2566, 7
  %v2568 = vsub.s32 %v2565, %v2567
  %v2569 = vrot.slane %v2561, %v2568
  %v2571 = vunpack.c.l.s4 1966171168
  %v2572 = vunpack.c.0.s8 %v2571
  %v2573 = vlaneseq
  %v2574 = vshrl.u32 %v2573, 7
  %v2575 = vsub.s32 %v2572, %v2574
  %v2576 = vrot.slane %v2562, %v2575
  %v2577 = vcombine.low %v2569, %v2576
  %v2578 = vcombine.low %v2423, %v2424
  %v2579 = vcombine.low %v2425, %v2426
  %v2580 = vcombine.low %v2427, %v2428
  %v2581 = vcombine.low %v2429, %v2430
  %v2583 = vunpack.c.l.s4 1966171168
  %v2584 = vunpack.c.0.s8 %v2583
  %v2585 = vlaneseq
  %v2586 = vshrl.u32 %v2585, 7
  %v2587 = vsub.s32 %v2584, %v2586
  %v2588 = vrot.slane %v2578, %v2587
  %v2590 = vunpack.c.l.s4 1966171168
  %v2591 = vunpack.c.0.s8 %v2590
  %v2592 = vlaneseq
  %v2593 = vshrl.u32 %v2592, 7
  %v2594 = vsub.s32 %v2591, %v2593
  %v2595 = vrot.slane %v2579, %v2594
  %v2597 = vunpack.c.l.s4 1966171168
  %v2598 = vunpack.c.0.s8 %v2597
  %v2599 = vlaneseq
  %v2600 = vshrl.u32 %v2599, 7
  %v2601 = vsub.s32 %v2598, %v2600
  %v2602 = vrot.slane %v2580, %v2601
  %v2604 = vunpack.c.l.s4 1966171168
  %v2605 = vunpack.c.0.s8 %v2604
  %v2606 = vlaneseq
  %v2607 = vshrl.u32 %v2606, 7
  %v2608 = vsub.s32 %v2605, %v2607
  %v2609 = vrot.slane %v2581, %v2608
  %v2610 = vcombine.low %v2588, %v2595
  %v2611 = vcombine.low %v2602, %v2609
  %v2613 = vunpack.c.l.s4 1966171168
  %v2614 = vunpack.c.0.s8 %v2613
  %v2615 = vlaneseq
  %v2616 = vshrl.u32 %v2615, 7
  %v2617 = vsub.s32 %v2614, %v2616
  %v2618 = vrot.slane %v2610, %v2617
  %v2620 = vunpack.c.l.s4 1966171168
  %v2621 = vunpack.c.0.s8 %v2620
  %v2622 = vlaneseq
  %v2623 = vshrl.u32 %v2622, 7
  %v2624 = vsub.s32 %v2621, %v2623
  %v2625 = vrot.slane %v2611, %v2624
  %v2626 = vcombine.low %v2618, %v2625
  %v2627 = vcombine.low %v2431, %v2432
  %v2628 = vcombine.low %v2433, %v2434
  %v2629 = vcombine.low %v2435, %v2436
  %v2630 = vcombine.low %v2437, %v2438
  %v2632 = vunpack.c.l.s4 1966171168
  %v2633 = vunpack.c.0.s8 %v2632
  %v2634 = vlaneseq
  %v2635 = vshrl.u32 %v2634, 7
  %v2636 = vsub.s32 %v2633, %v2635
  %v2637 = vrot.slane %v2627, %v2636
  %v2639 = vunpack.c.l.s4 1966171168
  %v2640 = vunpack.c.0.s8 %v2639
  %v2641 = vlaneseq
  %v2642 = vshrl.u32 %v2641, 7
  %v2643 = vsub.s32 %v2640, %v2642
  %v2644 = vrot.slane %v2628, %v2643
  %v2646 = vunpack.c.l.s4 1966171168
  %v2647 = vunpack.c.0.s8 %v2646
  %v2648 = vlaneseq
  %v2649 = vshrl.u32 %v2648, 7
  %v2650 = vsub.s32 %v2647, %v2649
  %v2651 = vrot.slane %v2629, %v2650
  %v2653 = vunpack.c.l.s4 1966171168
  %v2654 = vunpack.c.0.s8 %v2653
  %v2655 = vlaneseq
  %v2656 = vshrl.u32 %v2655, 7
  %v2657 = vsub.s32 %v2654, %v2656
  %v2658 = vrot.slane %v2630, %v2657
  %v2659 = vcombine.low %v2637, %v2644
  %v2660 = vcombine.low %v2651, %v2658
  %v2662 = vunpack.c.l.s4 1966171168
  %v2663 = vunpack.c.0.s8 %v2662
  %v2664 = vlaneseq
  %v2665 = vshrl.u32 %v2664, 7
  %v2666 = vsub.s32 %v2663, %v2665
  %v2667 = vrot.slane %v2659, %v2666
  %v2669 = vunpack.c.l.s4 1966171168
  %v2670 = vunpack.c.0.s8 %v2669
  %v2671 = vlaneseq
  %v2672 = vshrl.u32 %v2671, 7
  %v2673 = vsub.s32 %v2670, %v2672
  %v2674 = vrot.slane %v2660, %v2673
  %v2675 = vcombine.low %v2667, %v2674
  %v2676 = vcombine.low %v2439, %v2440
  %v2677 = vcombine.low %v2441, %v2442
  %v2678 = vcombine.low %v2443, %v2444
  %v2679 = vcombine.low %v2445, %v2446
  %v2681 = vunpack.c.l.s4 1966171168
  %v2682 = vunpack.c.0.s8 %v2681
  %v2683 = vlaneseq
  %v2684 = vshrl.u32 %v2683, 7
  %v2685 = vsub.s32 %v2682, %v2684
  %v2686 = vrot.slane %v2676, %v2685
  %v2688 = vunpack.c.l.s4 1966171168
  %v2689 = vunpack.c.0.s8 %v2688
  %v2690 = vlaneseq
  %v2691 = vshrl.u32 %v2690, 7
  %v2692 = vsub.s32 %v2689, %v2691
  %v2693 = vrot.slane %v2677, %v2692
  %v2695 = vunpack.c.l.s4 1966171168
  %v2696 = vunpack.c.0.s8 %v2695
  %v2697 = vlaneseq
  %v2698 = vshrl.u32 %v2697, 7
  %v2699 = vsub.s32 %v2696, %v2698
  %v2700 = vrot.slane %v2678, %v2699
  %v2702 = vunpack.c.l.s4 1966171168
  %v2703 = vunpack.c.0.s8 %v2702
  %v2704 = vlaneseq
  %v2705 = vshrl.u32 %v2704, 7
  %v2706 = vsub.s32 %v2703, %v2705
  %v2707 = vrot.slane %v2679, %v2706
  %v2708 = vcombine.low %v2686, %v2693
  %v2709 = vcombine.low %v2700, %v2707
  %v2711 = vunpack.c.l.s4 1966171168
  %v2712 = vunpack.c.0.s8 %v2711
  %v2713 = vlaneseq
  %v2714 = vshrl.u32 %v2713, 7
  %v2715 = vsub.s32 %v2712, %v2714
  %v2716 = vrot.slane %v2708, %v2715
  %v2718 = vunpack.c.l.s4 1966171168
  %v2719 = vunpack.c.0.s8 %v2718
  %v2720 = vlaneseq
  %v2721 = vshrl.u32 %v2720, 7
  %v2722 = vsub.s32 %v2719, %v2721
  %v2723 = vrot.slane %v2709, %v2722
  %v2724 = vcombine.low %v2716, %v2723
  %v2725 = vcombine.low %v2447, %v2448
  %v2726 = vcombine.low %v2449, %v2450
  %v2727 = vcombine.low %v2451, %v2452
  %v2728 = vcombine.low %v2453, %v2454
  %v2730 = vunpack.c.l.s4 1966171168
  %v2731 = vunpack.c.0.s8 %v2730
  %v2732 = vlaneseq
  %v2733 = vshrl.u32 %v2732, 7
  %v2734 = vsub.s32 %v2731, %v2733
  %v2735 = vrot.slane %v2725, %v2734
  %v2737 = vunpack.c.l.s4 1966171168
  %v2738 = vunpack.c.0.s8 %v2737
  %v2739 = vlaneseq
  %v2740 = vshrl.u32 %v2739, 7
  %v2741 = vsub.s32 %v2738, %v2740
  %v2742 = vrot.slane %v2726, %v2741
  %v2744 = vunpack.c.l.s4 1966171168
  %v2745 = vunpack.c.0.s8 %v2744
  %v2746 = vlaneseq
  %v2747 = vshrl.u32 %v2746, 7
  %v2748 = vsub.s32 %v2745, %v2747
  %v2749 = vrot.slane %v2727, %v2748
  %v2751 = vunpack.c.l.s4 1966171168
  %v2752 = vunpack.c.0.s8 %v2751
  %v2753 = vlaneseq
  %v2754 = vshrl.u32 %v2753, 7
  %v2755 = vsub.s32 %v2752, %v2754
  %v2756 = vrot.slane %v2728, %v2755
  %v2757 = vcombine.low %v2735, %v2742
  %v2758 = vcombine.low %v2749, %v2756
  %v2760 = vunpack.c.l.s4 1966171168
  %v2761 = vunpack.c.0.s8 %v2760
  %v2762 = vlaneseq
  %v2763 = vshrl.u32 %v2762, 7
  %v2764 = vsub.s32 %v2761, %v2763
  %v2765 = vrot.slane %v2757, %v2764
  %v2767 = vunpack.c.l.s4 1966171168
  %v2768 = vunpack.c.0.s8 %v2767
  %v2769 = vlaneseq
  %v2770 = vshrl.u32 %v2769, 7
  %v2771 = vsub.s32 %v2768, %v2770
  %v2772 = vrot.slane %v2758, %v2771
  %v2773 = vcombine.low %v2765, %v2772
  %v2774 = vcombine.low %v2455, %v2456
  %v2775 = vcombine.low %v2457, %v2458
  %v2776 = vcombine.low %v2459, %v2460
  %v2777 = vcombine.low %v2461, %v2462
  %v2779 = vunpack.c.l.s4 1966171168
  %v2780 = vunpack.c.0.s8 %v2779
  %v2781 = vlaneseq
  %v2782 = vshrl.u32 %v2781, 7
  %v2783 = vsub.s32 %v2780, %v2782
  %v2784 = vrot.slane %v2774, %v2783
  %v2786 = vunpack.c.l.s4 1966171168
  %v2787 = vunpack.c.0.s8 %v2786
  %v2788 = vlaneseq
  %v2789 = vshrl.u32 %v2788, 7
  %v2790 = vsub.s32 %v2787, %v2789
  %v2791 = vrot.slane %v2775, %v2790
  %v2793 = vunpack.c.l.s4 1966171168
  %v2794 = vunpack.c.0.s8 %v2793
  %v2795 = vlaneseq
  %v2796 = vshrl.u32 %v2795, 7
  %v2797 = vsub.s32 %v2794, %v2796
  %v2798 = vrot.slane %v2776, %v2797
  %v2800 = vunpack.c.l.s4 1966171168
  %v2801 = vunpack.c.0.s8 %v2800
  %v2802 = vlaneseq
  %v2803 = vshrl.u32 %v2802, 7
  %v2804 = vsub.s32 %v2801, %v2803
  %v2805 = vrot.slane %v2777, %v2804
  %v2806 = vcombine.low %v2784, %v2791
  %v2807 = vcombine.low %v2798, %v2805
  %v2809 = vunpack.c.l.s4 1966171168
  %v2810 = vunpack.c.0.s8 %v2809
  %v2811 = vlaneseq
  %v2812 = vshrl.u32 %v2811, 7
  %v2813 = vsub.s32 %v2810, %v2812
  %v2814 = vrot.slane %v2806, %v2813
  %v2816 = vunpack.c.l.s4 1966171168
  %v2817 = vunpack.c.0.s8 %v2816
  %v2818 = vlaneseq
  %v2819 = vshrl.u32 %v2818, 7
  %v2820 = vsub.s32 %v2817, %v2819
  %v2821 = vrot.slane %v2807, %v2820
  %v2822 = vcombine.low %v2814, %v2821
  %v2823 = vcombine.low %v2463, %v2464
  %v2824 = vcombine.low %v2465, %v2466
  %v2825 = vcombine.low %v2467, %v2468
  %v2826 = vcombine.low %v2469, %v2470
  %v2828 = vunpack.c.l.s4 1966171168
  %v2829 = vunpack.c.0.s8 %v2828
  %v2830 = vlaneseq
  %v2831 = vshrl.u32 %v2830, 7
  %v2832 = vsub.s32 %v2829, %v2831
  %v2833 = vrot.slane %v2823, %v2832
  %v2835 = vunpack.c.l.s4 1966171168
  %v2836 = vunpack.c.0.s8 %v2835
  %v2837 = vlaneseq
  %v2838 = vshrl.u32 %v2837, 7
  %v2839 = vsub.s32 %v2836, %v2838
  %v2840 = vrot.slane %v2824, %v2839
  %v2842 = vunpack.c.l.s4 1966171168
  %v2843 = vunpack.c.0.s8 %v2842
  %v2844 = vlaneseq
  %v2845 = vshrl.u32 %v2844, 7
  %v2846 = vsub.s32 %v2843, %v2845
  %v2847 = vrot.slane %v2825, %v2846
  %v2849 = vunpack.c.l.s4 1966171168
  %v2850 = vunpack.c.0.s8 %v2849
  %v2851 = vlaneseq
  %v2852 = vshrl.u32 %v2851, 7
  %v2853 = vsub.s32 %v2850, %v2852
  %v2854 = vrot.slane %v2826, %v2853
  %v2855 = vcombine.low %v2833, %v2840
  %v2856 = vcombine.low %v2847, %v2854
  %v2858 = vunpack.c.l.s4 1966171168
  %v2859 = vunpack.c.0.s8 %v2858
  %v2860 = vlaneseq
  %v2861 = vshrl.u32 %v2860, 7
  %v2862 = vsub.s32 %v2859, %v2861
  %v2863 = vrot.slane %v2855, %v2862
  %v2865 = vunpack.c.l.s4 1966171168
  %v2866 = vunpack.c.0.s8 %v2865
  %v2867 = vlaneseq
  %v2868 = vshrl.u32 %v2867, 7
  %v2869 = vsub.s32 %v2866, %v2868
  %v2870 = vrot.slane %v2856, %v2869
  %v2871 = vcombine.low %v2863, %v2870
  %v2872 = vcombine.low %v2471, %v2472
  %v2873 = vcombine.low %v2473, %v2474
  %v2874 = vcombine.low %v2475, %v2476
  %v2875 = vcombine.low %v2477, %v2478
  %v2877 = vunpack.c.l.s4 1966171168
  %v2878 = vunpack.c.0.s8 %v2877
  %v2879 = vlaneseq
  %v2880 = vshrl.u32 %v2879, 7
  %v2881 = vsub.s32 %v2878, %v2880
  %v2882 = vrot.slane %v2872, %v2881
  %v2884 = vunpack.c.l.s4 1966171168
  %v2885 = vunpack.c.0.s8 %v2884
  %v2886 = vlaneseq
  %v2887 = vshrl.u32 %v2886, 7
  %v2888 = vsub.s32 %v2885, %v2887
  %v2889 = vrot.slane %v2873, %v2888
  %v2891 = vunpack.c.l.s4 1966171168
  %v2892 = vunpack.c.0.s8 %v2891
  %v2893 = vlaneseq
  %v2894 = vshrl.u32 %v2893, 7
  %v2895 = vsub.s32 %v2892, %v2894
  %v2896 = vrot.slane %v2874, %v2895
  %v2898 = vunpack.c.l.s4 1966171168
  %v2899 = vunpack.c.0.s8 %v2898
  %v2900 = vlaneseq
  %v2901 = vshrl.u32 %v2900, 7
  %v2902 = vsub.s32 %v2899, %v2901
  %v2903 = vrot.slane %v2875, %v2902
  %v2904 = vcombine.low %v2882, %v2889
  %v2905 = vcombine.low %v2896, %v2903
  %v2907 = vunpack.c.l.s4 1966171168
  %v2908 = vunpack.c.0.s8 %v2907
  %v2909 = vlaneseq
  %v2910 = vshrl.u32 %v2909, 7
  %v2911 = vsub.s32 %v2908, %v2910
  %v2912 = vrot.slane %v2904, %v2911
  %v2914 = vunpack.c.l.s4 1966171168
  %v2915 = vunpack.c.0.s8 %v2914
  %v2916 = vlaneseq
  %v2917 = vshrl.u32 %v2916, 7
  %v2918 = vsub.s32 %v2915, %v2917
  %v2919 = vrot.slane %v2905, %v2918
  %v2920 = vcombine.low %v2912, %v2919
  %v2921 = vcombine.low %v2479, %v2480
  %v2922 = vcombine.low %v2481, %v2482
  %v2923 = vcombine.low %v2483, %v2484
  %v2924 = vcombine.low %v2485, %v2486
  %v2926 = vunpack.c.l.s4 1966171168
  %v2927 = vunpack.c.0.s8 %v2926
  %v2928 = vlaneseq
  %v2929 = vshrl.u32 %v2928, 7
  %v2930 = vsub.s32 %v2927, %v2929
  %v2931 = vrot.slane %v2921, %v2930
  %v2933 = vunpack.c.l.s4 1966171168
  %v2934 = vunpack.c.0.s8 %v2933
  %v2935 = vlaneseq
  %v2936 = vshrl.u32 %v2935, 7
  %v2937 = vsub.s32 %v2934, %v2936
  %v2938 = vrot.slane %v2922, %v2937
  %v2940 = vunpack.c.l.s4 1966171168
  %v2941 = vunpack.c.0.s8 %v2940
  %v2942 = vlaneseq
  %v2943 = vshrl.u32 %v2942, 7
  %v2944 = vsub.s32 %v2941, %v2943
  %v2945 = vrot.slane %v2923, %v2944
  %v2947 = vunpack.c.l.s4 1966171168
  %v2948 = vunpack.c.0.s8 %v2947
  %v2949 = vlaneseq
  %v2950 = vshrl.u32 %v2949, 7
  %v2951 = vsub.s32 %v2948, %v2950
  %v2952 = vrot.slane %v2924, %v2951
  %v2953 = vcombine.low %v2931, %v2938
  %v2954 = vcombine.low %v2945, %v2952
  %v2956 = vunpack.c.l.s4 1966171168
  %v2957 = vunpack.c.0.s8 %v2956
  %v2958 = vlaneseq
  %v2959 = vshrl.u32 %v2958, 7
  %v2960 = vsub.s32 %v2957, %v2959
  %v2961 = vrot.slane %v2953, %v2960
  %v2963 = vunpack.c.l.s4 1966171168
  %v2964 = vunpack.c.0.s8 %v2963
  %v2965 = vlaneseq
  %v2966 = vshrl.u32 %v2965, 7
  %v2967 = vsub.s32 %v2964, %v2966
  %v2968 = vrot.slane %v2954, %v2967
  %v2969 = vcombine.low %v2961, %v2968
  %v2970 = vcombine.low %v2487, %v2488
  %v2971 = vcombine.low %v2489, %v2490
  %v2972 = vcombine.low %v2491, %v2492
  %v2973 = vcombine.low %v2493, %v2494
  %v2975 = vunpack.c.l.s4 1966171168
  %v2976 = vunpack.c.0.s8 %v2975
  %v2977 = vlaneseq
  %v2978 = vshrl.u32 %v2977, 7
  %v2979 = vsub.s32 %v2976, %v2978
  %v2980 = vrot.slane %v2970, %v2979
  %v2982 = vunpack.c.l.s4 1966171168
  %v2983 = vunpack.c.0.s8 %v2982
  %v2984 = vlaneseq
  %v2985 = vshrl.u32 %v2984, 7
  %v2986 = vsub.s32 %v2983, %v2985
  %v2987 = vrot.slane %v2971, %v2986
  %v2989 = vunpack.c.l.s4 1966171168
  %v2990 = vunpack.c.0.s8 %v2989
  %v2991 = vlaneseq
  %v2992 = vshrl.u32 %v2991, 7
  %v2993 = vsub.s32 %v2990, %v2992
  %v2994 = vrot.slane %v2972, %v2993
  %v2996 = vunpack.c.l.s4 1966171168
  %v2997 = vunpack.c.0.s8 %v2996
  %v2998 = vlaneseq
  %v2999 = vshrl.u32 %v2998, 7
  %v3000 = vsub.s32 %v2997, %v2999
  %v3001 = vrot.slane %v2973, %v3000
  %v3002 = vcombine.low %v2980, %v2987
  %v3003 = vcombine.low %v2994, %v3001
  %v3005 = vunpack.c.l.s4 1966171168
  %v3006 = vunpack.c.0.s8 %v3005
  %v3007 = vlaneseq
  %v3008 = vshrl.u32 %v3007, 7
  %v3009 = vsub.s32 %v3006, %v3008
  %v3010 = vrot.slane %v3002, %v3009
  %v3012 = vunpack.c.l.s4 1966171168
  %v3013 = vunpack.c.0.s8 %v3012
  %v3014 = vlaneseq
  %v3015 = vshrl.u32 %v3014, 7
  %v3016 = vsub.s32 %v3013, %v3015
  %v3017 = vrot.slane %v3003, %v3016
  %v3018 = vcombine.low %v3010, %v3017
  %v3019 = vcombine.low %v2495, %v2496
  %v3020 = vcombine.low %v2497, %v2498
  %v3021 = vcombine.low %v2499, %v2500
  %v3022 = vcombine.low %v2501, %v2502
  %v3024 = vunpack.c.l.s4 1966171168
  %v3025 = vunpack.c.0.s8 %v3024
  %v3026 = vlaneseq
  %v3027 = vshrl.u32 %v3026, 7
  %v3028 = vsub.s32 %v3025, %v3027
  %v3029 = vrot.slane %v3019, %v3028
  %v3031 = vunpack.c.l.s4 1966171168
  %v3032 = vunpack.c.0.s8 %v3031
  %v3033 = vlaneseq
  %v3034 = vshrl.u32 %v3033, 7
  %v3035 = vsub.s32 %v3032, %v3034
  %v3036 = vrot.slane %v3020, %v3035
  %v3038 = vunpack.c.l.s4 1966171168
  %v3039 = vunpack.c.0.s8 %v3038
  %v3040 = vlaneseq
  %v3041 = vshrl.u32 %v3040, 7
  %v3042 = vsub.s32 %v3039, %v3041
  %v3043 = vrot.slane %v3021, %v3042
  %v3045 = vunpack.c.l.s4 1966171168
  %v3046 = vunpack.c.0.s8 %v3045
  %v3047 = vlaneseq
  %v3048 = vshrl.u32 %v3047, 7
  %v3049 = vsub.s32 %v3046, %v3048
  %v3050 = vrot.slane %v3022, %v3049
  %v3051 = vcombine.low %v3029, %v3036
  %v3052 = vcombine.low %v3043, %v3050
  %v3054 = vunpack.c.l.s4 1966171168
  %v3055 = vunpack.c.0.s8 %v3054
  %v3056 = vlaneseq
  %v3057 = vshrl.u32 %v3056, 7
  %v3058 = vsub.s32 %v3055, %v3057
  %v3059 = vrot.slane %v3051, %v3058
  %v3061 = vunpack.c.l.s4 1966171168
  %v3062 = vunpack.c.0.s8 %v3061
  %v3063 = vlaneseq
  %v3064 = vshrl.u32 %v3063, 7
  %v3065 = vsub.s32 %v3062, %v3064
  %v3066 = vrot.slane %v3052, %v3065
  %v3067 = vcombine.low %v3059, %v3066
  %v3068 = vcombine.low %v2503, %v2504
  %v3069 = vcombine.low %v2505, %v2506
  %v3070 = vcombine.low %v2507, %v2508
  %v3071 = vcombine.low %v2509, %v2510
  %v3073 = vunpack.c.l.s4 1966171168
  %v3074 = vunpack.c.0.s8 %v3073
  %v3075 = vlaneseq
  %v3076 = vshrl.u32 %v3075, 7
  %v3077 = vsub.s32 %v3074, %v3076
  %v3078 = vrot.slane %v3068, %v3077
  %v3080 = vunpack.c.l.s4 1966171168
  %v3081 = vunpack.c.0.s8 %v3080
  %v3082 = vlaneseq
  %v3083 = vshrl.u32 %v3082, 7
  %v3084 = vsub.s32 %v3081, %v3083
  %v3085 = vrot.slane %v3069, %v3084
  %v3087 = vunpack.c.l.s4 1966171168
  %v3088 = vunpack.c.0.s8 %v3087
  %v3089 = vlaneseq
  %v3090 = vshrl.u32 %v3089, 7
  %v3091 = vsub.s32 %v3088, %v3090
  %v3092 = vrot.slane %v3070, %v3091
  %v3094 = vunpack.c.l.s4 1966171168
  %v3095 = vunpack.c.0.s8 %v3094
  %v3096 = vlaneseq
  %v3097 = vshrl.u32 %v3096, 7
  %v3098 = vsub.s32 %v3095, %v3097
  %v3099 = vrot.slane %v3071, %v3098
  %v3100 = vcombine.low %v3078, %v3085
  %v3101 = vcombine.low %v3092, %v3099
  %v3103 = vunpack.c.l.s4 1966171168
  %v3104 = vunpack.c.0.s8 %v3103
  %v3105 = vlaneseq
  %v3106 = vshrl.u32 %v3105, 7
  %v3107 = vsub.s32 %v3104, %v3106
  %v3108 = vrot.slane %v3100, %v3107
  %v3110 = vunpack.c.l.s4 1966171168
  %v3111 = vunpack.c.0.s8 %v3110
  %v3112 = vlaneseq
  %v3113 = vshrl.u32 %v3112, 7
  %v3114 = vsub.s32 %v3111, %v3113
  %v3115 = vrot.slane %v3101, %v3114
  %v3116 = vcombine.low %v3108, %v3115
  %v3117 = vcombine.low %v2511, %v2512
  %v3118 = vcombine.low %v2513, %v2514
  %v3119 = vcombine.low %v2515, %v2516
  %v3120 = vcombine.low %v2517, %v2518
  %v3122 = vunpack.c.l.s4 1966171168
  %v3123 = vunpack.c.0.s8 %v3122
  %v3124 = vlaneseq
  %v3125 = vshrl.u32 %v3124, 7
  %v3126 = vsub.s32 %v3123, %v3125
  %v3127 = vrot.slane %v3117, %v3126
  %v3129 = vunpack.c.l.s4 1966171168
  %v3130 = vunpack.c.0.s8 %v3129
  %v3131 = vlaneseq
  %v3132 = vshrl.u32 %v3131, 7
  %v3133 = vsub.s32 %v3130, %v3132
  %v3134 = vrot.slane %v3118, %v3133
  %v3136 = vunpack.c.l.s4 1966171168
  %v3137 = vunpack.c.0.s8 %v3136
  %v3138 = vlaneseq
  %v3139 = vshrl.u32 %v3138, 7
  %v3140 = vsub.s32 %v3137, %v3139
  %v3141 = vrot.slane %v3119, %v3140
  %v3143 = vunpack.c.l.s4 1966171168
  %v3144 = vunpack.c.0.s8 %v3143
  %v3145 = vlaneseq
  %v3146 = vshrl.u32 %v3145, 7
  %v3147 = vsub.s32 %v3144, %v3146
  %v3148 = vrot.slane %v3120, %v3147
  %v3149 = vcombine.low %v3127, %v3134
  %v3150 = vcombine.low %v3141, %v3148
  %v3152 = vunpack.c.l.s4 1966171168
  %v3153 = vunpack.c.0.s8 %v3152
  %v3154 = vlaneseq
  %v3155 = vshrl.u32 %v3154, 7
  %v3156 = vsub.s32 %v3153, %v3155
  %v3157 = vrot.slane %v3149, %v3156
  %v3159 = vunpack.c.l.s4 1966171168
  %v3160 = vunpack.c.0.s8 %v3159
  %v3161 = vlaneseq
  %v3162 = vshrl.u32 %v3161, 7
  %v3163 = vsub.s32 %v3160, %v3162
  %v3164 = vrot.slane %v3150, %v3163
  %v3165 = vcombine.low %v3157, %v3164
  %v3166 = vcombine.low %v2519, %v2520
  %v3167 = vcombine.low %v2521, %v2522
  %v3168 = vcombine.low %v2523, %v2524
  %v3169 = vcombine.low %v2525, %v2526
  %v3171 = vunpack.c.l.s4 1966171168
  %v3172 = vunpack.c.0.s8 %v3171
  %v3173 = vlaneseq
  %v3174 = vshrl.u32 %v3173, 7
  %v3175 = vsub.s32 %v3172, %v3174
  %v3176 = vrot.slane %v3166, %v3175
  %v3178 = vunpack.c.l.s4 1966171168
  %v3179 = vunpack.c.0.s8 %v3178
  %v3180 = vlaneseq
  %v3181 = vshrl.u32 %v3180, 7
  %v3182 = vsub.s32 %v3179, %v3181
  %v3183 = vrot.slane %v3167, %v3182
  %v3185 = vunpack.c.l.s4 1966171168
  %v3186 = vunpack.c.0.s8 %v3185
  %v3187 = vlaneseq
  %v3188 = vshrl.u32 %v3187, 7
  %v3189 = vsub.s32 %v3186, %v3188
  %v3190 = vrot.slane %v3168, %v3189
  %v3192 = vunpack.c.l.s4 1966171168
  %v3193 = vunpack.c.0.s8 %v3192
  %v3194 = vlaneseq
  %v3195 = vshrl.u32 %v3194, 7
  %v3196 = vsub.s32 %v3193, %v3195
  %v3197 = vrot.slane %v3169, %v3196
  %v3198 = vcombine.low %v3176, %v3183
  %v3199 = vcombine.low %v3190, %v3197
  %v3201 = vunpack.c.l.s4 1966171168
  %v3202 = vunpack.c.0.s8 %v3201
  %v3203 = vlaneseq
  %v3204 = vshrl.u32 %v3203, 7
  %v3205 = vsub.s32 %v3202, %v3204
  %v3206 = vrot.slane %v3198, %v3205
  %v3208 = vunpack.c.l.s4 1966171168
  %v3209 = vunpack.c.0.s8 %v3208
  %v3210 = vlaneseq
  %v3211 = vshrl.u32 %v3210, 7
  %v3212 = vsub.s32 %v3209, %v3211
  %v3213 = vrot.slane %v3199, %v3212
  %v3214 = vcombine.low %v3206, %v3213
  %v3215 = vcombine.low %v2527, %v2528
  %v3217 = vunpack.c.l.s4 1966171168
  %v3218 = vunpack.c.0.s8 %v3217
  %v3219 = vlaneseq
  %v3220 = vshrl.u32 %v3219, 7
  %v3221 = vsub.s32 %v3218, %v3220
  %v3222 = vrot.slane %v3215, %v3221
  %v3224 = vunpack.c.l.s4 1966171168
  %v3225 = vunpack.c.0.s8 %v3224
  %v3226 = vlaneseq
  %v3227 = vshrl.u32 %v3226, 7
  %v3228 = vsub.s32 %v3225, %v3227
  %v3229 = vrot.slane %v3222, %v3228
  %v3230 = vpack.i.b16 %v968, %v967
  %v3231 = vpack.i.b16 %v970, %v969
  %v3232 = vpack.i.b16 %v972, %v971
  %v3233 = vpack.i.b16 %v974, %v973
  %v3234 = vpack.i.b16 %v976, %v975
  %v3235 = vpack.i.b16 %v978, %v977
  %v3236 = vpack.i.b16 %v980, %v979
  %v3237 = vpack.i.b16 %v982, %v981
  %v3238 = vpack.i.b16 %v984, %v983
  %v3239 = vpack.i.b16 %v986, %v1194
  %v3240 = vpack.i.b16 %v988, %v987
  %v3241 = vpack.i.b16 %v990, %v989
  %v3242 = vpack.i.b16 %v992, %v991
  %v3243 = vpack.i.b16 %v994, %v993
  %v3244 = vpack.i.b16 %v996, %v995
  %v3245 = vpack.i.b16 %v998, %v997
  %v3246 = vpack.i.b16 %v1000, %v999
  %v3247 = vpack.i.b16 %v1002, %v1001
  %v3248 = vpack.i.b16 %v1195, %v1003
  %v3249 = vpack.i.b16 %v1006, %v1005
  %v3250 = vpack.i.b16 %v1008, %v1007
  %v3251 = vpack.i.b16 %v1010, %v1009
  %v3252 = vpack.i.b16 %v1012, %v1011
  %v3253 = vpack.i.b16 %v1014, %v1013
  %v3254 = vpack.i.b16 %v1016, %v1015
  %v3255 = vpack.i.b16 %v1018, %v1017
  %v3256 = vpack.i.b16 %v1020, %v1019
  %v3257 = vpack.i.b16 %v1022, %v1021
  %v3258 = vpack.i.b16 %v1024, %v1196
  %v3259 = vpack.i.b16 %v1026, %v1025
  %v3260 = vpack.i.b16 %v1028, %v1027
  %v3261 = vpack.i.b16 %v1030, %v1029
  %v3262 = vpack.i.b16 %v1032, %v1031
  %v3263 = vpack.i.b16 %v1034, %v1033
  %v3264 = vpack.i.b16 %v1036, %v1035
  %v3265 = vpack.i.b16 %v1038, %v1037
  %v3266 = vpack.i.b16 %v1040, %v1039
  %v3267 = vpack.i.b16 %v1197, %v1041
  %v3268 = vpack.i.b16 %v1044, %v1043
  %v3269 = vpack.i.b16 %v1046, %v1045
  %v3270 = vpack.i.b16 %v1048, %v1047
  %v3271 = vpack.i.b16 %v1050, %v1049
  %v3272 = vpack.i.b16 %v1052, %v1051
  %v3273 = vpack.i.b16 %v1054, %v1053
  %v3274 = vpack.i.b16 %v1056, %v1055
  %v3275 = vpack.i.b16 %v1058, %v1057
  %v3276 = vpack.i.b16 %v1060, %v1059
  %v3277 = vpack.i.b16 %v1062, %v1198
  %v3278 = vpack.i.b16 %v1064, %v1063
  %v3279 = vpack.i.b16 %v1066, %v1065
  %v3280 = vpack.i.b16 %v1068, %v1067
  %v3281 = vpack.i.b16 %v1070, %v1069
  %v3282 = vpack.i.b16 %v1072, %v1071
  %v3283 = vpack.i.b16 %v1074, %v1073
  %v3284 = vpack.i.b16 %v1076, %v1075
  %v3285 = vpack.i.b16 %v1078, %v1077
  %v3286 = vpack.i.b16 %v1199, %v1079
  %v3287 = vpack.i.b16 %v1082, %v1081
  %v3288 = vpack.i.b16 %v1084, %v1083
  %v3289 = vpack.i.b16 %v1086, %v1085
  %v3290 = vpack.i.b16 %v1088, %v1087
  %v3291 = vpack.i.b16 %v1090, %v1089
  %v3292 = vpack.i.b16 %v1092, %v1091
  %v3293 = vpack.i.b16 %v1094, %v1093
  %v3294 = vpack.i.b16 %v1096, %v1095
  %v3295 = vpack.i.b16 %v1098, %v1097
  %v3296 = vpack.i.b16 %v1100, %v1200
  %v3297 = vpack.i.b16 %v1102, %v1101
  %v3298 = vpack.i.b16 %v1104, %v1103
  %v3299 = vpack.i.b16 %v1106, %v1105
  %v3300 = vpack.i.b16 %v1108, %v1107
  %v3301 = vpack.i.b16 %v1110, %v1109
  %v3302 = vpack.i.b16 %v1112, %v1111
  %v3303 = vpack.i.b16 %v1114, %v1113
  %v3304 = vpack.i.b16 %v1116, %v1115
  %v3305 = vpack.i.b16 %v1201, %v1117
  %v3306 = vpack.i.b16 %v1120, %v1119
  %v3307 = vpack.i.b16 %v1122, %v1121
  %v3308 = vpack.i.b16 %v1124, %v1123
  %v3309 = vpack.i.b16 %v1126, %v1125
  %v3310 = vpack.i.b16 %v1128, %v1127
  %v3311 = vpack.i.b16 %v1130, %v1129
  %v3312 = vpack.i.b16 %v1132, %v1131
  %v3313 = vpack.i.b16 %v1134, %v1133
  %v3314 = vpack.i.b16 %v1136, %v1135
  %v3315 = vpack.i.b16 %v1138, %v1202
  %v3316 = vpack.i.b16 %v1140, %v1139
  %v3317 = vpack.i.b16 %v1142, %v1141
  %v3318 = vpack.i.b16 %v1144, %v1143
  %v3319 = vpack.i.b16 %v1146, %v1145
  %v3320 = vpack.i.b16 %v1148, %v1147
  %v3321 = vpack.i.b16 %v1150, %v1149
  %v3322 = vpack.i.b16 %v1152, %v1151
  %v3323 = vpack.i.b16 %v1154, %v1153
  %v3324 = vpack.i.b16 %v1203, %v1155
  %v3325 = vpack.i.b16 %v1158, %v1157
  %v3326 = vpack.i.b16 %v1160, %v1159
  %v3327 = vpack.i.b16 %v1162, %v1161
  %v3328 = vpack.i.b16 %v1164, %v1163
  %v3329 = vpack.i.b16 %v1166, %v1165
  %v3330 = vpack.i.b16 %v1168, %v1167
  %v3331 = vpack.i.b16 %v1170, %v1169
  %v3332 = vpack.i.b16 %v1172, %v1171
  %v3333 = vpack.i.b16 %v1174, %v1173
  %v3334 = vpack.i.b16 %v1176, %v1204
  %v3335 = vpack.i.b16 %v1178, %v1177
  %v3336 = vpack.i.b16 %v1180, %v1179
  %v3337 = vpack.i.b16 %v1182, %v1181
  %v3338 = vpack.i.b16 %v1184, %v1183
  %v3339 = vpack.i.b16 %v1186, %v1185
  %v3340 = vpack.i.b16 %v1188, %v1187
  %v3341 = vpack.i.b16 %v1190, %v1189
  %v3342 = vpack.i.b16 %v1192, %v1191
  %v3343 = vpack.i.b16 %v1205, %v1193
  %v3344 = vcombine.low %v3230, %v3231
  %v3345 = vcombine.low %v3232, %v3233
  %v3346 = vcombine.low %v3234, %v3235
  %v3347 = vcombine.low %v3236, %v3237
  %v3349 = vunpack.c.l.s4 1966171168
  %v3350 = vunpack.c.0.s8 %v3349
  %v3351 = vlaneseq
  %v3352 = vshrl.u32 %v3351, 7
  %v3353 = vsub.s32 %v3350, %v3352
  %v3354 = vrot.slane %v3344, %v3353
  %v3356 = vunpack.c.l.s4 1966171168
  %v3357 = vunpack.c.0.s8 %v3356
  %v3358 = vlaneseq
  %v3359 = vshrl.u32 %v3358, 7
  %v3360 = vsub.s32 %v3357, %v3359
  %v3361 = vrot.slane %v3345, %v3360
  %v3363 = vunpack.c.l.s4 1966171168
  %v3364 = vunpack.c.0.s8 %v3363
  %v3365 = vlaneseq
  %v3366 = vshrl.u32 %v3365, 7
  %v3367 = vsub.s32 %v3364, %v3366
  %v3368 = vrot.slane %v3346, %v3367
  %v3370 = vunpack.c.l.s4 1966171168
  %v3371 = vunpack.c.0.s8 %v3370
  %v3372 = vlaneseq
  %v3373 = vshrl.u32 %v3372, 7
  %v3374 = vsub.s32 %v3371, %v3373
  %v3375 = vrot.slane %v3347, %v3374
  %v3376 = vcombine.low %v3354, %v3361
  %v3377 = vcombine.low %v3368, %v3375
  %v3379 = vunpack.c.l.s4 1966171168
  %v3380 = vunpack.c.0.s8 %v3379
  %v3381 = vlaneseq
  %v3382 = vshrl.u32 %v3381, 7
  %v3383 = vsub.s32 %v3380, %v3382
  %v3384 = vrot.slane %v3376, %v3383
  %v3386 = vunpack.c.l.s4 1966171168
  %v3387 = vunpack.c.0.s8 %v3386
  %v3388 = vlaneseq
  %v3389 = vshrl.u32 %v3388, 7
  %v3390 = vsub.s32 %v3387, %v3389
  %v3391 = vrot.slane %v3377, %v3390
  %v3392 = vcombine.low %v3384, %v3391
  %v3393 = vcombine.low %v3238, %v3239
  %v3394 = vcombine.low %v3240, %v3241
  %v3395 = vcombine.low %v3242, %v3243
  %v3396 = vcombine.low %v3244, %v3245
  %v3398 = vunpack.c.l.s4 1966171168
  %v3399 = vunpack.c.0.s8 %v3398
  %v3400 = vlaneseq
  %v3401 = vshrl.u32 %v3400, 7
  %v3402 = vsub.s32 %v3399, %v3401
  %v3403 = vrot.slane %v3393, %v3402
  %v3405 = vunpack.c.l.s4 1966171168
  %v3406 = vunpack.c.0.s8 %v3405
  %v3407 = vlaneseq
  %v3408 = vshrl.u32 %v3407, 7
  %v3409 = vsub.s32 %v3406, %v3408
  %v3410 = vrot.slane %v3394, %v3409
  %v3412 = vunpack.c.l.s4 1966171168
  %v3413 = vunpack.c.0.s8 %v3412
  %v3414 = vlaneseq
  %v3415 = vshrl.u32 %v3414, 7
  %v3416 = vsub.s32 %v3413, %v3415
  %v3417 = vrot.slane %v3395, %v3416
  %v3419 = vunpack.c.l.s4 1966171168
  %v3420 = vunpack.c.0.s8 %v3419
  %v3421 = vlaneseq
  %v3422 = vshrl.u32 %v3421, 7
  %v3423 = vsub.s32 %v3420, %v3422
  %v3424 = vrot.slane %v3396, %v3423
  %v3425 = vcombine.low %v3403, %v3410
  %v3426 = vcombine.low %v3417, %v3424
  %v3428 = vunpack.c.l.s4 1966171168
  %v3429 = vunpack.c.0.s8 %v3428
  %v3430 = vlaneseq
  %v3431 = vshrl.u32 %v3430, 7
  %v3432 = vsub.s32 %v3429, %v3431
  %v3433 = vrot.slane %v3425, %v3432
  %v3435 = vunpack.c.l.s4 1966171168
  %v3436 = vunpack.c.0.s8 %v3435
  %v3437 = vlaneseq
  %v3438 = vshrl.u32 %v3437, 7
  %v3439 = vsub.s32 %v3436, %v3438
  %v3440 = vrot.slane %v3426, %v3439
  %v3441 = vcombine.low %v3433, %v3440
  %v3442 = vcombine.low %v3246, %v3247
  %v3443 = vcombine.low %v3248, %v3249
  %v3444 = vcombine.low %v3250, %v3251
  %v3445 = vcombine.low %v3252, %v3253
  %v3447 = vunpack.c.l.s4 1966171168
  %v3448 = vunpack.c.0.s8 %v3447
  %v3449 = vlaneseq
  %v3450 = vshrl.u32 %v3449, 7
  %v3451 = vsub.s32 %v3448, %v3450
  %v3452 = vrot.slane %v3442, %v3451
  %v3454 = vunpack.c.l.s4 1966171168
  %v3455 = vunpack.c.0.s8 %v3454
  %v3456 = vlaneseq
  %v3457 = vshrl.u32 %v3456, 7
  %v3458 = vsub.s32 %v3455, %v3457
  %v3459 = vrot.slane %v3443, %v3458
  %v3461 = vunpack.c.l.s4 1966171168
  %v3462 = vunpack.c.0.s8 %v3461
  %v3463 = vlaneseq
  %v3464 = vshrl.u32 %v3463, 7
  %v3465 = vsub.s32 %v3462, %v3464
  %v3466 = vrot.slane %v3444, %v3465
  %v3468 = vunpack.c.l.s4 1966171168
  %v3469 = vunpack.c.0.s8 %v3468
  %v3470 = vlaneseq
  %v3471 = vshrl.u32 %v3470, 7
  %v3472 = vsub.s32 %v3469, %v3471
  %v3473 = vrot.slane %v3445, %v3472
  %v3474 = vcombine.low %v3452, %v3459
  %v3475 = vcombine.low %v3466, %v3473
  %v3477 = vunpack.c.l.s4 1966171168
  %v3478 = vunpack.c.0.s8 %v3477
  %v3479 = vlaneseq
  %v3480 = vshrl.u32 %v3479, 7
  %v3481 = vsub.s32 %v3478, %v3480
  %v3482 = vrot.slane %v3474, %v3481
  %v3484 = vunpack.c.l.s4 1966171168
  %v3485 = vunpack.c.0.s8 %v3484
  %v3486 = vlaneseq
  %v3487 = vshrl.u32 %v3486, 7
  %v3488 = vsub.s32 %v3485, %v3487
  %v3489 = vrot.slane %v3475, %v3488
  %v3490 = vcombine.low %v3482, %v3489
  %v3491 = vcombine.low %v3254, %v3255
  %v3492 = vcombine.low %v3256, %v3257
  %v3493 = vcombine.low %v3258, %v3259
  %v3494 = vcombine.low %v3260, %v3261
  %v3496 = vunpack.c.l.s4 1966171168
  %v3497 = vunpack.c.0.s8 %v3496
  %v3498 = vlaneseq
  %v3499 = vshrl.u32 %v3498, 7
  %v3500 = vsub.s32 %v3497, %v3499
  %v3501 = vrot.slane %v3491, %v3500
  %v3503 = vunpack.c.l.s4 1966171168
  %v3504 = vunpack.c.0.s8 %v3503
  %v3505 = vlaneseq
  %v3506 = vshrl.u32 %v3505, 7
  %v3507 = vsub.s32 %v3504, %v3506
  %v3508 = vrot.slane %v3492, %v3507
  %v3510 = vunpack.c.l.s4 1966171168
  %v3511 = vunpack.c.0.s8 %v3510
  %v3512 = vlaneseq
  %v3513 = vshrl.u32 %v3512, 7
  %v3514 = vsub.s32 %v3511, %v3513
  %v3515 = vrot.slane %v3493, %v3514
  %v3517 = vunpack.c.l.s4 1966171168
  %v3518 = vunpack.c.0.s8 %v3517
  %v3519 = vlaneseq
  %v3520 = vshrl.u32 %v3519, 7
  %v3521 = vsub.s32 %v3518, %v3520
  %v3522 = vrot.slane %v3494, %v3521
  %v3523 = vcombine.low %v3501, %v3508
  %v3524 = vcombine.low %v3515, %v3522
  %v3526 = vunpack.c.l.s4 1966171168
  %v3527 = vunpack.c.0.s8 %v3526
  %v3528 = vlaneseq
  %v3529 = vshrl.u32 %v3528, 7
  %v3530 = vsub.s32 %v3527, %v3529
  %v3531 = vrot.slane %v3523, %v3530
  %v3533 = vunpack.c.l.s4 1966171168
  %v3534 = vunpack.c.0.s8 %v3533
  %v3535 = vlaneseq
  %v3536 = vshrl.u32 %v3535, 7
  %v3537 = vsub.s32 %v3534, %v3536
  %v3538 = vrot.slane %v3524, %v3537
  %v3539 = vcombine.low %v3531, %v3538
  %v3540 = vcombine.low %v3262, %v3263
  %v3541 = vcombine.low %v3264, %v3265
  %v3542 = vcombine.low %v3266, %v3267
  %v3543 = vcombine.low %v3268, %v3269
  %v3545 = vunpack.c.l.s4 1966171168
  %v3546 = vunpack.c.0.s8 %v3545
  %v3547 = vlaneseq
  %v3548 = vshrl.u32 %v3547, 7
  %v3549 = vsub.s32 %v3546, %v3548
  %v3550 = vrot.slane %v3540, %v3549
  %v3552 = vunpack.c.l.s4 1966171168
  %v3553 = vunpack.c.0.s8 %v3552
  %v3554 = vlaneseq
  %v3555 = vshrl.u32 %v3554, 7
  %v3556 = vsub.s32 %v3553, %v3555
  %v3557 = vrot.slane %v3541, %v3556
  %v3559 = vunpack.c.l.s4 1966171168
  %v3560 = vunpack.c.0.s8 %v3559
  %v3561 = vlaneseq
  %v3562 = vshrl.u32 %v3561, 7
  %v3563 = vsub.s32 %v3560, %v3562
  %v3564 = vrot.slane %v3542, %v3563
  %v3566 = vunpack.c.l.s4 1966171168
  %v3567 = vunpack.c.0.s8 %v3566
  %v3568 = vlaneseq
  %v3569 = vshrl.u32 %v3568, 7
  %v3570 = vsub.s32 %v3567, %v3569
  %v3571 = vrot.slane %v3543, %v3570
  %v3572 = vcombine.low %v3550, %v3557
  %v3573 = vcombine.low %v3564, %v3571
  %v3575 = vunpack.c.l.s4 1966171168
  %v3576 = vunpack.c.0.s8 %v3575
  %v3577 = vlaneseq
  %v3578 = vshrl.u32 %v3577, 7
  %v3579 = vsub.s32 %v3576, %v3578
  %v3580 = vrot.slane %v3572, %v3579
  %v3582 = vunpack.c.l.s4 1966171168
  %v3583 = vunpack.c.0.s8 %v3582
  %v3584 = vlaneseq
  %v3585 = vshrl.u32 %v3584, 7
  %v3586 = vsub.s32 %v3583, %v3585
  %v3587 = vrot.slane %v3573, %v3586
  %v3588 = vcombine.low %v3580, %v3587
  %v3589 = vcombine.low %v3270, %v3271
  %v3590 = vcombine.low %v3272, %v3273
  %v3591 = vcombine.low %v3274, %v3275
  %v3592 = vcombine.low %v3276, %v3277
  %v3594 = vunpack.c.l.s4 1966171168
  %v3595 = vunpack.c.0.s8 %v3594
  %v3596 = vlaneseq
  %v3597 = vshrl.u32 %v3596, 7
  %v3598 = vsub.s32 %v3595, %v3597
  %v3599 = vrot.slane %v3589, %v3598
  %v3601 = vunpack.c.l.s4 1966171168
  %v3602 = vunpack.c.0.s8 %v3601
  %v3603 = vlaneseq
  %v3604 = vshrl.u32 %v3603, 7
  %v3605 = vsub.s32 %v3602, %v3604
  %v3606 = vrot.slane %v3590, %v3605
  %v3608 = vunpack.c.l.s4 1966171168
  %v3609 = vunpack.c.0.s8 %v3608
  %v3610 = vlaneseq
  %v3611 = vshrl.u32 %v3610, 7
  %v3612 = vsub.s32 %v3609, %v3611
  %v3613 = vrot.slane %v3591, %v3612
  %v3615 = vunpack.c.l.s4 1966171168
  %v3616 = vunpack.c.0.s8 %v3615
  %v3617 = vlaneseq
  %v3618 = vshrl.u32 %v3617, 7
  %v3619 = vsub.s32 %v3616, %v3618
  %v3620 = vrot.slane %v3592, %v3619
  %v3621 = vcombine.low %v3599, %v3606
  %v3622 = vcombine.low %v3613, %v3620
  %v3624 = vunpack.c.l.s4 1966171168
  %v3625 = vunpack.c.0.s8 %v3624
  %v3626 = vlaneseq
  %v3627 = vshrl.u32 %v3626, 7
  %v3628 = vsub.s32 %v3625, %v3627
  %v3629 = vrot.slane %v3621, %v3628
  %v3631 = vunpack.c.l.s4 1966171168
  %v3632 = vunpack.c.0.s8 %v3631
  %v3633 = vlaneseq
  %v3634 = vshrl.u32 %v3633, 7
  %v3635 = vsub.s32 %v3632, %v3634
  %v3636 = vrot.slane %v3622, %v3635
  %v3637 = vcombine.low %v3629, %v3636
  %v3638 = vcombine.low %v3278, %v3279
  %v3639 = vcombine.low %v3280, %v3281
  %v3640 = vcombine.low %v3282, %v3283
  %v3641 = vcombine.low %v3284, %v3285
  %v3643 = vunpack.c.l.s4 1966171168
  %v3644 = vunpack.c.0.s8 %v3643
  %v3645 = vlaneseq
  %v3646 = vshrl.u32 %v3645, 7
  %v3647 = vsub.s32 %v3644, %v3646
  %v3648 = vrot.slane %v3638, %v3647
  %v3650 = vunpack.c.l.s4 1966171168
  %v3651 = vunpack.c.0.s8 %v3650
  %v3652 = vlaneseq
  %v3653 = vshrl.u32 %v3652, 7
  %v3654 = vsub.s32 %v3651, %v3653
  %v3655 = vrot.slane %v3639, %v3654
  %v3657 = vunpack.c.l.s4 1966171168
  %v3658 = vunpack.c.0.s8 %v3657
  %v3659 = vlaneseq
  %v3660 = vshrl.u32 %v3659, 7
  %v3661 = vsub.s32 %v3658, %v3660
  %v3662 = vrot.slane %v3640, %v3661
  %v3664 = vunpack.c.l.s4 1966171168
  %v3665 = vunpack.c.0.s8 %v3664
  %v3666 = vlaneseq
  %v3667 = vshrl.u32 %v3666, 7
  %v3668 = vsub.s32 %v3665, %v3667
  %v3669 = vrot.slane %v3641, %v3668
  %v3670 = vcombine.low %v3648, %v3655
  %v3671 = vcombine.low %v3662, %v3669
  %v3673 = vunpack.c.l.s4 1966171168
  %v3674 = vunpack.c.0.s8 %v3673
  %v3675 = vlaneseq
  %v3676 = vshrl.u32 %v3675, 7
  %v3677 = vsub.s32 %v3674, %v3676
  %v3678 = vrot.slane %v3670, %v3677
  %v3680 = vunpack.c.l.s4 1966171168
  %v3681 = vunpack.c.0.s8 %v3680
  %v3682 = vlaneseq
  %v3683 = vshrl.u32 %v3682, 7
  %v3684 = vsub.s32 %v3681, %v3683
  %v3685 = vrot.slane %v3671, %v3684
  %v3686 = vcombine.low %v3678, %v3685
  %v3687 = vcombine.low %v3286, %v3287
  %v3688 = vcombine.low %v3288, %v3289
  %v3689 = vcombine.low %v3290, %v3291
  %v3690 = vcombine.low %v3292, %v3293
  %v3692 = vunpack.c.l.s4 1966171168
  %v3693 = vunpack.c.0.s8 %v3692
  %v3694 = vlaneseq
  %v3695 = vshrl.u32 %v3694, 7
  %v3696 = vsub.s32 %v3693, %v3695
  %v3697 = vrot.slane %v3687, %v3696
  %v3699 = vunpack.c.l.s4 1966171168
  %v3700 = vunpack.c.0.s8 %v3699
  %v3701 = vlaneseq
  %v3702 = vshrl.u32 %v3701, 7
  %v3703 = vsub.s32 %v3700, %v3702
  %v3704 = vrot.slane %v3688, %v3703
  %v3706 = vunpack.c.l.s4 1966171168
  %v3707 = vunpack.c.0.s8 %v3706
  %v3708 = vlaneseq
  %v3709 = vshrl.u32 %v3708, 7
  %v3710 = vsub.s32 %v3707, %v3709
  %v3711 = vrot.slane %v3689, %v3710
  %v3713 = vunpack.c.l.s4 1966171168
  %v3714 = vunpack.c.0.s8 %v3713
  %v3715 = vlaneseq
  %v3716 = vshrl.u32 %v3715, 7
  %v3717 = vsub.s32 %v3714, %v3716
  %v3718 = vrot.slane %v3690, %v3717
  %v3719 = vcombine.low %v3697, %v3704
  %v3720 = vcombine.low %v3711, %v3718
  %v3722 = vunpack.c.l.s4 1966171168
  %v3723 = vunpack.c.0.s8 %v3722
  %v3724 = vlaneseq
  %v3725 = vshrl.u32 %v3724, 7
  %v3726 = vsub.s32 %v3723, %v3725
  %v3727 = vrot.slane %v3719, %v3726
  %v3729 = vunpack.c.l.s4 1966171168
  %v3730 = vunpack.c.0.s8 %v3729
  %v3731 = vlaneseq
  %v3732 = vshrl.u32 %v3731, 7
  %v3733 = vsub.s32 %v3730, %v3732
  %v3734 = vrot.slane %v3720, %v3733
  %v3735 = vcombine.low %v3727, %v3734
  %v3736 = vcombine.low %v3294, %v3295
  %v3737 = vcombine.low %v3296, %v3297
  %v3738 = vcombine.low %v3298, %v3299
  %v3739 = vcombine.low %v3300, %v3301
  %v3741 = vunpack.c.l.s4 1966171168
  %v3742 = vunpack.c.0.s8 %v3741
  %v3743 = vlaneseq
  %v3744 = vshrl.u32 %v3743, 7
  %v3745 = vsub.s32 %v3742, %v3744
  %v3746 = vrot.slane %v3736, %v3745
  %v3748 = vunpack.c.l.s4 1966171168
  %v3749 = vunpack.c.0.s8 %v3748
  %v3750 = vlaneseq
  %v3751 = vshrl.u32 %v3750, 7
  %v3752 = vsub.s32 %v3749, %v3751
  %v3753 = vrot.slane %v3737, %v3752
  %v3755 = vunpack.c.l.s4 1966171168
  %v3756 = vunpack.c.0.s8 %v3755
  %v3757 = vlaneseq
  %v3758 = vshrl.u32 %v3757, 7
  %v3759 = vsub.s32 %v3756, %v3758
  %v3760 = vrot.slane %v3738, %v3759
  %v3762 = vunpack.c.l.s4 1966171168
  %v3763 = vunpack.c.0.s8 %v3762
  %v3764 = vlaneseq
  %v3765 = vshrl.u32 %v3764, 7
  %v3766 = vsub.s32 %v3763, %v3765
  %v3767 = vrot.slane %v3739, %v3766
  %v3768 = vcombine.low %v3746, %v3753
  %v3769 = vcombine.low %v3760, %v3767
  %v3771 = vunpack.c.l.s4 1966171168
  %v3772 = vunpack.c.0.s8 %v3771
  %v3773 = vlaneseq
  %v3774 = vshrl.u32 %v3773, 7
  %v3775 = vsub.s32 %v3772, %v3774
  %v3776 = vrot.slane %v3768, %v3775
  %v3778 = vunpack.c.l.s4 1966171168
  %v3779 = vunpack.c.0.s8 %v3778
  %v3780 = vlaneseq
  %v3781 = vshrl.u32 %v3780, 7
  %v3782 = vsub.s32 %v3779, %v3781
  %v3783 = vrot.slane %v3769, %v3782
  %v3784 = vcombine.low %v3776, %v3783
  %v3785 = vcombine.low %v3302, %v3303
  %v3786 = vcombine.low %v3304, %v3305
  %v3787 = vcombine.low %v3306, %v3307
  %v3788 = vcombine.low %v3308, %v3309
  %v3790 = vunpack.c.l.s4 1966171168
  %v3791 = vunpack.c.0.s8 %v3790
  %v3792 = vlaneseq
  %v3793 = vshrl.u32 %v3792, 7
  %v3794 = vsub.s32 %v3791, %v3793
  %v3795 = vrot.slane %v3785, %v3794
  %v3797 = vunpack.c.l.s4 1966171168
  %v3798 = vunpack.c.0.s8 %v3797
  %v3799 = vlaneseq
  %v3800 = vshrl.u32 %v3799, 7
  %v3801 = vsub.s32 %v3798, %v3800
  %v3802 = vrot.slane %v3786, %v3801
  %v3804 = vunpack.c.l.s4 1966171168
  %v3805 = vunpack.c.0.s8 %v3804
  %v3806 = vlaneseq
  %v3807 = vshrl.u32 %v3806, 7
  %v3808 = vsub.s32 %v3805, %v3807
  %v3809 = vrot.slane %v3787, %v3808
  %v3811 = vunpack.c.l.s4 1966171168
  %v3812 = vunpack.c.0.s8 %v3811
  %v3813 = vlaneseq
  %v3814 = vshrl.u32 %v3813, 7
  %v3815 = vsub.s32 %v3812, %v3814
  %v3816 = vrot.slane %v3788, %v3815
  %v3817 = vcombine.low %v3795, %v3802
  %v3818 = vcombine.low %v3809, %v3816
  %v3820 = vunpack.c.l.s4 1966171168
  %v3821 = vunpack.c.0.s8 %v3820
  %v3822 = vlaneseq
  %v3823 = vshrl.u32 %v3822, 7
  %v3824 = vsub.s32 %v3821, %v3823
  %v3825 = vrot.slane %v3817, %v3824
  %v3827 = vunpack.c.l.s4 1966171168
  %v3828 = vunpack.c.0.s8 %v3827
  %v3829 = vlaneseq
  %v3830 = vshrl.u32 %v3829, 7
  %v3831 = vsub.s32 %v3828, %v3830
  %v3832 = vrot.slane %v3818, %v3831
  %v3833 = vcombine.low %v3825, %v3832
  %v3834 = vcombine.low %v3310, %v3311
  %v3835 = vcombine.low %v3312, %v3313
  %v3836 = vcombine.low %v3314, %v3315
  %v3837 = vcombine.low %v3316, %v3317
  %v3839 = vunpack.c.l.s4 1966171168
  %v3840 = vunpack.c.0.s8 %v3839
  %v3841 = vlaneseq
  %v3842 = vshrl.u32 %v3841, 7
  %v3843 = vsub.s32 %v3840, %v3842
  %v3844 = vrot.slane %v3834, %v3843
  %v3846 = vunpack.c.l.s4 1966171168
  %v3847 = vunpack.c.0.s8 %v3846
  %v3848 = vlaneseq
  %v3849 = vshrl.u32 %v3848, 7
  %v3850 = vsub.s32 %v3847, %v3849
  %v3851 = vrot.slane %v3835, %v3850
  %v3853 = vunpack.c.l.s4 1966171168
  %v3854 = vunpack.c.0.s8 %v3853
  %v3855 = vlaneseq
  %v3856 = vshrl.u32 %v3855, 7
  %v3857 = vsub.s32 %v3854, %v3856
  %v3858 = vrot.slane %v3836, %v3857
  %v3860 = vunpack.c.l.s4 1966171168
  %v3861 = vunpack.c.0.s8 %v3860
  %v3862 = vlaneseq
  %v3863 = vshrl.u32 %v3862, 7
  %v3864 = vsub.s32 %v3861, %v3863
  %v3865 = vrot.slane %v3837, %v3864
  %v3866 = vcombine.low %v3844, %v3851
  %v3867 = vcombine.low %v3858, %v3865
  %v3869 = vunpack.c.l.s4 1966171168
  %v3870 = vunpack.c.0.s8 %v3869
  %v3871 = vlaneseq
  %v3872 = vshrl.u32 %v3871, 7
  %v3873 = vsub.s32 %v3870, %v3872
  %v3874 = vrot.slane %v3866, %v3873
  %v3876 = vunpack.c.l.s4 1966171168
  %v3877 = vunpack.c.0.s8 %v3876
  %v3878 = vlaneseq
  %v3879 = vshrl.u32 %v3878, 7
  %v3880 = vsub.s32 %v3877, %v3879
  %v3881 = vrot.slane %v3867, %v3880
  %v3882 = vcombine.low %v3874, %v3881
  %v3883 = vcombine.low %v3318, %v3319
  %v3884 = vcombine.low %v3320, %v3321
  %v3885 = vcombine.low %v3322, %v3323
  %v3886 = vcombine.low %v3324, %v3325
  %v3888 = vunpack.c.l.s4 1966171168
  %v3889 = vunpack.c.0.s8 %v3888
  %v3890 = vlaneseq
  %v3891 = vshrl.u32 %v3890, 7
  %v3892 = vsub.s32 %v3889, %v3891
  %v3893 = vrot.slane %v3883, %v3892
  %v3895 = vunpack.c.l.s4 1966171168
  %v3896 = vunpack.c.0.s8 %v3895
  %v3897 = vlaneseq
  %v3898 = vshrl.u32 %v3897, 7
  %v3899 = vsub.s32 %v3896, %v3898
  %v3900 = vrot.slane %v3884, %v3899
  %v3902 = vunpack.c.l.s4 1966171168
  %v3903 = vunpack.c.0.s8 %v3902
  %v3904 = vlaneseq
  %v3905 = vshrl.u32 %v3904, 7
  %v3906 = vsub.s32 %v3903, %v3905
  %v3907 = vrot.slane %v3885, %v3906
  %v3909 = vunpack.c.l.s4 1966171168
  %v3910 = vunpack.c.0.s8 %v3909
  %v3911 = vlaneseq
  %v3912 = vshrl.u32 %v3911, 7
  %v3913 = vsub.s32 %v3910, %v3912
  %v3914 = vrot.slane %v3886, %v3913
  %v3915 = vcombine.low %v3893, %v3900
  %v3916 = vcombine.low %v3907, %v3914
  %v3918 = vunpack.c.l.s4 1966171168
  %v3919 = vunpack.c.0.s8 %v3918
  %v3920 = vlaneseq
  %v3921 = vshrl.u32 %v3920, 7
  %v3922 = vsub.s32 %v3919, %v3921
  %v3923 = vrot.slane %v3915, %v3922
  %v3925 = vunpack.c.l.s4 1966171168
  %v3926 = vunpack.c.0.s8 %v3925
  %v3927 = vlaneseq
  %v3928 = vshrl.u32 %v3927, 7
  %v3929 = vsub.s32 %v3926, %v3928
  %v3930 = vrot.slane %v3916, %v3929
  %v3931 = vcombine.low %v3923, %v3930
  %v3932 = vcombine.low %v3326, %v3327
  %v3933 = vcombine.low %v3328, %v3329
  %v3934 = vcombine.low %v3330, %v3331
  %v3935 = vcombine.low %v3332, %v3333
  %v3937 = vunpack.c.l.s4 1966171168
  %v3938 = vunpack.c.0.s8 %v3937
  %v3939 = vlaneseq
  %v3940 = vshrl.u32 %v3939, 7
  %v3941 = vsub.s32 %v3938, %v3940
  %v3942 = vrot.slane %v3932, %v3941
  %v3944 = vunpack.c.l.s4 1966171168
  %v3945 = vunpack.c.0.s8 %v3944
  %v3946 = vlaneseq
  %v3947 = vshrl.u32 %v3946, 7
  %v3948 = vsub.s32 %v3945, %v3947
  %v3949 = vrot.slane %v3933, %v3948
  %v3951 = vunpack.c.l.s4 1966171168
  %v3952 = vunpack.c.0.s8 %v3951
  %v3953 = vlaneseq
  %v3954 = vshrl.u32 %v3953, 7
  %v3955 = vsub.s32 %v3952, %v3954
  %v3956 = vrot.slane %v3934, %v3955
  %v3958 = vunpack.c.l.s4 1966171168
  %v3959 = vunpack.c.0.s8 %v3958
  %v3960 = vlaneseq
  %v3961 = vshrl.u32 %v3960, 7
  %v3962 = vsub.s32 %v3959, %v3961
  %v3963 = vrot.slane %v3935, %v3962
  %v3964 = vcombine.low %v3942, %v3949
  %v3965 = vcombine.low %v3956, %v3963
  %v3967 = vunpack.c.l.s4 1966171168
  %v3968 = vunpack.c.0.s8 %v3967
  %v3969 = vlaneseq
  %v3970 = vshrl.u32 %v3969, 7
  %v3971 = vsub.s32 %v3968, %v3970
  %v3972 = vrot.slane %v3964, %v3971
  %v3974 = vunpack.c.l.s4 1966171168
  %v3975 = vunpack.c.0.s8 %v3974
  %v3976 = vlaneseq
  %v3977 = vshrl.u32 %v3976, 7
  %v3978 = vsub.s32 %v3975, %v3977
  %v3979 = vrot.slane %v3965, %v3978
  %v3980 = vcombine.low %v3972, %v3979
  %v3981 = vcombine.low %v3334, %v3335
  %v3982 = vcombine.low %v3336, %v3337
  %v3983 = vcombine.low %v3338, %v3339
  %v3984 = vcombine.low %v3340, %v3341
  %v3986 = vunpack.c.l.s4 1966171168
  %v3987 = vunpack.c.0.s8 %v3986
  %v3988 = vlaneseq
  %v3989 = vshrl.u32 %v3988, 7
  %v3990 = vsub.s32 %v3987, %v3989
  %v3991 = vrot.slane %v3981, %v3990
  %v3993 = vunpack.c.l.s4 1966171168
  %v3994 = vunpack.c.0.s8 %v3993
  %v3995 = vlaneseq
  %v3996 = vshrl.u32 %v3995, 7
  %v3997 = vsub.s32 %v3994, %v3996
  %v3998 = vrot.slane %v3982, %v3997
  %v4000 = vunpack.c.l.s4 1966171168
  %v4001 = vunpack.c.0.s8 %v4000
  %v4002 = vlaneseq
  %v4003 = vshrl.u32 %v4002, 7
  %v4004 = vsub.s32 %v4001, %v4003
  %v4005 = vrot.slane %v3983, %v4004
  %v4007 = vunpack.c.l.s4 1966171168
  %v4008 = vunpack.c.0.s8 %v4007
  %v4009 = vlaneseq
  %v4010 = vshrl.u32 %v4009, 7
  %v4011 = vsub.s32 %v4008, %v4010
  %v4012 = vrot.slane %v3984, %v4011
  %v4013 = vcombine.low %v3991, %v3998
  %v4014 = vcombine.low %v4005, %v4012
  %v4016 = vunpack.c.l.s4 1966171168
  %v4017 = vunpack.c.0.s8 %v4016
  %v4018 = vlaneseq
  %v4019 = vshrl.u32 %v4018, 7
  %v4020 = vsub.s32 %v4017, %v4019
  %v4021 = vrot.slane %v4013, %v4020
  %v4023 = vunpack.c.l.s4 1966171168
  %v4024 = vunpack.c.0.s8 %v4023
  %v4025 = vlaneseq
  %v4026 = vshrl.u32 %v4025, 7
  %v4027 = vsub.s32 %v4024, %v4026
  %v4028 = vrot.slane %v4014, %v4027
  %v4029 = vcombine.low %v4021, %v4028
  %v4030 = vcombine.low %v3342, %v3343
  %v4032 = vunpack.c.l.s4 1966171168
  %v4033 = vunpack.c.0.s8 %v4032
  %v4034 = vlaneseq
  %v4035 = vshrl.u32 %v4034, 7
  %v4036 = vsub.s32 %v4033, %v4035
  %v4037 = vrot.slane %v4030, %v4036
  %v4039 = vunpack.c.l.s4 1966171168
  %v4040 = vunpack.c.0.s8 %v4039
  %v4041 = vlaneseq
  %v4042 = vshrl.u32 %v4041, 7
  %v4043 = vsub.s32 %v4040, %v4042
  %v4044 = vrot.slane %v4037, %v4043
  %4045 = vrot.lane.b32.xlu0 %v3392, 12
  %v4046 = vpop.permute.xlu0 %4045
  %4047 = vrot.lane.b32.xlu0 %v3441, 12
  %v4048 = vpop.permute.xlu0 %4047
  %4049 = vrot.lane.b32.xlu0 %v3490, 12
  %v4050 = vpop.permute.xlu0 %4049
  %4051 = vrot.lane.b32.xlu0 %v3539, 12
  %v4052 = vpop.permute.xlu0 %4051
  %4053 = vrot.lane.b32.xlu0 %v3588, 12
  %v4054 = vpop.permute.xlu0 %4053
  %4055 = vrot.lane.b32.xlu0 %v3637, 12
  %v4056 = vpop.permute.xlu0 %4055
  %4057 = vrot.lane.b32.xlu0 %v3686, 12
  %v4058 = vpop.permute.xlu0 %4057
  %4059 = vrot.lane.b32.xlu0 %v3735, 12
  %v4060 = vpop.permute.xlu0 %4059
  %4061 = vrot.lane.b32.xlu0 %v3784, 12
  %v4062 = vpop.permute.xlu0 %4061
  %4063 = vrot.lane.b32.xlu0 %v3833, 12
  %v4064 = vpop.permute.xlu0 %4063
  %4065 = vrot.lane.b32.xlu0 %v3882, 12
  %v4066 = vpop.permute.xlu0 %4065
  %4067 = vrot.lane.b32.xlu0 %v3931, 12
  %v4068 = vpop.permute.xlu0 %4067
  %4069 = vrot.lane.b32.xlu0 %v3980, 12
  %v4070 = vpop.permute.xlu0 %4069
  %4071 = vrot.lane.b32.xlu0 %v4029, 12
  %v4072 = vpop.permute.xlu0 %4071
  %4073 = vrot.lane.b32.xlu0 %v4044, 12
  %v4074 = vpop.permute.xlu0 %4073
  %v4075 = vpack.i.b16 %v2083, %v2082
  %v4076 = vpack.i.b16 %v2085, %v2084
  %v4077 = vpack.i.b16 %v2087, %v2086
  %v4078 = vpack.i.b16 %v2089, %v2088
  %v4079 = vpack.i.b16 %v2091, %v2090
  %v4080 = vpack.i.b16 %v2093, %v2092
  %v4081 = vpack.i.b16 %v2095, %v2094
  %v4082 = vpack.i.b16 %v2097, %v2096
  %v4083 = vpack.i.b16 %v2099, %v2098
  %v4084 = vpack.i.b16 %v2101, %v2100
  %v4085 = vpack.i.b16 %v2103, %v2102
  %v4086 = vpack.i.b16 %v2105, %v2104
  %v4087 = vpack.i.b16 %v2107, %v2106
  %v4088 = vpack.i.b16 %v2109, %v2108
  %v4089 = vpack.i.b16 %v2111, %v2110
  %v4090 = vpack.i.b16 %v2113, %v2112
  %v4091 = vpack.i.b16 %v2115, %v2114
  %v4092 = vpack.i.b16 %v2117, %v2116
  %v4093 = vpack.i.b16 %v2119, %v2118
  %v4094 = vpack.i.b16 %v2121, %v2120
  %v4095 = vpack.i.b16 %v2123, %v2122
  %v4096 = vpack.i.b16 %v2125, %v2124
  %v4097 = vpack.i.b16 %v2127, %v2126
  %v4098 = vpack.i.b16 %v2129, %v2128
  %v4099 = vpack.i.b16 %v2131, %v2130
  %v4100 = vpack.i.b16 %v2133, %v2132
  %v4101 = vpack.i.b16 %v2135, %v2134
  %v4102 = vpack.i.b16 %v2137, %v2136
  %v4103 = vpack.i.b16 %v2139, %v2138
  %v4104 = vpack.i.b16 %v2141, %v2140
  %v4105 = vpack.i.b16 %v2143, %v2142
  %v4106 = vpack.i.b16 %v2145, %v2144
  %v4107 = vpack.i.b16 %v2147, %v2146
  %v4108 = vpack.i.b16 %v2149, %v2148
  %v4109 = vpack.i.b16 %v2151, %v2150
  %v4110 = vpack.i.b16 %v2153, %v2152
  %v4111 = vpack.i.b16 %v2155, %v2154
  %v4112 = vpack.i.b16 %v2157, %v2156
  %v4113 = vpack.i.b16 %v2159, %v2158
  %v4114 = vpack.i.b16 %v2161, %v2160
  %v4115 = vpack.i.b16 %v2163, %v2162
  %v4116 = vpack.i.b16 %v2165, %v2164
  %v4117 = vpack.i.b16 %v2167, %v2166
  %v4118 = vpack.i.b16 %v2169, %v2168
  %v4119 = vpack.i.b16 %v2171, %v2170
  %v4120 = vpack.i.b16 %v2173, %v2172
  %v4121 = vpack.i.b16 %v2175, %v2174
  %v4122 = vpack.i.b16 %v2177, %v2176
  %v4123 = vpack.i.b16 %v2179, %v2178
  %v4124 = vpack.i.b16 %v2181, %v2180
  %v4125 = vpack.i.b16 %v2183, %v2182
  %v4126 = vpack.i.b16 %v2185, %v2184
  %v4127 = vpack.i.b16 %v2187, %v2186
  %v4128 = vpack.i.b16 %v2189, %v2188
  %v4129 = vpack.i.b16 %v2191, %v2190
  %v4130 = vpack.i.b16 %v2193, %v2192
  %v4131 = vpack.i.b16 %v2195, %v2194
  %v4132 = vpack.i.b16 %v2197, %v2196
  %v4133 = vpack.i.b16 %v2199, %v2198
  %v4134 = vpack.i.b16 %v2201, %v2200
  %v4135 = vpack.i.b16 %v2203, %v2202
  %v4136 = vpack.i.b16 %v2205, %v2204
  %v4137 = vpack.i.b16 %v2207, %v2206
  %v4138 = vpack.i.b16 %v2209, %v2208
  %v4139 = vpack.i.b16 %v2211, %v2210
  %v4140 = vpack.i.b16 %v2213, %v2212
  %v4141 = vpack.i.b16 %v2215, %v2214
  %v4142 = vpack.i.b16 %v2217, %v2216
  %v4143 = vpack.i.b16 %v2219, %v2218
  %v4144 = vpack.i.b16 %v2221, %v2220
  %v4145 = vpack.i.b16 %v2223, %v2222
  %v4146 = vpack.i.b16 %v2225, %v2224
  %v4147 = vpack.i.b16 %v2227, %v2226
  %v4148 = vpack.i.b16 %v2229, %v2228
  %v4149 = vpack.i.b16 %v2231, %v2230
  %v4150 = vpack.i.b16 %v2233, %v2232
  %v4151 = vpack.i.b16 %v2235, %v2234
  %v4152 = vpack.i.b16 %v2237, %v2236
  %v4153 = vpack.i.b16 %v2239, %v2238
  %v4154 = vpack.i.b16 %v2241, %v2240
  %v4155 = vpack.i.b16 %v2243, %v2242
  %v4156 = vpack.i.b16 %v2245, %v2244
  %v4157 = vpack.i.b16 %v2247, %v2246
  %v4158 = vpack.i.b16 %v2249, %v2248
  %v4159 = vpack.i.b16 %v2251, %v2250
  %v4160 = vpack.i.b16 %v2253, %v2252
  %v4161 = vpack.i.b16 %v2255, %v2254
  %v4162 = vpack.i.b16 %v2257, %v2256
  %v4163 = vpack.i.b16 %v2259, %v2258
  %v4164 = vpack.i.b16 %v2261, %v2260
  %v4165 = vpack.i.b16 %v2263, %v2262
  %v4166 = vpack.i.b16 %v2265, %v2264
  %v4167 = vpack.i.b16 %v2267, %v2266
  %v4168 = vpack.i.b16 %v2269, %v2268
  %v4169 = vpack.i.b16 %v2271, %v2270
  %v4170 = vpack.i.b16 %v2273, %v2272
  %v4171 = vpack.i.b16 %v2275, %v2274
  %v4172 = vpack.i.b16 %v2277, %v2276
  %v4173 = vpack.i.b16 %v2279, %v2278
  %v4174 = vpack.i.b16 %v2281, %v2280
  %v4175 = vpack.i.b16 %v2283, %v2282
  %v4176 = vpack.i.b16 %v2285, %v2284
  %v4177 = vpack.i.b16 %v2287, %v2286
  %v4178 = vpack.i.b16 %v2289, %v2288
  %v4179 = vpack.i.b16 %v2291, %v2290
  %v4180 = vpack.i.b16 %v2293, %v2292
  %v4181 = vpack.i.b16 %v2295, %v2294
  %v4182 = vpack.i.b16 %v2297, %v2296
  %v4183 = vpack.i.b16 %v2299, %v2298
  %v4184 = vpack.i.b16 %v2301, %v2300
  %v4185 = vpack.i.b16 %v2303, %v2302
  %v4186 = vpack.i.b16 %v2305, %v2304
  %v4187 = vpack.i.b16 %v2307, %v2306
  %v4188 = vpack.i.b16 %v2309, %v2308
  %v4189 = vcombine.low %v4075, %v4076
  %v4190 = vcombine.low %v4077, %v4078
  %v4191 = vcombine.low %v4079, %v4080
  %v4192 = vcombine.low %v4081, %v4082
  %v4194 = vunpack.c.l.s4 1966171168
  %v4195 = vunpack.c.0.s8 %v4194
  %v4196 = vlaneseq
  %v4197 = vshrl.u32 %v4196, 7
  %v4198 = vsub.s32 %v4195, %v4197
  %v4199 = vrot.slane %v4189, %v4198
  %v4201 = vunpack.c.l.s4 1966171168
  %v4202 = vunpack.c.0.s8 %v4201
  %v4203 = vlaneseq
  %v4204 = vshrl.u32 %v4203, 7
  %v4205 = vsub.s32 %v4202, %v4204
  %v4206 = vrot.slane %v4190, %v4205
  %v4208 = vunpack.c.l.s4 1966171168
  %v4209 = vunpack.c.0.s8 %v4208
  %v4210 = vlaneseq
  %v4211 = vshrl.u32 %v4210, 7
  %v4212 = vsub.s32 %v4209, %v4211
  %v4213 = vrot.slane %v4191, %v4212
  %v4215 = vunpack.c.l.s4 1966171168
  %v4216 = vunpack.c.0.s8 %v4215
  %v4217 = vlaneseq
  %v4218 = vshrl.u32 %v4217, 7
  %v4219 = vsub.s32 %v4216, %v4218
  %v4220 = vrot.slane %v4192, %v4219
  %v4221 = vcombine.low %v4199, %v4206
  %v4222 = vcombine.low %v4213, %v4220
  %v4224 = vunpack.c.l.s4 1966171168
  %v4225 = vunpack.c.0.s8 %v4224
  %v4226 = vlaneseq
  %v4227 = vshrl.u32 %v4226, 7
  %v4228 = vsub.s32 %v4225, %v4227
  %v4229 = vrot.slane %v4221, %v4228
  %v4231 = vunpack.c.l.s4 1966171168
  %v4232 = vunpack.c.0.s8 %v4231
  %v4233 = vlaneseq
  %v4234 = vshrl.u32 %v4233, 7
  %v4235 = vsub.s32 %v4232, %v4234
  %v4236 = vrot.slane %v4222, %v4235
  %v4237 = vcombine.low %v4229, %v4236
  %v4238 = vcombine.low %v4083, %v4084
  %v4239 = vcombine.low %v4085, %v4086
  %v4240 = vcombine.low %v4087, %v4088
  %v4241 = vcombine.low %v4089, %v4090
  %v4243 = vunpack.c.l.s4 1966171168
  %v4244 = vunpack.c.0.s8 %v4243
  %v4245 = vlaneseq
  %v4246 = vshrl.u32 %v4245, 7
  %v4247 = vsub.s32 %v4244, %v4246
  %v4248 = vrot.slane %v4238, %v4247
  %v4250 = vunpack.c.l.s4 1966171168
  %v4251 = vunpack.c.0.s8 %v4250
  %v4252 = vlaneseq
  %v4253 = vshrl.u32 %v4252, 7
  %v4254 = vsub.s32 %v4251, %v4253
  %v4255 = vrot.slane %v4239, %v4254
  %v4257 = vunpack.c.l.s4 1966171168
  %v4258 = vunpack.c.0.s8 %v4257
  %v4259 = vlaneseq
  %v4260 = vshrl.u32 %v4259, 7
  %v4261 = vsub.s32 %v4258, %v4260
  %v4262 = vrot.slane %v4240, %v4261
  %v4264 = vunpack.c.l.s4 1966171168
  %v4265 = vunpack.c.0.s8 %v4264
  %v4266 = vlaneseq
  %v4267 = vshrl.u32 %v4266, 7
  %v4268 = vsub.s32 %v4265, %v4267
  %v4269 = vrot.slane %v4241, %v4268
  %v4270 = vcombine.low %v4248, %v4255
  %v4271 = vcombine.low %v4262, %v4269
  %v4273 = vunpack.c.l.s4 1966171168
  %v4274 = vunpack.c.0.s8 %v4273
  %v4275 = vlaneseq
  %v4276 = vshrl.u32 %v4275, 7
  %v4277 = vsub.s32 %v4274, %v4276
  %v4278 = vrot.slane %v4270, %v4277
  %v4280 = vunpack.c.l.s4 1966171168
  %v4281 = vunpack.c.0.s8 %v4280
  %v4282 = vlaneseq
  %v4283 = vshrl.u32 %v4282, 7
  %v4284 = vsub.s32 %v4281, %v4283
  %v4285 = vrot.slane %v4271, %v4284
  %v4286 = vcombine.low %v4278, %v4285
  %v4287 = vcombine.low %v4091, %v4092
  %v4288 = vcombine.low %v4093, %v4094
  %v4289 = vcombine.low %v4095, %v4096
  %v4290 = vcombine.low %v4097, %v4098
  %v4292 = vunpack.c.l.s4 1966171168
  %v4293 = vunpack.c.0.s8 %v4292
  %v4294 = vlaneseq
  %v4295 = vshrl.u32 %v4294, 7
  %v4296 = vsub.s32 %v4293, %v4295
  %v4297 = vrot.slane %v4287, %v4296
  %v4299 = vunpack.c.l.s4 1966171168
  %v4300 = vunpack.c.0.s8 %v4299
  %v4301 = vlaneseq
  %v4302 = vshrl.u32 %v4301, 7
  %v4303 = vsub.s32 %v4300, %v4302
  %v4304 = vrot.slane %v4288, %v4303
  %v4306 = vunpack.c.l.s4 1966171168
  %v4307 = vunpack.c.0.s8 %v4306
  %v4308 = vlaneseq
  %v4309 = vshrl.u32 %v4308, 7
  %v4310 = vsub.s32 %v4307, %v4309
  %v4311 = vrot.slane %v4289, %v4310
  %v4313 = vunpack.c.l.s4 1966171168
  %v4314 = vunpack.c.0.s8 %v4313
  %v4315 = vlaneseq
  %v4316 = vshrl.u32 %v4315, 7
  %v4317 = vsub.s32 %v4314, %v4316
  %v4318 = vrot.slane %v4290, %v4317
  %v4319 = vcombine.low %v4297, %v4304
  %v4320 = vcombine.low %v4311, %v4318
  %v4322 = vunpack.c.l.s4 1966171168
  %v4323 = vunpack.c.0.s8 %v4322
  %v4324 = vlaneseq
  %v4325 = vshrl.u32 %v4324, 7
  %v4326 = vsub.s32 %v4323, %v4325
  %v4327 = vrot.slane %v4319, %v4326
  %v4329 = vunpack.c.l.s4 1966171168
  %v4330 = vunpack.c.0.s8 %v4329
  %v4331 = vlaneseq
  %v4332 = vshrl.u32 %v4331, 7
  %v4333 = vsub.s32 %v4330, %v4332
  %v4334 = vrot.slane %v4320, %v4333
  %v4335 = vcombine.low %v4327, %v4334
  %v4336 = vcombine.low %v4099, %v4100
  %v4337 = vcombine.low %v4101, %v4102
  %v4338 = vcombine.low %v4103, %v4104
  %v4339 = vcombine.low %v4105, %v4106
  %v4341 = vunpack.c.l.s4 1966171168
  %v4342 = vunpack.c.0.s8 %v4341
  %v4343 = vlaneseq
  %v4344 = vshrl.u32 %v4343, 7
  %v4345 = vsub.s32 %v4342, %v4344
  %v4346 = vrot.slane %v4336, %v4345
  %v4348 = vunpack.c.l.s4 1966171168
  %v4349 = vunpack.c.0.s8 %v4348
  %v4350 = vlaneseq
  %v4351 = vshrl.u32 %v4350, 7
  %v4352 = vsub.s32 %v4349, %v4351
  %v4353 = vrot.slane %v4337, %v4352
  %v4355 = vunpack.c.l.s4 1966171168
  %v4356 = vunpack.c.0.s8 %v4355
  %v4357 = vlaneseq
  %v4358 = vshrl.u32 %v4357, 7
  %v4359 = vsub.s32 %v4356, %v4358
  %v4360 = vrot.slane %v4338, %v4359
  %v4362 = vunpack.c.l.s4 1966171168
  %v4363 = vunpack.c.0.s8 %v4362
  %v4364 = vlaneseq
  %v4365 = vshrl.u32 %v4364, 7
  %v4366 = vsub.s32 %v4363, %v4365
  %v4367 = vrot.slane %v4339, %v4366
  %v4368 = vcombine.low %v4346, %v4353
  %v4369 = vcombine.low %v4360, %v4367
  %v4371 = vunpack.c.l.s4 1966171168
  %v4372 = vunpack.c.0.s8 %v4371
  %v4373 = vlaneseq
  %v4374 = vshrl.u32 %v4373, 7
  %v4375 = vsub.s32 %v4372, %v4374
  %v4376 = vrot.slane %v4368, %v4375
  %v4378 = vunpack.c.l.s4 1966171168
  %v4379 = vunpack.c.0.s8 %v4378
  %v4380 = vlaneseq
  %v4381 = vshrl.u32 %v4380, 7
  %v4382 = vsub.s32 %v4379, %v4381
  %v4383 = vrot.slane %v4369, %v4382
  %v4384 = vcombine.low %v4376, %v4383
  %v4385 = vcombine.low %v4107, %v4108
  %v4386 = vcombine.low %v4109, %v4110
  %v4387 = vcombine.low %v4111, %v4112
  %v4388 = vcombine.low %v4113, %v4114
  %v4390 = vunpack.c.l.s4 1966171168
  %v4391 = vunpack.c.0.s8 %v4390
  %v4392 = vlaneseq
  %v4393 = vshrl.u32 %v4392, 7
  %v4394 = vsub.s32 %v4391, %v4393
  %v4395 = vrot.slane %v4385, %v4394
  %v4397 = vunpack.c.l.s4 1966171168
  %v4398 = vunpack.c.0.s8 %v4397
  %v4399 = vlaneseq
  %v4400 = vshrl.u32 %v4399, 7
  %v4401 = vsub.s32 %v4398, %v4400
  %v4402 = vrot.slane %v4386, %v4401
  %v4404 = vunpack.c.l.s4 1966171168
  %v4405 = vunpack.c.0.s8 %v4404
  %v4406 = vlaneseq
  %v4407 = vshrl.u32 %v4406, 7
  %v4408 = vsub.s32 %v4405, %v4407
  %v4409 = vrot.slane %v4387, %v4408
  %v4411 = vunpack.c.l.s4 1966171168
  %v4412 = vunpack.c.0.s8 %v4411
  %v4413 = vlaneseq
  %v4414 = vshrl.u32 %v4413, 7
  %v4415 = vsub.s32 %v4412, %v4414
  %v4416 = vrot.slane %v4388, %v4415
  %v4417 = vcombine.low %v4395, %v4402
  %v4418 = vcombine.low %v4409, %v4416
  %v4420 = vunpack.c.l.s4 1966171168
  %v4421 = vunpack.c.0.s8 %v4420
  %v4422 = vlaneseq
  %v4423 = vshrl.u32 %v4422, 7
  %v4424 = vsub.s32 %v4421, %v4423
  %v4425 = vrot.slane %v4417, %v4424
  %v4427 = vunpack.c.l.s4 1966171168
  %v4428 = vunpack.c.0.s8 %v4427
  %v4429 = vlaneseq
  %v4430 = vshrl.u32 %v4429, 7
  %v4431 = vsub.s32 %v4428, %v4430
  %v4432 = vrot.slane %v4418, %v4431
  %v4433 = vcombine.low %v4425, %v4432
  %v4434 = vcombine.low %v4115, %v4116
  %v4435 = vcombine.low %v4117, %v4118
  %v4436 = vcombine.low %v4119, %v4120
  %v4437 = vcombine.low %v4121, %v4122
  %v4439 = vunpack.c.l.s4 1966171168
  %v4440 = vunpack.c.0.s8 %v4439
  %v4441 = vlaneseq
  %v4442 = vshrl.u32 %v4441, 7
  %v4443 = vsub.s32 %v4440, %v4442
  %v4444 = vrot.slane %v4434, %v4443
  %v4446 = vunpack.c.l.s4 1966171168
  %v4447 = vunpack.c.0.s8 %v4446
  %v4448 = vlaneseq
  %v4449 = vshrl.u32 %v4448, 7
  %v4450 = vsub.s32 %v4447, %v4449
  %v4451 = vrot.slane %v4435, %v4450
  %v4453 = vunpack.c.l.s4 1966171168
  %v4454 = vunpack.c.0.s8 %v4453
  %v4455 = vlaneseq
  %v4456 = vshrl.u32 %v4455, 7
  %v4457 = vsub.s32 %v4454, %v4456
  %v4458 = vrot.slane %v4436, %v4457
  %v4460 = vunpack.c.l.s4 1966171168
  %v4461 = vunpack.c.0.s8 %v4460
  %v4462 = vlaneseq
  %v4463 = vshrl.u32 %v4462, 7
  %v4464 = vsub.s32 %v4461, %v4463
  %v4465 = vrot.slane %v4437, %v4464
  %v4466 = vcombine.low %v4444, %v4451
  %v4467 = vcombine.low %v4458, %v4465
  %v4469 = vunpack.c.l.s4 1966171168
  %v4470 = vunpack.c.0.s8 %v4469
  %v4471 = vlaneseq
  %v4472 = vshrl.u32 %v4471, 7
  %v4473 = vsub.s32 %v4470, %v4472
  %v4474 = vrot.slane %v4466, %v4473
  %v4476 = vunpack.c.l.s4 1966171168
  %v4477 = vunpack.c.0.s8 %v4476
  %v4478 = vlaneseq
  %v4479 = vshrl.u32 %v4478, 7
  %v4480 = vsub.s32 %v4477, %v4479
  %v4481 = vrot.slane %v4467, %v4480
  %v4482 = vcombine.low %v4474, %v4481
  %v4483 = vcombine.low %v4123, %v4124
  %v4484 = vcombine.low %v4125, %v4126
  %v4485 = vcombine.low %v4127, %v4128
  %v4486 = vcombine.low %v4129, %v4130
  %v4488 = vunpack.c.l.s4 1966171168
  %v4489 = vunpack.c.0.s8 %v4488
  %v4490 = vlaneseq
  %v4491 = vshrl.u32 %v4490, 7
  %v4492 = vsub.s32 %v4489, %v4491
  %v4493 = vrot.slane %v4483, %v4492
  %v4495 = vunpack.c.l.s4 1966171168
  %v4496 = vunpack.c.0.s8 %v4495
  %v4497 = vlaneseq
  %v4498 = vshrl.u32 %v4497, 7
  %v4499 = vsub.s32 %v4496, %v4498
  %v4500 = vrot.slane %v4484, %v4499
  %v4502 = vunpack.c.l.s4 1966171168
  %v4503 = vunpack.c.0.s8 %v4502
  %v4504 = vlaneseq
  %v4505 = vshrl.u32 %v4504, 7
  %v4506 = vsub.s32 %v4503, %v4505
  %v4507 = vrot.slane %v4485, %v4506
  %v4509 = vunpack.c.l.s4 1966171168
  %v4510 = vunpack.c.0.s8 %v4509
  %v4511 = vlaneseq
  %v4512 = vshrl.u32 %v4511, 7
  %v4513 = vsub.s32 %v4510, %v4512
  %v4514 = vrot.slane %v4486, %v4513
  %v4515 = vcombine.low %v4493, %v4500
  %v4516 = vcombine.low %v4507, %v4514
  %v4518 = vunpack.c.l.s4 1966171168
  %v4519 = vunpack.c.0.s8 %v4518
  %v4520 = vlaneseq
  %v4521 = vshrl.u32 %v4520, 7
  %v4522 = vsub.s32 %v4519, %v4521
  %v4523 = vrot.slane %v4515, %v4522
  %v4525 = vunpack.c.l.s4 1966171168
  %v4526 = vunpack.c.0.s8 %v4525
  %v4527 = vlaneseq
  %v4528 = vshrl.u32 %v4527, 7
  %v4529 = vsub.s32 %v4526, %v4528
  %v4530 = vrot.slane %v4516, %v4529
  %v4531 = vcombine.low %v4523, %v4530
  %v4532 = vcombine.low %v4131, %v4132
  %v4533 = vcombine.low %v4133, %v4134
  %v4534 = vcombine.low %v4135, %v4136
  %v4535 = vcombine.low %v4137, %v4138
  %v4537 = vunpack.c.l.s4 1966171168
  %v4538 = vunpack.c.0.s8 %v4537
  %v4539 = vlaneseq
  %v4540 = vshrl.u32 %v4539, 7
  %v4541 = vsub.s32 %v4538, %v4540
  %v4542 = vrot.slane %v4532, %v4541
  %v4544 = vunpack.c.l.s4 1966171168
  %v4545 = vunpack.c.0.s8 %v4544
  %v4546 = vlaneseq
  %v4547 = vshrl.u32 %v4546, 7
  %v4548 = vsub.s32 %v4545, %v4547
  %v4549 = vrot.slane %v4533, %v4548
  %v4551 = vunpack.c.l.s4 1966171168
  %v4552 = vunpack.c.0.s8 %v4551
  %v4553 = vlaneseq
  %v4554 = vshrl.u32 %v4553, 7
  %v4555 = vsub.s32 %v4552, %v4554
  %v4556 = vrot.slane %v4534, %v4555
  %v4558 = vunpack.c.l.s4 1966171168
  %v4559 = vunpack.c.0.s8 %v4558
  %v4560 = vlaneseq
  %v4561 = vshrl.u32 %v4560, 7
  %v4562 = vsub.s32 %v4559, %v4561
  %v4563 = vrot.slane %v4535, %v4562
  %v4564 = vcombine.low %v4542, %v4549
  %v4565 = vcombine.low %v4556, %v4563
  %v4567 = vunpack.c.l.s4 1966171168
  %v4568 = vunpack.c.0.s8 %v4567
  %v4569 = vlaneseq
  %v4570 = vshrl.u32 %v4569, 7
  %v4571 = vsub.s32 %v4568, %v4570
  %v4572 = vrot.slane %v4564, %v4571
  %v4574 = vunpack.c.l.s4 1966171168
  %v4575 = vunpack.c.0.s8 %v4574
  %v4576 = vlaneseq
  %v4577 = vshrl.u32 %v4576, 7
  %v4578 = vsub.s32 %v4575, %v4577
  %v4579 = vrot.slane %v4565, %v4578
  %v4580 = vcombine.low %v4572, %v4579
  %v4581 = vcombine.low %v4139, %v4140
  %v4582 = vcombine.low %v4141, %v4142
  %v4583 = vcombine.low %v4143, %v4144
  %v4584 = vcombine.low %v4145, %v4146
  %v4586 = vunpack.c.l.s4 1966171168
  %v4587 = vunpack.c.0.s8 %v4586
  %v4588 = vlaneseq
  %v4589 = vshrl.u32 %v4588, 7
  %v4590 = vsub.s32 %v4587, %v4589
  %v4591 = vrot.slane %v4581, %v4590
  %v4593 = vunpack.c.l.s4 1966171168
  %v4594 = vunpack.c.0.s8 %v4593
  %v4595 = vlaneseq
  %v4596 = vshrl.u32 %v4595, 7
  %v4597 = vsub.s32 %v4594, %v4596
  %v4598 = vrot.slane %v4582, %v4597
  %v4600 = vunpack.c.l.s4 1966171168
  %v4601 = vunpack.c.0.s8 %v4600
  %v4602 = vlaneseq
  %v4603 = vshrl.u32 %v4602, 7
  %v4604 = vsub.s32 %v4601, %v4603
  %v4605 = vrot.slane %v4583, %v4604
  %v4607 = vunpack.c.l.s4 1966171168
  %v4608 = vunpack.c.0.s8 %v4607
  %v4609 = vlaneseq
  %v4610 = vshrl.u32 %v4609, 7
  %v4611 = vsub.s32 %v4608, %v4610
  %v4612 = vrot.slane %v4584, %v4611
  %v4613 = vcombine.low %v4591, %v4598
  %v4614 = vcombine.low %v4605, %v4612
  %v4616 = vunpack.c.l.s4 1966171168
  %v4617 = vunpack.c.0.s8 %v4616
  %v4618 = vlaneseq
  %v4619 = vshrl.u32 %v4618, 7
  %v4620 = vsub.s32 %v4617, %v4619
  %v4621 = vrot.slane %v4613, %v4620
  %v4623 = vunpack.c.l.s4 1966171168
  %v4624 = vunpack.c.0.s8 %v4623
  %v4625 = vlaneseq
  %v4626 = vshrl.u32 %v4625, 7
  %v4627 = vsub.s32 %v4624, %v4626
  %v4628 = vrot.slane %v4614, %v4627
  %v4629 = vcombine.low %v4621, %v4628
  %v4630 = vcombine.low %v4147, %v4148
  %v4631 = vcombine.low %v4149, %v4150
  %v4632 = vcombine.low %v4151, %v4152
  %v4633 = vcombine.low %v4153, %v4154
  %v4635 = vunpack.c.l.s4 1966171168
  %v4636 = vunpack.c.0.s8 %v4635
  %v4637 = vlaneseq
  %v4638 = vshrl.u32 %v4637, 7
  %v4639 = vsub.s32 %v4636, %v4638
  %v4640 = vrot.slane %v4630, %v4639
  %v4642 = vunpack.c.l.s4 1966171168
  %v4643 = vunpack.c.0.s8 %v4642
  %v4644 = vlaneseq
  %v4645 = vshrl.u32 %v4644, 7
  %v4646 = vsub.s32 %v4643, %v4645
  %v4647 = vrot.slane %v4631, %v4646
  %v4649 = vunpack.c.l.s4 1966171168
  %v4650 = vunpack.c.0.s8 %v4649
  %v4651 = vlaneseq
  %v4652 = vshrl.u32 %v4651, 7
  %v4653 = vsub.s32 %v4650, %v4652
  %v4654 = vrot.slane %v4632, %v4653
  %v4656 = vunpack.c.l.s4 1966171168
  %v4657 = vunpack.c.0.s8 %v4656
  %v4658 = vlaneseq
  %v4659 = vshrl.u32 %v4658, 7
  %v4660 = vsub.s32 %v4657, %v4659
  %v4661 = vrot.slane %v4633, %v4660
  %v4662 = vcombine.low %v4640, %v4647
  %v4663 = vcombine.low %v4654, %v4661
  %v4665 = vunpack.c.l.s4 1966171168
  %v4666 = vunpack.c.0.s8 %v4665
  %v4667 = vlaneseq
  %v4668 = vshrl.u32 %v4667, 7
  %v4669 = vsub.s32 %v4666, %v4668
  %v4670 = vrot.slane %v4662, %v4669
  %v4672 = vunpack.c.l.s4 1966171168
  %v4673 = vunpack.c.0.s8 %v4672
  %v4674 = vlaneseq
  %v4675 = vshrl.u32 %v4674, 7
  %v4676 = vsub.s32 %v4673, %v4675
  %v4677 = vrot.slane %v4663, %v4676
  %v4678 = vcombine.low %v4670, %v4677
  %v4679 = vcombine.low %v4155, %v4156
  %v4680 = vcombine.low %v4157, %v4158
  %v4681 = vcombine.low %v4159, %v4160
  %v4682 = vcombine.low %v4161, %v4162
  %v4684 = vunpack.c.l.s4 1966171168
  %v4685 = vunpack.c.0.s8 %v4684
  %v4686 = vlaneseq
  %v4687 = vshrl.u32 %v4686, 7
  %v4688 = vsub.s32 %v4685, %v4687
  %v4689 = vrot.slane %v4679, %v4688
  %v4691 = vunpack.c.l.s4 1966171168
  %v4692 = vunpack.c.0.s8 %v4691
  %v4693 = vlaneseq
  %v4694 = vshrl.u32 %v4693, 7
  %v4695 = vsub.s32 %v4692, %v4694
  %v4696 = vrot.slane %v4680, %v4695
  %v4698 = vunpack.c.l.s4 1966171168
  %v4699 = vunpack.c.0.s8 %v4698
  %v4700 = vlaneseq
  %v4701 = vshrl.u32 %v4700, 7
  %v4702 = vsub.s32 %v4699, %v4701
  %v4703 = vrot.slane %v4681, %v4702
  %v4705 = vunpack.c.l.s4 1966171168
  %v4706 = vunpack.c.0.s8 %v4705
  %v4707 = vlaneseq
  %v4708 = vshrl.u32 %v4707, 7
  %v4709 = vsub.s32 %v4706, %v4708
  %v4710 = vrot.slane %v4682, %v4709
  %v4711 = vcombine.low %v4689, %v4696
  %v4712 = vcombine.low %v4703, %v4710
  %v4714 = vunpack.c.l.s4 1966171168
  %v4715 = vunpack.c.0.s8 %v4714
  %v4716 = vlaneseq
  %v4717 = vshrl.u32 %v4716, 7
  %v4718 = vsub.s32 %v4715, %v4717
  %v4719 = vrot.slane %v4711, %v4718
  %v4721 = vunpack.c.l.s4 1966171168
  %v4722 = vunpack.c.0.s8 %v4721
  %v4723 = vlaneseq
  %v4724 = vshrl.u32 %v4723, 7
  %v4725 = vsub.s32 %v4722, %v4724
  %v4726 = vrot.slane %v4712, %v4725
  %v4727 = vcombine.low %v4719, %v4726
  %v4728 = vcombine.low %v4163, %v4164
  %v4729 = vcombine.low %v4165, %v4166
  %v4730 = vcombine.low %v4167, %v4168
  %v4731 = vcombine.low %v4169, %v4170
  %v4733 = vunpack.c.l.s4 1966171168
  %v4734 = vunpack.c.0.s8 %v4733
  %v4735 = vlaneseq
  %v4736 = vshrl.u32 %v4735, 7
  %v4737 = vsub.s32 %v4734, %v4736
  %v4738 = vrot.slane %v4728, %v4737
  %v4740 = vunpack.c.l.s4 1966171168
  %v4741 = vunpack.c.0.s8 %v4740
  %v4742 = vlaneseq
  %v4743 = vshrl.u32 %v4742, 7
  %v4744 = vsub.s32 %v4741, %v4743
  %v4745 = vrot.slane %v4729, %v4744
  %v4747 = vunpack.c.l.s4 1966171168
  %v4748 = vunpack.c.0.s8 %v4747
  %v4749 = vlaneseq
  %v4750 = vshrl.u32 %v4749, 7
  %v4751 = vsub.s32 %v4748, %v4750
  %v4752 = vrot.slane %v4730, %v4751
  %v4754 = vunpack.c.l.s4 1966171168
  %v4755 = vunpack.c.0.s8 %v4754
  %v4756 = vlaneseq
  %v4757 = vshrl.u32 %v4756, 7
  %v4758 = vsub.s32 %v4755, %v4757
  %v4759 = vrot.slane %v4731, %v4758
  %v4760 = vcombine.low %v4738, %v4745
  %v4761 = vcombine.low %v4752, %v4759
  %v4763 = vunpack.c.l.s4 1966171168
  %v4764 = vunpack.c.0.s8 %v4763
  %v4765 = vlaneseq
  %v4766 = vshrl.u32 %v4765, 7
  %v4767 = vsub.s32 %v4764, %v4766
  %v4768 = vrot.slane %v4760, %v4767
  %v4770 = vunpack.c.l.s4 1966171168
  %v4771 = vunpack.c.0.s8 %v4770
  %v4772 = vlaneseq
  %v4773 = vshrl.u32 %v4772, 7
  %v4774 = vsub.s32 %v4771, %v4773
  %v4775 = vrot.slane %v4761, %v4774
  %v4776 = vcombine.low %v4768, %v4775
  %v4777 = vcombine.low %v4171, %v4172
  %v4778 = vcombine.low %v4173, %v4174
  %v4779 = vcombine.low %v4175, %v4176
  %v4780 = vcombine.low %v4177, %v4178
  %v4782 = vunpack.c.l.s4 1966171168
  %v4783 = vunpack.c.0.s8 %v4782
  %v4784 = vlaneseq
  %v4785 = vshrl.u32 %v4784, 7
  %v4786 = vsub.s32 %v4783, %v4785
  %v4787 = vrot.slane %v4777, %v4786
  %v4789 = vunpack.c.l.s4 1966171168
  %v4790 = vunpack.c.0.s8 %v4789
  %v4791 = vlaneseq
  %v4792 = vshrl.u32 %v4791, 7
  %v4793 = vsub.s32 %v4790, %v4792
  %v4794 = vrot.slane %v4778, %v4793
  %v4796 = vunpack.c.l.s4 1966171168
  %v4797 = vunpack.c.0.s8 %v4796
  %v4798 = vlaneseq
  %v4799 = vshrl.u32 %v4798, 7
  %v4800 = vsub.s32 %v4797, %v4799
  %v4801 = vrot.slane %v4779, %v4800
  %v4803 = vunpack.c.l.s4 1966171168
  %v4804 = vunpack.c.0.s8 %v4803
  %v4805 = vlaneseq
  %v4806 = vshrl.u32 %v4805, 7
  %v4807 = vsub.s32 %v4804, %v4806
  %v4808 = vrot.slane %v4780, %v4807
  %v4809 = vcombine.low %v4787, %v4794
  %v4810 = vcombine.low %v4801, %v4808
  %v4812 = vunpack.c.l.s4 1966171168
  %v4813 = vunpack.c.0.s8 %v4812
  %v4814 = vlaneseq
  %v4815 = vshrl.u32 %v4814, 7
  %v4816 = vsub.s32 %v4813, %v4815
  %v4817 = vrot.slane %v4809, %v4816
  %v4819 = vunpack.c.l.s4 1966171168
  %v4820 = vunpack.c.0.s8 %v4819
  %v4821 = vlaneseq
  %v4822 = vshrl.u32 %v4821, 7
  %v4823 = vsub.s32 %v4820, %v4822
  %v4824 = vrot.slane %v4810, %v4823
  %v4825 = vcombine.low %v4817, %v4824
  %v4826 = vcombine.low %v4179, %v4180
  %v4827 = vcombine.low %v4181, %v4182
  %v4828 = vcombine.low %v4183, %v4184
  %v4829 = vcombine.low %v4185, %v4186
  %v4831 = vunpack.c.l.s4 1966171168
  %v4832 = vunpack.c.0.s8 %v4831
  %v4833 = vlaneseq
  %v4834 = vshrl.u32 %v4833, 7
  %v4835 = vsub.s32 %v4832, %v4834
  %v4836 = vrot.slane %v4826, %v4835
  %v4838 = vunpack.c.l.s4 1966171168
  %v4839 = vunpack.c.0.s8 %v4838
  %v4840 = vlaneseq
  %v4841 = vshrl.u32 %v4840, 7
  %v4842 = vsub.s32 %v4839, %v4841
  %v4843 = vrot.slane %v4827, %v4842
  %v4845 = vunpack.c.l.s4 1966171168
  %v4846 = vunpack.c.0.s8 %v4845
  %v4847 = vlaneseq
  %v4848 = vshrl.u32 %v4847, 7
  %v4849 = vsub.s32 %v4846, %v4848
  %v4850 = vrot.slane %v4828, %v4849
  %v4852 = vunpack.c.l.s4 1966171168
  %v4853 = vunpack.c.0.s8 %v4852
  %v4854 = vlaneseq
  %v4855 = vshrl.u32 %v4854, 7
  %v4856 = vsub.s32 %v4853, %v4855
  %v4857 = vrot.slane %v4829, %v4856
  %v4858 = vcombine.low %v4836, %v4843
  %v4859 = vcombine.low %v4850, %v4857
  %v4861 = vunpack.c.l.s4 1966171168
  %v4862 = vunpack.c.0.s8 %v4861
  %v4863 = vlaneseq
  %v4864 = vshrl.u32 %v4863, 7
  %v4865 = vsub.s32 %v4862, %v4864
  %v4866 = vrot.slane %v4858, %v4865
  %v4868 = vunpack.c.l.s4 1966171168
  %v4869 = vunpack.c.0.s8 %v4868
  %v4870 = vlaneseq
  %v4871 = vshrl.u32 %v4870, 7
  %v4872 = vsub.s32 %v4869, %v4871
  %v4873 = vrot.slane %v4859, %v4872
  %v4874 = vcombine.low %v4866, %v4873
  %v4875 = vcombine.low %v4187, %v4188
  %v4877 = vunpack.c.l.s4 1966171168
  %v4878 = vunpack.c.0.s8 %v4877
  %v4879 = vlaneseq
  %v4880 = vshrl.u32 %v4879, 7
  %v4881 = vsub.s32 %v4878, %v4880
  %v4882 = vrot.slane %v4875, %v4881
  %v4884 = vunpack.c.l.s4 1966171168
  %v4885 = vunpack.c.0.s8 %v4884
  %v4886 = vlaneseq
  %v4887 = vshrl.u32 %v4886, 7
  %v4888 = vsub.s32 %v4885, %v4887
  %v4889 = vrot.slane %v4882, %v4888
  %4890 = vrot.lane.b32.xlu0 %v4237, 24
  %v4891 = vpop.permute.xlu0 %4890
  %4892 = vrot.lane.b32.xlu0 %v4286, 24
  %v4893 = vpop.permute.xlu0 %4892
  %4894 = vrot.lane.b32.xlu0 %v4335, 24
  %v4895 = vpop.permute.xlu0 %4894
  %4896 = vrot.lane.b32.xlu0 %v4384, 24
  %v4897 = vpop.permute.xlu0 %4896
  %4898 = vrot.lane.b32.xlu0 %v4433, 24
  %v4899 = vpop.permute.xlu0 %4898
  %4900 = vrot.lane.b32.xlu0 %v4482, 24
  %v4901 = vpop.permute.xlu0 %4900
  %4902 = vrot.lane.b32.xlu0 %v4531, 24
  %v4903 = vpop.permute.xlu0 %4902
  %4904 = vrot.lane.b32.xlu0 %v4580, 24
  %v4905 = vpop.permute.xlu0 %4904
  %4906 = vrot.lane.b32.xlu0 %v4629, 24
  %v4907 = vpop.permute.xlu0 %4906
  %4908 = vrot.lane.b32.xlu0 %v4678, 24
  %v4909 = vpop.permute.xlu0 %4908
  %4910 = vrot.lane.b32.xlu0 %v4727, 24
  %v4911 = vpop.permute.xlu0 %4910
  %4912 = vrot.lane.b32.xlu0 %v4776, 24
  %v4913 = vpop.permute.xlu0 %4912
  %4914 = vrot.lane.b32.xlu0 %v4825, 24
  %v4915 = vpop.permute.xlu0 %4914
  %4916 = vrot.lane.b32.xlu0 %v4874, 24
  %v4917 = vpop.permute.xlu0 %4916
  %4918 = vrot.lane.b32.xlu0 %v4889, 24
  %v4919 = vpop.permute.xlu0 %4918
  %v4920 = vpack.i.b16 %v2084, %v2083
  %v4921 = vpack.i.b16 %v2086, %v2085
  %v4922 = vpack.i.b16 %v2088, %v2087
  %v4923 = vpack.i.b16 %v2090, %v2089
  %v4924 = vpack.i.b16 %v2092, %v2091
  %v4925 = vpack.i.b16 %v2094, %v2093
  %v4926 = vpack.i.b16 %v2096, %v2095
  %v4927 = vpack.i.b16 %v2098, %v2097
  %v4928 = vpack.i.b16 %v2100, %v2099
  %v4929 = vpack.i.b16 %v2102, %v2310
  %v4930 = vpack.i.b16 %v2104, %v2103
  %v4931 = vpack.i.b16 %v2106, %v2105
  %v4932 = vpack.i.b16 %v2108, %v2107
  %v4933 = vpack.i.b16 %v2110, %v2109
  %v4934 = vpack.i.b16 %v2112, %v2111
  %v4935 = vpack.i.b16 %v2114, %v2113
  %v4936 = vpack.i.b16 %v2116, %v2115
  %v4937 = vpack.i.b16 %v2118, %v2117
  %v4938 = vpack.i.b16 %v2311, %v2119
  %v4939 = vpack.i.b16 %v2122, %v2121
  %v4940 = vpack.i.b16 %v2124, %v2123
  %v4941 = vpack.i.b16 %v2126, %v2125
  %v4942 = vpack.i.b16 %v2128, %v2127
  %v4943 = vpack.i.b16 %v2130, %v2129
  %v4944 = vpack.i.b16 %v2132, %v2131
  %v4945 = vpack.i.b16 %v2134, %v2133
  %v4946 = vpack.i.b16 %v2136, %v2135
  %v4947 = vpack.i.b16 %v2138, %v2137
  %v4948 = vpack.i.b16 %v2140, %v2312
  %v4949 = vpack.i.b16 %v2142, %v2141
  %v4950 = vpack.i.b16 %v2144, %v2143
  %v4951 = vpack.i.b16 %v2146, %v2145
  %v4952 = vpack.i.b16 %v2148, %v2147
  %v4953 = vpack.i.b16 %v2150, %v2149
  %v4954 = vpack.i.b16 %v2152, %v2151
  %v4955 = vpack.i.b16 %v2154, %v2153
  %v4956 = vpack.i.b16 %v2156, %v2155
  %v4957 = vpack.i.b16 %v2313, %v2157
  %v4958 = vpack.i.b16 %v2160, %v2159
  %v4959 = vpack.i.b16 %v2162, %v2161
  %v4960 = vpack.i.b16 %v2164, %v2163
  %v4961 = vpack.i.b16 %v2166, %v2165
  %v4962 = vpack.i.b16 %v2168, %v2167
  %v4963 = vpack.i.b16 %v2170, %v2169
  %v4964 = vpack.i.b16 %v2172, %v2171
  %v4965 = vpack.i.b16 %v2174, %v2173
  %v4966 = vpack.i.b16 %v2176, %v2175
  %v4967 = vpack.i.b16 %v2178, %v2314
  %v4968 = vpack.i.b16 %v2180, %v2179
  %v4969 = vpack.i.b16 %v2182, %v2181
  %v4970 = vpack.i.b16 %v2184, %v2183
  %v4971 = vpack.i.b16 %v2186, %v2185
  %v4972 = vpack.i.b16 %v2188, %v2187
  %v4973 = vpack.i.b16 %v2190, %v2189
  %v4974 = vpack.i.b16 %v2192, %v2191
  %v4975 = vpack.i.b16 %v2194, %v2193
  %v4976 = vpack.i.b16 %v2315, %v2195
  %v4977 = vpack.i.b16 %v2198, %v2197
  %v4978 = vpack.i.b16 %v2200, %v2199
  %v4979 = vpack.i.b16 %v2202, %v2201
  %v4980 = vpack.i.b16 %v2204, %v2203
  %v4981 = vpack.i.b16 %v2206, %v2205
  %v4982 = vpack.i.b16 %v2208, %v2207
  %v4983 = vpack.i.b16 %v2210, %v2209
  %v4984 = vpack.i.b16 %v2212, %v2211
  %v4985 = vpack.i.b16 %v2214, %v2213
  %v4986 = vpack.i.b16 %v2216, %v2316
  %v4987 = vpack.i.b16 %v2218, %v2217
  %v4988 = vpack.i.b16 %v2220, %v2219
  %v4989 = vpack.i.b16 %v2222, %v2221
  %v4990 = vpack.i.b16 %v2224, %v2223
  %v4991 = vpack.i.b16 %v2226, %v2225
  %v4992 = vpack.i.b16 %v2228, %v2227
  %v4993 = vpack.i.b16 %v2230, %v2229
  %v4994 = vpack.i.b16 %v2232, %v2231
  %v4995 = vpack.i.b16 %v2317, %v2233
  %v4996 = vpack.i.b16 %v2236, %v2235
  %v4997 = vpack.i.b16 %v2238, %v2237
  %v4998 = vpack.i.b16 %v2240, %v2239
  %v4999 = vpack.i.b16 %v2242, %v2241
  %v5000 = vpack.i.b16 %v2244, %v2243
  %v5001 = vpack.i.b16 %v2246, %v2245
  %v5002 = vpack.i.b16 %v2248, %v2247
  %v5003 = vpack.i.b16 %v2250, %v2249
  %v5004 = vpack.i.b16 %v2252, %v2251
  %v5005 = vpack.i.b16 %v2254, %v2318
  %v5006 = vpack.i.b16 %v2256, %v2255
  %v5007 = vpack.i.b16 %v2258, %v2257
  %v5008 = vpack.i.b16 %v2260, %v2259
  %v5009 = vpack.i.b16 %v2262, %v2261
  %v5010 = vpack.i.b16 %v2264, %v2263
  %v5011 = vpack.i.b16 %v2266, %v2265
  %v5012 = vpack.i.b16 %v2268, %v2267
  %v5013 = vpack.i.b16 %v2270, %v2269
  %v5014 = vpack.i.b16 %v2319, %v2271
  %v5015 = vpack.i.b16 %v2274, %v2273
  %v5016 = vpack.i.b16 %v2276, %v2275
  %v5017 = vpack.i.b16 %v2278, %v2277
  %v5018 = vpack.i.b16 %v2280, %v2279
  %v5019 = vpack.i.b16 %v2282, %v2281
  %v5020 = vpack.i.b16 %v2284, %v2283
  %v5021 = vpack.i.b16 %v2286, %v2285
  %v5022 = vpack.i.b16 %v2288, %v2287
  %v5023 = vpack.i.b16 %v2290, %v2289
  %v5024 = vpack.i.b16 %v2292, %v2320
  %v5025 = vpack.i.b16 %v2294, %v2293
  %v5026 = vpack.i.b16 %v2296, %v2295
  %v5027 = vpack.i.b16 %v2298, %v2297
  %v5028 = vpack.i.b16 %v2300, %v2299
  %v5029 = vpack.i.b16 %v2302, %v2301
  %v5030 = vpack.i.b16 %v2304, %v2303
  %v5031 = vpack.i.b16 %v2306, %v2305
  %v5032 = vpack.i.b16 %v2308, %v2307
  %v5033 = vpack.i.b16 %v2321, %v2309
  %v5034 = vcombine.low %v4920, %v4921
  %v5035 = vcombine.low %v4922, %v4923
  %v5036 = vcombine.low %v4924, %v4925
  %v5037 = vcombine.low %v4926, %v4927
  %v5039 = vunpack.c.l.s4 1966171168
  %v5040 = vunpack.c.0.s8 %v5039
  %v5041 = vlaneseq
  %v5042 = vshrl.u32 %v5041, 7
  %v5043 = vsub.s32 %v5040, %v5042
  %v5044 = vrot.slane %v5034, %v5043
  %v5046 = vunpack.c.l.s4 1966171168
  %v5047 = vunpack.c.0.s8 %v5046
  %v5048 = vlaneseq
  %v5049 = vshrl.u32 %v5048, 7
  %v5050 = vsub.s32 %v5047, %v5049
  %v5051 = vrot.slane %v5035, %v5050
  %v5053 = vunpack.c.l.s4 1966171168
  %v5054 = vunpack.c.0.s8 %v5053
  %v5055 = vlaneseq
  %v5056 = vshrl.u32 %v5055, 7
  %v5057 = vsub.s32 %v5054, %v5056
  %v5058 = vrot.slane %v5036, %v5057
  %v5060 = vunpack.c.l.s4 1966171168
  %v5061 = vunpack.c.0.s8 %v5060
  %v5062 = vlaneseq
  %v5063 = vshrl.u32 %v5062, 7
  %v5064 = vsub.s32 %v5061, %v5063
  %v5065 = vrot.slane %v5037, %v5064
  %v5066 = vcombine.low %v5044, %v5051
  %v5067 = vcombine.low %v5058, %v5065
  %v5069 = vunpack.c.l.s4 1966171168
  %v5070 = vunpack.c.0.s8 %v5069
  %v5071 = vlaneseq
  %v5072 = vshrl.u32 %v5071, 7
  %v5073 = vsub.s32 %v5070, %v5072
  %v5074 = vrot.slane %v5066, %v5073
  %v5076 = vunpack.c.l.s4 1966171168
  %v5077 = vunpack.c.0.s8 %v5076
  %v5078 = vlaneseq
  %v5079 = vshrl.u32 %v5078, 7
  %v5080 = vsub.s32 %v5077, %v5079
  %v5081 = vrot.slane %v5067, %v5080
  %v5082 = vcombine.low %v5074, %v5081
  %v5083 = vcombine.low %v4928, %v4929
  %v5084 = vcombine.low %v4930, %v4931
  %v5085 = vcombine.low %v4932, %v4933
  %v5086 = vcombine.low %v4934, %v4935
  %v5088 = vunpack.c.l.s4 1966171168
  %v5089 = vunpack.c.0.s8 %v5088
  %v5090 = vlaneseq
  %v5091 = vshrl.u32 %v5090, 7
  %v5092 = vsub.s32 %v5089, %v5091
  %v5093 = vrot.slane %v5083, %v5092
  %v5095 = vunpack.c.l.s4 1966171168
  %v5096 = vunpack.c.0.s8 %v5095
  %v5097 = vlaneseq
  %v5098 = vshrl.u32 %v5097, 7
  %v5099 = vsub.s32 %v5096, %v5098
  %v5100 = vrot.slane %v5084, %v5099
  %v5102 = vunpack.c.l.s4 1966171168
  %v5103 = vunpack.c.0.s8 %v5102
  %v5104 = vlaneseq
  %v5105 = vshrl.u32 %v5104, 7
  %v5106 = vsub.s32 %v5103, %v5105
  %v5107 = vrot.slane %v5085, %v5106
  %v5109 = vunpack.c.l.s4 1966171168
  %v5110 = vunpack.c.0.s8 %v5109
  %v5111 = vlaneseq
  %v5112 = vshrl.u32 %v5111, 7
  %v5113 = vsub.s32 %v5110, %v5112
  %v5114 = vrot.slane %v5086, %v5113
  %v5115 = vcombine.low %v5093, %v5100
  %v5116 = vcombine.low %v5107, %v5114
  %v5118 = vunpack.c.l.s4 1966171168
  %v5119 = vunpack.c.0.s8 %v5118
  %v5120 = vlaneseq
  %v5121 = vshrl.u32 %v5120, 7
  %v5122 = vsub.s32 %v5119, %v5121
  %v5123 = vrot.slane %v5115, %v5122
  %v5125 = vunpack.c.l.s4 1966171168
  %v5126 = vunpack.c.0.s8 %v5125
  %v5127 = vlaneseq
  %v5128 = vshrl.u32 %v5127, 7
  %v5129 = vsub.s32 %v5126, %v5128
  %v5130 = vrot.slane %v5116, %v5129
  %v5131 = vcombine.low %v5123, %v5130
  %v5132 = vcombine.low %v4936, %v4937
  %v5133 = vcombine.low %v4938, %v4939
  %v5134 = vcombine.low %v4940, %v4941
  %v5135 = vcombine.low %v4942, %v4943
  %v5137 = vunpack.c.l.s4 1966171168
  %v5138 = vunpack.c.0.s8 %v5137
  %v5139 = vlaneseq
  %v5140 = vshrl.u32 %v5139, 7
  %v5141 = vsub.s32 %v5138, %v5140
  %v5142 = vrot.slane %v5132, %v5141
  %v5144 = vunpack.c.l.s4 1966171168
  %v5145 = vunpack.c.0.s8 %v5144
  %v5146 = vlaneseq
  %v5147 = vshrl.u32 %v5146, 7
  %v5148 = vsub.s32 %v5145, %v5147
  %v5149 = vrot.slane %v5133, %v5148
  %v5151 = vunpack.c.l.s4 1966171168
  %v5152 = vunpack.c.0.s8 %v5151
  %v5153 = vlaneseq
  %v5154 = vshrl.u32 %v5153, 7
  %v5155 = vsub.s32 %v5152, %v5154
  %v5156 = vrot.slane %v5134, %v5155
  %v5158 = vunpack.c.l.s4 1966171168
  %v5159 = vunpack.c.0.s8 %v5158
  %v5160 = vlaneseq
  %v5161 = vshrl.u32 %v5160, 7
  %v5162 = vsub.s32 %v5159, %v5161
  %v5163 = vrot.slane %v5135, %v5162
  %v5164 = vcombine.low %v5142, %v5149
  %v5165 = vcombine.low %v5156, %v5163
  %v5167 = vunpack.c.l.s4 1966171168
  %v5168 = vunpack.c.0.s8 %v5167
  %v5169 = vlaneseq
  %v5170 = vshrl.u32 %v5169, 7
  %v5171 = vsub.s32 %v5168, %v5170
  %v5172 = vrot.slane %v5164, %v5171
  %v5174 = vunpack.c.l.s4 1966171168
  %v5175 = vunpack.c.0.s8 %v5174
  %v5176 = vlaneseq
  %v5177 = vshrl.u32 %v5176, 7
  %v5178 = vsub.s32 %v5175, %v5177
  %v5179 = vrot.slane %v5165, %v5178
  %v5180 = vcombine.low %v5172, %v5179
  %v5181 = vcombine.low %v4944, %v4945
  %v5182 = vcombine.low %v4946, %v4947
  %v5183 = vcombine.low %v4948, %v4949
  %v5184 = vcombine.low %v4950, %v4951
  %v5186 = vunpack.c.l.s4 1966171168
  %v5187 = vunpack.c.0.s8 %v5186
  %v5188 = vlaneseq
  %v5189 = vshrl.u32 %v5188, 7
  %v5190 = vsub.s32 %v5187, %v5189
  %v5191 = vrot.slane %v5181, %v5190
  %v5193 = vunpack.c.l.s4 1966171168
  %v5194 = vunpack.c.0.s8 %v5193
  %v5195 = vlaneseq
  %v5196 = vshrl.u32 %v5195, 7
  %v5197 = vsub.s32 %v5194, %v5196
  %v5198 = vrot.slane %v5182, %v5197
  %v5200 = vunpack.c.l.s4 1966171168
  %v5201 = vunpack.c.0.s8 %v5200
  %v5202 = vlaneseq
  %v5203 = vshrl.u32 %v5202, 7
  %v5204 = vsub.s32 %v5201, %v5203
  %v5205 = vrot.slane %v5183, %v5204
  %v5207 = vunpack.c.l.s4 1966171168
  %v5208 = vunpack.c.0.s8 %v5207
  %v5209 = vlaneseq
  %v5210 = vshrl.u32 %v5209, 7
  %v5211 = vsub.s32 %v5208, %v5210
  %v5212 = vrot.slane %v5184, %v5211
  %v5213 = vcombine.low %v5191, %v5198
  %v5214 = vcombine.low %v5205, %v5212
  %v5216 = vunpack.c.l.s4 1966171168
  %v5217 = vunpack.c.0.s8 %v5216
  %v5218 = vlaneseq
  %v5219 = vshrl.u32 %v5218, 7
  %v5220 = vsub.s32 %v5217, %v5219
  %v5221 = vrot.slane %v5213, %v5220
  %v5223 = vunpack.c.l.s4 1966171168
  %v5224 = vunpack.c.0.s8 %v5223
  %v5225 = vlaneseq
  %v5226 = vshrl.u32 %v5225, 7
  %v5227 = vsub.s32 %v5224, %v5226
  %v5228 = vrot.slane %v5214, %v5227
  %v5229 = vcombine.low %v5221, %v5228
  %v5230 = vcombine.low %v4952, %v4953
  %v5231 = vcombine.low %v4954, %v4955
  %v5232 = vcombine.low %v4956, %v4957
  %v5233 = vcombine.low %v4958, %v4959
  %v5235 = vunpack.c.l.s4 1966171168
  %v5236 = vunpack.c.0.s8 %v5235
  %v5237 = vlaneseq
  %v5238 = vshrl.u32 %v5237, 7
  %v5239 = vsub.s32 %v5236, %v5238
  %v5240 = vrot.slane %v5230, %v5239
  %v5242 = vunpack.c.l.s4 1966171168
  %v5243 = vunpack.c.0.s8 %v5242
  %v5244 = vlaneseq
  %v5245 = vshrl.u32 %v5244, 7
  %v5246 = vsub.s32 %v5243, %v5245
  %v5247 = vrot.slane %v5231, %v5246
  %v5249 = vunpack.c.l.s4 1966171168
  %v5250 = vunpack.c.0.s8 %v5249
  %v5251 = vlaneseq
  %v5252 = vshrl.u32 %v5251, 7
  %v5253 = vsub.s32 %v5250, %v5252
  %v5254 = vrot.slane %v5232, %v5253
  %v5256 = vunpack.c.l.s4 1966171168
  %v5257 = vunpack.c.0.s8 %v5256
  %v5258 = vlaneseq
  %v5259 = vshrl.u32 %v5258, 7
  %v5260 = vsub.s32 %v5257, %v5259
  %v5261 = vrot.slane %v5233, %v5260
  %v5262 = vcombine.low %v5240, %v5247
  %v5263 = vcombine.low %v5254, %v5261
  %v5265 = vunpack.c.l.s4 1966171168
  %v5266 = vunpack.c.0.s8 %v5265
  %v5267 = vlaneseq
  %v5268 = vshrl.u32 %v5267, 7
  %v5269 = vsub.s32 %v5266, %v5268
  %v5270 = vrot.slane %v5262, %v5269
  %v5272 = vunpack.c.l.s4 1966171168
  %v5273 = vunpack.c.0.s8 %v5272
  %v5274 = vlaneseq
  %v5275 = vshrl.u32 %v5274, 7
  %v5276 = vsub.s32 %v5273, %v5275
  %v5277 = vrot.slane %v5263, %v5276
  %v5278 = vcombine.low %v5270, %v5277
  %v5279 = vcombine.low %v4960, %v4961
  %v5280 = vcombine.low %v4962, %v4963
  %v5281 = vcombine.low %v4964, %v4965
  %v5282 = vcombine.low %v4966, %v4967
  %v5284 = vunpack.c.l.s4 1966171168
  %v5285 = vunpack.c.0.s8 %v5284
  %v5286 = vlaneseq
  %v5287 = vshrl.u32 %v5286, 7
  %v5288 = vsub.s32 %v5285, %v5287
  %v5289 = vrot.slane %v5279, %v5288
  %v5291 = vunpack.c.l.s4 1966171168
  %v5292 = vunpack.c.0.s8 %v5291
  %v5293 = vlaneseq
  %v5294 = vshrl.u32 %v5293, 7
  %v5295 = vsub.s32 %v5292, %v5294
  %v5296 = vrot.slane %v5280, %v5295
  %v5298 = vunpack.c.l.s4 1966171168
  %v5299 = vunpack.c.0.s8 %v5298
  %v5300 = vlaneseq
  %v5301 = vshrl.u32 %v5300, 7
  %v5302 = vsub.s32 %v5299, %v5301
  %v5303 = vrot.slane %v5281, %v5302
  %v5305 = vunpack.c.l.s4 1966171168
  %v5306 = vunpack.c.0.s8 %v5305
  %v5307 = vlaneseq
  %v5308 = vshrl.u32 %v5307, 7
  %v5309 = vsub.s32 %v5306, %v5308
  %v5310 = vrot.slane %v5282, %v5309
  %v5311 = vcombine.low %v5289, %v5296
  %v5312 = vcombine.low %v5303, %v5310
  %v5314 = vunpack.c.l.s4 1966171168
  %v5315 = vunpack.c.0.s8 %v5314
  %v5316 = vlaneseq
  %v5317 = vshrl.u32 %v5316, 7
  %v5318 = vsub.s32 %v5315, %v5317
  %v5319 = vrot.slane %v5311, %v5318
  %v5321 = vunpack.c.l.s4 1966171168
  %v5322 = vunpack.c.0.s8 %v5321
  %v5323 = vlaneseq
  %v5324 = vshrl.u32 %v5323, 7
  %v5325 = vsub.s32 %v5322, %v5324
  %v5326 = vrot.slane %v5312, %v5325
  %v5327 = vcombine.low %v5319, %v5326
  %v5328 = vcombine.low %v4968, %v4969
  %v5329 = vcombine.low %v4970, %v4971
  %v5330 = vcombine.low %v4972, %v4973
  %v5331 = vcombine.low %v4974, %v4975
  %v5333 = vunpack.c.l.s4 1966171168
  %v5334 = vunpack.c.0.s8 %v5333
  %v5335 = vlaneseq
  %v5336 = vshrl.u32 %v5335, 7
  %v5337 = vsub.s32 %v5334, %v5336
  %v5338 = vrot.slane %v5328, %v5337
  %v5340 = vunpack.c.l.s4 1966171168
  %v5341 = vunpack.c.0.s8 %v5340
  %v5342 = vlaneseq
  %v5343 = vshrl.u32 %v5342, 7
  %v5344 = vsub.s32 %v5341, %v5343
  %v5345 = vrot.slane %v5329, %v5344
  %v5347 = vunpack.c.l.s4 1966171168
  %v5348 = vunpack.c.0.s8 %v5347
  %v5349 = vlaneseq
  %v5350 = vshrl.u32 %v5349, 7
  %v5351 = vsub.s32 %v5348, %v5350
  %v5352 = vrot.slane %v5330, %v5351
  %v5354 = vunpack.c.l.s4 1966171168
  %v5355 = vunpack.c.0.s8 %v5354
  %v5356 = vlaneseq
  %v5357 = vshrl.u32 %v5356, 7
  %v5358 = vsub.s32 %v5355, %v5357
  %v5359 = vrot.slane %v5331, %v5358
  %v5360 = vcombine.low %v5338, %v5345
  %v5361 = vcombine.low %v5352, %v5359
  %v5363 = vunpack.c.l.s4 1966171168
  %v5364 = vunpack.c.0.s8 %v5363
  %v5365 = vlaneseq
  %v5366 = vshrl.u32 %v5365, 7
  %v5367 = vsub.s32 %v5364, %v5366
  %v5368 = vrot.slane %v5360, %v5367
  %v5370 = vunpack.c.l.s4 1966171168
  %v5371 = vunpack.c.0.s8 %v5370
  %v5372 = vlaneseq
  %v5373 = vshrl.u32 %v5372, 7
  %v5374 = vsub.s32 %v5371, %v5373
  %v5375 = vrot.slane %v5361, %v5374
  %v5376 = vcombine.low %v5368, %v5375
  %v5377 = vcombine.low %v4976, %v4977
  %v5378 = vcombine.low %v4978, %v4979
  %v5379 = vcombine.low %v4980, %v4981
  %v5380 = vcombine.low %v4982, %v4983
  %v5382 = vunpack.c.l.s4 1966171168
  %v5383 = vunpack.c.0.s8 %v5382
  %v5384 = vlaneseq
  %v5385 = vshrl.u32 %v5384, 7
  %v5386 = vsub.s32 %v5383, %v5385
  %v5387 = vrot.slane %v5377, %v5386
  %v5389 = vunpack.c.l.s4 1966171168
  %v5390 = vunpack.c.0.s8 %v5389
  %v5391 = vlaneseq
  %v5392 = vshrl.u32 %v5391, 7
  %v5393 = vsub.s32 %v5390, %v5392
  %v5394 = vrot.slane %v5378, %v5393
  %v5396 = vunpack.c.l.s4 1966171168
  %v5397 = vunpack.c.0.s8 %v5396
  %v5398 = vlaneseq
  %v5399 = vshrl.u32 %v5398, 7
  %v5400 = vsub.s32 %v5397, %v5399
  %v5401 = vrot.slane %v5379, %v5400
  %v5403 = vunpack.c.l.s4 1966171168
  %v5404 = vunpack.c.0.s8 %v5403
  %v5405 = vlaneseq
  %v5406 = vshrl.u32 %v5405, 7
  %v5407 = vsub.s32 %v5404, %v5406
  %v5408 = vrot.slane %v5380, %v5407
  %v5409 = vcombine.low %v5387, %v5394
  %v5410 = vcombine.low %v5401, %v5408
  %v5412 = vunpack.c.l.s4 1966171168
  %v5413 = vunpack.c.0.s8 %v5412
  %v5414 = vlaneseq
  %v5415 = vshrl.u32 %v5414, 7
  %v5416 = vsub.s32 %v5413, %v5415
  %v5417 = vrot.slane %v5409, %v5416
  %v5419 = vunpack.c.l.s4 1966171168
  %v5420 = vunpack.c.0.s8 %v5419
  %v5421 = vlaneseq
  %v5422 = vshrl.u32 %v5421, 7
  %v5423 = vsub.s32 %v5420, %v5422
  %v5424 = vrot.slane %v5410, %v5423
  %v5425 = vcombine.low %v5417, %v5424
  %v5426 = vcombine.low %v4984, %v4985
  %v5427 = vcombine.low %v4986, %v4987
  %v5428 = vcombine.low %v4988, %v4989
  %v5429 = vcombine.low %v4990, %v4991
  %v5431 = vunpack.c.l.s4 1966171168
  %v5432 = vunpack.c.0.s8 %v5431
  %v5433 = vlaneseq
  %v5434 = vshrl.u32 %v5433, 7
  %v5435 = vsub.s32 %v5432, %v5434
  %v5436 = vrot.slane %v5426, %v5435
  %v5438 = vunpack.c.l.s4 1966171168
  %v5439 = vunpack.c.0.s8 %v5438
  %v5440 = vlaneseq
  %v5441 = vshrl.u32 %v5440, 7
  %v5442 = vsub.s32 %v5439, %v5441
  %v5443 = vrot.slane %v5427, %v5442
  %v5445 = vunpack.c.l.s4 1966171168
  %v5446 = vunpack.c.0.s8 %v5445
  %v5447 = vlaneseq
  %v5448 = vshrl.u32 %v5447, 7
  %v5449 = vsub.s32 %v5446, %v5448
  %v5450 = vrot.slane %v5428, %v5449
  %v5452 = vunpack.c.l.s4 1966171168
  %v5453 = vunpack.c.0.s8 %v5452
  %v5454 = vlaneseq
  %v5455 = vshrl.u32 %v5454, 7
  %v5456 = vsub.s32 %v5453, %v5455
  %v5457 = vrot.slane %v5429, %v5456
  %v5458 = vcombine.low %v5436, %v5443
  %v5459 = vcombine.low %v5450, %v5457
  %v5461 = vunpack.c.l.s4 1966171168
  %v5462 = vunpack.c.0.s8 %v5461
  %v5463 = vlaneseq
  %v5464 = vshrl.u32 %v5463, 7
  %v5465 = vsub.s32 %v5462, %v5464
  %v5466 = vrot.slane %v5458, %v5465
  %v5468 = vunpack.c.l.s4 1966171168
  %v5469 = vunpack.c.0.s8 %v5468
  %v5470 = vlaneseq
  %v5471 = vshrl.u32 %v5470, 7
  %v5472 = vsub.s32 %v5469, %v5471
  %v5473 = vrot.slane %v5459, %v5472
  %v5474 = vcombine.low %v5466, %v5473
  %v5475 = vcombine.low %v4992, %v4993
  %v5476 = vcombine.low %v4994, %v4995
  %v5477 = vcombine.low %v4996, %v4997
  %v5478 = vcombine.low %v4998, %v4999
  %v5480 = vunpack.c.l.s4 1966171168
  %v5481 = vunpack.c.0.s8 %v5480
  %v5482 = vlaneseq
  %v5483 = vshrl.u32 %v5482, 7
  %v5484 = vsub.s32 %v5481, %v5483
  %v5485 = vrot.slane %v5475, %v5484
  %v5487 = vunpack.c.l.s4 1966171168
  %v5488 = vunpack.c.0.s8 %v5487
  %v5489 = vlaneseq
  %v5490 = vshrl.u32 %v5489, 7
  %v5491 = vsub.s32 %v5488, %v5490
  %v5492 = vrot.slane %v5476, %v5491
  %v5494 = vunpack.c.l.s4 1966171168
  %v5495 = vunpack.c.0.s8 %v5494
  %v5496 = vlaneseq
  %v5497 = vshrl.u32 %v5496, 7
  %v5498 = vsub.s32 %v5495, %v5497
  %v5499 = vrot.slane %v5477, %v5498
  %v5501 = vunpack.c.l.s4 1966171168
  %v5502 = vunpack.c.0.s8 %v5501
  %v5503 = vlaneseq
  %v5504 = vshrl.u32 %v5503, 7
  %v5505 = vsub.s32 %v5502, %v5504
  %v5506 = vrot.slane %v5478, %v5505
  %v5507 = vcombine.low %v5485, %v5492
  %v5508 = vcombine.low %v5499, %v5506
  %v5510 = vunpack.c.l.s4 1966171168
  %v5511 = vunpack.c.0.s8 %v5510
  %v5512 = vlaneseq
  %v5513 = vshrl.u32 %v5512, 7
  %v5514 = vsub.s32 %v5511, %v5513
  %v5515 = vrot.slane %v5507, %v5514
  %v5517 = vunpack.c.l.s4 1966171168
  %v5518 = vunpack.c.0.s8 %v5517
  %v5519 = vlaneseq
  %v5520 = vshrl.u32 %v5519, 7
  %v5521 = vsub.s32 %v5518, %v5520
  %v5522 = vrot.slane %v5508, %v5521
  %v5523 = vcombine.low %v5515, %v5522
  %v5524 = vcombine.low %v5000, %v5001
  %v5525 = vcombine.low %v5002, %v5003
  %v5526 = vcombine.low %v5004, %v5005
  %v5527 = vcombine.low %v5006, %v5007
  %v5529 = vunpack.c.l.s4 1966171168
  %v5530 = vunpack.c.0.s8 %v5529
  %v5531 = vlaneseq
  %v5532 = vshrl.u32 %v5531, 7
  %v5533 = vsub.s32 %v5530, %v5532
  %v5534 = vrot.slane %v5524, %v5533
  %v5536 = vunpack.c.l.s4 1966171168
  %v5537 = vunpack.c.0.s8 %v5536
  %v5538 = vlaneseq
  %v5539 = vshrl.u32 %v5538, 7
  %v5540 = vsub.s32 %v5537, %v5539
  %v5541 = vrot.slane %v5525, %v5540
  %v5543 = vunpack.c.l.s4 1966171168
  %v5544 = vunpack.c.0.s8 %v5543
  %v5545 = vlaneseq
  %v5546 = vshrl.u32 %v5545, 7
  %v5547 = vsub.s32 %v5544, %v5546
  %v5548 = vrot.slane %v5526, %v5547
  %v5550 = vunpack.c.l.s4 1966171168
  %v5551 = vunpack.c.0.s8 %v5550
  %v5552 = vlaneseq
  %v5553 = vshrl.u32 %v5552, 7
  %v5554 = vsub.s32 %v5551, %v5553
  %v5555 = vrot.slane %v5527, %v5554
  %v5556 = vcombine.low %v5534, %v5541
  %v5557 = vcombine.low %v5548, %v5555
  %v5559 = vunpack.c.l.s4 1966171168
  %v5560 = vunpack.c.0.s8 %v5559
  %v5561 = vlaneseq
  %v5562 = vshrl.u32 %v5561, 7
  %v5563 = vsub.s32 %v5560, %v5562
  %v5564 = vrot.slane %v5556, %v5563
  %v5566 = vunpack.c.l.s4 1966171168
  %v5567 = vunpack.c.0.s8 %v5566
  %v5568 = vlaneseq
  %v5569 = vshrl.u32 %v5568, 7
  %v5570 = vsub.s32 %v5567, %v5569
  %v5571 = vrot.slane %v5557, %v5570
  %v5572 = vcombine.low %v5564, %v5571
  %v5573 = vcombine.low %v5008, %v5009
  %v5574 = vcombine.low %v5010, %v5011
  %v5575 = vcombine.low %v5012, %v5013
  %v5576 = vcombine.low %v5014, %v5015
  %v5578 = vunpack.c.l.s4 1966171168
  %v5579 = vunpack.c.0.s8 %v5578
  %v5580 = vlaneseq
  %v5581 = vshrl.u32 %v5580, 7
  %v5582 = vsub.s32 %v5579, %v5581
  %v5583 = vrot.slane %v5573, %v5582
  %v5585 = vunpack.c.l.s4 1966171168
  %v5586 = vunpack.c.0.s8 %v5585
  %v5587 = vlaneseq
  %v5588 = vshrl.u32 %v5587, 7
  %v5589 = vsub.s32 %v5586, %v5588
  %v5590 = vrot.slane %v5574, %v5589
  %v5592 = vunpack.c.l.s4 1966171168
  %v5593 = vunpack.c.0.s8 %v5592
  %v5594 = vlaneseq
  %v5595 = vshrl.u32 %v5594, 7
  %v5596 = vsub.s32 %v5593, %v5595
  %v5597 = vrot.slane %v5575, %v5596
  %v5599 = vunpack.c.l.s4 1966171168
  %v5600 = vunpack.c.0.s8 %v5599
  %v5601 = vlaneseq
  %v5602 = vshrl.u32 %v5601, 7
  %v5603 = vsub.s32 %v5600, %v5602
  %v5604 = vrot.slane %v5576, %v5603
  %v5605 = vcombine.low %v5583, %v5590
  %v5606 = vcombine.low %v5597, %v5604
  %v5608 = vunpack.c.l.s4 1966171168
  %v5609 = vunpack.c.0.s8 %v5608
  %v5610 = vlaneseq
  %v5611 = vshrl.u32 %v5610, 7
  %v5612 = vsub.s32 %v5609, %v5611
  %v5613 = vrot.slane %v5605, %v5612
  %v5615 = vunpack.c.l.s4 1966171168
  %v5616 = vunpack.c.0.s8 %v5615
  %v5617 = vlaneseq
  %v5618 = vshrl.u32 %v5617, 7
  %v5619 = vsub.s32 %v5616, %v5618
  %v5620 = vrot.slane %v5606, %v5619
  %v5621 = vcombine.low %v5613, %v5620
  %v5622 = vcombine.low %v5016, %v5017
  %v5623 = vcombine.low %v5018, %v5019
  %v5624 = vcombine.low %v5020, %v5021
  %v5625 = vcombine.low %v5022, %v5023
  %v5627 = vunpack.c.l.s4 1966171168
  %v5628 = vunpack.c.0.s8 %v5627
  %v5629 = vlaneseq
  %v5630 = vshrl.u32 %v5629, 7
  %v5631 = vsub.s32 %v5628, %v5630
  %v5632 = vrot.slane %v5622, %v5631
  %v5634 = vunpack.c.l.s4 1966171168
  %v5635 = vunpack.c.0.s8 %v5634
  %v5636 = vlaneseq
  %v5637 = vshrl.u32 %v5636, 7
  %v5638 = vsub.s32 %v5635, %v5637
  %v5639 = vrot.slane %v5623, %v5638
  %v5641 = vunpack.c.l.s4 1966171168
  %v5642 = vunpack.c.0.s8 %v5641
  %v5643 = vlaneseq
  %v5644 = vshrl.u32 %v5643, 7
  %v5645 = vsub.s32 %v5642, %v5644
  %v5646 = vrot.slane %v5624, %v5645
  %v5648 = vunpack.c.l.s4 1966171168
  %v5649 = vunpack.c.0.s8 %v5648
  %v5650 = vlaneseq
  %v5651 = vshrl.u32 %v5650, 7
  %v5652 = vsub.s32 %v5649, %v5651
  %v5653 = vrot.slane %v5625, %v5652
  %v5654 = vcombine.low %v5632, %v5639
  %v5655 = vcombine.low %v5646, %v5653
  %v5657 = vunpack.c.l.s4 1966171168
  %v5658 = vunpack.c.0.s8 %v5657
  %v5659 = vlaneseq
  %v5660 = vshrl.u32 %v5659, 7
  %v5661 = vsub.s32 %v5658, %v5660
  %v5662 = vrot.slane %v5654, %v5661
  %v5664 = vunpack.c.l.s4 1966171168
  %v5665 = vunpack.c.0.s8 %v5664
  %v5666 = vlaneseq
  %v5667 = vshrl.u32 %v5666, 7
  %v5668 = vsub.s32 %v5665, %v5667
  %v5669 = vrot.slane %v5655, %v5668
  %v5670 = vcombine.low %v5662, %v5669
  %v5671 = vcombine.low %v5024, %v5025
  %v5672 = vcombine.low %v5026, %v5027
  %v5673 = vcombine.low %v5028, %v5029
  %v5674 = vcombine.low %v5030, %v5031
  %v5676 = vunpack.c.l.s4 1966171168
  %v5677 = vunpack.c.0.s8 %v5676
  %v5678 = vlaneseq
  %v5679 = vshrl.u32 %v5678, 7
  %v5680 = vsub.s32 %v5677, %v5679
  %v5681 = vrot.slane %v5671, %v5680
  %v5683 = vunpack.c.l.s4 1966171168
  %v5684 = vunpack.c.0.s8 %v5683
  %v5685 = vlaneseq
  %v5686 = vshrl.u32 %v5685, 7
  %v5687 = vsub.s32 %v5684, %v5686
  %v5688 = vrot.slane %v5672, %v5687
  %v5690 = vunpack.c.l.s4 1966171168
  %v5691 = vunpack.c.0.s8 %v5690
  %v5692 = vlaneseq
  %v5693 = vshrl.u32 %v5692, 7
  %v5694 = vsub.s32 %v5691, %v5693
  %v5695 = vrot.slane %v5673, %v5694
  %v5697 = vunpack.c.l.s4 1966171168
  %v5698 = vunpack.c.0.s8 %v5697
  %v5699 = vlaneseq
  %v5700 = vshrl.u32 %v5699, 7
  %v5701 = vsub.s32 %v5698, %v5700
  %v5702 = vrot.slane %v5674, %v5701
  %v5703 = vcombine.low %v5681, %v5688
  %v5704 = vcombine.low %v5695, %v5702
  %v5706 = vunpack.c.l.s4 1966171168
  %v5707 = vunpack.c.0.s8 %v5706
  %v5708 = vlaneseq
  %v5709 = vshrl.u32 %v5708, 7
  %v5710 = vsub.s32 %v5707, %v5709
  %v5711 = vrot.slane %v5703, %v5710
  %v5713 = vunpack.c.l.s4 1966171168
  %v5714 = vunpack.c.0.s8 %v5713
  %v5715 = vlaneseq
  %v5716 = vshrl.u32 %v5715, 7
  %v5717 = vsub.s32 %v5714, %v5716
  %v5718 = vrot.slane %v5704, %v5717
  %v5719 = vcombine.low %v5711, %v5718
  %v5720 = vcombine.low %v5032, %v5033
  %v5722 = vunpack.c.l.s4 1966171168
  %v5723 = vunpack.c.0.s8 %v5722
  %v5724 = vlaneseq
  %v5725 = vshrl.u32 %v5724, 7
  %v5726 = vsub.s32 %v5723, %v5725
  %v5727 = vrot.slane %v5720, %v5726
  %v5729 = vunpack.c.l.s4 1966171168
  %v5730 = vunpack.c.0.s8 %v5729
  %v5731 = vlaneseq
  %v5732 = vshrl.u32 %v5731, 7
  %v5733 = vsub.s32 %v5730, %v5732
  %v5734 = vrot.slane %v5727, %v5733
  %5735 = vrot.lane.b32.xlu0 %v5082, 36
  %v5736 = vpop.permute.xlu0 %5735
  %5737 = vrot.lane.b32.xlu0 %v5131, 36
  %v5738 = vpop.permute.xlu0 %5737
  %5739 = vrot.lane.b32.xlu0 %v5180, 36
  %v5740 = vpop.permute.xlu0 %5739
  %5741 = vrot.lane.b32.xlu0 %v5229, 36
  %v5742 = vpop.permute.xlu0 %5741
  %5743 = vrot.lane.b32.xlu0 %v5278, 36
  %v5744 = vpop.permute.xlu0 %5743
  %5745 = vrot.lane.b32.xlu0 %v5327, 36
  %v5746 = vpop.permute.xlu0 %5745
  %5747 = vrot.lane.b32.xlu0 %v5376, 36
  %v5748 = vpop.permute.xlu0 %5747
  %5749 = vrot.lane.b32.xlu0 %v5425, 36
  %v5750 = vpop.permute.xlu0 %5749
  %5751 = vrot.lane.b32.xlu0 %v5474, 36
  %v5752 = vpop.permute.xlu0 %5751
  %5753 = vrot.lane.b32.xlu0 %v5523, 36
  %v5754 = vpop.permute.xlu0 %5753
  %5755 = vrot.lane.b32.xlu0 %v5572, 36
  %v5756 = vpop.permute.xlu0 %5755
  %5757 = vrot.lane.b32.xlu0 %v5621, 36
  %v5758 = vpop.permute.xlu0 %5757
  %5759 = vrot.lane.b32.xlu0 %v5670, 36
  %v5760 = vpop.permute.xlu0 %5759
  %5761 = vrot.lane.b32.xlu0 %v5719, 36
  %v5762 = vpop.permute.xlu0 %5761
  %5763 = vrot.lane.b32.xlu0 %v5734, 36
  %v5764 = vpop.permute.xlu0 %5763
  %v5765 = vpack.i.b16 %v986, %v985
  %v5766 = vpack.i.b16 %v1004, %v1003
  %v5767 = vpack.i.b16 %v1024, %v1023
  %v5768 = vpack.i.b16 %v1042, %v1041
  %v5769 = vpack.i.b16 %v1062, %v1061
  %v5770 = vpack.i.b16 %v1080, %v1079
  %v5771 = vpack.i.b16 %v1100, %v1099
  %v5772 = vpack.i.b16 %v1118, %v1117
  %v5773 = vpack.i.b16 %v1138, %v1137
  %v5774 = vpack.i.b16 %v1156, %v1155
  %v5775 = vpack.i.b16 %v1176, %v1175
  %v5776 = vpack.i.b16 %v2395, %v1193
  %v5777 = vpack.i.b16 %v2397, %v2396
  %v5778 = vpack.i.b16 %v2399, %v2398
  %v5779 = vpack.i.b16 %v2401, %v2400
  %v5780 = vpack.i.b16 %v2403, %v2402
  %v5781 = vpack.i.b16 %v2405, %v2404
  %v5782 = vpack.i.b16 %v2407, %v2406
  %v5783 = vpack.i.b16 %v2409, %v2408
  %v5784 = vpack.i.b16 %v2411, %v2410
  %v5785 = vpack.i.b16 %v2413, %v2412
  %v5786 = vcombine.low %v5765, %v3240
  %v5787 = vcombine.low %v3241, %v3242
  %v5788 = vcombine.low %v3243, %v3244
  %v5789 = vcombine.low %v3245, %v3246
  %v5791 = vunpack.c.l.s4 1966171168
  %v5792 = vunpack.c.0.s8 %v5791
  %v5793 = vlaneseq
  %v5794 = vshrl.u32 %v5793, 7
  %v5795 = vsub.s32 %v5792, %v5794
  %v5796 = vrot.slane %v5786, %v5795
  %v5798 = vunpack.c.l.s4 1966171168
  %v5799 = vunpack.c.0.s8 %v5798
  %v5800 = vlaneseq
  %v5801 = vshrl.u32 %v5800, 7
  %v5802 = vsub.s32 %v5799, %v5801
  %v5803 = vrot.slane %v5787, %v5802
  %v5805 = vunpack.c.l.s4 1966171168
  %v5806 = vunpack.c.0.s8 %v5805
  %v5807 = vlaneseq
  %v5808 = vshrl.u32 %v5807, 7
  %v5809 = vsub.s32 %v5806, %v5808
  %v5810 = vrot.slane %v5788, %v5809
  %v5812 = vunpack.c.l.s4 1966171168
  %v5813 = vunpack.c.0.s8 %v5812
  %v5814 = vlaneseq
  %v5815 = vshrl.u32 %v5814, 7
  %v5816 = vsub.s32 %v5813, %v5815
  %v5817 = vrot.slane %v5789, %v5816
  %v5818 = vcombine.low %v5796, %v5803
  %v5819 = vcombine.low %v5810, %v5817
  %v5821 = vunpack.c.l.s4 1966171168
  %v5822 = vunpack.c.0.s8 %v5821
  %v5823 = vlaneseq
  %v5824 = vshrl.u32 %v5823, 7
  %v5825 = vsub.s32 %v5822, %v5824
  %v5826 = vrot.slane %v5818, %v5825
  %v5828 = vunpack.c.l.s4 1966171168
  %v5829 = vunpack.c.0.s8 %v5828
  %v5830 = vlaneseq
  %v5831 = vshrl.u32 %v5830, 7
  %v5832 = vsub.s32 %v5829, %v5831
  %v5833 = vrot.slane %v5819, %v5832
  %v5834 = vcombine.low %v5826, %v5833
  %v5835 = vcombine.low %v3247, %v5766
  %v5836 = vcombine.low %v3249, %v3250
  %v5837 = vcombine.low %v3251, %v3252
  %v5838 = vcombine.low %v3253, %v3254
  %v5840 = vunpack.c.l.s4 1966171168
  %v5841 = vunpack.c.0.s8 %v5840
  %v5842 = vlaneseq
  %v5843 = vshrl.u32 %v5842, 7
  %v5844 = vsub.s32 %v5841, %v5843
  %v5845 = vrot.slane %v5835, %v5844
  %v5847 = vunpack.c.l.s4 1966171168
  %v5848 = vunpack.c.0.s8 %v5847
  %v5849 = vlaneseq
  %v5850 = vshrl.u32 %v5849, 7
  %v5851 = vsub.s32 %v5848, %v5850
  %v5852 = vrot.slane %v5836, %v5851
  %v5854 = vunpack.c.l.s4 1966171168
  %v5855 = vunpack.c.0.s8 %v5854
  %v5856 = vlaneseq
  %v5857 = vshrl.u32 %v5856, 7
  %v5858 = vsub.s32 %v5855, %v5857
  %v5859 = vrot.slane %v5837, %v5858
  %v5861 = vunpack.c.l.s4 1966171168
  %v5862 = vunpack.c.0.s8 %v5861
  %v5863 = vlaneseq
  %v5864 = vshrl.u32 %v5863, 7
  %v5865 = vsub.s32 %v5862, %v5864
  %v5866 = vrot.slane %v5838, %v5865
  %v5867 = vcombine.low %v5845, %v5852
  %v5868 = vcombine.low %v5859, %v5866
  %v5870 = vunpack.c.l.s4 1966171168
  %v5871 = vunpack.c.0.s8 %v5870
  %v5872 = vlaneseq
  %v5873 = vshrl.u32 %v5872, 7
  %v5874 = vsub.s32 %v5871, %v5873
  %v5875 = vrot.slane %v5867, %v5874
  %v5877 = vunpack.c.l.s4 1966171168
  %v5878 = vunpack.c.0.s8 %v5877
  %v5879 = vlaneseq
  %v5880 = vshrl.u32 %v5879, 7
  %v5881 = vsub.s32 %v5878, %v5880
  %v5882 = vrot.slane %v5868, %v5881
  %v5883 = vcombine.low %v5875, %v5882
  %v5884 = vcombine.low %v3255, %v3256
  %v5885 = vcombine.low %v3257, %v5767
  %v5886 = vcombine.low %v3259, %v3260
  %v5887 = vcombine.low %v3261, %v3262
  %v5889 = vunpack.c.l.s4 1966171168
  %v5890 = vunpack.c.0.s8 %v5889
  %v5891 = vlaneseq
  %v5892 = vshrl.u32 %v5891, 7
  %v5893 = vsub.s32 %v5890, %v5892
  %v5894 = vrot.slane %v5884, %v5893
  %v5896 = vunpack.c.l.s4 1966171168
  %v5897 = vunpack.c.0.s8 %v5896
  %v5898 = vlaneseq
  %v5899 = vshrl.u32 %v5898, 7
  %v5900 = vsub.s32 %v5897, %v5899
  %v5901 = vrot.slane %v5885, %v5900
  %v5903 = vunpack.c.l.s4 1966171168
  %v5904 = vunpack.c.0.s8 %v5903
  %v5905 = vlaneseq
  %v5906 = vshrl.u32 %v5905, 7
  %v5907 = vsub.s32 %v5904, %v5906
  %v5908 = vrot.slane %v5886, %v5907
  %v5910 = vunpack.c.l.s4 1966171168
  %v5911 = vunpack.c.0.s8 %v5910
  %v5912 = vlaneseq
  %v5913 = vshrl.u32 %v5912, 7
  %v5914 = vsub.s32 %v5911, %v5913
  %v5915 = vrot.slane %v5887, %v5914
  %v5916 = vcombine.low %v5894, %v5901
  %v5917 = vcombine.low %v5908, %v5915
  %v5919 = vunpack.c.l.s4 1966171168
  %v5920 = vunpack.c.0.s8 %v5919
  %v5921 = vlaneseq
  %v5922 = vshrl.u32 %v5921, 7
  %v5923 = vsub.s32 %v5920, %v5922
  %v5924 = vrot.slane %v5916, %v5923
  %v5926 = vunpack.c.l.s4 1966171168
  %v5927 = vunpack.c.0.s8 %v5926
  %v5928 = vlaneseq
  %v5929 = vshrl.u32 %v5928, 7
  %v5930 = vsub.s32 %v5927, %v5929
  %v5931 = vrot.slane %v5917, %v5930
  %v5932 = vcombine.low %v5924, %v5931
  %v5933 = vcombine.low %v3263, %v3264
  %v5934 = vcombine.low %v3265, %v3266
  %v5935 = vcombine.low %v5768, %v3268
  %v5936 = vcombine.low %v3269, %v3270
  %v5938 = vunpack.c.l.s4 1966171168
  %v5939 = vunpack.c.0.s8 %v5938
  %v5940 = vlaneseq
  %v5941 = vshrl.u32 %v5940, 7
  %v5942 = vsub.s32 %v5939, %v5941
  %v5943 = vrot.slane %v5933, %v5942
  %v5945 = vunpack.c.l.s4 1966171168
  %v5946 = vunpack.c.0.s8 %v5945
  %v5947 = vlaneseq
  %v5948 = vshrl.u32 %v5947, 7
  %v5949 = vsub.s32 %v5946, %v5948
  %v5950 = vrot.slane %v5934, %v5949
  %v5952 = vunpack.c.l.s4 1966171168
  %v5953 = vunpack.c.0.s8 %v5952
  %v5954 = vlaneseq
  %v5955 = vshrl.u32 %v5954, 7
  %v5956 = vsub.s32 %v5953, %v5955
  %v5957 = vrot.slane %v5935, %v5956
  %v5959 = vunpack.c.l.s4 1966171168
  %v5960 = vunpack.c.0.s8 %v5959
  %v5961 = vlaneseq
  %v5962 = vshrl.u32 %v5961, 7
  %v5963 = vsub.s32 %v5960, %v5962
  %v5964 = vrot.slane %v5936, %v5963
  %v5965 = vcombine.low %v5943, %v5950
  %v5966 = vcombine.low %v5957, %v5964
  %v5968 = vunpack.c.l.s4 1966171168
  %v5969 = vunpack.c.0.s8 %v5968
  %v5970 = vlaneseq
  %v5971 = vshrl.u32 %v5970, 7
  %v5972 = vsub.s32 %v5969, %v5971
  %v5973 = vrot.slane %v5965, %v5972
  %v5975 = vunpack.c.l.s4 1966171168
  %v5976 = vunpack.c.0.s8 %v5975
  %v5977 = vlaneseq
  %v5978 = vshrl.u32 %v5977, 7
  %v5979 = vsub.s32 %v5976, %v5978
  %v5980 = vrot.slane %v5966, %v5979
  %v5981 = vcombine.low %v5973, %v5980
  %v5982 = vcombine.low %v3271, %v3272
  %v5983 = vcombine.low %v3273, %v3274
  %v5984 = vcombine.low %v3275, %v3276
  %v5985 = vcombine.low %v5769, %v3278
  %v5987 = vunpack.c.l.s4 1966171168
  %v5988 = vunpack.c.0.s8 %v5987
  %v5989 = vlaneseq
  %v5990 = vshrl.u32 %v5989, 7
  %v5991 = vsub.s32 %v5988, %v5990
  %v5992 = vrot.slane %v5982, %v5991
  %v5994 = vunpack.c.l.s4 1966171168
  %v5995 = vunpack.c.0.s8 %v5994
  %v5996 = vlaneseq
  %v5997 = vshrl.u32 %v5996, 7
  %v5998 = vsub.s32 %v5995, %v5997
  %v5999 = vrot.slane %v5983, %v5998
  %v6001 = vunpack.c.l.s4 1966171168
  %v6002 = vunpack.c.0.s8 %v6001
  %v6003 = vlaneseq
  %v6004 = vshrl.u32 %v6003, 7
  %v6005 = vsub.s32 %v6002, %v6004
  %v6006 = vrot.slane %v5984, %v6005
  %v6008 = vunpack.c.l.s4 1966171168
  %v6009 = vunpack.c.0.s8 %v6008
  %v6010 = vlaneseq
  %v6011 = vshrl.u32 %v6010, 7
  %v6012 = vsub.s32 %v6009, %v6011
  %v6013 = vrot.slane %v5985, %v6012
  %v6014 = vcombine.low %v5992, %v5999
  %v6015 = vcombine.low %v6006, %v6013
  %v6017 = vunpack.c.l.s4 1966171168
  %v6018 = vunpack.c.0.s8 %v6017
  %v6019 = vlaneseq
  %v6020 = vshrl.u32 %v6019, 7
  %v6021 = vsub.s32 %v6018, %v6020
  %v6022 = vrot.slane %v6014, %v6021
  %v6024 = vunpack.c.l.s4 1966171168
  %v6025 = vunpack.c.0.s8 %v6024
  %v6026 = vlaneseq
  %v6027 = vshrl.u32 %v6026, 7
  %v6028 = vsub.s32 %v6025, %v6027
  %v6029 = vrot.slane %v6015, %v6028
  %v6030 = vcombine.low %v6022, %v6029
  %v6031 = vcombine.low %v3279, %v3280
  %v6032 = vcombine.low %v3281, %v3282
  %v6033 = vcombine.low %v3283, %v3284
  %v6034 = vcombine.low %v3285, %v5770
  %v6036 = vunpack.c.l.s4 1966171168
  %v6037 = vunpack.c.0.s8 %v6036
  %v6038 = vlaneseq
  %v6039 = vshrl.u32 %v6038, 7
  %v6040 = vsub.s32 %v6037, %v6039
  %v6041 = vrot.slane %v6031, %v6040
  %v6043 = vunpack.c.l.s4 1966171168
  %v6044 = vunpack.c.0.s8 %v6043
  %v6045 = vlaneseq
  %v6046 = vshrl.u32 %v6045, 7
  %v6047 = vsub.s32 %v6044, %v6046
  %v6048 = vrot.slane %v6032, %v6047
  %v6050 = vunpack.c.l.s4 1966171168
  %v6051 = vunpack.c.0.s8 %v6050
  %v6052 = vlaneseq
  %v6053 = vshrl.u32 %v6052, 7
  %v6054 = vsub.s32 %v6051, %v6053
  %v6055 = vrot.slane %v6033, %v6054
  %v6057 = vunpack.c.l.s4 1966171168
  %v6058 = vunpack.c.0.s8 %v6057
  %v6059 = vlaneseq
  %v6060 = vshrl.u32 %v6059, 7
  %v6061 = vsub.s32 %v6058, %v6060
  %v6062 = vrot.slane %v6034, %v6061
  %v6063 = vcombine.low %v6041, %v6048
  %v6064 = vcombine.low %v6055, %v6062
  %v6066 = vunpack.c.l.s4 1966171168
  %v6067 = vunpack.c.0.s8 %v6066
  %v6068 = vlaneseq
  %v6069 = vshrl.u32 %v6068, 7
  %v6070 = vsub.s32 %v6067, %v6069
  %v6071 = vrot.slane %v6063, %v6070
  %v6073 = vunpack.c.l.s4 1966171168
  %v6074 = vunpack.c.0.s8 %v6073
  %v6075 = vlaneseq
  %v6076 = vshrl.u32 %v6075, 7
  %v6077 = vsub.s32 %v6074, %v6076
  %v6078 = vrot.slane %v6064, %v6077
  %v6079 = vcombine.low %v6071, %v6078
  %v6080 = vcombine.low %v3287, %v3288
  %v6081 = vcombine.low %v3289, %v3290
  %v6082 = vcombine.low %v3291, %v3292
  %v6083 = vcombine.low %v3293, %v3294
  %v6085 = vunpack.c.l.s4 1966171168
  %v6086 = vunpack.c.0.s8 %v6085
  %v6087 = vlaneseq
  %v6088 = vshrl.u32 %v6087, 7
  %v6089 = vsub.s32 %v6086, %v6088
  %v6090 = vrot.slane %v6080, %v6089
  %v6092 = vunpack.c.l.s4 1966171168
  %v6093 = vunpack.c.0.s8 %v6092
  %v6094 = vlaneseq
  %v6095 = vshrl.u32 %v6094, 7
  %v6096 = vsub.s32 %v6093, %v6095
  %v6097 = vrot.slane %v6081, %v6096
  %v6099 = vunpack.c.l.s4 1966171168
  %v6100 = vunpack.c.0.s8 %v6099
  %v6101 = vlaneseq
  %v6102 = vshrl.u32 %v6101, 7
  %v6103 = vsub.s32 %v6100, %v6102
  %v6104 = vrot.slane %v6082, %v6103
  %v6106 = vunpack.c.l.s4 1966171168
  %v6107 = vunpack.c.0.s8 %v6106
  %v6108 = vlaneseq
  %v6109 = vshrl.u32 %v6108, 7
  %v6110 = vsub.s32 %v6107, %v6109
  %v6111 = vrot.slane %v6083, %v6110
  %v6112 = vcombine.low %v6090, %v6097
  %v6113 = vcombine.low %v6104, %v6111
  %v6115 = vunpack.c.l.s4 1966171168
  %v6116 = vunpack.c.0.s8 %v6115
  %v6117 = vlaneseq
  %v6118 = vshrl.u32 %v6117, 7
  %v6119 = vsub.s32 %v6116, %v6118
  %v6120 = vrot.slane %v6112, %v6119
  %v6122 = vunpack.c.l.s4 1966171168
  %v6123 = vunpack.c.0.s8 %v6122
  %v6124 = vlaneseq
  %v6125 = vshrl.u32 %v6124, 7
  %v6126 = vsub.s32 %v6123, %v6125
  %v6127 = vrot.slane %v6113, %v6126
  %v6128 = vcombine.low %v6120, %v6127
  %v6129 = vcombine.low %v3295, %v5771
  %v6130 = vcombine.low %v3297, %v3298
  %v6131 = vcombine.low %v3299, %v3300
  %v6132 = vcombine.low %v3301, %v3302
  %v6134 = vunpack.c.l.s4 1966171168
  %v6135 = vunpack.c.0.s8 %v6134
  %v6136 = vlaneseq
  %v6137 = vshrl.u32 %v6136, 7
  %v6138 = vsub.s32 %v6135, %v6137
  %v6139 = vrot.slane %v6129, %v6138
  %v6141 = vunpack.c.l.s4 1966171168
  %v6142 = vunpack.c.0.s8 %v6141
  %v6143 = vlaneseq
  %v6144 = vshrl.u32 %v6143, 7
  %v6145 = vsub.s32 %v6142, %v6144
  %v6146 = vrot.slane %v6130, %v6145
  %v6148 = vunpack.c.l.s4 1966171168
  %v6149 = vunpack.c.0.s8 %v6148
  %v6150 = vlaneseq
  %v6151 = vshrl.u32 %v6150, 7
  %v6152 = vsub.s32 %v6149, %v6151
  %v6153 = vrot.slane %v6131, %v6152
  %v6155 = vunpack.c.l.s4 1966171168
  %v6156 = vunpack.c.0.s8 %v6155
  %v6157 = vlaneseq
  %v6158 = vshrl.u32 %v6157, 7
  %v6159 = vsub.s32 %v6156, %v6158
  %v6160 = vrot.slane %v6132, %v6159
  %v6161 = vcombine.low %v6139, %v6146
  %v6162 = vcombine.low %v6153, %v6160
  %v6164 = vunpack.c.l.s4 1966171168
  %v6165 = vunpack.c.0.s8 %v6164
  %v6166 = vlaneseq
  %v6167 = vshrl.u32 %v6166, 7
  %v6168 = vsub.s32 %v6165, %v6167
  %v6169 = vrot.slane %v6161, %v6168
  %v6171 = vunpack.c.l.s4 1966171168
  %v6172 = vunpack.c.0.s8 %v6171
  %v6173 = vlaneseq
  %v6174 = vshrl.u32 %v6173, 7
  %v6175 = vsub.s32 %v6172, %v6174
  %v6176 = vrot.slane %v6162, %v6175
  %v6177 = vcombine.low %v6169, %v6176
  %v6178 = vcombine.low %v3303, %v3304
  %v6179 = vcombine.low %v5772, %v3306
  %v6180 = vcombine.low %v3307, %v3308
  %v6181 = vcombine.low %v3309, %v3310
  %v6183 = vunpack.c.l.s4 1966171168
  %v6184 = vunpack.c.0.s8 %v6183
  %v6185 = vlaneseq
  %v6186 = vshrl.u32 %v6185, 7
  %v6187 = vsub.s32 %v6184, %v6186
  %v6188 = vrot.slane %v6178, %v6187
  %v6190 = vunpack.c.l.s4 1966171168
  %v6191 = vunpack.c.0.s8 %v6190
  %v6192 = vlaneseq
  %v6193 = vshrl.u32 %v6192, 7
  %v6194 = vsub.s32 %v6191, %v6193
  %v6195 = vrot.slane %v6179, %v6194
  %v6197 = vunpack.c.l.s4 1966171168
  %v6198 = vunpack.c.0.s8 %v6197
  %v6199 = vlaneseq
  %v6200 = vshrl.u32 %v6199, 7
  %v6201 = vsub.s32 %v6198, %v6200
  %v6202 = vrot.slane %v6180, %v6201
  %v6204 = vunpack.c.l.s4 1966171168
  %v6205 = vunpack.c.0.s8 %v6204
  %v6206 = vlaneseq
  %v6207 = vshrl.u32 %v6206, 7
  %v6208 = vsub.s32 %v6205, %v6207
  %v6209 = vrot.slane %v6181, %v6208
  %v6210 = vcombine.low %v6188, %v6195
  %v6211 = vcombine.low %v6202, %v6209
  %v6213 = vunpack.c.l.s4 1966171168
  %v6214 = vunpack.c.0.s8 %v6213
  %v6215 = vlaneseq
  %v6216 = vshrl.u32 %v6215, 7
  %v6217 = vsub.s32 %v6214, %v6216
  %v6218 = vrot.slane %v6210, %v6217
  %v6220 = vunpack.c.l.s4 1966171168
  %v6221 = vunpack.c.0.s8 %v6220
  %v6222 = vlaneseq
  %v6223 = vshrl.u32 %v6222, 7
  %v6224 = vsub.s32 %v6221, %v6223
  %v6225 = vrot.slane %v6211, %v6224
  %v6226 = vcombine.low %v6218, %v6225
  %v6227 = vcombine.low %v3311, %v3312
  %v6228 = vcombine.low %v3313, %v3314
  %v6229 = vcombine.low %v5773, %v3316
  %v6230 = vcombine.low %v3317, %v3318
  %v6232 = vunpack.c.l.s4 1966171168
  %v6233 = vunpack.c.0.s8 %v6232
  %v6234 = vlaneseq
  %v6235 = vshrl.u32 %v6234, 7
  %v6236 = vsub.s32 %v6233, %v6235
  %v6237 = vrot.slane %v6227, %v6236
  %v6239 = vunpack.c.l.s4 1966171168
  %v6240 = vunpack.c.0.s8 %v6239
  %v6241 = vlaneseq
  %v6242 = vshrl.u32 %v6241, 7
  %v6243 = vsub.s32 %v6240, %v6242
  %v6244 = vrot.slane %v6228, %v6243
  %v6246 = vunpack.c.l.s4 1966171168
  %v6247 = vunpack.c.0.s8 %v6246
  %v6248 = vlaneseq
  %v6249 = vshrl.u32 %v6248, 7
  %v6250 = vsub.s32 %v6247, %v6249
  %v6251 = vrot.slane %v6229, %v6250
  %v6253 = vunpack.c.l.s4 1966171168
  %v6254 = vunpack.c.0.s8 %v6253
  %v6255 = vlaneseq
  %v6256 = vshrl.u32 %v6255, 7
  %v6257 = vsub.s32 %v6254, %v6256
  %v6258 = vrot.slane %v6230, %v6257
  %v6259 = vcombine.low %v6237, %v6244
  %v6260 = vcombine.low %v6251, %v6258
  %v6262 = vunpack.c.l.s4 1966171168
  %v6263 = vunpack.c.0.s8 %v6262
  %v6264 = vlaneseq
  %v6265 = vshrl.u32 %v6264, 7
  %v6266 = vsub.s32 %v6263, %v6265
  %v6267 = vrot.slane %v6259, %v6266
  %v6269 = vunpack.c.l.s4 1966171168
  %v6270 = vunpack.c.0.s8 %v6269
  %v6271 = vlaneseq
  %v6272 = vshrl.u32 %v6271, 7
  %v6273 = vsub.s32 %v6270, %v6272
  %v6274 = vrot.slane %v6260, %v6273
  %v6275 = vcombine.low %v6267, %v6274
  %v6276 = vcombine.low %v3319, %v3320
  %v6277 = vcombine.low %v3321, %v3322
  %v6278 = vcombine.low %v3323, %v5774
  %v6279 = vcombine.low %v3325, %v3326
  %v6281 = vunpack.c.l.s4 1966171168
  %v6282 = vunpack.c.0.s8 %v6281
  %v6283 = vlaneseq
  %v6284 = vshrl.u32 %v6283, 7
  %v6285 = vsub.s32 %v6282, %v6284
  %v6286 = vrot.slane %v6276, %v6285
  %v6288 = vunpack.c.l.s4 1966171168
  %v6289 = vunpack.c.0.s8 %v6288
  %v6290 = vlaneseq
  %v6291 = vshrl.u32 %v6290, 7
  %v6292 = vsub.s32 %v6289, %v6291
  %v6293 = vrot.slane %v6277, %v6292
  %v6295 = vunpack.c.l.s4 1966171168
  %v6296 = vunpack.c.0.s8 %v6295
  %v6297 = vlaneseq
  %v6298 = vshrl.u32 %v6297, 7
  %v6299 = vsub.s32 %v6296, %v6298
  %v6300 = vrot.slane %v6278, %v6299
  %v6302 = vunpack.c.l.s4 1966171168
  %v6303 = vunpack.c.0.s8 %v6302
  %v6304 = vlaneseq
  %v6305 = vshrl.u32 %v6304, 7
  %v6306 = vsub.s32 %v6303, %v6305
  %v6307 = vrot.slane %v6279, %v6306
  %v6308 = vcombine.low %v6286, %v6293
  %v6309 = vcombine.low %v6300, %v6307
  %v6311 = vunpack.c.l.s4 1966171168
  %v6312 = vunpack.c.0.s8 %v6311
  %v6313 = vlaneseq
  %v6314 = vshrl.u32 %v6313, 7
  %v6315 = vsub.s32 %v6312, %v6314
  %v6316 = vrot.slane %v6308, %v6315
  %v6318 = vunpack.c.l.s4 1966171168
  %v6319 = vunpack.c.0.s8 %v6318
  %v6320 = vlaneseq
  %v6321 = vshrl.u32 %v6320, 7
  %v6322 = vsub.s32 %v6319, %v6321
  %v6323 = vrot.slane %v6309, %v6322
  %v6324 = vcombine.low %v6316, %v6323
  %v6325 = vcombine.low %v3327, %v3328
  %v6326 = vcombine.low %v3329, %v3330
  %v6327 = vcombine.low %v3331, %v3332
  %v6328 = vcombine.low %v3333, %v5775
  %v6330 = vunpack.c.l.s4 1966171168
  %v6331 = vunpack.c.0.s8 %v6330
  %v6332 = vlaneseq
  %v6333 = vshrl.u32 %v6332, 7
  %v6334 = vsub.s32 %v6331, %v6333
  %v6335 = vrot.slane %v6325, %v6334
  %v6337 = vunpack.c.l.s4 1966171168
  %v6338 = vunpack.c.0.s8 %v6337
  %v6339 = vlaneseq
  %v6340 = vshrl.u32 %v6339, 7
  %v6341 = vsub.s32 %v6338, %v6340
  %v6342 = vrot.slane %v6326, %v6341
  %v6344 = vunpack.c.l.s4 1966171168
  %v6345 = vunpack.c.0.s8 %v6344
  %v6346 = vlaneseq
  %v6347 = vshrl.u32 %v6346, 7
  %v6348 = vsub.s32 %v6345, %v6347
  %v6349 = vrot.slane %v6327, %v6348
  %v6351 = vunpack.c.l.s4 1966171168
  %v6352 = vunpack.c.0.s8 %v6351
  %v6353 = vlaneseq
  %v6354 = vshrl.u32 %v6353, 7
  %v6355 = vsub.s32 %v6352, %v6354
  %v6356 = vrot.slane %v6328, %v6355
  %v6357 = vcombine.low %v6335, %v6342
  %v6358 = vcombine.low %v6349, %v6356
  %v6360 = vunpack.c.l.s4 1966171168
  %v6361 = vunpack.c.0.s8 %v6360
  %v6362 = vlaneseq
  %v6363 = vshrl.u32 %v6362, 7
  %v6364 = vsub.s32 %v6361, %v6363
  %v6365 = vrot.slane %v6357, %v6364
  %v6367 = vunpack.c.l.s4 1966171168
  %v6368 = vunpack.c.0.s8 %v6367
  %v6369 = vlaneseq
  %v6370 = vshrl.u32 %v6369, 7
  %v6371 = vsub.s32 %v6368, %v6370
  %v6372 = vrot.slane %v6358, %v6371
  %v6373 = vcombine.low %v6365, %v6372
  %v6374 = vcombine.low %v3335, %v3336
  %v6375 = vcombine.low %v3337, %v3338
  %v6376 = vcombine.low %v3339, %v3340
  %v6377 = vcombine.low %v3341, %v3342
  %v6379 = vunpack.c.l.s4 1966171168
  %v6380 = vunpack.c.0.s8 %v6379
  %v6381 = vlaneseq
  %v6382 = vshrl.u32 %v6381, 7
  %v6383 = vsub.s32 %v6380, %v6382
  %v6384 = vrot.slane %v6374, %v6383
  %v6386 = vunpack.c.l.s4 1966171168
  %v6387 = vunpack.c.0.s8 %v6386
  %v6388 = vlaneseq
  %v6389 = vshrl.u32 %v6388, 7
  %v6390 = vsub.s32 %v6387, %v6389
  %v6391 = vrot.slane %v6375, %v6390
  %v6393 = vunpack.c.l.s4 1966171168
  %v6394 = vunpack.c.0.s8 %v6393
  %v6395 = vlaneseq
  %v6396 = vshrl.u32 %v6395, 7
  %v6397 = vsub.s32 %v6394, %v6396
  %v6398 = vrot.slane %v6376, %v6397
  %v6400 = vunpack.c.l.s4 1966171168
  %v6401 = vunpack.c.0.s8 %v6400
  %v6402 = vlaneseq
  %v6403 = vshrl.u32 %v6402, 7
  %v6404 = vsub.s32 %v6401, %v6403
  %v6405 = vrot.slane %v6377, %v6404
  %v6406 = vcombine.low %v6384, %v6391
  %v6407 = vcombine.low %v6398, %v6405
  %v6409 = vunpack.c.l.s4 1966171168
  %v6410 = vunpack.c.0.s8 %v6409
  %v6411 = vlaneseq
  %v6412 = vshrl.u32 %v6411, 7
  %v6413 = vsub.s32 %v6410, %v6412
  %v6414 = vrot.slane %v6406, %v6413
  %v6416 = vunpack.c.l.s4 1966171168
  %v6417 = vunpack.c.0.s8 %v6416
  %v6418 = vlaneseq
  %v6419 = vshrl.u32 %v6418, 7
  %v6420 = vsub.s32 %v6417, %v6419
  %v6421 = vrot.slane %v6407, %v6420
  %v6422 = vcombine.low %v6414, %v6421
  %v6423 = vcombine.low %v5776, %v5777
  %v6424 = vcombine.low %v5778, %v5779
  %v6425 = vcombine.low %v5780, %v5781
  %v6426 = vcombine.low %v5782, %v5783
  %v6428 = vunpack.c.l.s4 1966171168
  %v6429 = vunpack.c.0.s8 %v6428
  %v6430 = vlaneseq
  %v6431 = vshrl.u32 %v6430, 7
  %v6432 = vsub.s32 %v6429, %v6431
  %v6433 = vrot.slane %v6423, %v6432
  %v6435 = vunpack.c.l.s4 1966171168
  %v6436 = vunpack.c.0.s8 %v6435
  %v6437 = vlaneseq
  %v6438 = vshrl.u32 %v6437, 7
  %v6439 = vsub.s32 %v6436, %v6438
  %v6440 = vrot.slane %v6424, %v6439
  %v6442 = vunpack.c.l.s4 1966171168
  %v6443 = vunpack.c.0.s8 %v6442
  %v6444 = vlaneseq
  %v6445 = vshrl.u32 %v6444, 7
  %v6446 = vsub.s32 %v6443, %v6445
  %v6447 = vrot.slane %v6425, %v6446
  %v6449 = vunpack.c.l.s4 1966171168
  %v6450 = vunpack.c.0.s8 %v6449
  %v6451 = vlaneseq
  %v6452 = vshrl.u32 %v6451, 7
  %v6453 = vsub.s32 %v6450, %v6452
  %v6454 = vrot.slane %v6426, %v6453
  %v6455 = vcombine.low %v6433, %v6440
  %v6456 = vcombine.low %v6447, %v6454
  %v6458 = vunpack.c.l.s4 1966171168
  %v6459 = vunpack.c.0.s8 %v6458
  %v6460 = vlaneseq
  %v6461 = vshrl.u32 %v6460, 7
  %v6462 = vsub.s32 %v6459, %v6461
  %v6463 = vrot.slane %v6455, %v6462
  %v6465 = vunpack.c.l.s4 1966171168
  %v6466 = vunpack.c.0.s8 %v6465
  %v6467 = vlaneseq
  %v6468 = vshrl.u32 %v6467, 7
  %v6469 = vsub.s32 %v6466, %v6468
  %v6470 = vrot.slane %v6456, %v6469
  %v6471 = vcombine.low %v6463, %v6470
  %v6472 = vcombine.low %v5784, %v5785
  %v6474 = vunpack.c.l.s4 1966171168
  %v6475 = vunpack.c.0.s8 %v6474
  %v6476 = vlaneseq
  %v6477 = vshrl.u32 %v6476, 7
  %v6478 = vsub.s32 %v6475, %v6477
  %v6479 = vrot.slane %v6472, %v6478
  %v6481 = vunpack.c.l.s4 1966171168
  %v6482 = vunpack.c.0.s8 %v6481
  %v6483 = vlaneseq
  %v6484 = vshrl.u32 %v6483, 7
  %v6485 = vsub.s32 %v6482, %v6484
  %v6486 = vrot.slane %v6479, %v6485
  %6487 = vrot.lane.b32.xlu0 %v5834, 48
  %v6488 = vpop.permute.xlu0 %6487
  %6489 = vrot.lane.b32.xlu0 %v5883, 48
  %v6490 = vpop.permute.xlu0 %6489
  %6491 = vrot.lane.b32.xlu0 %v5932, 48
  %v6492 = vpop.permute.xlu0 %6491
  %6493 = vrot.lane.b32.xlu0 %v5981, 48
  %v6494 = vpop.permute.xlu0 %6493
  %6495 = vrot.lane.b32.xlu0 %v6030, 48
  %v6496 = vpop.permute.xlu0 %6495
  %6497 = vrot.lane.b32.xlu0 %v6079, 48
  %v6498 = vpop.permute.xlu0 %6497
  %6499 = vrot.lane.b32.xlu0 %v6128, 48
  %v6500 = vpop.permute.xlu0 %6499
  %6501 = vrot.lane.b32.xlu0 %v6177, 48
  %v6502 = vpop.permute.xlu0 %6501
  %6503 = vrot.lane.b32.xlu0 %v6226, 48
  %v6504 = vpop.permute.xlu0 %6503
  %6505 = vrot.lane.b32.xlu0 %v6275, 48
  %v6506 = vpop.permute.xlu0 %6505
  %6507 = vrot.lane.b32.xlu0 %v6324, 48
  %v6508 = vpop.permute.xlu0 %6507
  %6509 = vrot.lane.b32.xlu0 %v6373, 48
  %v6510 = vpop.permute.xlu0 %6509
  %6511 = vrot.lane.b32.xlu0 %v6422, 48
  %v6512 = vpop.permute.xlu0 %6511
  %6513 = vrot.lane.b32.xlu0 %v6471, 48
  %v6514 = vpop.permute.xlu0 %6513
  %6515 = vrot.lane.b32.xlu0 %v6486, 48
  %v6516 = vpop.permute.xlu0 %6515
  %v6517 = vpack.i.b16 %v1005, %v1195
  %v6518 = vpack.i.b16 %v1196, %v1022
  %v6519 = vpack.i.b16 %v1043, %v1197
  %v6520 = vpack.i.b16 %v1198, %v1060
  %v6521 = vpack.i.b16 %v1081, %v1199
  %v6522 = vpack.i.b16 %v1200, %v1098
  %v6523 = vpack.i.b16 %v1119, %v1201
  %v6524 = vpack.i.b16 %v1202, %v1136
  %v6525 = vpack.i.b16 %v1157, %v1203
  %v6526 = vpack.i.b16 %v1204, %v1174
  %v6527 = vpack.i.b16 %v2396, %v1205
  %v6528 = vpack.i.b16 %v2398, %v2397
  %v6529 = vpack.i.b16 %v2400, %v2399
  %v6530 = vpack.i.b16 %v2402, %v2401
  %v6531 = vpack.i.b16 %v2404, %v2403
  %v6532 = vpack.i.b16 %v2406, %v2405
  %v6533 = vpack.i.b16 %v2408, %v2407
  %v6534 = vpack.i.b16 %v2410, %v2409
  %v6535 = vpack.i.b16 %v2412, %v2411
  %v6536 = vpack.i.b16 %v2414, %v2413
  %v6537 = vcombine.low %v2595, %v2602
  %v6538 = vcombine.low %v2609, %v2637
  %v6540 = vunpack.c.l.s4 1966171168
  %v6541 = vunpack.c.0.s8 %v6540
  %v6542 = vlaneseq
  %v6543 = vshrl.u32 %v6542, 7
  %v6544 = vsub.s32 %v6541, %v6543
  %v6545 = vrot.slane %v6537, %v6544
  %v6547 = vunpack.c.l.s4 1966171168
  %v6548 = vunpack.c.0.s8 %v6547
  %v6549 = vlaneseq
  %v6550 = vshrl.u32 %v6549, 7
  %v6551 = vsub.s32 %v6548, %v6550
  %v6552 = vrot.slane %v6538, %v6551
  %v6553 = vcombine.low %v6545, %v6552
  %v6554 = vcombine.low %v2433, %v6517
  %v6556 = vunpack.c.l.s4 1966171168
  %v6557 = vunpack.c.0.s8 %v6556
  %v6558 = vlaneseq
  %v6559 = vshrl.u32 %v6558, 7
  %v6560 = vsub.s32 %v6557, %v6559
  %v6561 = vrot.slane %v6554, %v6560
  %v6562 = vcombine.low %v6561, %v2651
  %v6563 = vcombine.low %v2658, %v2686
  %v6565 = vunpack.c.l.s4 1966171168
  %v6566 = vunpack.c.0.s8 %v6565
  %v6567 = vlaneseq
  %v6568 = vshrl.u32 %v6567, 7
  %v6569 = vsub.s32 %v6566, %v6568
  %v6570 = vrot.slane %v6562, %v6569
  %v6572 = vunpack.c.l.s4 1966171168
  %v6573 = vunpack.c.0.s8 %v6572
  %v6574 = vlaneseq
  %v6575 = vshrl.u32 %v6574, 7
  %v6576 = vsub.s32 %v6573, %v6575
  %v6577 = vrot.slane %v6563, %v6576
  %v6578 = vcombine.low %v6570, %v6577
  %v6579 = vcombine.low %v6518, %v2444
  %v6581 = vunpack.c.l.s4 1966171168
  %v6582 = vunpack.c.0.s8 %v6581
  %v6583 = vlaneseq
  %v6584 = vshrl.u32 %v6583, 7
  %v6585 = vsub.s32 %v6582, %v6584
  %v6586 = vrot.slane %v6579, %v6585
  %v6587 = vcombine.low %v2693, %v6586
  %v6588 = vcombine.low %v2707, %v2735
  %v6590 = vunpack.c.l.s4 1966171168
  %v6591 = vunpack.c.0.s8 %v6590
  %v6592 = vlaneseq
  %v6593 = vshrl.u32 %v6592, 7
  %v6594 = vsub.s32 %v6591, %v6593
  %v6595 = vrot.slane %v6587, %v6594
  %v6597 = vunpack.c.l.s4 1966171168
  %v6598 = vunpack.c.0.s8 %v6597
  %v6599 = vlaneseq
  %v6600 = vshrl.u32 %v6599, 7
  %v6601 = vsub.s32 %v6598, %v6600
  %v6602 = vrot.slane %v6588, %v6601
  %v6603 = vcombine.low %v6595, %v6602
  %v6604 = vcombine.low %v6519, %v2454
  %v6606 = vunpack.c.l.s4 1966171168
  %v6607 = vunpack.c.0.s8 %v6606
  %v6608 = vlaneseq
  %v6609 = vshrl.u32 %v6608, 7
  %v6610 = vsub.s32 %v6607, %v6609
  %v6611 = vrot.slane %v6604, %v6610
  %v6612 = vcombine.low %v2742, %v2749
  %v6613 = vcombine.low %v6611, %v2784
  %v6615 = vunpack.c.l.s4 1966171168
  %v6616 = vunpack.c.0.s8 %v6615
  %v6617 = vlaneseq
  %v6618 = vshrl.u32 %v6617, 7
  %v6619 = vsub.s32 %v6616, %v6618
  %v6620 = vrot.slane %v6612, %v6619
  %v6622 = vunpack.c.l.s4 1966171168
  %v6623 = vunpack.c.0.s8 %v6622
  %v6624 = vlaneseq
  %v6625 = vshrl.u32 %v6624, 7
  %v6626 = vsub.s32 %v6623, %v6625
  %v6627 = vrot.slane %v6613, %v6626
  %v6628 = vcombine.low %v6620, %v6627
  %v6629 = vcombine.low %v2461, %v6520
  %v6631 = vunpack.c.l.s4 1966171168
  %v6632 = vunpack.c.0.s8 %v6631
  %v6633 = vlaneseq
  %v6634 = vshrl.u32 %v6633, 7
  %v6635 = vsub.s32 %v6632, %v6634
  %v6636 = vrot.slane %v6629, %v6635
  %v6637 = vcombine.low %v2791, %v2798
  %v6638 = vcombine.low %v6636, %v2833
  %v6640 = vunpack.c.l.s4 1966171168
  %v6641 = vunpack.c.0.s8 %v6640
  %v6642 = vlaneseq
  %v6643 = vshrl.u32 %v6642, 7
  %v6644 = vsub.s32 %v6641, %v6643
  %v6645 = vrot.slane %v6637, %v6644
  %v6647 = vunpack.c.l.s4 1966171168
  %v6648 = vunpack.c.0.s8 %v6647
  %v6649 = vlaneseq
  %v6650 = vshrl.u32 %v6649, 7
  %v6651 = vsub.s32 %v6648, %v6650
  %v6652 = vrot.slane %v6638, %v6651
  %v6653 = vcombine.low %v6645, %v6652
  %v6654 = vcombine.low %v2471, %v6521
  %v6656 = vunpack.c.l.s4 1966171168
  %v6657 = vunpack.c.0.s8 %v6656
  %v6658 = vlaneseq
  %v6659 = vshrl.u32 %v6658, 7
  %v6660 = vsub.s32 %v6657, %v6659
  %v6661 = vrot.slane %v6654, %v6660
  %v6662 = vcombine.low %v2840, %v2847
  %v6663 = vcombine.low %v2854, %v6661
  %v6665 = vunpack.c.l.s4 1966171168
  %v6666 = vunpack.c.0.s8 %v6665
  %v6667 = vlaneseq
  %v6668 = vshrl.u32 %v6667, 7
  %v6669 = vsub.s32 %v6666, %v6668
  %v6670 = vrot.slane %v6662, %v6669
  %v6672 = vunpack.c.l.s4 1966171168
  %v6673 = vunpack.c.0.s8 %v6672
  %v6674 = vlaneseq
  %v6675 = vshrl.u32 %v6674, 7
  %v6676 = vsub.s32 %v6673, %v6675
  %v6677 = vrot.slane %v6663, %v6676
  %v6678 = vcombine.low %v6670, %v6677
  %v6679 = vcombine.low %v2889, %v2896
  %v6680 = vcombine.low %v2903, %v2931
  %v6682 = vunpack.c.l.s4 1966171168
  %v6683 = vunpack.c.0.s8 %v6682
  %v6684 = vlaneseq
  %v6685 = vshrl.u32 %v6684, 7
  %v6686 = vsub.s32 %v6683, %v6685
  %v6687 = vrot.slane %v6679, %v6686
  %v6689 = vunpack.c.l.s4 1966171168
  %v6690 = vunpack.c.0.s8 %v6689
  %v6691 = vlaneseq
  %v6692 = vshrl.u32 %v6691, 7
  %v6693 = vsub.s32 %v6690, %v6692
  %v6694 = vrot.slane %v6680, %v6693
  %v6695 = vcombine.low %v6687, %v6694
  %v6696 = vcombine.low %v6522, %v2482
  %v6698 = vunpack.c.l.s4 1966171168
  %v6699 = vunpack.c.0.s8 %v6698
  %v6700 = vlaneseq
  %v6701 = vshrl.u32 %v6700, 7
  %v6702 = vsub.s32 %v6699, %v6701
  %v6703 = vrot.slane %v6696, %v6702
  %v6704 = vcombine.low %v6703, %v2945
  %v6705 = vcombine.low %v2952, %v2980
  %v6707 = vunpack.c.l.s4 1966171168
  %v6708 = vunpack.c.0.s8 %v6707
  %v6709 = vlaneseq
  %v6710 = vshrl.u32 %v6709, 7
  %v6711 = vsub.s32 %v6708, %v6710
  %v6712 = vrot.slane %v6704, %v6711
  %v6714 = vunpack.c.l.s4 1966171168
  %v6715 = vunpack.c.0.s8 %v6714
  %v6716 = vlaneseq
  %v6717 = vshrl.u32 %v6716, 7
  %v6718 = vsub.s32 %v6715, %v6717
  %v6719 = vrot.slane %v6705, %v6718
  %v6720 = vcombine.low %v6712, %v6719
  %v6721 = vcombine.low %v6523, %v2492
  %v6723 = vunpack.c.l.s4 1966171168
  %v6724 = vunpack.c.0.s8 %v6723
  %v6725 = vlaneseq
  %v6726 = vshrl.u32 %v6725, 7
  %v6727 = vsub.s32 %v6724, %v6726
  %v6728 = vrot.slane %v6721, %v6727
  %v6729 = vcombine.low %v2987, %v6728
  %v6730 = vcombine.low %v3001, %v3029
  %v6732 = vunpack.c.l.s4 1966171168
  %v6733 = vunpack.c.0.s8 %v6732
  %v6734 = vlaneseq
  %v6735 = vshrl.u32 %v6734, 7
  %v6736 = vsub.s32 %v6733, %v6735
  %v6737 = vrot.slane %v6729, %v6736
  %v6739 = vunpack.c.l.s4 1966171168
  %v6740 = vunpack.c.0.s8 %v6739
  %v6741 = vlaneseq
  %v6742 = vshrl.u32 %v6741, 7
  %v6743 = vsub.s32 %v6740, %v6742
  %v6744 = vrot.slane %v6730, %v6743
  %v6745 = vcombine.low %v6737, %v6744
  %v6746 = vcombine.low %v2499, %v6524
  %v6748 = vunpack.c.l.s4 1966171168
  %v6749 = vunpack.c.0.s8 %v6748
  %v6750 = vlaneseq
  %v6751 = vshrl.u32 %v6750, 7
  %v6752 = vsub.s32 %v6749, %v6751
  %v6753 = vrot.slane %v6746, %v6752
  %v6754 = vcombine.low %v3036, %v6753
  %v6755 = vcombine.low %v3050, %v3078
  %v6757 = vunpack.c.l.s4 1966171168
  %v6758 = vunpack.c.0.s8 %v6757
  %v6759 = vlaneseq
  %v6760 = vshrl.u32 %v6759, 7
  %v6761 = vsub.s32 %v6758, %v6760
  %v6762 = vrot.slane %v6754, %v6761
  %v6764 = vunpack.c.l.s4 1966171168
  %v6765 = vunpack.c.0.s8 %v6764
  %v6766 = vlaneseq
  %v6767 = vshrl.u32 %v6766, 7
  %v6768 = vsub.s32 %v6765, %v6767
  %v6769 = vrot.slane %v6755, %v6768
  %v6770 = vcombine.low %v6762, %v6769
  %v6771 = vcombine.low %v2509, %v6525
  %v6773 = vunpack.c.l.s4 1966171168
  %v6774 = vunpack.c.0.s8 %v6773
  %v6775 = vlaneseq
  %v6776 = vshrl.u32 %v6775, 7
  %v6777 = vsub.s32 %v6774, %v6776
  %v6778 = vrot.slane %v6771, %v6777
  %v6779 = vcombine.low %v3085, %v3092
  %v6780 = vcombine.low %v6778, %v3127
  %v6782 = vunpack.c.l.s4 1966171168
  %v6783 = vunpack.c.0.s8 %v6782
  %v6784 = vlaneseq
  %v6785 = vshrl.u32 %v6784, 7
  %v6786 = vsub.s32 %v6783, %v6785
  %v6787 = vrot.slane %v6779, %v6786
  %v6789 = vunpack.c.l.s4 1966171168
  %v6790 = vunpack.c.0.s8 %v6789
  %v6791 = vlaneseq
  %v6792 = vshrl.u32 %v6791, 7
  %v6793 = vsub.s32 %v6790, %v6792
  %v6794 = vrot.slane %v6780, %v6793
  %v6795 = vcombine.low %v6787, %v6794
  %v6796 = vcombine.low %v6526, %v2520
  %v6798 = vunpack.c.l.s4 1966171168
  %v6799 = vunpack.c.0.s8 %v6798
  %v6800 = vlaneseq
  %v6801 = vshrl.u32 %v6800, 7
  %v6802 = vsub.s32 %v6799, %v6801
  %v6803 = vrot.slane %v6796, %v6802
  %v6804 = vcombine.low %v3134, %v3141
  %v6805 = vcombine.low %v3148, %v6803
  %v6807 = vunpack.c.l.s4 1966171168
  %v6808 = vunpack.c.0.s8 %v6807
  %v6809 = vlaneseq
  %v6810 = vshrl.u32 %v6809, 7
  %v6811 = vsub.s32 %v6808, %v6810
  %v6812 = vrot.slane %v6804, %v6811
  %v6814 = vunpack.c.l.s4 1966171168
  %v6815 = vunpack.c.0.s8 %v6814
  %v6816 = vlaneseq
  %v6817 = vshrl.u32 %v6816, 7
  %v6818 = vsub.s32 %v6815, %v6817
  %v6819 = vrot.slane %v6805, %v6818
  %v6820 = vcombine.low %v6812, %v6819
  %v6821 = vcombine.low %v3183, %v3190
  %v6822 = vcombine.low %v3197, %v3222
  %v6824 = vunpack.c.l.s4 1966171168
  %v6825 = vunpack.c.0.s8 %v6824
  %v6826 = vlaneseq
  %v6827 = vshrl.u32 %v6826, 7
  %v6828 = vsub.s32 %v6825, %v6827
  %v6829 = vrot.slane %v6821, %v6828
  %v6831 = vunpack.c.l.s4 1966171168
  %v6832 = vunpack.c.0.s8 %v6831
  %v6833 = vlaneseq
  %v6834 = vshrl.u32 %v6833, 7
  %v6835 = vsub.s32 %v6832, %v6834
  %v6836 = vrot.slane %v6822, %v6835
  %v6837 = vcombine.low %v6829, %v6836
  %v6838 = vcombine.low %v6527, %v6528
  %v6839 = vcombine.low %v6529, %v6530
  %v6840 = vcombine.low %v6531, %v6532
  %v6841 = vcombine.low %v6533, %v6534
  %v6843 = vunpack.c.l.s4 1966171168
  %v6844 = vunpack.c.0.s8 %v6843
  %v6845 = vlaneseq
  %v6846 = vshrl.u32 %v6845, 7
  %v6847 = vsub.s32 %v6844, %v6846
  %v6848 = vrot.slane %v6838, %v6847
  %v6850 = vunpack.c.l.s4 1966171168
  %v6851 = vunpack.c.0.s8 %v6850
  %v6852 = vlaneseq
  %v6853 = vshrl.u32 %v6852, 7
  %v6854 = vsub.s32 %v6851, %v6853
  %v6855 = vrot.slane %v6839, %v6854
  %v6857 = vunpack.c.l.s4 1966171168
  %v6858 = vunpack.c.0.s8 %v6857
  %v6859 = vlaneseq
  %v6860 = vshrl.u32 %v6859, 7
  %v6861 = vsub.s32 %v6858, %v6860
  %v6862 = vrot.slane %v6840, %v6861
  %v6864 = vunpack.c.l.s4 1966171168
  %v6865 = vunpack.c.0.s8 %v6864
  %v6866 = vlaneseq
  %v6867 = vshrl.u32 %v6866, 7
  %v6868 = vsub.s32 %v6865, %v6867
  %v6869 = vrot.slane %v6841, %v6868
  %v6870 = vcombine.low %v6848, %v6855
  %v6871 = vcombine.low %v6862, %v6869
  %v6873 = vunpack.c.l.s4 1966171168
  %v6874 = vunpack.c.0.s8 %v6873
  %v6875 = vlaneseq
  %v6876 = vshrl.u32 %v6875, 7
  %v6877 = vsub.s32 %v6874, %v6876
  %v6878 = vrot.slane %v6870, %v6877
  %v6880 = vunpack.c.l.s4 1966171168
  %v6881 = vunpack.c.0.s8 %v6880
  %v6882 = vlaneseq
  %v6883 = vshrl.u32 %v6882, 7
  %v6884 = vsub.s32 %v6881, %v6883
  %v6885 = vrot.slane %v6871, %v6884
  %v6886 = vcombine.low %v6878, %v6885
  %v6887 = vcombine.low %v6535, %v6536
  %v6889 = vunpack.c.l.s4 1966171168
  %v6890 = vunpack.c.0.s8 %v6889
  %v6891 = vlaneseq
  %v6892 = vshrl.u32 %v6891, 7
  %v6893 = vsub.s32 %v6890, %v6892
  %v6894 = vrot.slane %v6887, %v6893
  %v6896 = vunpack.c.l.s4 1966171168
  %v6897 = vunpack.c.0.s8 %v6896
  %v6898 = vlaneseq
  %v6899 = vshrl.u32 %v6898, 7
  %v6900 = vsub.s32 %v6897, %v6899
  %v6901 = vrot.slane %v6894, %v6900
  %6902 = vrot.lane.b32.xlu0 %v6553, 60
  %v6903 = vpop.permute.xlu0 %6902
  %6904 = vrot.lane.b32.xlu0 %v6578, 60
  %v6905 = vpop.permute.xlu0 %6904
  %6906 = vrot.lane.b32.xlu0 %v6603, 60
  %v6907 = vpop.permute.xlu0 %6906
  %6908 = vrot.lane.b32.xlu0 %v6628, 60
  %v6909 = vpop.permute.xlu0 %6908
  %6910 = vrot.lane.b32.xlu0 %v6653, 60
  %v6911 = vpop.permute.xlu0 %6910
  %6912 = vrot.lane.b32.xlu0 %v6678, 60
  %v6913 = vpop.permute.xlu0 %6912
  %6914 = vrot.lane.b32.xlu0 %v6695, 60
  %v6915 = vpop.permute.xlu0 %6914
  %6916 = vrot.lane.b32.xlu0 %v6720, 60
  %v6917 = vpop.permute.xlu0 %6916
  %6918 = vrot.lane.b32.xlu0 %v6745, 60
  %v6919 = vpop.permute.xlu0 %6918
  %6920 = vrot.lane.b32.xlu0 %v6770, 60
  %v6921 = vpop.permute.xlu0 %6920
  %6922 = vrot.lane.b32.xlu0 %v6795, 60
  %v6923 = vpop.permute.xlu0 %6922
  %6924 = vrot.lane.b32.xlu0 %v6820, 60
  %v6925 = vpop.permute.xlu0 %6924
  %6926 = vrot.lane.b32.xlu0 %v6837, 60
  %v6927 = vpop.permute.xlu0 %6926
  %6928 = vrot.lane.b32.xlu0 %v6886, 60
  %v6929 = vpop.permute.xlu0 %6928
  %6930 = vrot.lane.b32.xlu0 %v6901, 60
  %v6931 = vpop.permute.xlu0 %6930
  %vm6932 = vcmask 97280
  %v6935 = vsel %vm6932, %v2577, %v4046
  %v6938 = vsel %vm6932, %v2626, %v4048
  %v6941 = vsel %vm6932, %v2675, %v4050
  %v6944 = vsel %vm6932, %v2724, %v4052
  %v6947 = vsel %vm6932, %v2773, %v4054
  %v6950 = vsel %vm6932, %v2822, %v4056
  %v6953 = vsel %vm6932, %v2871, %v4058
  %v6956 = vsel %vm6932, %v2920, %v4060
  %v6959 = vsel %vm6932, %v2969, %v4062
  %v6962 = vsel %vm6932, %v3018, %v4064
  %v6965 = vsel %vm6932, %v3067, %v4066
  %v6968 = vsel %vm6932, %v3116, %v4068
  %v6971 = vsel %vm6932, %v3165, %v4070
  %v6974 = vsel %vm6932, %v3214, %v4072
  %v6977 = vsel %vm6932, %v3229, %v4074
  %vm6978 = vcmask 195584
  %v6980 = vsel %vm6978, %v6935, %v4891
  %v6982 = vsel %vm6978, %v6938, %v4893
  %v6984 = vsel %vm6978, %v6941, %v4895
  %v6986 = vsel %vm6978, %v6944, %v4897
  %v6988 = vsel %vm6978, %v6947, %v4899
  %v6990 = vsel %vm6978, %v6950, %v4901
  %v6992 = vsel %vm6978, %v6953, %v4903
  %v6994 = vsel %vm6978, %v6956, %v4905
  %v6996 = vsel %vm6978, %v6959, %v4907
  %v6998 = vsel %vm6978, %v6962, %v4909
  %v7000 = vsel %vm6978, %v6965, %v4911
  %v7002 = vsel %vm6978, %v6968, %v4913
  %v7004 = vsel %vm6978, %v6971, %v4915
  %v7006 = vsel %vm6978, %v6974, %v4917
  %v7008 = vsel %vm6978, %v6977, %v4919
  %vm7009 = vcmask 293888
  %v7011 = vsel %vm7009, %v6980, %v5736
  %v7013 = vsel %vm7009, %v6982, %v5738
  %v7015 = vsel %vm7009, %v6984, %v5740
  %v7017 = vsel %vm7009, %v6986, %v5742
  %v7019 = vsel %vm7009, %v6988, %v5744
  %v7021 = vsel %vm7009, %v6990, %v5746
  %v7023 = vsel %vm7009, %v6992, %v5748
  %v7025 = vsel %vm7009, %v6994, %v5750
  %v7027 = vsel %vm7009, %v6996, %v5752
  %v7029 = vsel %vm7009, %v6998, %v5754
  %v7031 = vsel %vm7009, %v7000, %v5756
  %v7033 = vsel %vm7009, %v7002, %v5758
  %v7035 = vsel %vm7009, %v7004, %v5760
  %v7037 = vsel %vm7009, %v7006, %v5762
  %v7039 = vsel %vm7009, %v7008, %v5764
  %vm7040 = vcmask 392192
  %v7042 = vsel %vm7040, %v7011, %v6488
  %v7044 = vsel %vm7040, %v7013, %v6490
  %v7046 = vsel %vm7040, %v7015, %v6492
  %v7048 = vsel %vm7040, %v7017, %v6494
  %v7050 = vsel %vm7040, %v7019, %v6496
  %v7052 = vsel %vm7040, %v7021, %v6498
  %v7054 = vsel %vm7040, %v7023, %v6500
  %v7056 = vsel %vm7040, %v7025, %v6502
  %v7058 = vsel %vm7040, %v7027, %v6504
  %v7060 = vsel %vm7040, %v7029, %v6506
  %v7062 = vsel %vm7040, %v7031, %v6508
  %v7064 = vsel %vm7040, %v7033, %v6510
  %v7066 = vsel %vm7040, %v7035, %v6512
  %v7068 = vsel %vm7040, %v7037, %v6514
  %v7070 = vsel %vm7040, %v7039, %v6516
  %vm7071 = vcmask 490496
  %v7073 = vsel %vm7071, %v7042, %v6903
  %v7075 = vsel %vm7071, %v7044, %v6905
  %v7077 = vsel %vm7071, %v7046, %v6907
  %v7079 = vsel %vm7071, %v7048, %v6909
  %v7081 = vsel %vm7071, %v7050, %v6911
  %v7083 = vsel %vm7071, %v7052, %v6913
  %v7085 = vsel %vm7071, %v7054, %v6915
  %v7087 = vsel %vm7071, %v7056, %v6917
  %v7089 = vsel %vm7071, %v7058, %v6919
  %v7091 = vsel %vm7071, %v7060, %v6921
  %v7093 = vsel %vm7071, %v7062, %v6923
  %v7095 = vsel %vm7071, %v7064, %v6925
  %v7097 = vsel %vm7071, %v7066, %v6927
  %v7099 = vsel %vm7071, %v7068, %v6929
  %v7101 = vsel %vm7071, %v7070, %v6931
  %v7102 = vld [vmem:[%s1] sm:$0xf]
  %v7103 = vld [vmem:[%s1 + $0x4] sm:$0xf]
  %v7104 = vld [vmem:[%s1 + $0x8] sm:$0xf]
  %v7105 = vld [vmem:[%s1 + $0xc] sm:$0xf]
  %v7106 = vld [vmem:[%s1 + $0x10] sm:$0xf]
  %v7107 = vld [vmem:[%s1 + $0x14] sm:$0xf]
  %v7108 = vld [vmem:[%s1 + $0x18] sm:$0xf]
  %v7109 = vld [vmem:[%s1 + $0x1c] sm:$0xf]
  %v7110 = vld [vmem:[%s1 + $0x20] sm:$0xf]
  %v7111 = vld [vmem:[%s2] sm:$0x1]
  %v7113 = vlaneseq
  %v7114 = vshrl.u32 %v7113, 7
  %v7115 = vsub.s32 0, %v7114
  %v7116 = vrot.slane %v7111, %v7115
  %v7127 = vunpack.c.l.b16 %v7102
  %v7128 = vunpack.c.l.b16 %v7103
  %v7129 = vunpack.c.l.b16 %v7104
  %v7130 = vunpack.c.l.b16 %v7105
  %v7131 = vunpack.c.l.b16 %v7106
  %v7132 = vunpack.c.l.b16 %v7107
  %v7133 = vunpack.c.l.b16 %v7108
  %v7134 = vunpack.c.l.b16 %v7109
  %v7135 = vunpack.c.l.b16 %v7110
  %v7136 = vpack.c.b16 %v7128, %v7127
  %v7137 = vpack.c.b16 %v7130, %v7129
  %v7138 = vpack.c.b16 %v7132, %v7131
  %v7139 = vpack.c.b16 %v7134, %v7133
  %v7140 = vpack.c.b16 %v7135, %v7135
  %vm7145 = vcmask 588800
  %v7146 = vsel %vm7145, %v7073, 0
  %v7148 = vsel %vm7145, %v7075, 0
  %v7150 = vsel %vm7145, %v7077, 0
  %v7152 = vsel %vm7145, %v7079, 0
  %v7154 = vsel %vm7145, %v7081, 0
  %v7156 = vsel %vm7145, %v7083, 0
  %v7158 = vsel %vm7145, %v7085, 0
  %v7160 = vsel %vm7145, %v7087, 0
  %v7162 = vsel %vm7145, %v7089, 0
  %v7164 = vsel %vm7145, %v7091, 0
  %v7166 = vsel %vm7145, %v7093, 0
  %v7168 = vsel %vm7145, %v7095, 0
  %v7170 = vsel %vm7145, %v7097, 0
  %v7172 = vsel %vm7145, %v7099, 0
  %v7174 = vsel %vm7145, %v7101, 0
  %vm7176 = vcmask 1043456
  %v7178 = vsel %vm7176, %v7140, 0
  %7180 = vmatprep.subr.bf16.mxu0 0
  %7181 = vmatpush1.bf16.msra.mxu0 %v7136
  %7182 = vmatprep.subr.bf16.mxu0 0
  %7183 = vmatpush1.bf16.msra.mxu0 %v7137
  %7184 = vmatprep.subr.bf16.mxu0 0
  %7185 = vmatpush1.bf16.msra.mxu0 %v7138
  %7186 = vmatprep.subr.bf16.mxu0 0
  %7187 = vmatpush1.bf16.msra.mxu0 %v7139
  %7188 = vmatprep.subr.bf16.mxu0 0
  %7189 = vmatpush1.bf16.msra.mxu0 %v7178
  %7190 = vmatprep.subr.bf16.mxu0 0
  %7191 = vmatpush1.bf16.msra.mxu0 0
  %7192 = vmatprep.subr.bf16.mxu0 0
  %7193 = vmatpush1.bf16.msra.mxu0 0
  %7194 = vmatprep.subr.bf16.mxu0 0
  %7195 = vmatpush1.bf16.msra.mxu0 0
  %7196 = vmatprep.subr.bf16.mxu0 0
  %7197 = vmatpush1.bf16.msra.mxu0 0
  %7198 = vmatprep.subr.bf16.mxu0 0
  %7199 = vmatpush1.bf16.msra.mxu0 0
  %7200 = vmatprep.subr.bf16.mxu0 0
  %7201 = vmatpush1.bf16.msra.mxu0 0
  %7202 = vmatprep.subr.bf16.mxu0 0
  %7203 = vmatpush1.bf16.msra.mxu0 0
  %7204 = vmatprep.subr.bf16.mxu0 0
  %7205 = vmatpush1.bf16.msra.mxu0 0
  %7206 = vmatprep.subr.bf16.mxu0 0
  %7207 = vmatpush1.bf16.msra.mxu0 0
  %7208 = vmatprep.subr.bf16.mxu0 0
  %7209 = vmatpush1.bf16.msra.mxu0 0
  %7210 = vmatprep.subr.bf16.mxu0 0
  %7211 = vmatpush1.bf16.msra.mxu0 0
  %7212 = vmatprep.mubr.bf16.mxu0 0
  %7213 = vmatmul.mubr.bf16.gmra.mrb[0].mxu0 %v7146
  %v7214 = vpop.f32.mrb[0].mxu0
  %v7215 = vadd.f32 %v7116, %v7214
  %v7216 = vpop.f32.mrb[0].mxu0
  %v7217 = vpop.f32.mrb[0].mxu0
  %v7218 = vadd.f32 %v7116, %v7217
  %v7219 = vpop.f32.mrb[0].mxu0
  %7220 = vmatprep.mubr.bf16.mxu0 0
  %7221 = vmatmul.mubr.bf16.gmra.mrb[0].mxu0 %v7148
  %v7222 = vpop.f32.mrb[0].mxu0
  %v7223 = vadd.f32 %v7116, %v7222
  %v7224 = vpop.f32.mrb[0].mxu0
  %v7225 = vpop.f32.mrb[0].mxu0
  %v7226 = vadd.f32 %v7116, %v7225
  %v7227 = vpop.f32.mrb[0].mxu0
  %7228 = vmatprep.mubr.bf16.mxu0 0
  %7229 = vmatmul.mubr.bf16.gmra.mrb[0].mxu0 %v7150
  %v7230 = vpop.f32.mrb[0].mxu0
  %v7231 = vadd.f32 %v7116, %v7230
  %v7232 = vpop.f32.mrb[0].mxu0
  %v7233 = vpop.f32.mrb[0].mxu0
  %v7234 = vadd.f32 %v7116, %v7233
  %v7235 = vpop.f32.mrb[0].mxu0
  %7236 = vmatprep.mubr.bf16.mxu0 0
  %7237 = vmatmul.mubr.bf16.gmra.mrb[0].mxu0 %v7152
  %v7238 = vpop.f32.mrb[0].mxu0
  %v7239 = vadd.f32 %v7116, %v7238
  %v7240 = vpop.f32.mrb[0].mxu0
  %v7241 = vpop.f32.mrb[0].mxu0
  %v7242 = vadd.f32 %v7116, %v7241
  %v7243 = vpop.f32.mrb[0].mxu0
  %7244 = vmatprep.mubr.bf16.mxu0 0
  %7245 = vmatmul.mubr.bf16.gmra.mrb[0].mxu0 %v7154
  %v7246 = vpop.f32.mrb[0].mxu0
  %v7247 = vadd.f32 %v7116, %v7246
  %v7248 = vpop.f32.mrb[0].mxu0
  %v7249 = vpop.f32.mrb[0].mxu0
  %v7250 = vadd.f32 %v7116, %v7249
  %v7251 = vpop.f32.mrb[0].mxu0
  %7252 = vmatprep.mubr.bf16.mxu0 0
  %7253 = vmatmul.mubr.bf16.gmra.mrb[0].mxu0 %v7156
  %v7254 = vpop.f32.mrb[0].mxu0
  %v7255 = vadd.f32 %v7116, %v7254
  %v7256 = vpop.f32.mrb[0].mxu0
  %v7257 = vpop.f32.mrb[0].mxu0
  %v7258 = vadd.f32 %v7116, %v7257
  %v7259 = vpop.f32.mrb[0].mxu0
  %7260 = vmatprep.mubr.bf16.mxu0 0
  %7261 = vmatmul.mubr.bf16.gmra.mrb[0].mxu0 %v7158
  %v7262 = vpop.f32.mrb[0].mxu0
  %v7263 = vadd.f32 %v7116, %v7262
  %v7264 = vpop.f32.mrb[0].mxu0
  %v7265 = vpop.f32.mrb[0].mxu0
  %v7266 = vadd.f32 %v7116, %v7265
  %v7267 = vpop.f32.mrb[0].mxu0
  %7268 = vmatprep.mubr.bf16.mxu0 0
  %7269 = vmatmul.mubr.bf16.gmra.mrb[0].mxu0 %v7160
  %v7270 = vpop.f32.mrb[0].mxu0
  %v7271 = vadd.f32 %v7116, %v7270
  %v7272 = vpop.f32.mrb[0].mxu0
  %v7273 = vpop.f32.mrb[0].mxu0
  %v7274 = vadd.f32 %v7116, %v7273
  %v7275 = vpop.f32.mrb[0].mxu0
  %7276 = vmatprep.mubr.bf16.mxu0 0
  %7277 = vmatmul.mubr.bf16.gmra.mrb[0].mxu0 %v7162
  %v7278 = vpop.f32.mrb[0].mxu0
  %v7279 = vadd.f32 %v7116, %v7278
  %v7280 = vpop.f32.mrb[0].mxu0
  %v7281 = vpop.f32.mrb[0].mxu0
  %v7282 = vadd.f32 %v7116, %v7281
  %v7283 = vpop.f32.mrb[0].mxu0
  %7284 = vmatprep.mubr.bf16.mxu0 0
  %7285 = vmatmul.mubr.bf16.gmra.mrb[0].mxu0 %v7164
  %v7286 = vpop.f32.mrb[0].mxu0
  %v7287 = vadd.f32 %v7116, %v7286
  %v7288 = vpop.f32.mrb[0].mxu0
  %v7289 = vpop.f32.mrb[0].mxu0
  %v7290 = vadd.f32 %v7116, %v7289
  %v7291 = vpop.f32.mrb[0].mxu0
  %7292 = vmatprep.mubr.bf16.mxu0 0
  %7293 = vmatmul.mubr.bf16.gmra.mrb[0].mxu0 %v7166
  %v7294 = vpop.f32.mrb[0].mxu0
  %v7295 = vadd.f32 %v7116, %v7294
  %v7296 = vpop.f32.mrb[0].mxu0
  %v7297 = vpop.f32.mrb[0].mxu0
  %v7298 = vadd.f32 %v7116, %v7297
  %v7299 = vpop.f32.mrb[0].mxu0
  %7300 = vmatprep.mubr.bf16.mxu0 0
  %7301 = vmatmul.mubr.bf16.gmra.mrb[0].mxu0 %v7168
  %v7302 = vpop.f32.mrb[0].mxu0
  %v7303 = vadd.f32 %v7116, %v7302
  %v7304 = vpop.f32.mrb[0].mxu0
  %v7305 = vpop.f32.mrb[0].mxu0
  %v7306 = vadd.f32 %v7116, %v7305
  %v7307 = vpop.f32.mrb[0].mxu0
  %7308 = vmatprep.mubr.bf16.mxu0 0
  %7309 = vmatmul.mubr.bf16.gmra.mrb[0].mxu0 %v7170
  %v7310 = vpop.f32.mrb[0].mxu0
  %v7311 = vadd.f32 %v7116, %v7310
  %v7312 = vpop.f32.mrb[0].mxu0
  %v7313 = vpop.f32.mrb[0].mxu0
  %v7314 = vadd.f32 %v7116, %v7313
  %v7315 = vpop.f32.mrb[0].mxu0
  %7316 = vmatprep.mubr.bf16.mxu0 0
  %7317 = vmatmul.mubr.bf16.gmra.mrb[0].mxu0 %v7172
  %v7318 = vpop.f32.mrb[0].mxu0
  %v7319 = vadd.f32 %v7116, %v7318
  %v7320 = vpop.f32.mrb[0].mxu0
  %v7321 = vpop.f32.mrb[0].mxu0
  %v7322 = vadd.f32 %v7116, %v7321
  %v7323 = vpop.f32.mrb[0].mxu0
  %7324 = vmatprep.mubr.bf16.mxu0 0
  %7325 = vmatmul.mubr.bf16.gmra.mrb[0].mxu0 %v7174
  %v7326 = vpop.f32.mrb[0].mxu0
  %v7327 = vadd.f32 %v7116, %v7326
  %v7328 = vpop.f32.mrb[0].mxu0
  %v7329 = vpop.f32.mrb[0].mxu0
  %v7330 = vpop.f32.mrb[0].mxu0
  %7331 = vdwg.mxu0
  %v7361 = vcombine.high %v7215, %v7215
  %v7363 = vunpack.c.l.s4 1966171168
  %v7364 = vunpack.c.0.s8 %v7363
  %v7365 = vlaneseq
  %v7366 = vshrl.u32 %v7365, 7
  %v7367 = vsub.s32 %v7364, %v7366
  %v7368 = vrot.slane %v7215, %v7367
  %v7370 = vunpack.c.l.s4 1966171168
  %v7371 = vunpack.c.0.s8 %v7370
  %v7372 = vlaneseq
  %v7373 = vshrl.u32 %v7372, 7
  %v7374 = vsub.s32 %v7371, %v7373
  %v7375 = vrot.slane %v7361, %v7374
  %v7376 = vcombine.high %v7368, %v7368
  %v7377 = vcombine.high %v7375, %v7375
  %v7379 = vunpack.c.l.s4 1966171168
  %v7380 = vunpack.c.0.s8 %v7379
  %v7381 = vlaneseq
  %v7382 = vshrl.u32 %v7381, 7
  %v7383 = vsub.s32 %v7380, %v7382
  %v7384 = vrot.slane %v7368, %v7383
  %v7386 = vunpack.c.l.s4 1966171168
  %v7387 = vunpack.c.0.s8 %v7386
  %v7388 = vlaneseq
  %v7389 = vshrl.u32 %v7388, 7
  %v7390 = vsub.s32 %v7387, %v7389
  %v7391 = vrot.slane %v7375, %v7390
  %v7393 = vunpack.c.l.s4 1966171168
  %v7394 = vunpack.c.0.s8 %v7393
  %v7395 = vlaneseq
  %v7396 = vshrl.u32 %v7395, 7
  %v7397 = vsub.s32 %v7394, %v7396
  %v7398 = vrot.slane %v7376, %v7397
  %v7400 = vunpack.c.l.s4 1966171168
  %v7401 = vunpack.c.0.s8 %v7400
  %v7402 = vlaneseq
  %v7403 = vshrl.u32 %v7402, 7
  %v7404 = vsub.s32 %v7401, %v7403
  %v7405 = vrot.slane %v7377, %v7404
  %v7406 = vcombine.high %v7384, %v7384
  %v7407 = vcombine.high %v7391, %v7391
  %v7408 = vcombine.high %v7398, %v7398
  %v7409 = vcombine.high %v7405, %v7405
  %v7410 = vcombine.high %v7218, %v7218
  %v7412 = vunpack.c.l.s4 1966171168
  %v7413 = vunpack.c.0.s8 %v7412
  %v7414 = vlaneseq
  %v7415 = vshrl.u32 %v7414, 7
  %v7416 = vsub.s32 %v7413, %v7415
  %v7417 = vrot.slane %v7218, %v7416
  %v7419 = vunpack.c.l.s4 1966171168
  %v7420 = vunpack.c.0.s8 %v7419
  %v7421 = vlaneseq
  %v7422 = vshrl.u32 %v7421, 7
  %v7423 = vsub.s32 %v7420, %v7422
  %v7424 = vrot.slane %v7410, %v7423
  %v7425 = vcombine.high %v7417, %v7417
  %v7426 = vcombine.high %v7424, %v7424
  %v7428 = vunpack.c.l.s4 1966171168
  %v7429 = vunpack.c.0.s8 %v7428
  %v7430 = vlaneseq
  %v7431 = vshrl.u32 %v7430, 7
  %v7432 = vsub.s32 %v7429, %v7431
  %v7433 = vrot.slane %v7417, %v7432
  %v7435 = vunpack.c.l.s4 1966171168
  %v7436 = vunpack.c.0.s8 %v7435
  %v7437 = vlaneseq
  %v7438 = vshrl.u32 %v7437, 7
  %v7439 = vsub.s32 %v7436, %v7438
  %v7440 = vrot.slane %v7424, %v7439
  %v7442 = vunpack.c.l.s4 1966171168
  %v7443 = vunpack.c.0.s8 %v7442
  %v7444 = vlaneseq
  %v7445 = vshrl.u32 %v7444, 7
  %v7446 = vsub.s32 %v7443, %v7445
  %v7447 = vrot.slane %v7425, %v7446
  %v7449 = vunpack.c.l.s4 1966171168
  %v7450 = vunpack.c.0.s8 %v7449
  %v7451 = vlaneseq
  %v7452 = vshrl.u32 %v7451, 7
  %v7453 = vsub.s32 %v7450, %v7452
  %v7454 = vrot.slane %v7426, %v7453
  %v7455 = vcombine.high %v7433, %v7433
  %v7456 = vcombine.high %v7440, %v7440
  %v7457 = vcombine.high %v7447, %v7447
  %v7458 = vcombine.high %v7454, %v7454
  %v7459 = vcombine.high %v7223, %v7223
  %v7461 = vunpack.c.l.s4 1966171168
  %v7462 = vunpack.c.0.s8 %v7461
  %v7463 = vlaneseq
  %v7464 = vshrl.u32 %v7463, 7
  %v7465 = vsub.s32 %v7462, %v7464
  %v7466 = vrot.slane %v7223, %v7465
  %v7468 = vunpack.c.l.s4 1966171168
  %v7469 = vunpack.c.0.s8 %v7468
  %v7470 = vlaneseq
  %v7471 = vshrl.u32 %v7470, 7
  %v7472 = vsub.s32 %v7469, %v7471
  %v7473 = vrot.slane %v7459, %v7472
  %v7474 = vcombine.high %v7466, %v7466
  %v7475 = vcombine.high %v7473, %v7473
  %v7477 = vunpack.c.l.s4 1966171168
  %v7478 = vunpack.c.0.s8 %v7477
  %v7479 = vlaneseq
  %v7480 = vshrl.u32 %v7479, 7
  %v7481 = vsub.s32 %v7478, %v7480
  %v7482 = vrot.slane %v7466, %v7481
  %v7484 = vunpack.c.l.s4 1966171168
  %v7485 = vunpack.c.0.s8 %v7484
  %v7486 = vlaneseq
  %v7487 = vshrl.u32 %v7486, 7
  %v7488 = vsub.s32 %v7485, %v7487
  %v7489 = vrot.slane %v7473, %v7488
  %v7491 = vunpack.c.l.s4 1966171168
  %v7492 = vunpack.c.0.s8 %v7491
  %v7493 = vlaneseq
  %v7494 = vshrl.u32 %v7493, 7
  %v7495 = vsub.s32 %v7492, %v7494
  %v7496 = vrot.slane %v7474, %v7495
  %v7498 = vunpack.c.l.s4 1966171168
  %v7499 = vunpack.c.0.s8 %v7498
  %v7500 = vlaneseq
  %v7501 = vshrl.u32 %v7500, 7
  %v7502 = vsub.s32 %v7499, %v7501
  %v7503 = vrot.slane %v7475, %v7502
  %v7504 = vcombine.high %v7482, %v7482
  %v7505 = vcombine.high %v7489, %v7489
  %v7506 = vcombine.high %v7496, %v7496
  %v7507 = vcombine.high %v7503, %v7503
  %v7508 = vcombine.high %v7226, %v7226
  %v7510 = vunpack.c.l.s4 1966171168
  %v7511 = vunpack.c.0.s8 %v7510
  %v7512 = vlaneseq
  %v7513 = vshrl.u32 %v7512, 7
  %v7514 = vsub.s32 %v7511, %v7513
  %v7515 = vrot.slane %v7226, %v7514
  %v7517 = vunpack.c.l.s4 1966171168
  %v7518 = vunpack.c.0.s8 %v7517
  %v7519 = vlaneseq
  %v7520 = vshrl.u32 %v7519, 7
  %v7521 = vsub.s32 %v7518, %v7520
  %v7522 = vrot.slane %v7508, %v7521
  %v7523 = vcombine.high %v7515, %v7515
  %v7524 = vcombine.high %v7522, %v7522
  %v7526 = vunpack.c.l.s4 1966171168
  %v7527 = vunpack.c.0.s8 %v7526
  %v7528 = vlaneseq
  %v7529 = vshrl.u32 %v7528, 7
  %v7530 = vsub.s32 %v7527, %v7529
  %v7531 = vrot.slane %v7515, %v7530
  %v7533 = vunpack.c.l.s4 1966171168
  %v7534 = vunpack.c.0.s8 %v7533
  %v7535 = vlaneseq
  %v7536 = vshrl.u32 %v7535, 7
  %v7537 = vsub.s32 %v7534, %v7536
  %v7538 = vrot.slane %v7522, %v7537
  %v7540 = vunpack.c.l.s4 1966171168
  %v7541 = vunpack.c.0.s8 %v7540
  %v7542 = vlaneseq
  %v7543 = vshrl.u32 %v7542, 7
  %v7544 = vsub.s32 %v7541, %v7543
  %v7545 = vrot.slane %v7523, %v7544
  %v7547 = vunpack.c.l.s4 1966171168
  %v7548 = vunpack.c.0.s8 %v7547
  %v7549 = vlaneseq
  %v7550 = vshrl.u32 %v7549, 7
  %v7551 = vsub.s32 %v7548, %v7550
  %v7552 = vrot.slane %v7524, %v7551
  %v7553 = vcombine.high %v7531, %v7531
  %v7554 = vcombine.high %v7538, %v7538
  %v7555 = vcombine.high %v7545, %v7545
  %v7556 = vcombine.high %v7552, %v7552
  %v7557 = vcombine.high %v7231, %v7231
  %v7559 = vunpack.c.l.s4 1966171168
  %v7560 = vunpack.c.0.s8 %v7559
  %v7561 = vlaneseq
  %v7562 = vshrl.u32 %v7561, 7
  %v7563 = vsub.s32 %v7560, %v7562
  %v7564 = vrot.slane %v7231, %v7563
  %v7566 = vunpack.c.l.s4 1966171168
  %v7567 = vunpack.c.0.s8 %v7566
  %v7568 = vlaneseq
  %v7569 = vshrl.u32 %v7568, 7
  %v7570 = vsub.s32 %v7567, %v7569
  %v7571 = vrot.slane %v7557, %v7570
  %v7572 = vcombine.high %v7564, %v7564
  %v7573 = vcombine.high %v7571, %v7571
  %v7575 = vunpack.c.l.s4 1966171168
  %v7576 = vunpack.c.0.s8 %v7575
  %v7577 = vlaneseq
  %v7578 = vshrl.u32 %v7577, 7
  %v7579 = vsub.s32 %v7576, %v7578
  %v7580 = vrot.slane %v7564, %v7579
  %v7582 = vunpack.c.l.s4 1966171168
  %v7583 = vunpack.c.0.s8 %v7582
  %v7584 = vlaneseq
  %v7585 = vshrl.u32 %v7584, 7
  %v7586 = vsub.s32 %v7583, %v7585
  %v7587 = vrot.slane %v7571, %v7586
  %v7589 = vunpack.c.l.s4 1966171168
  %v7590 = vunpack.c.0.s8 %v7589
  %v7591 = vlaneseq
  %v7592 = vshrl.u32 %v7591, 7
  %v7593 = vsub.s32 %v7590, %v7592
  %v7594 = vrot.slane %v7572, %v7593
  %v7596 = vunpack.c.l.s4 1966171168
  %v7597 = vunpack.c.0.s8 %v7596
  %v7598 = vlaneseq
  %v7599 = vshrl.u32 %v7598, 7
  %v7600 = vsub.s32 %v7597, %v7599
  %v7601 = vrot.slane %v7573, %v7600
  %v7602 = vcombine.high %v7580, %v7580
  %v7603 = vcombine.high %v7587, %v7587
  %v7604 = vcombine.high %v7594, %v7594
  %v7605 = vcombine.high %v7601, %v7601
  %v7606 = vcombine.high %v7234, %v7234
  %v7608 = vunpack.c.l.s4 1966171168
  %v7609 = vunpack.c.0.s8 %v7608
  %v7610 = vlaneseq
  %v7611 = vshrl.u32 %v7610, 7
  %v7612 = vsub.s32 %v7609, %v7611
  %v7613 = vrot.slane %v7234, %v7612
  %v7615 = vunpack.c.l.s4 1966171168
  %v7616 = vunpack.c.0.s8 %v7615
  %v7617 = vlaneseq
  %v7618 = vshrl.u32 %v7617, 7
  %v7619 = vsub.s32 %v7616, %v7618
  %v7620 = vrot.slane %v7606, %v7619
  %v7621 = vcombine.high %v7613, %v7613
  %v7622 = vcombine.high %v7620, %v7620
  %v7624 = vunpack.c.l.s4 1966171168
  %v7625 = vunpack.c.0.s8 %v7624
  %v7626 = vlaneseq
  %v7627 = vshrl.u32 %v7626, 7
  %v7628 = vsub.s32 %v7625, %v7627
  %v7629 = vrot.slane %v7613, %v7628
  %v7631 = vunpack.c.l.s4 1966171168
  %v7632 = vunpack.c.0.s8 %v7631
  %v7633 = vlaneseq
  %v7634 = vshrl.u32 %v7633, 7
  %v7635 = vsub.s32 %v7632, %v7634
  %v7636 = vrot.slane %v7620, %v7635
  %v7638 = vunpack.c.l.s4 1966171168
  %v7639 = vunpack.c.0.s8 %v7638
  %v7640 = vlaneseq
  %v7641 = vshrl.u32 %v7640, 7
  %v7642 = vsub.s32 %v7639, %v7641
  %v7643 = vrot.slane %v7621, %v7642
  %v7645 = vunpack.c.l.s4 1966171168
  %v7646 = vunpack.c.0.s8 %v7645
  %v7647 = vlaneseq
  %v7648 = vshrl.u32 %v7647, 7
  %v7649 = vsub.s32 %v7646, %v7648
  %v7650 = vrot.slane %v7622, %v7649
  %v7651 = vcombine.high %v7629, %v7629
  %v7652 = vcombine.high %v7636, %v7636
  %v7653 = vcombine.high %v7643, %v7643
  %v7654 = vcombine.high %v7650, %v7650
  %v7655 = vcombine.high %v7239, %v7239
  %v7657 = vunpack.c.l.s4 1966171168
  %v7658 = vunpack.c.0.s8 %v7657
  %v7659 = vlaneseq
  %v7660 = vshrl.u32 %v7659, 7
  %v7661 = vsub.s32 %v7658, %v7660
  %v7662 = vrot.slane %v7239, %v7661
  %v7664 = vunpack.c.l.s4 1966171168
  %v7665 = vunpack.c.0.s8 %v7664
  %v7666 = vlaneseq
  %v7667 = vshrl.u32 %v7666, 7
  %v7668 = vsub.s32 %v7665, %v7667
  %v7669 = vrot.slane %v7655, %v7668
  %v7670 = vcombine.high %v7662, %v7662
  %v7671 = vcombine.high %v7669, %v7669
  %v7673 = vunpack.c.l.s4 1966171168
  %v7674 = vunpack.c.0.s8 %v7673
  %v7675 = vlaneseq
  %v7676 = vshrl.u32 %v7675, 7
  %v7677 = vsub.s32 %v7674, %v7676
  %v7678 = vrot.slane %v7662, %v7677
  %v7680 = vunpack.c.l.s4 1966171168
  %v7681 = vunpack.c.0.s8 %v7680
  %v7682 = vlaneseq
  %v7683 = vshrl.u32 %v7682, 7
  %v7684 = vsub.s32 %v7681, %v7683
  %v7685 = vrot.slane %v7669, %v7684
  %v7687 = vunpack.c.l.s4 1966171168
  %v7688 = vunpack.c.0.s8 %v7687
  %v7689 = vlaneseq
  %v7690 = vshrl.u32 %v7689, 7
  %v7691 = vsub.s32 %v7688, %v7690
  %v7692 = vrot.slane %v7670, %v7691
  %v7694 = vunpack.c.l.s4 1966171168
  %v7695 = vunpack.c.0.s8 %v7694
  %v7696 = vlaneseq
  %v7697 = vshrl.u32 %v7696, 7
  %v7698 = vsub.s32 %v7695, %v7697
  %v7699 = vrot.slane %v7671, %v7698
  %v7700 = vcombine.high %v7678, %v7678
  %v7701 = vcombine.high %v7685, %v7685
  %v7702 = vcombine.high %v7692, %v7692
  %v7703 = vcombine.high %v7699, %v7699
  %v7704 = vcombine.high %v7242, %v7242
  %v7706 = vunpack.c.l.s4 1966171168
  %v7707 = vunpack.c.0.s8 %v7706
  %v7708 = vlaneseq
  %v7709 = vshrl.u32 %v7708, 7
  %v7710 = vsub.s32 %v7707, %v7709
  %v7711 = vrot.slane %v7242, %v7710
  %v7713 = vunpack.c.l.s4 1966171168
  %v7714 = vunpack.c.0.s8 %v7713
  %v7715 = vlaneseq
  %v7716 = vshrl.u32 %v7715, 7
  %v7717 = vsub.s32 %v7714, %v7716
  %v7718 = vrot.slane %v7704, %v7717
  %v7719 = vcombine.high %v7711, %v7711
  %v7720 = vcombine.high %v7718, %v7718
  %v7722 = vunpack.c.l.s4 1966171168
  %v7723 = vunpack.c.0.s8 %v7722
  %v7724 = vlaneseq
  %v7725 = vshrl.u32 %v7724, 7
  %v7726 = vsub.s32 %v7723, %v7725
  %v7727 = vrot.slane %v7711, %v7726
  %v7729 = vunpack.c.l.s4 1966171168
  %v7730 = vunpack.c.0.s8 %v7729
  %v7731 = vlaneseq
  %v7732 = vshrl.u32 %v7731, 7
  %v7733 = vsub.s32 %v7730, %v7732
  %v7734 = vrot.slane %v7718, %v7733
  %v7736 = vunpack.c.l.s4 1966171168
  %v7737 = vunpack.c.0.s8 %v7736
  %v7738 = vlaneseq
  %v7739 = vshrl.u32 %v7738, 7
  %v7740 = vsub.s32 %v7737, %v7739
  %v7741 = vrot.slane %v7719, %v7740
  %v7743 = vunpack.c.l.s4 1966171168
  %v7744 = vunpack.c.0.s8 %v7743
  %v7745 = vlaneseq
  %v7746 = vshrl.u32 %v7745, 7
  %v7747 = vsub.s32 %v7744, %v7746
  %v7748 = vrot.slane %v7720, %v7747
  %v7749 = vcombine.high %v7727, %v7727
  %v7750 = vcombine.high %v7734, %v7734
  %v7751 = vcombine.high %v7741, %v7741
  %v7752 = vcombine.high %v7748, %v7748
  %v7753 = vcombine.high %v7247, %v7247
  %v7755 = vunpack.c.l.s4 1966171168
  %v7756 = vunpack.c.0.s8 %v7755
  %v7757 = vlaneseq
  %v7758 = vshrl.u32 %v7757, 7
  %v7759 = vsub.s32 %v7756, %v7758
  %v7760 = vrot.slane %v7247, %v7759
  %v7762 = vunpack.c.l.s4 1966171168
  %v7763 = vunpack.c.0.s8 %v7762
  %v7764 = vlaneseq
  %v7765 = vshrl.u32 %v7764, 7
  %v7766 = vsub.s32 %v7763, %v7765
  %v7767 = vrot.slane %v7753, %v7766
  %v7768 = vcombine.high %v7760, %v7760
  %v7769 = vcombine.high %v7767, %v7767
  %v7771 = vunpack.c.l.s4 1966171168
  %v7772 = vunpack.c.0.s8 %v7771
  %v7773 = vlaneseq
  %v7774 = vshrl.u32 %v7773, 7
  %v7775 = vsub.s32 %v7772, %v7774
  %v7776 = vrot.slane %v7760, %v7775
  %v7778 = vunpack.c.l.s4 1966171168
  %v7779 = vunpack.c.0.s8 %v7778
  %v7780 = vlaneseq
  %v7781 = vshrl.u32 %v7780, 7
  %v7782 = vsub.s32 %v7779, %v7781
  %v7783 = vrot.slane %v7767, %v7782
  %v7785 = vunpack.c.l.s4 1966171168
  %v7786 = vunpack.c.0.s8 %v7785
  %v7787 = vlaneseq
  %v7788 = vshrl.u32 %v7787, 7
  %v7789 = vsub.s32 %v7786, %v7788
  %v7790 = vrot.slane %v7768, %v7789
  %v7792 = vunpack.c.l.s4 1966171168
  %v7793 = vunpack.c.0.s8 %v7792
  %v7794 = vlaneseq
  %v7795 = vshrl.u32 %v7794, 7
  %v7796 = vsub.s32 %v7793, %v7795
  %v7797 = vrot.slane %v7769, %v7796
  %v7798 = vcombine.high %v7776, %v7776
  %v7799 = vcombine.high %v7783, %v7783
  %v7800 = vcombine.high %v7790, %v7790
  %v7801 = vcombine.high %v7797, %v7797
  %v7802 = vcombine.high %v7250, %v7250
  %v7804 = vunpack.c.l.s4 1966171168
  %v7805 = vunpack.c.0.s8 %v7804
  %v7806 = vlaneseq
  %v7807 = vshrl.u32 %v7806, 7
  %v7808 = vsub.s32 %v7805, %v7807
  %v7809 = vrot.slane %v7250, %v7808
  %v7811 = vunpack.c.l.s4 1966171168
  %v7812 = vunpack.c.0.s8 %v7811
  %v7813 = vlaneseq
  %v7814 = vshrl.u32 %v7813, 7
  %v7815 = vsub.s32 %v7812, %v7814
  %v7816 = vrot.slane %v7802, %v7815
  %v7817 = vcombine.high %v7809, %v7809
  %v7818 = vcombine.high %v7816, %v7816
  %v7820 = vunpack.c.l.s4 1966171168
  %v7821 = vunpack.c.0.s8 %v7820
  %v7822 = vlaneseq
  %v7823 = vshrl.u32 %v7822, 7
  %v7824 = vsub.s32 %v7821, %v7823
  %v7825 = vrot.slane %v7809, %v7824
  %v7827 = vunpack.c.l.s4 1966171168
  %v7828 = vunpack.c.0.s8 %v7827
  %v7829 = vlaneseq
  %v7830 = vshrl.u32 %v7829, 7
  %v7831 = vsub.s32 %v7828, %v7830
  %v7832 = vrot.slane %v7816, %v7831
  %v7834 = vunpack.c.l.s4 1966171168
  %v7835 = vunpack.c.0.s8 %v7834
  %v7836 = vlaneseq
  %v7837 = vshrl.u32 %v7836, 7
  %v7838 = vsub.s32 %v7835, %v7837
  %v7839 = vrot.slane %v7817, %v7838
  %v7841 = vunpack.c.l.s4 1966171168
  %v7842 = vunpack.c.0.s8 %v7841
  %v7843 = vlaneseq
  %v7844 = vshrl.u32 %v7843, 7
  %v7845 = vsub.s32 %v7842, %v7844
  %v7846 = vrot.slane %v7818, %v7845
  %v7847 = vcombine.high %v7825, %v7825
  %v7848 = vcombine.high %v7832, %v7832
  %v7849 = vcombine.high %v7839, %v7839
  %v7850 = vcombine.high %v7846, %v7846
  %v7851 = vcombine.high %v7255, %v7255
  %v7853 = vunpack.c.l.s4 1966171168
  %v7854 = vunpack.c.0.s8 %v7853
  %v7855 = vlaneseq
  %v7856 = vshrl.u32 %v7855, 7
  %v7857 = vsub.s32 %v7854, %v7856
  %v7858 = vrot.slane %v7255, %v7857
  %v7860 = vunpack.c.l.s4 1966171168
  %v7861 = vunpack.c.0.s8 %v7860
  %v7862 = vlaneseq
  %v7863 = vshrl.u32 %v7862, 7
  %v7864 = vsub.s32 %v7861, %v7863
  %v7865 = vrot.slane %v7851, %v7864
  %v7866 = vcombine.high %v7858, %v7858
  %v7867 = vcombine.high %v7865, %v7865
  %v7869 = vunpack.c.l.s4 1966171168
  %v7870 = vunpack.c.0.s8 %v7869
  %v7871 = vlaneseq
  %v7872 = vshrl.u32 %v7871, 7
  %v7873 = vsub.s32 %v7870, %v7872
  %v7874 = vrot.slane %v7858, %v7873
  %v7876 = vunpack.c.l.s4 1966171168
  %v7877 = vunpack.c.0.s8 %v7876
  %v7878 = vlaneseq
  %v7879 = vshrl.u32 %v7878, 7
  %v7880 = vsub.s32 %v7877, %v7879
  %v7881 = vrot.slane %v7865, %v7880
  %v7883 = vunpack.c.l.s4 1966171168
  %v7884 = vunpack.c.0.s8 %v7883
  %v7885 = vlaneseq
  %v7886 = vshrl.u32 %v7885, 7
  %v7887 = vsub.s32 %v7884, %v7886
  %v7888 = vrot.slane %v7866, %v7887
  %v7890 = vunpack.c.l.s4 1966171168
  %v7891 = vunpack.c.0.s8 %v7890
  %v7892 = vlaneseq
  %v7893 = vshrl.u32 %v7892, 7
  %v7894 = vsub.s32 %v7891, %v7893
  %v7895 = vrot.slane %v7867, %v7894
  %v7896 = vcombine.high %v7874, %v7874
  %v7897 = vcombine.high %v7881, %v7881
  %v7898 = vcombine.high %v7888, %v7888
  %v7899 = vcombine.high %v7895, %v7895
  %v7900 = vcombine.high %v7258, %v7258
  %v7902 = vunpack.c.l.s4 1966171168
  %v7903 = vunpack.c.0.s8 %v7902
  %v7904 = vlaneseq
  %v7905 = vshrl.u32 %v7904, 7
  %v7906 = vsub.s32 %v7903, %v7905
  %v7907 = vrot.slane %v7258, %v7906
  %v7909 = vunpack.c.l.s4 1966171168
  %v7910 = vunpack.c.0.s8 %v7909
  %v7911 = vlaneseq
  %v7912 = vshrl.u32 %v7911, 7
  %v7913 = vsub.s32 %v7910, %v7912
  %v7914 = vrot.slane %v7900, %v7913
  %v7915 = vcombine.high %v7907, %v7907
  %v7916 = vcombine.high %v7914, %v7914
  %v7918 = vunpack.c.l.s4 1966171168
  %v7919 = vunpack.c.0.s8 %v7918
  %v7920 = vlaneseq
  %v7921 = vshrl.u32 %v7920, 7
  %v7922 = vsub.s32 %v7919, %v7921
  %v7923 = vrot.slane %v7907, %v7922
  %v7925 = vunpack.c.l.s4 1966171168
  %v7926 = vunpack.c.0.s8 %v7925
  %v7927 = vlaneseq
  %v7928 = vshrl.u32 %v7927, 7
  %v7929 = vsub.s32 %v7926, %v7928
  %v7930 = vrot.slane %v7914, %v7929
  %v7932 = vunpack.c.l.s4 1966171168
  %v7933 = vunpack.c.0.s8 %v7932
  %v7934 = vlaneseq
  %v7935 = vshrl.u32 %v7934, 7
  %v7936 = vsub.s32 %v7933, %v7935
  %v7937 = vrot.slane %v7915, %v7936
  %v7939 = vunpack.c.l.s4 1966171168
  %v7940 = vunpack.c.0.s8 %v7939
  %v7941 = vlaneseq
  %v7942 = vshrl.u32 %v7941, 7
  %v7943 = vsub.s32 %v7940, %v7942
  %v7944 = vrot.slane %v7916, %v7943
  %v7945 = vcombine.high %v7923, %v7923
  %v7946 = vcombine.high %v7930, %v7930
  %v7947 = vcombine.high %v7937, %v7937
  %v7948 = vcombine.high %v7944, %v7944
  %v7949 = vcombine.high %v7263, %v7263
  %v7951 = vunpack.c.l.s4 1966171168
  %v7952 = vunpack.c.0.s8 %v7951
  %v7953 = vlaneseq
  %v7954 = vshrl.u32 %v7953, 7
  %v7955 = vsub.s32 %v7952, %v7954
  %v7956 = vrot.slane %v7263, %v7955
  %v7958 = vunpack.c.l.s4 1966171168
  %v7959 = vunpack.c.0.s8 %v7958
  %v7960 = vlaneseq
  %v7961 = vshrl.u32 %v7960, 7
  %v7962 = vsub.s32 %v7959, %v7961
  %v7963 = vrot.slane %v7949, %v7962
  %v7964 = vcombine.high %v7956, %v7956
  %v7965 = vcombine.high %v7963, %v7963
  %v7967 = vunpack.c.l.s4 1966171168
  %v7968 = vunpack.c.0.s8 %v7967
  %v7969 = vlaneseq
  %v7970 = vshrl.u32 %v7969, 7
  %v7971 = vsub.s32 %v7968, %v7970
  %v7972 = vrot.slane %v7956, %v7971
  %v7974 = vunpack.c.l.s4 1966171168
  %v7975 = vunpack.c.0.s8 %v7974
  %v7976 = vlaneseq
  %v7977 = vshrl.u32 %v7976, 7
  %v7978 = vsub.s32 %v7975, %v7977
  %v7979 = vrot.slane %v7963, %v7978
  %v7981 = vunpack.c.l.s4 1966171168
  %v7982 = vunpack.c.0.s8 %v7981
  %v7983 = vlaneseq
  %v7984 = vshrl.u32 %v7983, 7
  %v7985 = vsub.s32 %v7982, %v7984
  %v7986 = vrot.slane %v7964, %v7985
  %v7988 = vunpack.c.l.s4 1966171168
  %v7989 = vunpack.c.0.s8 %v7988
  %v7990 = vlaneseq
  %v7991 = vshrl.u32 %v7990, 7
  %v7992 = vsub.s32 %v7989, %v7991
  %v7993 = vrot.slane %v7965, %v7992
  %v7994 = vcombine.high %v7972, %v7972
  %v7995 = vcombine.high %v7979, %v7979
  %v7996 = vcombine.high %v7986, %v7986
  %v7997 = vcombine.high %v7993, %v7993
  %v7998 = vcombine.high %v7266, %v7266
  %v8000 = vunpack.c.l.s4 1966171168
  %v8001 = vunpack.c.0.s8 %v8000
  %v8002 = vlaneseq
  %v8003 = vshrl.u32 %v8002, 7
  %v8004 = vsub.s32 %v8001, %v8003
  %v8005 = vrot.slane %v7266, %v8004
  %v8007 = vunpack.c.l.s4 1966171168
  %v8008 = vunpack.c.0.s8 %v8007
  %v8009 = vlaneseq
  %v8010 = vshrl.u32 %v8009, 7
  %v8011 = vsub.s32 %v8008, %v8010
  %v8012 = vrot.slane %v7998, %v8011
  %v8013 = vcombine.high %v8005, %v8005
  %v8014 = vcombine.high %v8012, %v8012
  %v8016 = vunpack.c.l.s4 1966171168
  %v8017 = vunpack.c.0.s8 %v8016
  %v8018 = vlaneseq
  %v8019 = vshrl.u32 %v8018, 7
  %v8020 = vsub.s32 %v8017, %v8019
  %v8021 = vrot.slane %v8005, %v8020
  %v8023 = vunpack.c.l.s4 1966171168
  %v8024 = vunpack.c.0.s8 %v8023
  %v8025 = vlaneseq
  %v8026 = vshrl.u32 %v8025, 7
  %v8027 = vsub.s32 %v8024, %v8026
  %v8028 = vrot.slane %v8012, %v8027
  %v8030 = vunpack.c.l.s4 1966171168
  %v8031 = vunpack.c.0.s8 %v8030
  %v8032 = vlaneseq
  %v8033 = vshrl.u32 %v8032, 7
  %v8034 = vsub.s32 %v8031, %v8033
  %v8035 = vrot.slane %v8013, %v8034
  %v8037 = vunpack.c.l.s4 1966171168
  %v8038 = vunpack.c.0.s8 %v8037
  %v8039 = vlaneseq
  %v8040 = vshrl.u32 %v8039, 7
  %v8041 = vsub.s32 %v8038, %v8040
  %v8042 = vrot.slane %v8014, %v8041
  %v8043 = vcombine.high %v8021, %v8021
  %v8044 = vcombine.high %v8028, %v8028
  %v8045 = vcombine.high %v8035, %v8035
  %v8046 = vcombine.high %v8042, %v8042
  %v8047 = vcombine.high %v7271, %v7271
  %v8049 = vunpack.c.l.s4 1966171168
  %v8050 = vunpack.c.0.s8 %v8049
  %v8051 = vlaneseq
  %v8052 = vshrl.u32 %v8051, 7
  %v8053 = vsub.s32 %v8050, %v8052
  %v8054 = vrot.slane %v7271, %v8053
  %v8056 = vunpack.c.l.s4 1966171168
  %v8057 = vunpack.c.0.s8 %v8056
  %v8058 = vlaneseq
  %v8059 = vshrl.u32 %v8058, 7
  %v8060 = vsub.s32 %v8057, %v8059
  %v8061 = vrot.slane %v8047, %v8060
  %v8062 = vcombine.high %v8054, %v8054
  %v8063 = vcombine.high %v8061, %v8061
  %v8065 = vunpack.c.l.s4 1966171168
  %v8066 = vunpack.c.0.s8 %v8065
  %v8067 = vlaneseq
  %v8068 = vshrl.u32 %v8067, 7
  %v8069 = vsub.s32 %v8066, %v8068
  %v8070 = vrot.slane %v8054, %v8069
  %v8072 = vunpack.c.l.s4 1966171168
  %v8073 = vunpack.c.0.s8 %v8072
  %v8074 = vlaneseq
  %v8075 = vshrl.u32 %v8074, 7
  %v8076 = vsub.s32 %v8073, %v8075
  %v8077 = vrot.slane %v8061, %v8076
  %v8079 = vunpack.c.l.s4 1966171168
  %v8080 = vunpack.c.0.s8 %v8079
  %v8081 = vlaneseq
  %v8082 = vshrl.u32 %v8081, 7
  %v8083 = vsub.s32 %v8080, %v8082
  %v8084 = vrot.slane %v8062, %v8083
  %v8086 = vunpack.c.l.s4 1966171168
  %v8087 = vunpack.c.0.s8 %v8086
  %v8088 = vlaneseq
  %v8089 = vshrl.u32 %v8088, 7
  %v8090 = vsub.s32 %v8087, %v8089
  %v8091 = vrot.slane %v8063, %v8090
  %v8092 = vcombine.high %v8070, %v8070
  %v8093 = vcombine.high %v8077, %v8077
  %v8094 = vcombine.high %v8084, %v8084
  %v8095 = vcombine.high %v8091, %v8091
  %v8096 = vcombine.high %v7274, %v7274
  %v8098 = vunpack.c.l.s4 1966171168
  %v8099 = vunpack.c.0.s8 %v8098
  %v8100 = vlaneseq
  %v8101 = vshrl.u32 %v8100, 7
  %v8102 = vsub.s32 %v8099, %v8101
  %v8103 = vrot.slane %v7274, %v8102
  %v8105 = vunpack.c.l.s4 1966171168
  %v8106 = vunpack.c.0.s8 %v8105
  %v8107 = vlaneseq
  %v8108 = vshrl.u32 %v8107, 7
  %v8109 = vsub.s32 %v8106, %v8108
  %v8110 = vrot.slane %v8096, %v8109
  %v8111 = vcombine.high %v8103, %v8103
  %v8112 = vcombine.high %v8110, %v8110
  %v8114 = vunpack.c.l.s4 1966171168
  %v8115 = vunpack.c.0.s8 %v8114
  %v8116 = vlaneseq
  %v8117 = vshrl.u32 %v8116, 7
  %v8118 = vsub.s32 %v8115, %v8117
  %v8119 = vrot.slane %v8103, %v8118
  %v8121 = vunpack.c.l.s4 1966171168
  %v8122 = vunpack.c.0.s8 %v8121
  %v8123 = vlaneseq
  %v8124 = vshrl.u32 %v8123, 7
  %v8125 = vsub.s32 %v8122, %v8124
  %v8126 = vrot.slane %v8110, %v8125
  %v8128 = vunpack.c.l.s4 1966171168
  %v8129 = vunpack.c.0.s8 %v8128
  %v8130 = vlaneseq
  %v8131 = vshrl.u32 %v8130, 7
  %v8132 = vsub.s32 %v8129, %v8131
  %v8133 = vrot.slane %v8111, %v8132
  %v8135 = vunpack.c.l.s4 1966171168
  %v8136 = vunpack.c.0.s8 %v8135
  %v8137 = vlaneseq
  %v8138 = vshrl.u32 %v8137, 7
  %v8139 = vsub.s32 %v8136, %v8138
  %v8140 = vrot.slane %v8112, %v8139
  %v8141 = vcombine.high %v8119, %v8119
  %v8142 = vcombine.high %v8126, %v8126
  %v8143 = vcombine.high %v8133, %v8133
  %v8144 = vcombine.high %v8140, %v8140
  %v8145 = vcombine.high %v7279, %v7279
  %v8147 = vunpack.c.l.s4 1966171168
  %v8148 = vunpack.c.0.s8 %v8147
  %v8149 = vlaneseq
  %v8150 = vshrl.u32 %v8149, 7
  %v8151 = vsub.s32 %v8148, %v8150
  %v8152 = vrot.slane %v7279, %v8151
  %v8154 = vunpack.c.l.s4 1966171168
  %v8155 = vunpack.c.0.s8 %v8154
  %v8156 = vlaneseq
  %v8157 = vshrl.u32 %v8156, 7
  %v8158 = vsub.s32 %v8155, %v8157
  %v8159 = vrot.slane %v8145, %v8158
  %v8160 = vcombine.high %v8152, %v8152
  %v8161 = vcombine.high %v8159, %v8159
  %v8163 = vunpack.c.l.s4 1966171168
  %v8164 = vunpack.c.0.s8 %v8163
  %v8165 = vlaneseq
  %v8166 = vshrl.u32 %v8165, 7
  %v8167 = vsub.s32 %v8164, %v8166
  %v8168 = vrot.slane %v8152, %v8167
  %v8170 = vunpack.c.l.s4 1966171168
  %v8171 = vunpack.c.0.s8 %v8170
  %v8172 = vlaneseq
  %v8173 = vshrl.u32 %v8172, 7
  %v8174 = vsub.s32 %v8171, %v8173
  %v8175 = vrot.slane %v8159, %v8174
  %v8177 = vunpack.c.l.s4 1966171168
  %v8178 = vunpack.c.0.s8 %v8177
  %v8179 = vlaneseq
  %v8180 = vshrl.u32 %v8179, 7
  %v8181 = vsub.s32 %v8178, %v8180
  %v8182 = vrot.slane %v8160, %v8181
  %v8184 = vunpack.c.l.s4 1966171168
  %v8185 = vunpack.c.0.s8 %v8184
  %v8186 = vlaneseq
  %v8187 = vshrl.u32 %v8186, 7
  %v8188 = vsub.s32 %v8185, %v8187
  %v8189 = vrot.slane %v8161, %v8188
  %v8190 = vcombine.high %v8168, %v8168
  %v8191 = vcombine.high %v8175, %v8175
  %v8192 = vcombine.high %v8182, %v8182
  %v8193 = vcombine.high %v8189, %v8189
  %v8194 = vcombine.high %v7282, %v7282
  %v8196 = vunpack.c.l.s4 1966171168
  %v8197 = vunpack.c.0.s8 %v8196
  %v8198 = vlaneseq
  %v8199 = vshrl.u32 %v8198, 7
  %v8200 = vsub.s32 %v8197, %v8199
  %v8201 = vrot.slane %v7282, %v8200
  %v8203 = vunpack.c.l.s4 1966171168
  %v8204 = vunpack.c.0.s8 %v8203
  %v8205 = vlaneseq
  %v8206 = vshrl.u32 %v8205, 7
  %v8207 = vsub.s32 %v8204, %v8206
  %v8208 = vrot.slane %v8194, %v8207
  %v8209 = vcombine.high %v8201, %v8201
  %v8210 = vcombine.high %v8208, %v8208
  %v8212 = vunpack.c.l.s4 1966171168
  %v8213 = vunpack.c.0.s8 %v8212
  %v8214 = vlaneseq
  %v8215 = vshrl.u32 %v8214, 7
  %v8216 = vsub.s32 %v8213, %v8215
  %v8217 = vrot.slane %v8201, %v8216
  %v8219 = vunpack.c.l.s4 1966171168
  %v8220 = vunpack.c.0.s8 %v8219
  %v8221 = vlaneseq
  %v8222 = vshrl.u32 %v8221, 7
  %v8223 = vsub.s32 %v8220, %v8222
  %v8224 = vrot.slane %v8208, %v8223
  %v8226 = vunpack.c.l.s4 1966171168
  %v8227 = vunpack.c.0.s8 %v8226
  %v8228 = vlaneseq
  %v8229 = vshrl.u32 %v8228, 7
  %v8230 = vsub.s32 %v8227, %v8229
  %v8231 = vrot.slane %v8209, %v8230
  %v8233 = vunpack.c.l.s4 1966171168
  %v8234 = vunpack.c.0.s8 %v8233
  %v8235 = vlaneseq
  %v8236 = vshrl.u32 %v8235, 7
  %v8237 = vsub.s32 %v8234, %v8236
  %v8238 = vrot.slane %v8210, %v8237
  %v8239 = vcombine.high %v8217, %v8217
  %v8240 = vcombine.high %v8224, %v8224
  %v8241 = vcombine.high %v8231, %v8231
  %v8242 = vcombine.high %v8238, %v8238
  %v8243 = vcombine.high %v7287, %v7287
  %v8245 = vunpack.c.l.s4 1966171168
  %v8246 = vunpack.c.0.s8 %v8245
  %v8247 = vlaneseq
  %v8248 = vshrl.u32 %v8247, 7
  %v8249 = vsub.s32 %v8246, %v8248
  %v8250 = vrot.slane %v7287, %v8249
  %v8252 = vunpack.c.l.s4 1966171168
  %v8253 = vunpack.c.0.s8 %v8252
  %v8254 = vlaneseq
  %v8255 = vshrl.u32 %v8254, 7
  %v8256 = vsub.s32 %v8253, %v8255
  %v8257 = vrot.slane %v8243, %v8256
  %v8258 = vcombine.high %v8250, %v8250
  %v8259 = vcombine.high %v8257, %v8257
  %v8261 = vunpack.c.l.s4 1966171168
  %v8262 = vunpack.c.0.s8 %v8261
  %v8263 = vlaneseq
  %v8264 = vshrl.u32 %v8263, 7
  %v8265 = vsub.s32 %v8262, %v8264
  %v8266 = vrot.slane %v8250, %v8265
  %v8268 = vunpack.c.l.s4 1966171168
  %v8269 = vunpack.c.0.s8 %v8268
  %v8270 = vlaneseq
  %v8271 = vshrl.u32 %v8270, 7
  %v8272 = vsub.s32 %v8269, %v8271
  %v8273 = vrot.slane %v8257, %v8272
  %v8275 = vunpack.c.l.s4 1966171168
  %v8276 = vunpack.c.0.s8 %v8275
  %v8277 = vlaneseq
  %v8278 = vshrl.u32 %v8277, 7
  %v8279 = vsub.s32 %v8276, %v8278
  %v8280 = vrot.slane %v8258, %v8279
  %v8282 = vunpack.c.l.s4 1966171168
  %v8283 = vunpack.c.0.s8 %v8282
  %v8284 = vlaneseq
  %v8285 = vshrl.u32 %v8284, 7
  %v8286 = vsub.s32 %v8283, %v8285
  %v8287 = vrot.slane %v8259, %v8286
  %v8288 = vcombine.high %v8266, %v8266
  %v8289 = vcombine.high %v8273, %v8273
  %v8290 = vcombine.high %v8280, %v8280
  %v8291 = vcombine.high %v8287, %v8287
  %v8292 = vcombine.high %v7290, %v7290
  %v8294 = vunpack.c.l.s4 1966171168
  %v8295 = vunpack.c.0.s8 %v8294
  %v8296 = vlaneseq
  %v8297 = vshrl.u32 %v8296, 7
  %v8298 = vsub.s32 %v8295, %v8297
  %v8299 = vrot.slane %v7290, %v8298
  %v8301 = vunpack.c.l.s4 1966171168
  %v8302 = vunpack.c.0.s8 %v8301
  %v8303 = vlaneseq
  %v8304 = vshrl.u32 %v8303, 7
  %v8305 = vsub.s32 %v8302, %v8304
  %v8306 = vrot.slane %v8292, %v8305
  %v8307 = vcombine.high %v8299, %v8299
  %v8308 = vcombine.high %v8306, %v8306
  %v8310 = vunpack.c.l.s4 1966171168
  %v8311 = vunpack.c.0.s8 %v8310
  %v8312 = vlaneseq
  %v8313 = vshrl.u32 %v8312, 7
  %v8314 = vsub.s32 %v8311, %v8313
  %v8315 = vrot.slane %v8299, %v8314
  %v8317 = vunpack.c.l.s4 1966171168
  %v8318 = vunpack.c.0.s8 %v8317
  %v8319 = vlaneseq
  %v8320 = vshrl.u32 %v8319, 7
  %v8321 = vsub.s32 %v8318, %v8320
  %v8322 = vrot.slane %v8306, %v8321
  %v8324 = vunpack.c.l.s4 1966171168
  %v8325 = vunpack.c.0.s8 %v8324
  %v8326 = vlaneseq
  %v8327 = vshrl.u32 %v8326, 7
  %v8328 = vsub.s32 %v8325, %v8327
  %v8329 = vrot.slane %v8307, %v8328
  %v8331 = vunpack.c.l.s4 1966171168
  %v8332 = vunpack.c.0.s8 %v8331
  %v8333 = vlaneseq
  %v8334 = vshrl.u32 %v8333, 7
  %v8335 = vsub.s32 %v8332, %v8334
  %v8336 = vrot.slane %v8308, %v8335
  %v8337 = vcombine.high %v8315, %v8315
  %v8338 = vcombine.high %v8322, %v8322
  %v8339 = vcombine.high %v8329, %v8329
  %v8340 = vcombine.high %v8336, %v8336
  %v8341 = vcombine.high %v7295, %v7295
  %v8343 = vunpack.c.l.s4 1966171168
  %v8344 = vunpack.c.0.s8 %v8343
  %v8345 = vlaneseq
  %v8346 = vshrl.u32 %v8345, 7
  %v8347 = vsub.s32 %v8344, %v8346
  %v8348 = vrot.slane %v7295, %v8347
  %v8350 = vunpack.c.l.s4 1966171168
  %v8351 = vunpack.c.0.s8 %v8350
  %v8352 = vlaneseq
  %v8353 = vshrl.u32 %v8352, 7
  %v8354 = vsub.s32 %v8351, %v8353
  %v8355 = vrot.slane %v8341, %v8354
  %v8356 = vcombine.high %v8348, %v8348
  %v8357 = vcombine.high %v8355, %v8355
  %v8359 = vunpack.c.l.s4 1966171168
  %v8360 = vunpack.c.0.s8 %v8359
  %v8361 = vlaneseq
  %v8362 = vshrl.u32 %v8361, 7
  %v8363 = vsub.s32 %v8360, %v8362
  %v8364 = vrot.slane %v8348, %v8363
  %v8366 = vunpack.c.l.s4 1966171168
  %v8367 = vunpack.c.0.s8 %v8366
  %v8368 = vlaneseq
  %v8369 = vshrl.u32 %v8368, 7
  %v8370 = vsub.s32 %v8367, %v8369
  %v8371 = vrot.slane %v8355, %v8370
  %v8373 = vunpack.c.l.s4 1966171168
  %v8374 = vunpack.c.0.s8 %v8373
  %v8375 = vlaneseq
  %v8376 = vshrl.u32 %v8375, 7
  %v8377 = vsub.s32 %v8374, %v8376
  %v8378 = vrot.slane %v8356, %v8377
  %v8380 = vunpack.c.l.s4 1966171168
  %v8381 = vunpack.c.0.s8 %v8380
  %v8382 = vlaneseq
  %v8383 = vshrl.u32 %v8382, 7
  %v8384 = vsub.s32 %v8381, %v8383
  %v8385 = vrot.slane %v8357, %v8384
  %v8386 = vcombine.high %v8364, %v8364
  %v8387 = vcombine.high %v8371, %v8371
  %v8388 = vcombine.high %v8378, %v8378
  %v8389 = vcombine.high %v8385, %v8385
  %v8390 = vcombine.high %v7298, %v7298
  %v8392 = vunpack.c.l.s4 1966171168
  %v8393 = vunpack.c.0.s8 %v8392
  %v8394 = vlaneseq
  %v8395 = vshrl.u32 %v8394, 7
  %v8396 = vsub.s32 %v8393, %v8395
  %v8397 = vrot.slane %v7298, %v8396
  %v8399 = vunpack.c.l.s4 1966171168
  %v8400 = vunpack.c.0.s8 %v8399
  %v8401 = vlaneseq
  %v8402 = vshrl.u32 %v8401, 7
  %v8403 = vsub.s32 %v8400, %v8402
  %v8404 = vrot.slane %v8390, %v8403
  %v8405 = vcombine.high %v8397, %v8397
  %v8406 = vcombine.high %v8404, %v8404
  %v8408 = vunpack.c.l.s4 1966171168
  %v8409 = vunpack.c.0.s8 %v8408
  %v8410 = vlaneseq
  %v8411 = vshrl.u32 %v8410, 7
  %v8412 = vsub.s32 %v8409, %v8411
  %v8413 = vrot.slane %v8397, %v8412
  %v8415 = vunpack.c.l.s4 1966171168
  %v8416 = vunpack.c.0.s8 %v8415
  %v8417 = vlaneseq
  %v8418 = vshrl.u32 %v8417, 7
  %v8419 = vsub.s32 %v8416, %v8418
  %v8420 = vrot.slane %v8404, %v8419
  %v8422 = vunpack.c.l.s4 1966171168
  %v8423 = vunpack.c.0.s8 %v8422
  %v8424 = vlaneseq
  %v8425 = vshrl.u32 %v8424, 7
  %v8426 = vsub.s32 %v8423, %v8425
  %v8427 = vrot.slane %v8405, %v8426
  %v8429 = vunpack.c.l.s4 1966171168
  %v8430 = vunpack.c.0.s8 %v8429
  %v8431 = vlaneseq
  %v8432 = vshrl.u32 %v8431, 7
  %v8433 = vsub.s32 %v8430, %v8432
  %v8434 = vrot.slane %v8406, %v8433
  %v8435 = vcombine.high %v8413, %v8413
  %v8436 = vcombine.high %v8420, %v8420
  %v8437 = vcombine.high %v8427, %v8427
  %v8438 = vcombine.high %v8434, %v8434
  %v8439 = vcombine.high %v7303, %v7303
  %v8441 = vunpack.c.l.s4 1966171168
  %v8442 = vunpack.c.0.s8 %v8441
  %v8443 = vlaneseq
  %v8444 = vshrl.u32 %v8443, 7
  %v8445 = vsub.s32 %v8442, %v8444
  %v8446 = vrot.slane %v7303, %v8445
  %v8448 = vunpack.c.l.s4 1966171168
  %v8449 = vunpack.c.0.s8 %v8448
  %v8450 = vlaneseq
  %v8451 = vshrl.u32 %v8450, 7
  %v8452 = vsub.s32 %v8449, %v8451
  %v8453 = vrot.slane %v8439, %v8452
  %v8454 = vcombine.high %v8446, %v8446
  %v8455 = vcombine.high %v8453, %v8453
  %v8457 = vunpack.c.l.s4 1966171168
  %v8458 = vunpack.c.0.s8 %v8457
  %v8459 = vlaneseq
  %v8460 = vshrl.u32 %v8459, 7
  %v8461 = vsub.s32 %v8458, %v8460
  %v8462 = vrot.slane %v8446, %v8461
  %v8464 = vunpack.c.l.s4 1966171168
  %v8465 = vunpack.c.0.s8 %v8464
  %v8466 = vlaneseq
  %v8467 = vshrl.u32 %v8466, 7
  %v8468 = vsub.s32 %v8465, %v8467
  %v8469 = vrot.slane %v8453, %v8468
  %v8471 = vunpack.c.l.s4 1966171168
  %v8472 = vunpack.c.0.s8 %v8471
  %v8473 = vlaneseq
  %v8474 = vshrl.u32 %v8473, 7
  %v8475 = vsub.s32 %v8472, %v8474
  %v8476 = vrot.slane %v8454, %v8475
  %v8478 = vunpack.c.l.s4 1966171168
  %v8479 = vunpack.c.0.s8 %v8478
  %v8480 = vlaneseq
  %v8481 = vshrl.u32 %v8480, 7
  %v8482 = vsub.s32 %v8479, %v8481
  %v8483 = vrot.slane %v8455, %v8482
  %v8484 = vcombine.high %v8462, %v8462
  %v8485 = vcombine.high %v8469, %v8469
  %v8486 = vcombine.high %v8476, %v8476
  %v8487 = vcombine.high %v8483, %v8483
  %v8488 = vcombine.high %v7306, %v7306
  %v8490 = vunpack.c.l.s4 1966171168
  %v8491 = vunpack.c.0.s8 %v8490
  %v8492 = vlaneseq
  %v8493 = vshrl.u32 %v8492, 7
  %v8494 = vsub.s32 %v8491, %v8493
  %v8495 = vrot.slane %v7306, %v8494
  %v8497 = vunpack.c.l.s4 1966171168
  %v8498 = vunpack.c.0.s8 %v8497
  %v8499 = vlaneseq
  %v8500 = vshrl.u32 %v8499, 7
  %v8501 = vsub.s32 %v8498, %v8500
  %v8502 = vrot.slane %v8488, %v8501
  %v8503 = vcombine.high %v8495, %v8495
  %v8504 = vcombine.high %v8502, %v8502
  %v8506 = vunpack.c.l.s4 1966171168
  %v8507 = vunpack.c.0.s8 %v8506
  %v8508 = vlaneseq
  %v8509 = vshrl.u32 %v8508, 7
  %v8510 = vsub.s32 %v8507, %v8509
  %v8511 = vrot.slane %v8495, %v8510
  %v8513 = vunpack.c.l.s4 1966171168
  %v8514 = vunpack.c.0.s8 %v8513
  %v8515 = vlaneseq
  %v8516 = vshrl.u32 %v8515, 7
  %v8517 = vsub.s32 %v8514, %v8516
  %v8518 = vrot.slane %v8502, %v8517
  %v8520 = vunpack.c.l.s4 1966171168
  %v8521 = vunpack.c.0.s8 %v8520
  %v8522 = vlaneseq
  %v8523 = vshrl.u32 %v8522, 7
  %v8524 = vsub.s32 %v8521, %v8523
  %v8525 = vrot.slane %v8503, %v8524
  %v8527 = vunpack.c.l.s4 1966171168
  %v8528 = vunpack.c.0.s8 %v8527
  %v8529 = vlaneseq
  %v8530 = vshrl.u32 %v8529, 7
  %v8531 = vsub.s32 %v8528, %v8530
  %v8532 = vrot.slane %v8504, %v8531
  %v8533 = vcombine.high %v8511, %v8511
  %v8534 = vcombine.high %v8518, %v8518
  %v8535 = vcombine.high %v8525, %v8525
  %v8536 = vcombine.high %v8532, %v8532
  %v8537 = vcombine.high %v7311, %v7311
  %v8539 = vunpack.c.l.s4 1966171168
  %v8540 = vunpack.c.0.s8 %v8539
  %v8541 = vlaneseq
  %v8542 = vshrl.u32 %v8541, 7
  %v8543 = vsub.s32 %v8540, %v8542
  %v8544 = vrot.slane %v7311, %v8543
  %v8546 = vunpack.c.l.s4 1966171168
  %v8547 = vunpack.c.0.s8 %v8546
  %v8548 = vlaneseq
  %v8549 = vshrl.u32 %v8548, 7
  %v8550 = vsub.s32 %v8547, %v8549
  %v8551 = vrot.slane %v8537, %v8550
  %v8552 = vcombine.high %v8544, %v8544
  %v8553 = vcombine.high %v8551, %v8551
  %v8555 = vunpack.c.l.s4 1966171168
  %v8556 = vunpack.c.0.s8 %v8555
  %v8557 = vlaneseq
  %v8558 = vshrl.u32 %v8557, 7
  %v8559 = vsub.s32 %v8556, %v8558
  %v8560 = vrot.slane %v8544, %v8559
  %v8562 = vunpack.c.l.s4 1966171168
  %v8563 = vunpack.c.0.s8 %v8562
  %v8564 = vlaneseq
  %v8565 = vshrl.u32 %v8564, 7
  %v8566 = vsub.s32 %v8563, %v8565
  %v8567 = vrot.slane %v8551, %v8566
  %v8569 = vunpack.c.l.s4 1966171168
  %v8570 = vunpack.c.0.s8 %v8569
  %v8571 = vlaneseq
  %v8572 = vshrl.u32 %v8571, 7
  %v8573 = vsub.s32 %v8570, %v8572
  %v8574 = vrot.slane %v8552, %v8573
  %v8576 = vunpack.c.l.s4 1966171168
  %v8577 = vunpack.c.0.s8 %v8576
  %v8578 = vlaneseq
  %v8579 = vshrl.u32 %v8578, 7
  %v8580 = vsub.s32 %v8577, %v8579
  %v8581 = vrot.slane %v8553, %v8580
  %v8582 = vcombine.high %v8560, %v8560
  %v8583 = vcombine.high %v8567, %v8567
  %v8584 = vcombine.high %v8574, %v8574
  %v8585 = vcombine.high %v8581, %v8581
  %v8586 = vcombine.high %v7314, %v7314
  %v8588 = vunpack.c.l.s4 1966171168
  %v8589 = vunpack.c.0.s8 %v8588
  %v8590 = vlaneseq
  %v8591 = vshrl.u32 %v8590, 7
  %v8592 = vsub.s32 %v8589, %v8591
  %v8593 = vrot.slane %v7314, %v8592
  %v8595 = vunpack.c.l.s4 1966171168
  %v8596 = vunpack.c.0.s8 %v8595
  %v8597 = vlaneseq
  %v8598 = vshrl.u32 %v8597, 7
  %v8599 = vsub.s32 %v8596, %v8598
  %v8600 = vrot.slane %v8586, %v8599
  %v8601 = vcombine.high %v8593, %v8593
  %v8602 = vcombine.high %v8600, %v8600
  %v8604 = vunpack.c.l.s4 1966171168
  %v8605 = vunpack.c.0.s8 %v8604
  %v8606 = vlaneseq
  %v8607 = vshrl.u32 %v8606, 7
  %v8608 = vsub.s32 %v8605, %v8607
  %v8609 = vrot.slane %v8593, %v8608
  %v8611 = vunpack.c.l.s4 1966171168
  %v8612 = vunpack.c.0.s8 %v8611
  %v8613 = vlaneseq
  %v8614 = vshrl.u32 %v8613, 7
  %v8615 = vsub.s32 %v8612, %v8614
  %v8616 = vrot.slane %v8600, %v8615
  %v8618 = vunpack.c.l.s4 1966171168
  %v8619 = vunpack.c.0.s8 %v8618
  %v8620 = vlaneseq
  %v8621 = vshrl.u32 %v8620, 7
  %v8622 = vsub.s32 %v8619, %v8621
  %v8623 = vrot.slane %v8601, %v8622
  %v8625 = vunpack.c.l.s4 1966171168
  %v8626 = vunpack.c.0.s8 %v8625
  %v8627 = vlaneseq
  %v8628 = vshrl.u32 %v8627, 7
  %v8629 = vsub.s32 %v8626, %v8628
  %v8630 = vrot.slane %v8602, %v8629
  %v8631 = vcombine.high %v8609, %v8609
  %v8632 = vcombine.high %v8616, %v8616
  %v8633 = vcombine.high %v8623, %v8623
  %v8634 = vcombine.high %v8630, %v8630
  %v8635 = vcombine.high %v7319, %v7319
  %v8637 = vunpack.c.l.s4 1966171168
  %v8638 = vunpack.c.0.s8 %v8637
  %v8639 = vlaneseq
  %v8640 = vshrl.u32 %v8639, 7
  %v8641 = vsub.s32 %v8638, %v8640
  %v8642 = vrot.slane %v7319, %v8641
  %v8644 = vunpack.c.l.s4 1966171168
  %v8645 = vunpack.c.0.s8 %v8644
  %v8646 = vlaneseq
  %v8647 = vshrl.u32 %v8646, 7
  %v8648 = vsub.s32 %v8645, %v8647
  %v8649 = vrot.slane %v8635, %v8648
  %v8650 = vcombine.high %v8642, %v8642
  %v8651 = vcombine.high %v8649, %v8649
  %v8653 = vunpack.c.l.s4 1966171168
  %v8654 = vunpack.c.0.s8 %v8653
  %v8655 = vlaneseq
  %v8656 = vshrl.u32 %v8655, 7
  %v8657 = vsub.s32 %v8654, %v8656
  %v8658 = vrot.slane %v8642, %v8657
  %v8660 = vunpack.c.l.s4 1966171168
  %v8661 = vunpack.c.0.s8 %v8660
  %v8662 = vlaneseq
  %v8663 = vshrl.u32 %v8662, 7
  %v8664 = vsub.s32 %v8661, %v8663
  %v8665 = vrot.slane %v8649, %v8664
  %v8667 = vunpack.c.l.s4 1966171168
  %v8668 = vunpack.c.0.s8 %v8667
  %v8669 = vlaneseq
  %v8670 = vshrl.u32 %v8669, 7
  %v8671 = vsub.s32 %v8668, %v8670
  %v8672 = vrot.slane %v8650, %v8671
  %v8674 = vunpack.c.l.s4 1966171168
  %v8675 = vunpack.c.0.s8 %v8674
  %v8676 = vlaneseq
  %v8677 = vshrl.u32 %v8676, 7
  %v8678 = vsub.s32 %v8675, %v8677
  %v8679 = vrot.slane %v8651, %v8678
  %v8680 = vcombine.high %v8658, %v8658
  %v8681 = vcombine.high %v8665, %v8665
  %v8682 = vcombine.high %v8672, %v8672
  %v8683 = vcombine.high %v8679, %v8679
  %v8684 = vcombine.high %v7322, %v7322
  %v8686 = vunpack.c.l.s4 1966171168
  %v8687 = vunpack.c.0.s8 %v8686
  %v8688 = vlaneseq
  %v8689 = vshrl.u32 %v8688, 7
  %v8690 = vsub.s32 %v8687, %v8689
  %v8691 = vrot.slane %v7322, %v8690
  %v8693 = vunpack.c.l.s4 1966171168
  %v8694 = vunpack.c.0.s8 %v8693
  %v8695 = vlaneseq
  %v8696 = vshrl.u32 %v8695, 7
  %v8697 = vsub.s32 %v8694, %v8696
  %v8698 = vrot.slane %v8684, %v8697
  %v8699 = vcombine.high %v8691, %v8691
  %v8700 = vcombine.high %v8698, %v8698
  %v8702 = vunpack.c.l.s4 1966171168
  %v8703 = vunpack.c.0.s8 %v8702
  %v8704 = vlaneseq
  %v8705 = vshrl.u32 %v8704, 7
  %v8706 = vsub.s32 %v8703, %v8705
  %v8707 = vrot.slane %v8691, %v8706
  %v8709 = vunpack.c.l.s4 1966171168
  %v8710 = vunpack.c.0.s8 %v8709
  %v8711 = vlaneseq
  %v8712 = vshrl.u32 %v8711, 7
  %v8713 = vsub.s32 %v8710, %v8712
  %v8714 = vrot.slane %v8698, %v8713
  %v8716 = vunpack.c.l.s4 1966171168
  %v8717 = vunpack.c.0.s8 %v8716
  %v8718 = vlaneseq
  %v8719 = vshrl.u32 %v8718, 7
  %v8720 = vsub.s32 %v8717, %v8719
  %v8721 = vrot.slane %v8699, %v8720
  %v8723 = vunpack.c.l.s4 1966171168
  %v8724 = vunpack.c.0.s8 %v8723
  %v8725 = vlaneseq
  %v8726 = vshrl.u32 %v8725, 7
  %v8727 = vsub.s32 %v8724, %v8726
  %v8728 = vrot.slane %v8700, %v8727
  %v8729 = vcombine.high %v8707, %v8707
  %v8730 = vcombine.high %v8714, %v8714
  %v8731 = vcombine.high %v8721, %v8721
  %v8732 = vcombine.high %v8728, %v8728
  %v8734 = vunpack.c.l.s4 1966171168
  %v8735 = vunpack.c.0.s8 %v8734
  %v8736 = vlaneseq
  %v8737 = vshrl.u32 %v8736, 7
  %v8738 = vsub.s32 %v8735, %v8737
  %v8739 = vrot.slane %v7327, %v8738
  %v8740 = vcombine.high %v8739, %v8739
  %v8742 = vunpack.c.l.s4 1966171168
  %v8743 = vunpack.c.0.s8 %v8742
  %v8744 = vlaneseq
  %v8745 = vshrl.u32 %v8744, 7
  %v8746 = vsub.s32 %v8743, %v8745
  %v8747 = vrot.slane %v8739, %v8746
  %v8749 = vunpack.c.l.s4 1966171168
  %v8750 = vunpack.c.0.s8 %v8749
  %v8751 = vlaneseq
  %v8752 = vshrl.u32 %v8751, 7
  %v8753 = vsub.s32 %v8750, %v8752
  %v8754 = vrot.slane %v8740, %v8753
  %v8755 = vcombine.high %v8747, %v8747
  %v8756 = vcombine.high %v8754, %v8754
  %v8757 = vcombine.low %v7384, %v7398
  %v8758 = vcombine.low %v7406, %v7408
  %v8759 = vcombine.low %v7391, %v7405
  %v8760 = vcombine.low %v7407, %v7409
  %v8762 = vunpack.c.l.s4 1966171168
  %v8763 = vunpack.c.0.s8 %v8762
  %v8764 = vlaneseq
  %v8765 = vshrl.u32 %v8764, 7
  %v8766 = vsub.s32 %v8763, %v8765
  %v8767 = vrot.slane %v8757, %v8766
  %v8769 = vunpack.c.l.s4 1966171168
  %v8770 = vunpack.c.0.s8 %v8769
  %v8771 = vlaneseq
  %v8772 = vshrl.u32 %v8771, 7
  %v8773 = vsub.s32 %v8770, %v8772
  %v8774 = vrot.slane %v8758, %v8773
  %v8776 = vunpack.c.l.s4 1966171168
  %v8777 = vunpack.c.0.s8 %v8776
  %v8778 = vlaneseq
  %v8779 = vshrl.u32 %v8778, 7
  %v8780 = vsub.s32 %v8777, %v8779
  %v8781 = vrot.slane %v8759, %v8780
  %v8783 = vunpack.c.l.s4 1966171168
  %v8784 = vunpack.c.0.s8 %v8783
  %v8785 = vlaneseq
  %v8786 = vshrl.u32 %v8785, 7
  %v8787 = vsub.s32 %v8784, %v8786
  %v8788 = vrot.slane %v8760, %v8787
  %v8789 = vcombine.low %v8767, %v8774
  %v8790 = vcombine.low %v8781, %v8788
  %v8792 = vunpack.c.l.s4 1966171168
  %v8793 = vunpack.c.0.s8 %v8792
  %v8794 = vlaneseq
  %v8795 = vshrl.u32 %v8794, 7
  %v8796 = vsub.s32 %v8793, %v8795
  %v8797 = vrot.slane %v8789, %v8796
  %v8799 = vunpack.c.l.s4 1966171168
  %v8800 = vunpack.c.0.s8 %v8799
  %v8801 = vlaneseq
  %v8802 = vshrl.u32 %v8801, 7
  %v8803 = vsub.s32 %v8800, %v8802
  %v8804 = vrot.slane %v8790, %v8803
  %v8805 = vcombine.low %v8797, %v8804
  %v8806 = vcombine.low %v7433, %v7447
  %v8807 = vcombine.low %v7455, %v7457
  %v8808 = vcombine.low %v7440, %v7454
  %v8809 = vcombine.low %v7456, %v7458
  %v8811 = vunpack.c.l.s4 1966171168
  %v8812 = vunpack.c.0.s8 %v8811
  %v8813 = vlaneseq
  %v8814 = vshrl.u32 %v8813, 7
  %v8815 = vsub.s32 %v8812, %v8814
  %v8816 = vrot.slane %v8806, %v8815
  %v8818 = vunpack.c.l.s4 1966171168
  %v8819 = vunpack.c.0.s8 %v8818
  %v8820 = vlaneseq
  %v8821 = vshrl.u32 %v8820, 7
  %v8822 = vsub.s32 %v8819, %v8821
  %v8823 = vrot.slane %v8807, %v8822
  %v8825 = vunpack.c.l.s4 1966171168
  %v8826 = vunpack.c.0.s8 %v8825
  %v8827 = vlaneseq
  %v8828 = vshrl.u32 %v8827, 7
  %v8829 = vsub.s32 %v8826, %v8828
  %v8830 = vrot.slane %v8808, %v8829
  %v8832 = vunpack.c.l.s4 1966171168
  %v8833 = vunpack.c.0.s8 %v8832
  %v8834 = vlaneseq
  %v8835 = vshrl.u32 %v8834, 7
  %v8836 = vsub.s32 %v8833, %v8835
  %v8837 = vrot.slane %v8809, %v8836
  %v8838 = vcombine.low %v8816, %v8823
  %v8839 = vcombine.low %v8830, %v8837
  %v8841 = vunpack.c.l.s4 1966171168
  %v8842 = vunpack.c.0.s8 %v8841
  %v8843 = vlaneseq
  %v8844 = vshrl.u32 %v8843, 7
  %v8845 = vsub.s32 %v8842, %v8844
  %v8846 = vrot.slane %v8838, %v8845
  %v8848 = vunpack.c.l.s4 1966171168
  %v8849 = vunpack.c.0.s8 %v8848
  %v8850 = vlaneseq
  %v8851 = vshrl.u32 %v8850, 7
  %v8852 = vsub.s32 %v8849, %v8851
  %v8853 = vrot.slane %v8839, %v8852
  %v8854 = vcombine.low %v8846, %v8853
  %v8855 = vcombine.low %v7482, %v7496
  %v8857 = vunpack.c.l.s4 1966171168
  %v8858 = vunpack.c.0.s8 %v8857
  %v8859 = vlaneseq
  %v8860 = vshrl.u32 %v8859, 7
  %v8861 = vsub.s32 %v8858, %v8860
  %v8862 = vrot.slane %v8855, %v8861
  %v8864 = vunpack.c.l.s4 1966171168
  %v8865 = vunpack.c.0.s8 %v8864
  %v8866 = vlaneseq
  %v8867 = vshrl.u32 %v8866, 7
  %v8868 = vsub.s32 %v8865, %v8867
  %v8869 = vrot.slane %v7504, %v8868
  %v8870 = vcombine.low %v8862, %v8869
  %v8872 = vunpack.c.l.s4 1966171168
  %v8873 = vunpack.c.0.s8 %v8872
  %v8874 = vlaneseq
  %v8875 = vshrl.u32 %v8874, 7
  %v8876 = vsub.s32 %v8873, %v8875
  %v8877 = vrot.slane %v8870, %v8876
  %v8878 = vcombine.low %v7506, %v7489
  %v8879 = vcombine.low %v7503, %v7505
  %v8880 = vcombine.low %v7507, %v7531
  %v8881 = vcombine.low %v7545, %v7553
  %v8883 = vunpack.c.l.s4 1966171168
  %v8884 = vunpack.c.0.s8 %v8883
  %v8885 = vlaneseq
  %v8886 = vshrl.u32 %v8885, 7
  %v8887 = vsub.s32 %v8884, %v8886
  %v8888 = vrot.slane %v8878, %v8887
  %v8890 = vunpack.c.l.s4 1966171168
  %v8891 = vunpack.c.0.s8 %v8890
  %v8892 = vlaneseq
  %v8893 = vshrl.u32 %v8892, 7
  %v8894 = vsub.s32 %v8891, %v8893
  %v8895 = vrot.slane %v8879, %v8894
  %v8897 = vunpack.c.l.s4 1966171168
  %v8898 = vunpack.c.0.s8 %v8897
  %v8899 = vlaneseq
  %v8900 = vshrl.u32 %v8899, 7
  %v8901 = vsub.s32 %v8898, %v8900
  %v8902 = vrot.slane %v8880, %v8901
  %v8904 = vunpack.c.l.s4 1966171168
  %v8905 = vunpack.c.0.s8 %v8904
  %v8906 = vlaneseq
  %v8907 = vshrl.u32 %v8906, 7
  %v8908 = vsub.s32 %v8905, %v8907
  %v8909 = vrot.slane %v8881, %v8908
  %v8910 = vcombine.low %v8888, %v8895
  %v8911 = vcombine.low %v8902, %v8909
  %v8913 = vunpack.c.l.s4 1966171168
  %v8914 = vunpack.c.0.s8 %v8913
  %v8915 = vlaneseq
  %v8916 = vshrl.u32 %v8915, 7
  %v8917 = vsub.s32 %v8914, %v8916
  %v8918 = vrot.slane %v8910, %v8917
  %v8920 = vunpack.c.l.s4 1966171168
  %v8921 = vunpack.c.0.s8 %v8920
  %v8922 = vlaneseq
  %v8923 = vshrl.u32 %v8922, 7
  %v8924 = vsub.s32 %v8921, %v8923
  %v8925 = vrot.slane %v8911, %v8924
  %v8926 = vcombine.low %v8918, %v8925
  %v8927 = vcombine.low %v7555, %v7538
  %v8928 = vcombine.low %v7552, %v7554
  %v8929 = vcombine.low %v7556, %v7580
  %v8930 = vcombine.low %v7594, %v7602
  %v8932 = vunpack.c.l.s4 1966171168
  %v8933 = vunpack.c.0.s8 %v8932
  %v8934 = vlaneseq
  %v8935 = vshrl.u32 %v8934, 7
  %v8936 = vsub.s32 %v8933, %v8935
  %v8937 = vrot.slane %v8927, %v8936
  %v8939 = vunpack.c.l.s4 1966171168
  %v8940 = vunpack.c.0.s8 %v8939
  %v8941 = vlaneseq
  %v8942 = vshrl.u32 %v8941, 7
  %v8943 = vsub.s32 %v8940, %v8942
  %v8944 = vrot.slane %v8928, %v8943
  %v8946 = vunpack.c.l.s4 1966171168
  %v8947 = vunpack.c.0.s8 %v8946
  %v8948 = vlaneseq
  %v8949 = vshrl.u32 %v8948, 7
  %v8950 = vsub.s32 %v8947, %v8949
  %v8951 = vrot.slane %v8929, %v8950
  %v8953 = vunpack.c.l.s4 1966171168
  %v8954 = vunpack.c.0.s8 %v8953
  %v8955 = vlaneseq
  %v8956 = vshrl.u32 %v8955, 7
  %v8957 = vsub.s32 %v8954, %v8956
  %v8958 = vrot.slane %v8930, %v8957
  %v8959 = vcombine.low %v8937, %v8944
  %v8960 = vcombine.low %v8951, %v8958
  %v8962 = vunpack.c.l.s4 1966171168
  %v8963 = vunpack.c.0.s8 %v8962
  %v8964 = vlaneseq
  %v8965 = vshrl.u32 %v8964, 7
  %v8966 = vsub.s32 %v8963, %v8965
  %v8967 = vrot.slane %v8959, %v8966
  %v8969 = vunpack.c.l.s4 1966171168
  %v8970 = vunpack.c.0.s8 %v8969
  %v8971 = vlaneseq
  %v8972 = vshrl.u32 %v8971, 7
  %v8973 = vsub.s32 %v8970, %v8972
  %v8974 = vrot.slane %v8960, %v8973
  %v8975 = vcombine.low %v8967, %v8974
  %v8976 = vcombine.low %v7604, %v7587
  %v8978 = vunpack.c.l.s4 1966171168
  %v8979 = vunpack.c.0.s8 %v8978
  %v8980 = vlaneseq
  %v8981 = vshrl.u32 %v8980, 7
  %v8982 = vsub.s32 %v8979, %v8981
  %v8983 = vrot.slane %v8976, %v8982
  %v8985 = vunpack.c.l.s4 1966171168
  %v8986 = vunpack.c.0.s8 %v8985
  %v8987 = vlaneseq
  %v8988 = vshrl.u32 %v8987, 7
  %v8989 = vsub.s32 %v8986, %v8988
  %v8990 = vrot.slane %v7601, %v8989
  %v8991 = vcombine.low %v8983, %v8990
  %v8993 = vunpack.c.l.s4 1966171168
  %v8994 = vunpack.c.0.s8 %v8993
  %v8995 = vlaneseq
  %v8996 = vshrl.u32 %v8995, 7
  %v8997 = vsub.s32 %v8994, %v8996
  %v8998 = vrot.slane %v8991, %v8997
  %v8999 = vcombine.low %v7603, %v7605
  %v9000 = vcombine.low %v7629, %v7643
  %v9001 = vcombine.low %v7651, %v7653
  %v9002 = vcombine.low %v7636, %v7650
  %v9004 = vunpack.c.l.s4 1966171168
  %v9005 = vunpack.c.0.s8 %v9004
  %v9006 = vlaneseq
  %v9007 = vshrl.u32 %v9006, 7
  %v9008 = vsub.s32 %v9005, %v9007
  %v9009 = vrot.slane %v8999, %v9008
  %v9011 = vunpack.c.l.s4 1966171168
  %v9012 = vunpack.c.0.s8 %v9011
  %v9013 = vlaneseq
  %v9014 = vshrl.u32 %v9013, 7
  %v9015 = vsub.s32 %v9012, %v9014
  %v9016 = vrot.slane %v9000, %v9015
  %v9018 = vunpack.c.l.s4 1966171168
  %v9019 = vunpack.c.0.s8 %v9018
  %v9020 = vlaneseq
  %v9021 = vshrl.u32 %v9020, 7
  %v9022 = vsub.s32 %v9019, %v9021
  %v9023 = vrot.slane %v9001, %v9022
  %v9025 = vunpack.c.l.s4 1966171168
  %v9026 = vunpack.c.0.s8 %v9025
  %v9027 = vlaneseq
  %v9028 = vshrl.u32 %v9027, 7
  %v9029 = vsub.s32 %v9026, %v9028
  %v9030 = vrot.slane %v9002, %v9029
  %v9031 = vcombine.low %v9009, %v9016
  %v9032 = vcombine.low %v9023, %v9030
  %v9034 = vunpack.c.l.s4 1966171168
  %v9035 = vunpack.c.0.s8 %v9034
  %v9036 = vlaneseq
  %v9037 = vshrl.u32 %v9036, 7
  %v9038 = vsub.s32 %v9035, %v9037
  %v9039 = vrot.slane %v9031, %v9038
  %v9041 = vunpack.c.l.s4 1966171168
  %v9042 = vunpack.c.0.s8 %v9041
  %v9043 = vlaneseq
  %v9044 = vshrl.u32 %v9043, 7
  %v9045 = vsub.s32 %v9042, %v9044
  %v9046 = vrot.slane %v9032, %v9045
  %v9047 = vcombine.low %v9039, %v9046
  %v9048 = vcombine.low %v7652, %v7654
  %v9049 = vcombine.low %v7678, %v7692
  %v9050 = vcombine.low %v7700, %v7702
  %v9051 = vcombine.low %v7685, %v7699
  %v9053 = vunpack.c.l.s4 1966171168
  %v9054 = vunpack.c.0.s8 %v9053
  %v9055 = vlaneseq
  %v9056 = vshrl.u32 %v9055, 7
  %v9057 = vsub.s32 %v9054, %v9056
  %v9058 = vrot.slane %v9048, %v9057
  %v9060 = vunpack.c.l.s4 1966171168
  %v9061 = vunpack.c.0.s8 %v9060
  %v9062 = vlaneseq
  %v9063 = vshrl.u32 %v9062, 7
  %v9064 = vsub.s32 %v9061, %v9063
  %v9065 = vrot.slane %v9049, %v9064
  %v9067 = vunpack.c.l.s4 1966171168
  %v9068 = vunpack.c.0.s8 %v9067
  %v9069 = vlaneseq
  %v9070 = vshrl.u32 %v9069, 7
  %v9071 = vsub.s32 %v9068, %v9070
  %v9072 = vrot.slane %v9050, %v9071
  %v9074 = vunpack.c.l.s4 1966171168
  %v9075 = vunpack.c.0.s8 %v9074
  %v9076 = vlaneseq
  %v9077 = vshrl.u32 %v9076, 7
  %v9078 = vsub.s32 %v9075, %v9077
  %v9079 = vrot.slane %v9051, %v9078
  %v9080 = vcombine.low %v9058, %v9065
  %v9081 = vcombine.low %v9072, %v9079
  %v9083 = vunpack.c.l.s4 1966171168
  %v9084 = vunpack.c.0.s8 %v9083
  %v9085 = vlaneseq
  %v9086 = vshrl.u32 %v9085, 7
  %v9087 = vsub.s32 %v9084, %v9086
  %v9088 = vrot.slane %v9080, %v9087
  %v9090 = vunpack.c.l.s4 1966171168
  %v9091 = vunpack.c.0.s8 %v9090
  %v9092 = vlaneseq
  %v9093 = vshrl.u32 %v9092, 7
  %v9094 = vsub.s32 %v9091, %v9093
  %v9095 = vrot.slane %v9081, %v9094
  %v9096 = vcombine.low %v9088, %v9095
  %v9097 = vcombine.low %v7701, %v7703
  %v9099 = vunpack.c.l.s4 1966171168
  %v9100 = vunpack.c.0.s8 %v9099
  %v9101 = vlaneseq
  %v9102 = vshrl.u32 %v9101, 7
  %v9103 = vsub.s32 %v9100, %v9102
  %v9104 = vrot.slane %v9097, %v9103
  %v9106 = vunpack.c.l.s4 1966171168
  %v9107 = vunpack.c.0.s8 %v9106
  %v9108 = vlaneseq
  %v9109 = vshrl.u32 %v9108, 7
  %v9110 = vsub.s32 %v9107, %v9109
  %v9111 = vrot.slane %v7727, %v9110
  %v9112 = vcombine.low %v9104, %v9111
  %v9114 = vunpack.c.l.s4 1966171168
  %v9115 = vunpack.c.0.s8 %v9114
  %v9116 = vlaneseq
  %v9117 = vshrl.u32 %v9116, 7
  %v9118 = vsub.s32 %v9115, %v9117
  %v9119 = vrot.slane %v9112, %v9118
  %v9120 = vcombine.low %v7741, %v7749
  %v9121 = vcombine.low %v7751, %v7734
  %v9122 = vcombine.low %v7748, %v7750
  %v9123 = vcombine.low %v7752, %v7776
  %v9125 = vunpack.c.l.s4 1966171168
  %v9126 = vunpack.c.0.s8 %v9125
  %v9127 = vlaneseq
  %v9128 = vshrl.u32 %v9127, 7
  %v9129 = vsub.s32 %v9126, %v9128
  %v9130 = vrot.slane %v9120, %v9129
  %v9132 = vunpack.c.l.s4 1966171168
  %v9133 = vunpack.c.0.s8 %v9132
  %v9134 = vlaneseq
  %v9135 = vshrl.u32 %v9134, 7
  %v9136 = vsub.s32 %v9133, %v9135
  %v9137 = vrot.slane %v9121, %v9136
  %v9139 = vunpack.c.l.s4 1966171168
  %v9140 = vunpack.c.0.s8 %v9139
  %v9141 = vlaneseq
  %v9142 = vshrl.u32 %v9141, 7
  %v9143 = vsub.s32 %v9140, %v9142
  %v9144 = vrot.slane %v9122, %v9143
  %v9146 = vunpack.c.l.s4 1966171168
  %v9147 = vunpack.c.0.s8 %v9146
  %v9148 = vlaneseq
  %v9149 = vshrl.u32 %v9148, 7
  %v9150 = vsub.s32 %v9147, %v9149
  %v9151 = vrot.slane %v9123, %v9150
  %v9152 = vcombine.low %v9130, %v9137
  %v9153 = vcombine.low %v9144, %v9151
  %v9155 = vunpack.c.l.s4 1966171168
  %v9156 = vunpack.c.0.s8 %v9155
  %v9157 = vlaneseq
  %v9158 = vshrl.u32 %v9157, 7
  %v9159 = vsub.s32 %v9156, %v9158
  %v9160 = vrot.slane %v9152, %v9159
  %v9162 = vunpack.c.l.s4 1966171168
  %v9163 = vunpack.c.0.s8 %v9162
  %v9164 = vlaneseq
  %v9165 = vshrl.u32 %v9164, 7
  %v9166 = vsub.s32 %v9163, %v9165
  %v9167 = vrot.slane %v9153, %v9166
  %v9168 = vcombine.low %v9160, %v9167
  %v9169 = vcombine.low %v7790, %v7798
  %v9170 = vcombine.low %v7800, %v7783
  %v9171 = vcombine.low %v7797, %v7799
  %v9172 = vcombine.low %v7801, %v7825
  %v9174 = vunpack.c.l.s4 1966171168
  %v9175 = vunpack.c.0.s8 %v9174
  %v9176 = vlaneseq
  %v9177 = vshrl.u32 %v9176, 7
  %v9178 = vsub.s32 %v9175, %v9177
  %v9179 = vrot.slane %v9169, %v9178
  %v9181 = vunpack.c.l.s4 1966171168
  %v9182 = vunpack.c.0.s8 %v9181
  %v9183 = vlaneseq
  %v9184 = vshrl.u32 %v9183, 7
  %v9185 = vsub.s32 %v9182, %v9184
  %v9186 = vrot.slane %v9170, %v9185
  %v9188 = vunpack.c.l.s4 1966171168
  %v9189 = vunpack.c.0.s8 %v9188
  %v9190 = vlaneseq
  %v9191 = vshrl.u32 %v9190, 7
  %v9192 = vsub.s32 %v9189, %v9191
  %v9193 = vrot.slane %v9171, %v9192
  %v9195 = vunpack.c.l.s4 1966171168
  %v9196 = vunpack.c.0.s8 %v9195
  %v9197 = vlaneseq
  %v9198 = vshrl.u32 %v9197, 7
  %v9199 = vsub.s32 %v9196, %v9198
  %v9200 = vrot.slane %v9172, %v9199
  %v9201 = vcombine.low %v9179, %v9186
  %v9202 = vcombine.low %v9193, %v9200
  %v9204 = vunpack.c.l.s4 1966171168
  %v9205 = vunpack.c.0.s8 %v9204
  %v9206 = vlaneseq
  %v9207 = vshrl.u32 %v9206, 7
  %v9208 = vsub.s32 %v9205, %v9207
  %v9209 = vrot.slane %v9201, %v9208
  %v9211 = vunpack.c.l.s4 1966171168
  %v9212 = vunpack.c.0.s8 %v9211
  %v9213 = vlaneseq
  %v9214 = vshrl.u32 %v9213, 7
  %v9215 = vsub.s32 %v9212, %v9214
  %v9216 = vrot.slane %v9202, %v9215
  %v9217 = vcombine.low %v9209, %v9216
  %v9218 = vcombine.low %v7839, %v7847
  %v9220 = vunpack.c.l.s4 1966171168
  %v9221 = vunpack.c.0.s8 %v9220
  %v9222 = vlaneseq
  %v9223 = vshrl.u32 %v9222, 7
  %v9224 = vsub.s32 %v9221, %v9223
  %v9225 = vrot.slane %v9218, %v9224
  %v9227 = vunpack.c.l.s4 1966171168
  %v9228 = vunpack.c.0.s8 %v9227
  %v9229 = vlaneseq
  %v9230 = vshrl.u32 %v9229, 7
  %v9231 = vsub.s32 %v9228, %v9230
  %v9232 = vrot.slane %v7849, %v9231
  %v9233 = vcombine.low %v9225, %v9232
  %v9235 = vunpack.c.l.s4 1966171168
  %v9236 = vunpack.c.0.s8 %v9235
  %v9237 = vlaneseq
  %v9238 = vshrl.u32 %v9237, 7
  %v9239 = vsub.s32 %v9236, %v9238
  %v9240 = vrot.slane %v9233, %v9239
  %v9241 = vcombine.low %v7832, %v7846
  %v9242 = vcombine.low %v7848, %v7850
  %v9243 = vcombine.low %v7874, %v7888
  %v9244 = vcombine.low %v7896, %v7898
  %v9246 = vunpack.c.l.s4 1966171168
  %v9247 = vunpack.c.0.s8 %v9246
  %v9248 = vlaneseq
  %v9249 = vshrl.u32 %v9248, 7
  %v9250 = vsub.s32 %v9247, %v9249
  %v9251 = vrot.slane %v9241, %v9250
  %v9253 = vunpack.c.l.s4 1966171168
  %v9254 = vunpack.c.0.s8 %v9253
  %v9255 = vlaneseq
  %v9256 = vshrl.u32 %v9255, 7
  %v9257 = vsub.s32 %v9254, %v9256
  %v9258 = vrot.slane %v9242, %v9257
  %v9260 = vunpack.c.l.s4 1966171168
  %v9261 = vunpack.c.0.s8 %v9260
  %v9262 = vlaneseq
  %v9263 = vshrl.u32 %v9262, 7
  %v9264 = vsub.s32 %v9261, %v9263
  %v9265 = vrot.slane %v9243, %v9264
  %v9267 = vunpack.c.l.s4 1966171168
  %v9268 = vunpack.c.0.s8 %v9267
  %v9269 = vlaneseq
  %v9270 = vshrl.u32 %v9269, 7
  %v9271 = vsub.s32 %v9268, %v9270
  %v9272 = vrot.slane %v9244, %v9271
  %v9273 = vcombine.low %v9251, %v9258
  %v9274 = vcombine.low %v9265, %v9272
  %v9276 = vunpack.c.l.s4 1966171168
  %v9277 = vunpack.c.0.s8 %v9276
  %v9278 = vlaneseq
  %v9279 = vshrl.u32 %v9278, 7
  %v9280 = vsub.s32 %v9277, %v9279
  %v9281 = vrot.slane %v9273, %v9280
  %v9283 = vunpack.c.l.s4 1966171168
  %v9284 = vunpack.c.0.s8 %v9283
  %v9285 = vlaneseq
  %v9286 = vshrl.u32 %v9285, 7
  %v9287 = vsub.s32 %v9284, %v9286
  %v9288 = vrot.slane %v9274, %v9287
  %v9289 = vcombine.low %v9281, %v9288
  %v9290 = vcombine.low %v7881, %v7895
  %v9291 = vcombine.low %v7897, %v7899
  %v9292 = vcombine.low %v7923, %v7937
  %v9293 = vcombine.low %v7945, %v7947
  %v9295 = vunpack.c.l.s4 1966171168
  %v9296 = vunpack.c.0.s8 %v9295
  %v9297 = vlaneseq
  %v9298 = vshrl.u32 %v9297, 7
  %v9299 = vsub.s32 %v9296, %v9298
  %v9300 = vrot.slane %v9290, %v9299
  %v9302 = vunpack.c.l.s4 1966171168
  %v9303 = vunpack.c.0.s8 %v9302
  %v9304 = vlaneseq
  %v9305 = vshrl.u32 %v9304, 7
  %v9306 = vsub.s32 %v9303, %v9305
  %v9307 = vrot.slane %v9291, %v9306
  %v9309 = vunpack.c.l.s4 1966171168
  %v9310 = vunpack.c.0.s8 %v9309
  %v9311 = vlaneseq
  %v9312 = vshrl.u32 %v9311, 7
  %v9313 = vsub.s32 %v9310, %v9312
  %v9314 = vrot.slane %v9292, %v9313
  %v9316 = vunpack.c.l.s4 1966171168
  %v9317 = vunpack.c.0.s8 %v9316
  %v9318 = vlaneseq
  %v9319 = vshrl.u32 %v9318, 7
  %v9320 = vsub.s32 %v9317, %v9319
  %v9321 = vrot.slane %v9293, %v9320
  %v9322 = vcombine.low %v9300, %v9307
  %v9323 = vcombine.low %v9314, %v9321
  %v9325 = vunpack.c.l.s4 1966171168
  %v9326 = vunpack.c.0.s8 %v9325
  %v9327 = vlaneseq
  %v9328 = vshrl.u32 %v9327, 7
  %v9329 = vsub.s32 %v9326, %v9328
  %v9330 = vrot.slane %v9322, %v9329
  %v9332 = vunpack.c.l.s4 1966171168
  %v9333 = vunpack.c.0.s8 %v9332
  %v9334 = vlaneseq
  %v9335 = vshrl.u32 %v9334, 7
  %v9336 = vsub.s32 %v9333, %v9335
  %v9337 = vrot.slane %v9323, %v9336
  %v9338 = vcombine.low %v9330, %v9337
  %v9339 = vcombine.low %v7930, %v7944
  %v9341 = vunpack.c.l.s4 1966171168
  %v9342 = vunpack.c.0.s8 %v9341
  %v9343 = vlaneseq
  %v9344 = vshrl.u32 %v9343, 7
  %v9345 = vsub.s32 %v9342, %v9344
  %v9346 = vrot.slane %v9339, %v9345
  %v9348 = vunpack.c.l.s4 1966171168
  %v9349 = vunpack.c.0.s8 %v9348
  %v9350 = vlaneseq
  %v9351 = vshrl.u32 %v9350, 7
  %v9352 = vsub.s32 %v9349, %v9351
  %v9353 = vrot.slane %v7946, %v9352
  %v9354 = vcombine.low %v9346, %v9353
  %v9356 = vunpack.c.l.s4 1966171168
  %v9357 = vunpack.c.0.s8 %v9356
  %v9358 = vlaneseq
  %v9359 = vshrl.u32 %v9358, 7
  %v9360 = vsub.s32 %v9357, %v9359
  %v9361 = vrot.slane %v9354, %v9360
  %v9362 = vcombine.low %v7948, %v7972
  %v9363 = vcombine.low %v7986, %v7994
  %v9364 = vcombine.low %v7996, %v7979
  %v9365 = vcombine.low %v7993, %v7995
  %v9367 = vunpack.c.l.s4 1966171168
  %v9368 = vunpack.c.0.s8 %v9367
  %v9369 = vlaneseq
  %v9370 = vshrl.u32 %v9369, 7
  %v9371 = vsub.s32 %v9368, %v9370
  %v9372 = vrot.slane %v9362, %v9371
  %v9374 = vunpack.c.l.s4 1966171168
  %v9375 = vunpack.c.0.s8 %v9374
  %v9376 = vlaneseq
  %v9377 = vshrl.u32 %v9376, 7
  %v9378 = vsub.s32 %v9375, %v9377
  %v9379 = vrot.slane %v9363, %v9378
  %v9381 = vunpack.c.l.s4 1966171168
  %v9382 = vunpack.c.0.s8 %v9381
  %v9383 = vlaneseq
  %v9384 = vshrl.u32 %v9383, 7
  %v9385 = vsub.s32 %v9382, %v9384
  %v9386 = vrot.slane %v9364, %v9385
  %v9388 = vunpack.c.l.s4 1966171168
  %v9389 = vunpack.c.0.s8 %v9388
  %v9390 = vlaneseq
  %v9391 = vshrl.u32 %v9390, 7
  %v9392 = vsub.s32 %v9389, %v9391
  %v9393 = vrot.slane %v9365, %v9392
  %v9394 = vcombine.low %v9372, %v9379
  %v9395 = vcombine.low %v9386, %v9393
  %v9397 = vunpack.c.l.s4 1966171168
  %v9398 = vunpack.c.0.s8 %v9397
  %v9399 = vlaneseq
  %v9400 = vshrl.u32 %v9399, 7
  %v9401 = vsub.s32 %v9398, %v9400
  %v9402 = vrot.slane %v9394, %v9401
  %v9404 = vunpack.c.l.s4 1966171168
  %v9405 = vunpack.c.0.s8 %v9404
  %v9406 = vlaneseq
  %v9407 = vshrl.u32 %v9406, 7
  %v9408 = vsub.s32 %v9405, %v9407
  %v9409 = vrot.slane %v9395, %v9408
  %v9410 = vcombine.low %v9402, %v9409
  %v9411 = vcombine.low %v7997, %v8021
  %v9412 = vcombine.low %v8035, %v8043
  %v9413 = vcombine.low %v8045, %v8028
  %v9414 = vcombine.low %v8042, %v8044
  %v9416 = vunpack.c.l.s4 1966171168
  %v9417 = vunpack.c.0.s8 %v9416
  %v9418 = vlaneseq
  %v9419 = vshrl.u32 %v9418, 7
  %v9420 = vsub.s32 %v9417, %v9419
  %v9421 = vrot.slane %v9411, %v9420
  %v9423 = vunpack.c.l.s4 1966171168
  %v9424 = vunpack.c.0.s8 %v9423
  %v9425 = vlaneseq
  %v9426 = vshrl.u32 %v9425, 7
  %v9427 = vsub.s32 %v9424, %v9426
  %v9428 = vrot.slane %v9412, %v9427
  %v9430 = vunpack.c.l.s4 1966171168
  %v9431 = vunpack.c.0.s8 %v9430
  %v9432 = vlaneseq
  %v9433 = vshrl.u32 %v9432, 7
  %v9434 = vsub.s32 %v9431, %v9433
  %v9435 = vrot.slane %v9413, %v9434
  %v9437 = vunpack.c.l.s4 1966171168
  %v9438 = vunpack.c.0.s8 %v9437
  %v9439 = vlaneseq
  %v9440 = vshrl.u32 %v9439, 7
  %v9441 = vsub.s32 %v9438, %v9440
  %v9442 = vrot.slane %v9414, %v9441
  %v9443 = vcombine.low %v9421, %v9428
  %v9444 = vcombine.low %v9435, %v9442
  %v9446 = vunpack.c.l.s4 1966171168
  %v9447 = vunpack.c.0.s8 %v9446
  %v9448 = vlaneseq
  %v9449 = vshrl.u32 %v9448, 7
  %v9450 = vsub.s32 %v9447, %v9449
  %v9451 = vrot.slane %v9443, %v9450
  %v9453 = vunpack.c.l.s4 1966171168
  %v9454 = vunpack.c.0.s8 %v9453
  %v9455 = vlaneseq
  %v9456 = vshrl.u32 %v9455, 7
  %v9457 = vsub.s32 %v9454, %v9456
  %v9458 = vrot.slane %v9444, %v9457
  %v9459 = vcombine.low %v9451, %v9458
  %v9460 = vcombine.low %v8046, %v8070
  %v9462 = vunpack.c.l.s4 1966171168
  %v9463 = vunpack.c.0.s8 %v9462
  %v9464 = vlaneseq
  %v9465 = vshrl.u32 %v9464, 7
  %v9466 = vsub.s32 %v9463, %v9465
  %v9467 = vrot.slane %v9460, %v9466
  %v9469 = vunpack.c.l.s4 1966171168
  %v9470 = vunpack.c.0.s8 %v9469
  %v9471 = vlaneseq
  %v9472 = vshrl.u32 %v9471, 7
  %v9473 = vsub.s32 %v9470, %v9472
  %v9474 = vrot.slane %v8084, %v9473
  %v9475 = vcombine.low %v9467, %v9474
  %v9477 = vunpack.c.l.s4 1966171168
  %v9478 = vunpack.c.0.s8 %v9477
  %v9479 = vlaneseq
  %v9480 = vshrl.u32 %v9479, 7
  %v9481 = vsub.s32 %v9478, %v9480
  %v9482 = vrot.slane %v9475, %v9481
  %v9483 = vcombine.low %v8092, %v8094
  %v9484 = vcombine.low %v8077, %v8091
  %v9485 = vcombine.low %v8093, %v8095
  %v9486 = vcombine.low %v8119, %v8133
  %v9488 = vunpack.c.l.s4 1966171168
  %v9489 = vunpack.c.0.s8 %v9488
  %v9490 = vlaneseq
  %v9491 = vshrl.u32 %v9490, 7
  %v9492 = vsub.s32 %v9489, %v9491
  %v9493 = vrot.slane %v9483, %v9492
  %v9495 = vunpack.c.l.s4 1966171168
  %v9496 = vunpack.c.0.s8 %v9495
  %v9497 = vlaneseq
  %v9498 = vshrl.u32 %v9497, 7
  %v9499 = vsub.s32 %v9496, %v9498
  %v9500 = vrot.slane %v9484, %v9499
  %v9502 = vunpack.c.l.s4 1966171168
  %v9503 = vunpack.c.0.s8 %v9502
  %v9504 = vlaneseq
  %v9505 = vshrl.u32 %v9504, 7
  %v9506 = vsub.s32 %v9503, %v9505
  %v9507 = vrot.slane %v9485, %v9506
  %v9509 = vunpack.c.l.s4 1966171168
  %v9510 = vunpack.c.0.s8 %v9509
  %v9511 = vlaneseq
  %v9512 = vshrl.u32 %v9511, 7
  %v9513 = vsub.s32 %v9510, %v9512
  %v9514 = vrot.slane %v9486, %v9513
  %v9515 = vcombine.low %v9493, %v9500
  %v9516 = vcombine.low %v9507, %v9514
  %v9518 = vunpack.c.l.s4 1966171168
  %v9519 = vunpack.c.0.s8 %v9518
  %v9520 = vlaneseq
  %v9521 = vshrl.u32 %v9520, 7
  %v9522 = vsub.s32 %v9519, %v9521
  %v9523 = vrot.slane %v9515, %v9522
  %v9525 = vunpack.c.l.s4 1966171168
  %v9526 = vunpack.c.0.s8 %v9525
  %v9527 = vlaneseq
  %v9528 = vshrl.u32 %v9527, 7
  %v9529 = vsub.s32 %v9526, %v9528
  %v9530 = vrot.slane %v9516, %v9529
  %v9531 = vcombine.low %v9523, %v9530
  %v9532 = vcombine.low %v8141, %v8143
  %v9533 = vcombine.low %v8126, %v8140
  %v9534 = vcombine.low %v8142, %v8144
  %v9535 = vcombine.low %v8168, %v8182
  %v9537 = vunpack.c.l.s4 1966171168
  %v9538 = vunpack.c.0.s8 %v9537
  %v9539 = vlaneseq
  %v9540 = vshrl.u32 %v9539, 7
  %v9541 = vsub.s32 %v9538, %v9540
  %v9542 = vrot.slane %v9532, %v9541
  %v9544 = vunpack.c.l.s4 1966171168
  %v9545 = vunpack.c.0.s8 %v9544
  %v9546 = vlaneseq
  %v9547 = vshrl.u32 %v9546, 7
  %v9548 = vsub.s32 %v9545, %v9547
  %v9549 = vrot.slane %v9533, %v9548
  %v9551 = vunpack.c.l.s4 1966171168
  %v9552 = vunpack.c.0.s8 %v9551
  %v9553 = vlaneseq
  %v9554 = vshrl.u32 %v9553, 7
  %v9555 = vsub.s32 %v9552, %v9554
  %v9556 = vrot.slane %v9534, %v9555
  %v9558 = vunpack.c.l.s4 1966171168
  %v9559 = vunpack.c.0.s8 %v9558
  %v9560 = vlaneseq
  %v9561 = vshrl.u32 %v9560, 7
  %v9562 = vsub.s32 %v9559, %v9561
  %v9563 = vrot.slane %v9535, %v9562
  %v9564 = vcombine.low %v9542, %v9549
  %v9565 = vcombine.low %v9556, %v9563
  %v9567 = vunpack.c.l.s4 1966171168
  %v9568 = vunpack.c.0.s8 %v9567
  %v9569 = vlaneseq
  %v9570 = vshrl.u32 %v9569, 7
  %v9571 = vsub.s32 %v9568, %v9570
  %v9572 = vrot.slane %v9564, %v9571
  %v9574 = vunpack.c.l.s4 1966171168
  %v9575 = vunpack.c.0.s8 %v9574
  %v9576 = vlaneseq
  %v9577 = vshrl.u32 %v9576, 7
  %v9578 = vsub.s32 %v9575, %v9577
  %v9579 = vrot.slane %v9565, %v9578
  %v9580 = vcombine.low %v9572, %v9579
  %v9581 = vcombine.low %v8190, %v8192
  %v9583 = vunpack.c.l.s4 1966171168
  %v9584 = vunpack.c.0.s8 %v9583
  %v9585 = vlaneseq
  %v9586 = vshrl.u32 %v9585, 7
  %v9587 = vsub.s32 %v9584, %v9586
  %v9588 = vrot.slane %v9581, %v9587
  %v9590 = vunpack.c.l.s4 1966171168
  %v9591 = vunpack.c.0.s8 %v9590
  %v9592 = vlaneseq
  %v9593 = vshrl.u32 %v9592, 7
  %v9594 = vsub.s32 %v9591, %v9593
  %v9595 = vrot.slane %v8175, %v9594
  %v9596 = vcombine.low %v9588, %v9595
  %v9598 = vunpack.c.l.s4 1966171168
  %v9599 = vunpack.c.0.s8 %v9598
  %v9600 = vlaneseq
  %v9601 = vshrl.u32 %v9600, 7
  %v9602 = vsub.s32 %v9599, %v9601
  %v9603 = vrot.slane %v9596, %v9602
  %v9604 = vcombine.low %v8189, %v8191
  %v9605 = vcombine.low %v8193, %v8217
  %v9606 = vcombine.low %v8231, %v8239
  %v9607 = vcombine.low %v8241, %v8224
  %v9609 = vunpack.c.l.s4 1966171168
  %v9610 = vunpack.c.0.s8 %v9609
  %v9611 = vlaneseq
  %v9612 = vshrl.u32 %v9611, 7
  %v9613 = vsub.s32 %v9610, %v9612
  %v9614 = vrot.slane %v9604, %v9613
  %v9616 = vunpack.c.l.s4 1966171168
  %v9617 = vunpack.c.0.s8 %v9616
  %v9618 = vlaneseq
  %v9619 = vshrl.u32 %v9618, 7
  %v9620 = vsub.s32 %v9617, %v9619
  %v9621 = vrot.slane %v9605, %v9620
  %v9623 = vunpack.c.l.s4 1966171168
  %v9624 = vunpack.c.0.s8 %v9623
  %v9625 = vlaneseq
  %v9626 = vshrl.u32 %v9625, 7
  %v9627 = vsub.s32 %v9624, %v9626
  %v9628 = vrot.slane %v9606, %v9627
  %v9630 = vunpack.c.l.s4 1966171168
  %v9631 = vunpack.c.0.s8 %v9630
  %v9632 = vlaneseq
  %v9633 = vshrl.u32 %v9632, 7
  %v9634 = vsub.s32 %v9631, %v9633
  %v9635 = vrot.slane %v9607, %v9634
  %v9636 = vcombine.low %v9614, %v9621
  %v9637 = vcombine.low %v9628, %v9635
  %v9639 = vunpack.c.l.s4 1966171168
  %v9640 = vunpack.c.0.s8 %v9639
  %v9641 = vlaneseq
  %v9642 = vshrl.u32 %v9641, 7
  %v9643 = vsub.s32 %v9640, %v9642
  %v9644 = vrot.slane %v9636, %v9643
  %v9646 = vunpack.c.l.s4 1966171168
  %v9647 = vunpack.c.0.s8 %v9646
  %v9648 = vlaneseq
  %v9649 = vshrl.u32 %v9648, 7
  %v9650 = vsub.s32 %v9647, %v9649
  %v9651 = vrot.slane %v9637, %v9650
  %v9652 = vcombine.low %v9644, %v9651
  %v9653 = vcombine.low %v8238, %v8240
  %v9654 = vcombine.low %v8242, %v8266
  %v9655 = vcombine.low %v8280, %v8288
  %v9656 = vcombine.low %v8290, %v8273
  %v9658 = vunpack.c.l.s4 1966171168
  %v9659 = vunpack.c.0.s8 %v9658
  %v9660 = vlaneseq
  %v9661 = vshrl.u32 %v9660, 7
  %v9662 = vsub.s32 %v9659, %v9661
  %v9663 = vrot.slane %v9653, %v9662
  %v9665 = vunpack.c.l.s4 1966171168
  %v9666 = vunpack.c.0.s8 %v9665
  %v9667 = vlaneseq
  %v9668 = vshrl.u32 %v9667, 7
  %v9669 = vsub.s32 %v9666, %v9668
  %v9670 = vrot.slane %v9654, %v9669
  %v9672 = vunpack.c.l.s4 1966171168
  %v9673 = vunpack.c.0.s8 %v9672
  %v9674 = vlaneseq
  %v9675 = vshrl.u32 %v9674, 7
  %v9676 = vsub.s32 %v9673, %v9675
  %v9677 = vrot.slane %v9655, %v9676
  %v9679 = vunpack.c.l.s4 1966171168
  %v9680 = vunpack.c.0.s8 %v9679
  %v9681 = vlaneseq
  %v9682 = vshrl.u32 %v9681, 7
  %v9683 = vsub.s32 %v9680, %v9682
  %v9684 = vrot.slane %v9656, %v9683
  %v9685 = vcombine.low %v9663, %v9670
  %v9686 = vcombine.low %v9677, %v9684
  %v9688 = vunpack.c.l.s4 1966171168
  %v9689 = vunpack.c.0.s8 %v9688
  %v9690 = vlaneseq
  %v9691 = vshrl.u32 %v9690, 7
  %v9692 = vsub.s32 %v9689, %v9691
  %v9693 = vrot.slane %v9685, %v9692
  %v9695 = vunpack.c.l.s4 1966171168
  %v9696 = vunpack.c.0.s8 %v9695
  %v9697 = vlaneseq
  %v9698 = vshrl.u32 %v9697, 7
  %v9699 = vsub.s32 %v9696, %v9698
  %v9700 = vrot.slane %v9686, %v9699
  %v9701 = vcombine.low %v9693, %v9700
  %v9702 = vcombine.low %v8287, %v8289
  %v9704 = vunpack.c.l.s4 1966171168
  %v9705 = vunpack.c.0.s8 %v9704
  %v9706 = vlaneseq
  %v9707 = vshrl.u32 %v9706, 7
  %v9708 = vsub.s32 %v9705, %v9707
  %v9709 = vrot.slane %v9702, %v9708
  %v9711 = vunpack.c.l.s4 1966171168
  %v9712 = vunpack.c.0.s8 %v9711
  %v9713 = vlaneseq
  %v9714 = vshrl.u32 %v9713, 7
  %v9715 = vsub.s32 %v9712, %v9714
  %v9716 = vrot.slane %v8291, %v9715
  %v9717 = vcombine.low %v9709, %v9716
  %v9719 = vunpack.c.l.s4 1966171168
  %v9720 = vunpack.c.0.s8 %v9719
  %v9721 = vlaneseq
  %v9722 = vshrl.u32 %v9721, 7
  %v9723 = vsub.s32 %v9720, %v9722
  %v9724 = vrot.slane %v9717, %v9723
  %v9725 = vcombine.low %v8315, %v8329
  %v9726 = vcombine.low %v8337, %v8339
  %v9727 = vcombine.low %v8322, %v8336
  %v9728 = vcombine.low %v8338, %v8340
  %v9730 = vunpack.c.l.s4 1966171168
  %v9731 = vunpack.c.0.s8 %v9730
  %v9732 = vlaneseq
  %v9733 = vshrl.u32 %v9732, 7
  %v9734 = vsub.s32 %v9731, %v9733
  %v9735 = vrot.slane %v9725, %v9734
  %v9737 = vunpack.c.l.s4 1966171168
  %v9738 = vunpack.c.0.s8 %v9737
  %v9739 = vlaneseq
  %v9740 = vshrl.u32 %v9739, 7
  %v9741 = vsub.s32 %v9738, %v9740
  %v9742 = vrot.slane %v9726, %v9741
  %v9744 = vunpack.c.l.s4 1966171168
  %v9745 = vunpack.c.0.s8 %v9744
  %v9746 = vlaneseq
  %v9747 = vshrl.u32 %v9746, 7
  %v9748 = vsub.s32 %v9745, %v9747
  %v9749 = vrot.slane %v9727, %v9748
  %v9751 = vunpack.c.l.s4 1966171168
  %v9752 = vunpack.c.0.s8 %v9751
  %v9753 = vlaneseq
  %v9754 = vshrl.u32 %v9753, 7
  %v9755 = vsub.s32 %v9752, %v9754
  %v9756 = vrot.slane %v9728, %v9755
  %v9757 = vcombine.low %v9735, %v9742
  %v9758 = vcombine.low %v9749, %v9756
  %v9760 = vunpack.c.l.s4 1966171168
  %v9761 = vunpack.c.0.s8 %v9760
  %v9762 = vlaneseq
  %v9763 = vshrl.u32 %v9762, 7
  %v9764 = vsub.s32 %v9761, %v9763
  %v9765 = vrot.slane %v9757, %v9764
  %v9767 = vunpack.c.l.s4 1966171168
  %v9768 = vunpack.c.0.s8 %v9767
  %v9769 = vlaneseq
  %v9770 = vshrl.u32 %v9769, 7
  %v9771 = vsub.s32 %v9768, %v9770
  %v9772 = vrot.slane %v9758, %v9771
  %v9773 = vcombine.low %v9765, %v9772
  %v9774 = vcombine.low %v8364, %v8378
  %v9775 = vcombine.low %v8386, %v8388
  %v9776 = vcombine.low %v8371, %v8385
  %v9777 = vcombine.low %v8387, %v8389
  %v9779 = vunpack.c.l.s4 1966171168
  %v9780 = vunpack.c.0.s8 %v9779
  %v9781 = vlaneseq
  %v9782 = vshrl.u32 %v9781, 7
  %v9783 = vsub.s32 %v9780, %v9782
  %v9784 = vrot.slane %v9774, %v9783
  %v9786 = vunpack.c.l.s4 1966171168
  %v9787 = vunpack.c.0.s8 %v9786
  %v9788 = vlaneseq
  %v9789 = vshrl.u32 %v9788, 7
  %v9790 = vsub.s32 %v9787, %v9789
  %v9791 = vrot.slane %v9775, %v9790
  %v9793 = vunpack.c.l.s4 1966171168
  %v9794 = vunpack.c.0.s8 %v9793
  %v9795 = vlaneseq
  %v9796 = vshrl.u32 %v9795, 7
  %v9797 = vsub.s32 %v9794, %v9796
  %v9798 = vrot.slane %v9776, %v9797
  %v9800 = vunpack.c.l.s4 1966171168
  %v9801 = vunpack.c.0.s8 %v9800
  %v9802 = vlaneseq
  %v9803 = vshrl.u32 %v9802, 7
  %v9804 = vsub.s32 %v9801, %v9803
  %v9805 = vrot.slane %v9777, %v9804
  %v9806 = vcombine.low %v9784, %v9791
  %v9807 = vcombine.low %v9798, %v9805
  %v9809 = vunpack.c.l.s4 1966171168
  %v9810 = vunpack.c.0.s8 %v9809
  %v9811 = vlaneseq
  %v9812 = vshrl.u32 %v9811, 7
  %v9813 = vsub.s32 %v9810, %v9812
  %v9814 = vrot.slane %v9806, %v9813
  %v9816 = vunpack.c.l.s4 1966171168
  %v9817 = vunpack.c.0.s8 %v9816
  %v9818 = vlaneseq
  %v9819 = vshrl.u32 %v9818, 7
  %v9820 = vsub.s32 %v9817, %v9819
  %v9821 = vrot.slane %v9807, %v9820
  %v9822 = vcombine.low %v9814, %v9821
  %v9823 = vcombine.low %v8413, %v8427
  %v9825 = vunpack.c.l.s4 1966171168
  %v9826 = vunpack.c.0.s8 %v9825
  %v9827 = vlaneseq
  %v9828 = vshrl.u32 %v9827, 7
  %v9829 = vsub.s32 %v9826, %v9828
  %v9830 = vrot.slane %v9823, %v9829
  %v9832 = vunpack.c.l.s4 1966171168
  %v9833 = vunpack.c.0.s8 %v9832
  %v9834 = vlaneseq
  %v9835 = vshrl.u32 %v9834, 7
  %v9836 = vsub.s32 %v9833, %v9835
  %v9837 = vrot.slane %v8435, %v9836
  %v9838 = vcombine.low %v9830, %v9837
  %v9840 = vunpack.c.l.s4 1966171168
  %v9841 = vunpack.c.0.s8 %v9840
  %v9842 = vlaneseq
  %v9843 = vshrl.u32 %v9842, 7
  %v9844 = vsub.s32 %v9841, %v9843
  %v9845 = vrot.slane %v9838, %v9844
  %v9846 = vcombine.low %v8437, %v8420
  %v9847 = vcombine.low %v8434, %v8436
  %v9848 = vcombine.low %v8438, %v8462
  %v9849 = vcombine.low %v8476, %v8484
  %v9851 = vunpack.c.l.s4 1966171168
  %v9852 = vunpack.c.0.s8 %v9851
  %v9853 = vlaneseq
  %v9854 = vshrl.u32 %v9853, 7
  %v9855 = vsub.s32 %v9852, %v9854
  %v9856 = vrot.slane %v9846, %v9855
  %v9858 = vunpack.c.l.s4 1966171168
  %v9859 = vunpack.c.0.s8 %v9858
  %v9860 = vlaneseq
  %v9861 = vshrl.u32 %v9860, 7
  %v9862 = vsub.s32 %v9859, %v9861
  %v9863 = vrot.slane %v9847, %v9862
  %v9865 = vunpack.c.l.s4 1966171168
  %v9866 = vunpack.c.0.s8 %v9865
  %v9867 = vlaneseq
  %v9868 = vshrl.u32 %v9867, 7
  %v9869 = vsub.s32 %v9866, %v9868
  %v9870 = vrot.slane %v9848, %v9869
  %v9872 = vunpack.c.l.s4 1966171168
  %v9873 = vunpack.c.0.s8 %v9872
  %v9874 = vlaneseq
  %v9875 = vshrl.u32 %v9874, 7
  %v9876 = vsub.s32 %v9873, %v9875
  %v9877 = vrot.slane %v9849, %v9876
  %v9878 = vcombine.low %v9856, %v9863
  %v9879 = vcombine.low %v9870, %v9877
  %v9881 = vunpack.c.l.s4 1966171168
  %v9882 = vunpack.c.0.s8 %v9881
  %v9883 = vlaneseq
  %v9884 = vshrl.u32 %v9883, 7
  %v9885 = vsub.s32 %v9882, %v9884
  %v9886 = vrot.slane %v9878, %v9885
  %v9888 = vunpack.c.l.s4 1966171168
  %v9889 = vunpack.c.0.s8 %v9888
  %v9890 = vlaneseq
  %v9891 = vshrl.u32 %v9890, 7
  %v9892 = vsub.s32 %v9889, %v9891
  %v9893 = vrot.slane %v9879, %v9892
  %v9894 = vcombine.low %v9886, %v9893
  %v9895 = vcombine.low %v8486, %v8469
  %v9896 = vcombine.low %v8483, %v8485
  %v9897 = vcombine.low %v8487, %v8511
  %v9898 = vcombine.low %v8525, %v8533
  %v9900 = vunpack.c.l.s4 1966171168
  %v9901 = vunpack.c.0.s8 %v9900
  %v9902 = vlaneseq
  %v9903 = vshrl.u32 %v9902, 7
  %v9904 = vsub.s32 %v9901, %v9903
  %v9905 = vrot.slane %v9895, %v9904
  %v9907 = vunpack.c.l.s4 1966171168
  %v9908 = vunpack.c.0.s8 %v9907
  %v9909 = vlaneseq
  %v9910 = vshrl.u32 %v9909, 7
  %v9911 = vsub.s32 %v9908, %v9910
  %v9912 = vrot.slane %v9896, %v9911
  %v9914 = vunpack.c.l.s4 1966171168
  %v9915 = vunpack.c.0.s8 %v9914
  %v9916 = vlaneseq
  %v9917 = vshrl.u32 %v9916, 7
  %v9918 = vsub.s32 %v9915, %v9917
  %v9919 = vrot.slane %v9897, %v9918
  %v9921 = vunpack.c.l.s4 1966171168
  %v9922 = vunpack.c.0.s8 %v9921
  %v9923 = vlaneseq
  %v9924 = vshrl.u32 %v9923, 7
  %v9925 = vsub.s32 %v9922, %v9924
  %v9926 = vrot.slane %v9898, %v9925
  %v9927 = vcombine.low %v9905, %v9912
  %v9928 = vcombine.low %v9919, %v9926
  %v9930 = vunpack.c.l.s4 1966171168
  %v9931 = vunpack.c.0.s8 %v9930
  %v9932 = vlaneseq
  %v9933 = vshrl.u32 %v9932, 7
  %v9934 = vsub.s32 %v9931, %v9933
  %v9935 = vrot.slane %v9927, %v9934
  %v9937 = vunpack.c.l.s4 1966171168
  %v9938 = vunpack.c.0.s8 %v9937
  %v9939 = vlaneseq
  %v9940 = vshrl.u32 %v9939, 7
  %v9941 = vsub.s32 %v9938, %v9940
  %v9942 = vrot.slane %v9928, %v9941
  %v9943 = vcombine.low %v9935, %v9942
  %v9944 = vcombine.low %v8535, %v8518
  %v9946 = vunpack.c.l.s4 1966171168
  %v9947 = vunpack.c.0.s8 %v9946
  %v9948 = vlaneseq
  %v9949 = vshrl.u32 %v9948, 7
  %v9950 = vsub.s32 %v9947, %v9949
  %v9951 = vrot.slane %v9944, %v9950
  %v9953 = vunpack.c.l.s4 1966171168
  %v9954 = vunpack.c.0.s8 %v9953
  %v9955 = vlaneseq
  %v9956 = vshrl.u32 %v9955, 7
  %v9957 = vsub.s32 %v9954, %v9956
  %v9958 = vrot.slane %v8532, %v9957
  %v9959 = vcombine.low %v9951, %v9958
  %v9961 = vunpack.c.l.s4 1966171168
  %v9962 = vunpack.c.0.s8 %v9961
  %v9963 = vlaneseq
  %v9964 = vshrl.u32 %v9963, 7
  %v9965 = vsub.s32 %v9962, %v9964
  %v9966 = vrot.slane %v9959, %v9965
  %v9967 = vcombine.low %v8534, %v8536
  %v9968 = vcombine.low %v8560, %v8574
  %v9969 = vcombine.low %v8582, %v8584
  %v9970 = vcombine.low %v8567, %v8581
  %v9972 = vunpack.c.l.s4 1966171168
  %v9973 = vunpack.c.0.s8 %v9972
  %v9974 = vlaneseq
  %v9975 = vshrl.u32 %v9974, 7
  %v9976 = vsub.s32 %v9973, %v9975
  %v9977 = vrot.slane %v9967, %v9976
  %v9979 = vunpack.c.l.s4 1966171168
  %v9980 = vunpack.c.0.s8 %v9979
  %v9981 = vlaneseq
  %v9982 = vshrl.u32 %v9981, 7
  %v9983 = vsub.s32 %v9980, %v9982
  %v9984 = vrot.slane %v9968, %v9983
  %v9986 = vunpack.c.l.s4 1966171168
  %v9987 = vunpack.c.0.s8 %v9986
  %v9988 = vlaneseq
  %v9989 = vshrl.u32 %v9988, 7
  %v9990 = vsub.s32 %v9987, %v9989
  %v9991 = vrot.slane %v9969, %v9990
  %v9993 = vunpack.c.l.s4 1966171168
  %v9994 = vunpack.c.0.s8 %v9993
  %v9995 = vlaneseq
  %v9996 = vshrl.u32 %v9995, 7
  %v9997 = vsub.s32 %v9994, %v9996
  %v9998 = vrot.slane %v9970, %v9997
  %v9999 = vcombine.low %v9977, %v9984
  %v10000 = vcombine.low %v9991, %v9998
  %v10002 = vunpack.c.l.s4 1966171168
  %v10003 = vunpack.c.0.s8 %v10002
  %v10004 = vlaneseq
  %v10005 = vshrl.u32 %v10004, 7
  %v10006 = vsub.s32 %v10003, %v10005
  %v10007 = vrot.slane %v9999, %v10006
  %v10009 = vunpack.c.l.s4 1966171168
  %v10010 = vunpack.c.0.s8 %v10009
  %v10011 = vlaneseq
  %v10012 = vshrl.u32 %v10011, 7
  %v10013 = vsub.s32 %v10010, %v10012
  %v10014 = vrot.slane %v10000, %v10013
  %v10015 = vcombine.low %v10007, %v10014
  %v10016 = vcombine.low %v8583, %v8585
  %v10017 = vcombine.low %v8609, %v8623
  %v10018 = vcombine.low %v8631, %v8633
  %v10019 = vcombine.low %v8616, %v8630
  %v10021 = vunpack.c.l.s4 1966171168
  %v10022 = vunpack.c.0.s8 %v10021
  %v10023 = vlaneseq
  %v10024 = vshrl.u32 %v10023, 7
  %v10025 = vsub.s32 %v10022, %v10024
  %v10026 = vrot.slane %v10016, %v10025
  %v10028 = vunpack.c.l.s4 1966171168
  %v10029 = vunpack.c.0.s8 %v10028
  %v10030 = vlaneseq
  %v10031 = vshrl.u32 %v10030, 7
  %v10032 = vsub.s32 %v10029, %v10031
  %v10033 = vrot.slane %v10017, %v10032
  %v10035 = vunpack.c.l.s4 1966171168
  %v10036 = vunpack.c.0.s8 %v10035
  %v10037 = vlaneseq
  %v10038 = vshrl.u32 %v10037, 7
  %v10039 = vsub.s32 %v10036, %v10038
  %v10040 = vrot.slane %v10018, %v10039
  %v10042 = vunpack.c.l.s4 1966171168
  %v10043 = vunpack.c.0.s8 %v10042
  %v10044 = vlaneseq
  %v10045 = vshrl.u32 %v10044, 7
  %v10046 = vsub.s32 %v10043, %v10045
  %v10047 = vrot.slane %v10019, %v10046
  %v10048 = vcombine.low %v10026, %v10033
  %v10049 = vcombine.low %v10040, %v10047
  %v10051 = vunpack.c.l.s4 1966171168
  %v10052 = vunpack.c.0.s8 %v10051
  %v10053 = vlaneseq
  %v10054 = vshrl.u32 %v10053, 7
  %v10055 = vsub.s32 %v10052, %v10054
  %v10056 = vrot.slane %v10048, %v10055
  %v10058 = vunpack.c.l.s4 1966171168
  %v10059 = vunpack.c.0.s8 %v10058
  %v10060 = vlaneseq
  %v10061 = vshrl.u32 %v10060, 7
  %v10062 = vsub.s32 %v10059, %v10061
  %v10063 = vrot.slane %v10049, %v10062
  %v10064 = vcombine.low %v10056, %v10063
  %v10065 = vcombine.low %v8632, %v8634
  %v10067 = vunpack.c.l.s4 1966171168
  %v10068 = vunpack.c.0.s8 %v10067
  %v10069 = vlaneseq
  %v10070 = vshrl.u32 %v10069, 7
  %v10071 = vsub.s32 %v10068, %v10070
  %v10072 = vrot.slane %v10065, %v10071
  %v10074 = vunpack.c.l.s4 1966171168
  %v10075 = vunpack.c.0.s8 %v10074
  %v10076 = vlaneseq
  %v10077 = vshrl.u32 %v10076, 7
  %v10078 = vsub.s32 %v10075, %v10077
  %v10079 = vrot.slane %v8658, %v10078
  %v10080 = vcombine.low %v10072, %v10079
  %v10082 = vunpack.c.l.s4 1966171168
  %v10083 = vunpack.c.0.s8 %v10082
  %v10084 = vlaneseq
  %v10085 = vshrl.u32 %v10084, 7
  %v10086 = vsub.s32 %v10083, %v10085
  %v10087 = vrot.slane %v10080, %v10086
  %v10088 = vcombine.low %v8672, %v8680
  %v10089 = vcombine.low %v8682, %v8665
  %v10090 = vcombine.low %v8679, %v8681
  %v10091 = vcombine.low %v8683, %v8707
  %v10093 = vunpack.c.l.s4 1966171168
  %v10094 = vunpack.c.0.s8 %v10093
  %v10095 = vlaneseq
  %v10096 = vshrl.u32 %v10095, 7
  %v10097 = vsub.s32 %v10094, %v10096
  %v10098 = vrot.slane %v10088, %v10097
  %v10100 = vunpack.c.l.s4 1966171168
  %v10101 = vunpack.c.0.s8 %v10100
  %v10102 = vlaneseq
  %v10103 = vshrl.u32 %v10102, 7
  %v10104 = vsub.s32 %v10101, %v10103
  %v10105 = vrot.slane %v10089, %v10104
  %v10107 = vunpack.c.l.s4 1966171168
  %v10108 = vunpack.c.0.s8 %v10107
  %v10109 = vlaneseq
  %v10110 = vshrl.u32 %v10109, 7
  %v10111 = vsub.s32 %v10108, %v10110
  %v10112 = vrot.slane %v10090, %v10111
  %v10114 = vunpack.c.l.s4 1966171168
  %v10115 = vunpack.c.0.s8 %v10114
  %v10116 = vlaneseq
  %v10117 = vshrl.u32 %v10116, 7
  %v10118 = vsub.s32 %v10115, %v10117
  %v10119 = vrot.slane %v10091, %v10118
  %v10120 = vcombine.low %v10098, %v10105
  %v10121 = vcombine.low %v10112, %v10119
  %v10123 = vunpack.c.l.s4 1966171168
  %v10124 = vunpack.c.0.s8 %v10123
  %v10125 = vlaneseq
  %v10126 = vshrl.u32 %v10125, 7
  %v10127 = vsub.s32 %v10124, %v10126
  %v10128 = vrot.slane %v10120, %v10127
  %v10130 = vunpack.c.l.s4 1966171168
  %v10131 = vunpack.c.0.s8 %v10130
  %v10132 = vlaneseq
  %v10133 = vshrl.u32 %v10132, 7
  %v10134 = vsub.s32 %v10131, %v10133
  %v10135 = vrot.slane %v10121, %v10134
  %v10136 = vcombine.low %v10128, %v10135
  %v10137 = vcombine.low %v8721, %v8729
  %v10138 = vcombine.low %v8731, %v8714
  %v10139 = vcombine.low %v8728, %v8730
  %v10140 = vcombine.low %v8732, %v8747
  %v10142 = vunpack.c.l.s4 1966171168
  %v10143 = vunpack.c.0.s8 %v10142
  %v10144 = vlaneseq
  %v10145 = vshrl.u32 %v10144, 7
  %v10146 = vsub.s32 %v10143, %v10145
  %v10147 = vrot.slane %v10137, %v10146
  %v10149 = vunpack.c.l.s4 1966171168
  %v10150 = vunpack.c.0.s8 %v10149
  %v10151 = vlaneseq
  %v10152 = vshrl.u32 %v10151, 7
  %v10153 = vsub.s32 %v10150, %v10152
  %v10154 = vrot.slane %v10138, %v10153
  %v10156 = vunpack.c.l.s4 1966171168
  %v10157 = vunpack.c.0.s8 %v10156
  %v10158 = vlaneseq
  %v10159 = vshrl.u32 %v10158, 7
  %v10160 = vsub.s32 %v10157, %v10159
  %v10161 = vrot.slane %v10139, %v10160
  %v10163 = vunpack.c.l.s4 1966171168
  %v10164 = vunpack.c.0.s8 %v10163
  %v10165 = vlaneseq
  %v10166 = vshrl.u32 %v10165, 7
  %v10167 = vsub.s32 %v10164, %v10166
  %v10168 = vrot.slane %v10140, %v10167
  %v10169 = vcombine.low %v10147, %v10154
  %v10170 = vcombine.low %v10161, %v10168
  %v10172 = vunpack.c.l.s4 1966171168
  %v10173 = vunpack.c.0.s8 %v10172
  %v10174 = vlaneseq
  %v10175 = vshrl.u32 %v10174, 7
  %v10176 = vsub.s32 %v10173, %v10175
  %v10177 = vrot.slane %v10169, %v10176
  %v10179 = vunpack.c.l.s4 1966171168
  %v10180 = vunpack.c.0.s8 %v10179
  %v10181 = vlaneseq
  %v10182 = vshrl.u32 %v10181, 7
  %v10183 = vsub.s32 %v10180, %v10182
  %v10184 = vrot.slane %v10170, %v10183
  %v10185 = vcombine.low %v10177, %v10184
  %v10186 = vcombine.low %v8754, %v8755
  %v10188 = vunpack.c.l.s4 1966171168
  %v10189 = vunpack.c.0.s8 %v10188
  %v10190 = vlaneseq
  %v10191 = vshrl.u32 %v10190, 7
  %v10192 = vsub.s32 %v10189, %v10191
  %v10193 = vrot.slane %v10186, %v10192
  %v10195 = vunpack.c.l.s4 1966171168
  %v10196 = vunpack.c.0.s8 %v10195
  %v10197 = vlaneseq
  %v10198 = vshrl.u32 %v10197, 7
  %v10199 = vsub.s32 %v10196, %v10198
  %v10200 = vrot.slane %v8756, %v10199
  %v10201 = vcombine.low %v10193, %v10200
  %v10203 = vunpack.c.l.s4 1966171168
  %v10204 = vunpack.c.0.s8 %v10203
  %v10205 = vlaneseq
  %v10206 = vshrl.u32 %v10205, 7
  %v10207 = vsub.s32 %v10204, %v10206
  %v10208 = vrot.slane %v10201, %v10207
  %vm10245 = vcmask 80896
  %10246 = vst.msk [vmem:[%s3] sm:$0xff] %vm10245, %v8805
  %10247 = vst.msk [vmem:[%s3 + $0x8] sm:$0xff] %vm10245, %v8854
  %vm10248 = vcmask 75776
  %10249 = vst.msk [vmem:[%s3 + $0x10] sm:$0x7] %vm10248, %v8877
  %10250 = vst.msk [vmem:[%s3 + $0x18] sm:$0xff] %vm10245, %v8926
  %10251 = vst.msk [vmem:[%s3 + $0x20] sm:$0xff] %vm10245, %v8975
  %10252 = vst.msk [vmem:[%s3 + $0x28] sm:$0x7] %vm10248, %v8998
  %10253 = vst.msk [vmem:[%s3 + $0x30] sm:$0xff] %vm10245, %v9047
  %10254 = vst.msk [vmem:[%s3 + $0x38] sm:$0xff] %vm10245, %v9096
  %10255 = vst.msk [vmem:[%s3 + $0x40] sm:$0x7] %vm10248, %v9119
  %10256 = vst.msk [vmem:[%s3 + $0x48] sm:$0xff] %vm10245, %v9168
  %10257 = vst.msk [vmem:[%s3 + $0x50] sm:$0xff] %vm10245, %v9217
  %10258 = vst.msk [vmem:[%s3 + $0x58] sm:$0x7] %vm10248, %v9240
  %10259 = vst.msk [vmem:[%s3 + $0x60] sm:$0xff] %vm10245, %v9289
  %10260 = vst.msk [vmem:[%s3 + $0x68] sm:$0xff] %vm10245, %v9338
  %10261 = vst.msk [vmem:[%s3 + $0x70] sm:$0x7] %vm10248, %v9361
  %10262 = vst.msk [vmem:[%s3 + $0x78] sm:$0xff] %vm10245, %v9410
  %10263 = vst.msk [vmem:[%s3 + $0x80] sm:$0xff] %vm10245, %v9459
  %10264 = vst.msk [vmem:[%s3 + $0x88] sm:$0x7] %vm10248, %v9482
  %10265 = vst.msk [vmem:[%s3 + $0x90] sm:$0xff] %vm10245, %v9531
  %10266 = vst.msk [vmem:[%s3 + $0x98] sm:$0xff] %vm10245, %v9580
  %10267 = vst.msk [vmem:[%s3 + $0xa0] sm:$0x7] %vm10248, %v9603
  %10268 = vst.msk [vmem:[%s3 + $0xa8] sm:$0xff] %vm10245, %v9652
  %10269 = vst.msk [vmem:[%s3 + $0xb0] sm:$0xff] %vm10245, %v9701
  %10270 = vst.msk [vmem:[%s3 + $0xb8] sm:$0x7] %vm10248, %v9724
  %10271 = vst.msk [vmem:[%s3 + $0xc0] sm:$0xff] %vm10245, %v9773
  %10272 = vst.msk [vmem:[%s3 + $0xc8] sm:$0xff] %vm10245, %v9822
  %10273 = vst.msk [vmem:[%s3 + $0xd0] sm:$0x7] %vm10248, %v9845
  %10274 = vst.msk [vmem:[%s3 + $0xd8] sm:$0xff] %vm10245, %v9894
  %10275 = vst.msk [vmem:[%s3 + $0xe0] sm:$0xff] %vm10245, %v9943
  %10276 = vst.msk [vmem:[%s3 + $0xe8] sm:$0x7] %vm10248, %v9966
  %10277 = vst.msk [vmem:[%s3 + $0xf0] sm:$0xff] %vm10245, %v10015
  %10278 = vst.msk [vmem:[%s3 + $0xf8] sm:$0xff] %vm10245, %v10064
  %10279 = vst.msk [vmem:[%s3 + $0x100] sm:$0x7] %vm10248, %v10087
  %10280 = vst.msk [vmem:[%s3 + $0x108] sm:$0xff] %vm10245, %v10136
  %10281 = vst.msk [vmem:[%s3 + $0x110] sm:$0xff] %vm10245, %v10185
  %10282 = vst.msk [vmem:[%s3 + $0x118] sm:$0x7] %vm10248, %v10208
  // Predicated region
  $region14: #{tpu_custom_call.1} parent=0 // pred_check
    _
  $region15: #{tpu_custom_call.1} parent=0 // pred_check_branch
    %10284 = sbr.rel (0) target = $region17
  $region16: #{tpu_custom_call.1} parent=0 // pred_region
    _
  $region17: #{tpu_custom_call.1} parent=0 // pred_fallthru
    _
  // Predicated region
  $region18: #{tpu_custom_call.1} parent=0 // pred_check
    _
  $region19: #{tpu_custom_call.1} parent=0 // pred_check_branch
    %10286 = sbr.rel (0) target = $region21
  $region20: #{tpu_custom_call.1} parent=0 // pred_region
    _
  $region21: #{tpu_custom_call.1} parent=0 // pred_fallthru
    _

</llo_original>
